<compile_context>
chip_gen: v7x
topology: tpu7x:2x2x1
jax: 0.10.0
libtpu: 0.0.40
codegen_flags: <defaults>
</compile_context>

<pallas_src>
import functools

import jax
import jax.numpy as jnp
from jax import lax
from jax.experimental import pallas as pl
from jax.experimental.pallas import tpu as pltpu


# ----------------------------------------------------------------------------
# Fused TemporalBlock kernel (one grid step == one (batch-chunk, T-tile) tile)
# ----------------------------------------------------------------------------
def _temporal_block_kernel(x_ref, *rest, K, dilation, t_tile, b_blk,
                           has_ds, has_carry, compute_dtype):
    rest = list(rest)
    w1_ref = rest.pop(0)
    b1_ref = rest.pop(0)
    w2_ref = rest.pop(0)
    b2_ref = rest.pop(0)
    wds_ref = rest.pop(0) if has_ds else None
    bds_ref = rest.pop(0) if has_ds else None
    o_ref = rest.pop(0)
    xw_scr = rest.pop(0)                       # (b_blk, t_tile + 2*pad, Cin) bf16
    h1_scr = rest.pop(0)                       # (b_blk, t_tile + pad,  Cout) bf16
    carry_ref = rest.pop(0) if has_carry else None

    cin = x_ref.shape[-1]
    cout = o_ref.shape[-1]
    pad = (K - 1) * dilation                   # causal left pad of each conv
    te = t_tile + pad                          # h1 rows needed by conv2
    i_t = pl.program_id(1)

    x_cur = x_ref[...]                         # (b_blk, t_tile, Cin) f32

    # ---- causal x window on [t0 - 2*pad, t0 + t_tile), compute_dtype --------
    if pad > 0:
        if has_carry:
            @pl.when(i_t == 0)
            def _():                           # zeros before global t = 0
                xw_scr[:, 0:2 * pad, :] = jnp.zeros(
                    (b_blk, 2 * pad, cin), compute_dtype)

            @pl.when(i_t > 0)
            def _():                           # halo carried from previous step
                xw_scr[:, 0:2 * pad, :] = carry_ref[...]
        else:
            xw_scr[:, 0:2 * pad, :] = jnp.zeros(
                (b_blk, 2 * pad, cin), compute_dtype)
    xw_scr[:, 2 * pad:, :] = x_cur.astype(compute_dtype)   # cast once at write
    if has_carry:
        # last 2*pad rows of this window == halo of the next T step (this also
        # carries the leading zeros forward when t_tile < 2*pad).
        carry_ref[...] = xw_scr[:, t_tile:, :]

    # ---- conv1: K accumulating MXU matmuls, bias, relu ----------------------
    acc1 = jnp.zeros((b_blk, te, cout), jnp.float32)
    for k in range(K):
        acc1 = acc1 + jnp.einsum(
            "btc,co->bto", xw_scr[:, k * dilation:k * dilation + te, :],
            w1_ref[k], preferred_element_type=jnp.float32)
    h1 = jnp.maximum(acc1 + b1_ref[...], 0.0)               # relu (dropout=id)
    h1_scr[...] = h1.astype(compute_dtype)

    if pad > 0:
        # conv2's causal pad: h1 rows that fall before global t=0 must be
        # exactly zero.  Only tiles whose h1 window starts before 0 need this.
        @pl.when(i_t * t_tile < pad)
        def _():
            t_glob = (i_t * t_tile - pad
                      + lax.broadcasted_iota(jnp.int32, (1, te, 1), 1))
            h1_scr[...] = jnp.where(t_glob >= 0, h1, 0.0).astype(compute_dtype)

    # ---- conv2: K accumulating MXU matmuls, bias, relu ----------------------
    acc2 = jnp.zeros((b_blk, t_tile, cout), jnp.float32)
    for k in range(K):
        acc2 = acc2 + jnp.einsum(
            "btc,co->bto", h1_scr[:, k * dilation:k * dilation + t_tile, :],
            w2_ref[k], preferred_element_type=jnp.float32)
    h2 = jnp.maximum(acc2 + b2_ref[...], 0.0)

    # ---- residual branch (optional fused 1x1 conv) + final relu -------------
    if has_ds:
        res = jnp.einsum("btc,co->bto", xw_scr[:, 2 * pad:, :], wds_ref[...],
                         preferred_element_type=jnp.float32) + bds_ref[...]
    else:
        res = x_cur                                          # identity, f32
    o_ref[...] = jnp.maximum(h2 + res, 0.0).astype(o_ref.dtype)


# ----------------------------------------------------------------------------
# Tiling helpers
# ----------------------------------------------------------------------------
def _lane_pad(c):
    return max(128, ((c + 127) // 128) * 128)


def _choose_t_tile(T, target):
    """Largest divisor of T that is a multiple of 8 sublanes and <= target.
    (The halo is carried in scratch, so there is no t_tile >= 2*pad rule.)"""
    if T <= target:
        return T
    for cand in range(target, 7, -1):
        if T % cand == 0 and cand % 8 == 0:
            return cand
    return T   # no 8-aligned divisor <= target: single full-sequence tile


def _choose_b_block(B, t_tile, cin, cout, pad, itemsize, budget=8 << 20):
    """Largest divisor of B whose lane-padded VMEM footprint fits the budget."""
    cin_p, cout_p = _lane_pad(cin), _lane_pad(cout)
    for bb in range(B, 0, -1):
        if B % bb:
            continue
        io = 2 * bb * t_tile * (cin_p + cout_p) * 4          # dbl-buffered blocks
        scr = bb * ((t_tile + 2 * pad) * cin_p + (t_tile + pad) * cout_p
                    + 2 * pad * cin_p) * itemsize
        if io + scr <= budget:
            return bb
    return 1


# ----------------------------------------------------------------------------
# One fused TemporalBlock
# ----------------------------------------------------------------------------
def temporal_block(x, layer, *, dilation, t_tile_target=1024,
                   compute_dtype=jnp.bfloat16):
    """Fused TemporalBlock.  x: (B, T, Cin) f32 -> (B, T, Cout) f32."""
    B, T, Cin = x.shape
    w1 = layer["w1"]
    K, _, Cout = w1.shape
    pad = (K - 1) * dilation
    itemsize = jnp.dtype(compute_dtype).itemsize

    t_tile = _choose_t_tile(T, t_tile_target)
    n_t = T // t_tile
    b_blk = _choose_b_block(B, t_tile, Cin, Cout, pad, itemsize)
    n_b = B // b_blk
    has_ds = "w_ds" in layer
    has_carry = (pad > 0) and (n_t > 1)

    kernel = functools.partial(
        _temporal_block_kernel, K=K, dilation=dilation, t_tile=t_tile,
        b_blk=b_blk, has_ds=has_ds, has_carry=has_carry,
        compute_dtype=compute_dtype)

    in_specs = [
        pl.BlockSpec((b_blk, t_tile, Cin), lambda b, t: (b, t, 0)),
        pl.BlockSpec((K, Cin, Cout), lambda b, t: (0, 0, 0)),
        pl.BlockSpec((1, Cout), lambda b, t: (0, 0)),
        pl.BlockSpec((K, Cout, Cout), lambda b, t: (0, 0, 0)),
        pl.BlockSpec((1, Cout), lambda b, t: (0, 0)),
    ]
    args = [x,
            w1.astype(compute_dtype),
            layer["b1"].reshape(1, Cout),
            layer["w2"].astype(compute_dtype),
            layer["b2"].reshape(1, Cout)]
    if has_ds:
        in_specs += [pl.BlockSpec((Cin, Cout), lambda b, t: (0, 0)),
                     pl.BlockSpec((1, Cout), lambda b, t: (0, 0))]
        args += [layer["w_ds"].reshape(Cin, Cout).astype(compute_dtype),
                 layer["b_ds"].reshape(1, Cout)]

    scratch_shapes = [
        pltpu.VMEM((b_blk, t_tile + 2 * pad, Cin), compute_dtype),  # x window
        pltpu.VMEM((b_blk, t_tile + pad, Cout), compute_dtype),     # h1
    ]
    if has_carry:
        scratch_shapes.append(pltpu.VMEM((b_blk, 2 * pad, Cin), compute_dtype))

    # VMEM limit derived from the (lane-padded) working set + headroom.
    cin_p, cout_p = _lane_pad(Cin), _lane_pad(Cout)
    est = (2 * b_blk * t_tile * (cin_p + cout_p) * 4
           + b_blk * ((t_tile + 2 * pad) * cin_p + (t_tile + pad) * cout_p
                      + (2 * pad * cin_p if has_carry else 0)) * itemsize
           + (K * cin_p * cout_p + K * cout_p * cout_p
              + (cin_p * cout_p if has_ds else 0)) * itemsize)
    vmem_limit = int(min(max(2 * est + (4 << 20), 16 << 20), 48 << 20))

    flops = 2 * B * T * (K * Cin * Cout + K * Cout * Cout
                         + (Cin * Cout if has_ds else 0))
    bytes_accessed = (4 * B * T * (Cin + Cout)
                      + itemsize * (K * Cin * Cout + K * Cout * Cout
                                    + (Cin * Cout if has_ds else 0))
                      + 4 * Cout * (3 if has_ds else 2))

    return pl.pallas_call(
        kernel,
        out_shape=jax.ShapeDtypeStruct((B, T, Cout), jnp.float32),
        grid=(n_b, n_t),
        in_specs=in_specs,
        out_specs=pl.BlockSpec((b_blk, t_tile, Cout), lambda b, t: (b, t, 0)),
        scratch_shapes=scratch_shapes,
        compiler_params=pltpu.CompilerParams(
            # T axis carries the halo in scratch -> must be sequential.
            dimension_semantics=("parallel", "arbitrary"),
            vmem_limit_bytes=vmem_limit),
        cost_estimate=pl.CostEstimate(flops=flops, transcendentals=0,
                                      bytes_accessed=bytes_accessed),
    )(*args)


# ----------------------------------------------------------------------------
# Forward pass: stack of fused TemporalBlocks (dilation = 2**layer_index).
# ----------------------------------------------------------------------------
def temporal_conv_net(x_ncl, params, *, t_tile_target=1024,
                      compute_dtype=jnp.bfloat16):
    """x_ncl: (B, C, L) like PyTorch.  Returns (B, C_last, L)."""
    x = jnp.transpose(x_ncl, (0, 2, 1))              # -> (B, T, C)
    for i, layer in enumerate(params):
        x = temporal_block(x, layer, dilation=2 ** i,
                           t_tile_target=t_tile_target,
                           compute_dtype=compute_dtype)
    return jnp.transpose(x, (0, 2, 1))               # -> (B, C, L)


# ----------------------------------------------------------------------------
# Parameter construction (matches the PyTorch module's init; weight_norm is
# the identity reparameterization at init).
# ----------------------------------------------------------------------------
def init_tcn_params(key, num_inputs, num_channels, kernel_size):
    params = []
    for i, c_out in enumerate(num_channels):
        c_in = num_inputs if i == 0 else num_channels[i - 1]
        key, k1, k2, k3, k4, k5, k6 = jax.random.split(key, 7)
        bound1 = 1.0 / jnp.sqrt(c_in * kernel_size)
        bound2 = 1.0 / jnp.sqrt(c_out * kernel_size)
        layer = {
            # stored as (K, Cin, Cout); w[k] == torch_weight[:, :, k].T
            "w1": 0.01 * jax.random.normal(k1, (kernel_size, c_in, c_out), jnp.float32),
            "b1": jax.random.uniform(k2, (c_out,), jnp.float32, -bound1, bound1),
            "w2": 0.01 * jax.random.normal(k3, (kernel_size, c_out, c_out), jnp.float32),
            "b2": jax.random.uniform(k4, (c_out,), jnp.float32, -bound2, bound2),
        }
        if c_in != c_out:
            layer["w_ds"] = 0.01 * jax.random.normal(k5, (1, c_in, c_out), jnp.float32)
            layer["b_ds"] = jax.random.uniform(k6, (c_out,), jnp.float32,
                                               -1.0 / jnp.sqrt(c_in), 1.0 / jnp.sqrt(c_in))
        params.append(layer)
    return params


# ----------------------------------------------------------------------------
# Pure-JAX f32 reference.
# ----------------------------------------------------------------------------
def _ref_causal_conv(x, w, b, dilation):
    B, T, Cin = x.shape
    K, _, Cout = w.shape
    xp = jnp.pad(x, ((0, 0), ((K - 1) * dilation, 0), (0, 0)))
    out = jnp.zeros((B, T, Cout), jnp.float32)
    for k in range(K):
        out = out + jnp.einsum("btc,cd->btd",
                               xp[:, k * dilation:k * dilation + T, :], w[k])
    return out + b


def _ref_forward(x_ncl, params):
    x = jnp.transpose(x_ncl, (0, 2, 1))
    for i, layer in enumerate(params):
        d = 2 ** i
        res = (_ref_causal_conv(x, layer["w_ds"], layer["b_ds"], 1)
               if "w_ds" in layer else x)
        h1 = jax.nn.relu(_ref_causal_conv(x, layer["w1"], layer["b1"], d))
        h2 = jax.nn.relu(_ref_causal_conv(h1, layer["w2"], layer["b2"], d))
        x = jax.nn.relu(h2 + res)
    return jnp.transpose(x, (0, 2, 1))


if __name__ == "__main__":
    key = jax.random.PRNGKey(0)
    B, C_in, L = 2, 4, 64
    # layer 1 & 3 exercise the identity residual; layer 0 & 2 the 1x1 downsample
    num_channels = [8, 8, 16, 16]
    kernel_size = 3

    kx, kp = jax.random.split(key)
    x = jax.random.normal(kx, (B, C_in, L), jnp.float32)       # PyTorch NCL input
    params = init_tcn_params(kp, C_in, num_channels, kernel_size)

    # Small T tile so the carry-halo multi-tile path is exercised at this toy
    # size (deepest layer has 2*pad = 32 > t_tile = 16).  Production default
    # is t_tile_target=1024.
    fwd = jax.jit(functools.partial(temporal_conv_net, t_tile_target=16))
    out = jax.block_until_ready(fwd(x, params))

    ref = _ref_forward(x, params)
    assert out.shape == (B, num_channels[-1], L), out.shape
    err = float(jnp.abs(out - ref).max())
    # bf16 MXU operands (f32 accumulation) vs the f32 reference
    assert err < 3e-2, err
    print("KERNEL_OK")
</pallas_src>

<mosaic_0001>
module attributes {stable_mosaic.version = 11 : i64} {
  func.func @_temporal_block_kernel(%arg0: i32, %arg1: i32, %arg2: memref<2x16x8xf32, #tpu.memory_space<vmem>>, %arg3: memref<3x8x8xbf16, #tpu.memory_space<vmem>>, %arg4: memref<1x8xf32, #tpu.memory_space<vmem>>, %arg5: memref<3x8x8xbf16, #tpu.memory_space<vmem>>, %arg6: memref<1x8xf32, #tpu.memory_space<vmem>>, %arg7: memref<2x16x8xf32, #tpu.memory_space<vmem>>, %arg8: memref<2x24x8xbf16, #tpu.memory_space<vmem>>, %arg9: memref<2x20x8xbf16, #tpu.memory_space<vmem>>, %arg10: memref<2x8x8xbf16, #tpu.memory_space<vmem>>) attributes {dimension_semantics = [#tpu.dimension_semantics<parallel>, #tpu.dimension_semantics<arbitrary>], iteration_bounds = array<i64: 1, 4>, scalar_prefetch = 0 : i64, scratch_operands = 3 : i64, tpu.core_type = #tpu.core_type<tc>, window_params = [{transform_indices = @transform_0, window_bounds = array<i64: 2, 16, 8>}, {pipeline_mode = #tpu.pipeline_mode<synchronous>, transform_indices = @transform_1, window_bounds = array<i64: 3, 8, 8>}, {pipeline_mode = #tpu.pipeline_mode<synchronous>, transform_indices = @transform_2, window_bounds = array<i64: 1, 8>}, {pipeline_mode = #tpu.pipeline_mode<synchronous>, transform_indices = @transform_3, window_bounds = array<i64: 3, 8, 8>}, {pipeline_mode = #tpu.pipeline_mode<synchronous>, transform_indices = @transform_4, window_bounds = array<i64: 1, 8>}, {transform_indices = @transform_5, window_bounds = array<i64: 2, 16, 8>}]} {
    %c0 = arith.constant 0 : index
    %c0_0 = arith.constant 0 : index
    %c0_1 = arith.constant 0 : index
    %0 = vector.load %arg2[%c0, %c0_0, %c0_1] : memref<2x16x8xf32, #tpu.memory_space<vmem>>, vector<2x16x8xf32>
    %c0_i32 = arith.constant 0 : i32
    %1 = arith.cmpi eq, %arg1, %c0_i32 : i32
    %2 = arith.extui %1 : i1 to i32
    %c0_i32_2 = arith.constant 0 : i32
    %3 = arith.cmpi ne, %2, %c0_i32_2 : i32
    scf.if %3 {
      %cst_66 = arith.constant 0.000000e+00 : bf16
      %65 = vector.broadcast %cst_66 : bf16 to vector<2x8x8xbf16>
      %c0_67 = arith.constant 0 : index
      %c0_68 = arith.constant 0 : index
      %c0_69 = arith.constant 0 : index
      %66 = vector.load %arg8[%c0_67, %c0_68, %c0_69] : memref<2x24x8xbf16, #tpu.memory_space<vmem>>, vector<2x8x8xbf16>
      tpu.vector_store %arg8[%c0_67, %c0_68, %c0_69], %65 {strides = array<i32>} : memref<2x24x8xbf16, #tpu.memory_space<vmem>>, vector<2x8x8xbf16>,
    } else {
    }
    %c0_i32_3 = arith.constant 0 : i32
    %4 = arith.cmpi sgt, %arg1, %c0_i32_3 : i32
    %5 = arith.extui %4 : i1 to i32
    %c0_i32_4 = arith.constant 0 : i32
    %6 = arith.cmpi ne, %5, %c0_i32_4 : i32
    scf.if %6 {
      %c0_66 = arith.constant 0 : index
      %c0_67 = arith.constant 0 : index
      %c0_68 = arith.constant 0 : index
      %65 = vector.load %arg10[%c0_66, %c0_67, %c0_68] : memref<2x8x8xbf16, #tpu.memory_space<vmem>>, vector<2x8x8xbf16>
      %c0_69 = arith.constant 0 : index
      %c0_70 = arith.constant 0 : index
      %c0_71 = arith.constant 0 : index
      %66 = vector.load %arg8[%c0_69, %c0_70, %c0_71] : memref<2x24x8xbf16, #tpu.memory_space<vmem>>, vector<2x8x8xbf16>
      tpu.vector_store %arg8[%c0_69, %c0_70, %c0_71], %65 {strides = array<i32>} : memref<2x24x8xbf16, #tpu.memory_space<vmem>>, vector<2x8x8xbf16>,
    } else {
    }
    %7 = arith.truncf %0 : vector<2x16x8xf32> to vector<2x16x8xbf16>
    %c0_5 = arith.constant 0 : index
    %c8 = arith.constant 8 : index
    %c0_6 = arith.constant 0 : index
    %8 = vector.load %arg8[%c0_5, %c8, %c0_6] : memref<2x24x8xbf16, #tpu.memory_space<vmem>>, vector<2x16x8xbf16>
    tpu.vector_store %arg8[%c0_5, %c8, %c0_6], %7 {strides = array<i32>} : memref<2x24x8xbf16, #tpu.memory_space<vmem>>, vector<2x16x8xbf16>,
    %c0_7 = arith.constant 0 : index
    %c16 = arith.constant 16 : index
    %c0_8 = arith.constant 0 : index
    %9 = vector.load %arg8[%c0_7, %c16, %c0_8] : memref<2x24x8xbf16, #tpu.memory_space<vmem>>, vector<2x8x8xbf16>
    %c0_9 = arith.constant 0 : index
    %c0_10 = arith.constant 0 : index
    %c0_11 = arith.constant 0 : index
    %10 = vector.load %arg10[%c0_9, %c0_10, %c0_11] : memref<2x8x8xbf16, #tpu.memory_space<vmem>>, vector<2x8x8xbf16>
    tpu.vector_store %arg10[%c0_9, %c0_10, %c0_11], %9 {strides = array<i32>} : memref<2x8x8xbf16, #tpu.memory_space<vmem>>, vector<2x8x8xbf16>,
    %cst = arith.constant 0.000000e+00 : f32
    %11 = vector.broadcast %cst : f32 to vector<2x20x8xf32>
    %c0_12 = arith.constant 0 : index
    %c0_13 = arith.constant 0 : index
    %c0_14 = arith.constant 0 : index
    %12 = vector.load %arg8[%c0_12, %c0_13, %c0_14] : memref<2x24x8xbf16, #tpu.memory_space<vmem>>, vector<2x20x8xbf16>
    %c0_15 = arith.constant 0 : index
    %c0_16 = arith.constant 0 : index
    %c0_17 = arith.constant 0 : index
    %13 = vector.load %arg3[%c0_15, %c0_16, %c0_17] : memref<3x8x8xbf16, #tpu.memory_space<vmem>>, vector<1x8x8xbf16>
    %14 = vector.shape_cast %13 : vector<1x8x8xbf16> to vector<8x8xbf16>
    "tpu.trace_start"() <{level = 10 : i32, message = "btc,co->bto"}> : () -> ()
    %cst_18 = arith.constant dense<0.000000e+00> : vector<2x20x8xf32>
    %15 = tpu.matmul %12, %14, %cst_18 {dimension_numbers = #tpu.dot_dimension_numbers<[2], [0], [0, 1], [1], [0, 0, 0, 1, 1, 1], [], []>} : vector<2x20x8xbf16>, vector<8x8xbf16>, vector<2x20x8xf32> -> vector<2x20x8xf32>
    "tpu.trace_stop"() : () -> ()
    %16 = arith.addf %11, %15 : vector<2x20x8xf32>
    %c0_19 = arith.constant 0 : index
    %c2 = arith.constant 2 : index
    %c0_20 = arith.constant 0 : index
    %17 = vector.load %arg8[%c0_19, %c2, %c0_20] : memref<2x24x8xbf16, #tpu.memory_space<vmem>>, vector<2x20x8xbf16>
    %c1 = arith.constant 1 : index
    %c0_21 = arith.constant 0 : index
    %c0_22 = arith.constant 0 : index
    %18 = vector.load %arg3[%c1, %c0_21, %c0_22] : memref<3x8x8xbf16, #tpu.memory_space<vmem>>, vector<1x8x8xbf16>
    %19 = vector.shape_cast %18 : vector<1x8x8xbf16> to vector<8x8xbf16>
    "tpu.trace_start"() <{level = 10 : i32, message = "btc,co->bto"}> : () -> ()
    %cst_23 = arith.constant dense<0.000000e+00> : vector<2x20x8xf32>
    %20 = tpu.matmul %17, %19, %cst_23 {dimension_numbers = #tpu.dot_dimension_numbers<[2], [0], [0, 1], [1], [0, 0, 0, 1, 1, 1], [], []>} : vector<2x20x8xbf16>, vector<8x8xbf16>, vector<2x20x8xf32> -> vector<2x20x8xf32>
    "tpu.trace_stop"() : () -> ()
    %21 = arith.addf %16, %20 : vector<2x20x8xf32>
    %c0_24 = arith.constant 0 : index
    %c4 = arith.constant 4 : index
    %c0_25 = arith.constant 0 : index
    %22 = vector.load %arg8[%c0_24, %c4, %c0_25] : memref<2x24x8xbf16, #tpu.memory_space<vmem>>, vector<2x20x8xbf16>
    %c2_26 = arith.constant 2 : index
    %c0_27 = arith.constant 0 : index
    %c0_28 = arith.constant 0 : index
    %23 = vector.load %arg3[%c2_26, %c0_27, %c0_28] : memref<3x8x8xbf16, #tpu.memory_space<vmem>>, vector<1x8x8xbf16>
    %24 = vector.shape_cast %23 : vector<1x8x8xbf16> to vector<8x8xbf16>
    "tpu.trace_start"() <{level = 10 : i32, message = "btc,co->bto"}> : () -> ()
    %cst_29 = arith.constant dense<0.000000e+00> : vector<2x20x8xf32>
    %25 = tpu.matmul %22, %24, %cst_29 {dimension_numbers = #tpu.dot_dimension_numbers<[2], [0], [0, 1], [1], [0, 0, 0, 1, 1, 1], [], []>} : vector<2x20x8xbf16>, vector<8x8xbf16>, vector<2x20x8xf32> -> vector<2x20x8xf32>
    "tpu.trace_stop"() : () -> ()
    %26 = arith.addf %21, %25 : vector<2x20x8xf32>
    %c0_30 = arith.constant 0 : index
    %c0_31 = arith.constant 0 : index
    %27 = vector.load %arg4[%c0_30, %c0_31] : memref<1x8xf32, #tpu.memory_space<vmem>>, vector<1x8xf32>
    %28 = vector.shape_cast %27 : vector<1x8xf32> to vector<1x1x8xf32>
    %29 = vector.broadcast %28 : vector<1x1x8xf32> to vector<2x20x8xf32>
    %30 = arith.addf %26, %29 : vector<2x20x8xf32>
    %cst_32 = arith.constant 0.000000e+00 : f32
    %31 = vector.broadcast %cst_32 : f32 to vector<2x20x8xf32>
    %32 = arith.maximumf %30, %31 : vector<2x20x8xf32>
    %33 = arith.truncf %32 : vector<2x20x8xf32> to vector<2x20x8xbf16>
    %c0_33 = arith.constant 0 : index
    %c0_34 = arith.constant 0 : index
    %c0_35 = arith.constant 0 : index
    %34 = vector.load %arg9[%c0_33, %c0_34, %c0_35] : memref<2x20x8xbf16, #tpu.memory_space<vmem>>, vector<2x20x8xbf16>
    tpu.vector_store %arg9[%c0_33, %c0_34, %c0_35], %33 {strides = array<i32>} : memref<2x20x8xbf16, #tpu.memory_space<vmem>>, vector<2x20x8xbf16>,
    %c16_i32 = arith.constant 16 : i32
    %35 = arith.muli %arg1, %c16_i32 : i32
    %c4_i32 = arith.constant 4 : i32
    %36 = arith.cmpi slt, %35, %c4_i32 : i32
    %37 = arith.extui %36 : i1 to i32
    %c0_i32_36 = arith.constant 0 : i32
    %38 = arith.cmpi ne, %37, %c0_i32_36 : i32
    scf.if %38 {
      %c16_i32_66 = arith.constant 16 : i32
      %65 = arith.muli %arg1, %c16_i32_66 : i32
      %c4_i32_67 = arith.constant 4 : i32
      %66 = arith.subi %65, %c4_i32_67 : i32
      %67 = tpu.iota {dimensions = array<i32: 1>} : vector<1x20x1xi32>
      %68 = vector.broadcast %66 : i32 to vector<1x20x1xi32>
      %69 = arith.addi %68, %67 : vector<1x20x1xi32>
      %c0_i32_68 = arith.constant 0 : i32
      %70 = vector.broadcast %c0_i32_68 : i32 to vector<1x20x1xi32>
      %71 = arith.cmpi sge, %69, %70 : vector<1x20x1xi32>
      %cst_69 = arith.constant 0.000000e+00 : f32
      %72 = vector.shape_cast %71 : vector<1x20x1xi1> to vector<1x20x1xi1>
      %73 = vector.broadcast %72 : vector<1x20x1xi1> to vector<2x20x8xi1>
      %74 = vector.broadcast %cst_69 : f32 to vector<2x20x8xf32>
      %75 = arith.select %73, %32, %74 : vector<2x20x8xi1>, vector<2x20x8xf32>
      %76 = arith.truncf %75 : vector<2x20x8xf32> to vector<2x20x8xbf16>
      %c0_70 = arith.constant 0 : index
      %c0_71 = arith.constant 0 : index
      %c0_72 = arith.constant 0 : index
      %77 = vector.load %arg9[%c0_70, %c0_71, %c0_72] : memref<2x20x8xbf16, #tpu.memory_space<vmem>>, vector<2x20x8xbf16>
      tpu.vector_store %arg9[%c0_70, %c0_71, %c0_72], %76 {strides = array<i32>} : memref<2x20x8xbf16, #tpu.memory_space<vmem>>, vector<2x20x8xbf16>,
    } else {
    }
    %cst_37 = arith.constant 0.000000e+00 : f32
    %39 = vector.broadcast %cst_37 : f32 to vector<2x16x8xf32>
    %c0_38 = arith.constant 0 : index
    %c0_39 = arith.constant 0 : index
    %c0_40 = arith.constant 0 : index
    %40 = vector.load %arg9[%c0_38, %c0_39, %c0_40] : memref<2x20x8xbf16, #tpu.memory_space<vmem>>, vector<2x16x8xbf16>
    %c0_41 = arith.constant 0 : index
    %c0_42 = arith.constant 0 : index
    %c0_43 = arith.constant 0 : index
    %41 = vector.load %arg5[%c0_41, %c0_42, %c0_43] : memref<3x8x8xbf16, #tpu.memory_space<vmem>>, vector<1x8x8xbf16>
    %42 = vector.shape_cast %41 : vector<1x8x8xbf16> to vector<8x8xbf16>
    "tpu.trace_start"() <{level = 10 : i32, message = "btc,co->bto"}> : () -> ()
    %cst_44 = arith.constant dense<0.000000e+00> : vector<2x16x8xf32>
    %43 = tpu.matmul %40, %42, %cst_44 {dimension_numbers = #tpu.dot_dimension_numbers<[2], [0], [0, 1], [1], [0, 0, 0, 1, 1, 1], [], []>} : vector<2x16x8xbf16>, vector<8x8xbf16>, vector<2x16x8xf32> -> vector<2x16x8xf32>
    "tpu.trace_stop"() : () -> ()
    %44 = arith.addf %39, %43 : vector<2x16x8xf32>
    %c0_45 = arith.constant 0 : index
    %c2_46 = arith.constant 2 : index
    %c0_47 = arith.constant 0 : index
    %45 = vector.load %arg9[%c0_45, %c2_46, %c0_47] : memref<2x20x8xbf16, #tpu.memory_space<vmem>>, vector<2x16x8xbf16>
    %c1_48 = arith.constant 1 : index
    %c0_49 = arith.constant 0 : index
    %c0_50 = arith.constant 0 : index
    %46 = vector.load %arg5[%c1_48, %c0_49, %c0_50] : memref<3x8x8xbf16, #tpu.memory_space<vmem>>, vector<1x8x8xbf16>
    %47 = vector.shape_cast %46 : vector<1x8x8xbf16> to vector<8x8xbf16>
    "tpu.trace_start"() <{level = 10 : i32, message = "btc,co->bto"}> : () -> ()
    %cst_51 = arith.constant dense<0.000000e+00> : vector<2x16x8xf32>
    %48 = tpu.matmul %45, %47, %cst_51 {dimension_numbers = #tpu.dot_dimension_numbers<[2], [0], [0, 1], [1], [0, 0, 0, 1, 1, 1], [], []>} : vector<2x16x8xbf16>, vector<8x8xbf16>, vector<2x16x8xf32> -> vector<2x16x8xf32>
    "tpu.trace_stop"() : () -> ()
    %49 = arith.addf %44, %48 : vector<2x16x8xf32>
    %c0_52 = arith.constant 0 : index
    %c4_53 = arith.constant 4 : index
    %c0_54 = arith.constant 0 : index
    %50 = vector.load %arg9[%c0_52, %c4_53, %c0_54] : memref<2x20x8xbf16, #tpu.memory_space<vmem>>, vector<2x16x8xbf16>
    %c2_55 = arith.constant 2 : index
    %c0_56 = arith.constant 0 : index
    %c0_57 = arith.constant 0 : index
    %51 = vector.load %arg5[%c2_55, %c0_56, %c0_57] : memref<3x8x8xbf16, #tpu.memory_space<vmem>>, vector<1x8x8xbf16>
    %52 = vector.shape_cast %51 : vector<1x8x8xbf16> to vector<8x8xbf16>
    "tpu.trace_start"() <{level = 10 : i32, message = "btc,co->bto"}> : () -> ()
    %cst_58 = arith.constant dense<0.000000e+00> : vector<2x16x8xf32>
    %53 = tpu.matmul %50, %52, %cst_58 {dimension_numbers = #tpu.dot_dimension_numbers<[2], [0], [0, 1], [1], [0, 0, 0, 1, 1, 1], [], []>} : vector<2x16x8xbf16>, vector<8x8xbf16>, vector<2x16x8xf32> -> vector<2x16x8xf32>
    "tpu.trace_stop"() : () -> ()
    %54 = arith.addf %49, %53 : vector<2x16x8xf32>
    %c0_59 = arith.constant 0 : index
    %c0_60 = arith.constant 0 : index
    %55 = vector.load %arg6[%c0_59, %c0_60] : memref<1x8xf32, #tpu.memory_space<vmem>>, vector<1x8xf32>
    %56 = vector.shape_cast %55 : vector<1x8xf32> to vector<1x1x8xf32>
    %57 = vector.broadcast %56 : vector<1x1x8xf32> to vector<2x16x8xf32>
    %58 = arith.addf %54, %57 : vector<2x16x8xf32>
    %cst_61 = arith.constant 0.000000e+00 : f32
    %59 = vector.broadcast %cst_61 : f32 to vector<2x16x8xf32>
    %60 = arith.maximumf %58, %59 : vector<2x16x8xf32>
    %61 = arith.addf %60, %0 : vector<2x16x8xf32>
    %cst_62 = arith.constant 0.000000e+00 : f32
    %62 = vector.broadcast %cst_62 : f32 to vector<2x16x8xf32>
    %63 = arith.maximumf %61, %62 : vector<2x16x8xf32>
    %c0_63 = arith.constant 0 : index
    %c0_64 = arith.constant 0 : index
    %c0_65 = arith.constant 0 : index
    %64 = vector.load %arg7[%c0_63, %c0_64, %c0_65] : memref<2x16x8xf32, #tpu.memory_space<vmem>>, vector<2x16x8xf32>
    tpu.vector_store %arg7[%c0_63, %c0_64, %c0_65], %63 {strides = array<i32>} : memref<2x16x8xf32, #tpu.memory_space<vmem>>, vector<2x16x8xf32>,
    return
  }
  func.func @transform_0(%arg0: i32, %arg1: i32) -> (i32, i32, i32) {
    %c0_i32 = arith.constant 0 : i32
    %c0_i32_0 = arith.constant 0 : i32
    return %arg0, %arg1, %c0_i32 : i32, i32, i32
  }
  func.func @transform_1(%arg0: i32, %arg1: i32) -> (i32, i32, i32) {
    %c0_i32 = arith.constant 0 : i32
    %c0_i32_0 = arith.constant 0 : i32
    %c0_i32_1 = arith.constant 0 : i32
    %c0_i32_2 = arith.constant 0 : i32
    return %c0_i32, %c0_i32_0, %c0_i32_1 : i32, i32, i32
  }
  func.func @transform_2(%arg0: i32, %arg1: i32) -> (i32, i32) {
    %c0_i32 = arith.constant 0 : i32
    %c0_i32_0 = arith.constant 0 : i32
    %c0_i32_1 = arith.constant 0 : i32
    return %c0_i32, %c0_i32_0 : i32, i32
  }
  func.func @transform_3(%arg0: i32, %arg1: i32) -> (i32, i32, i32) {
    %c0_i32 = arith.constant 0 : i32
    %c0_i32_0 = arith.constant 0 : i32
    %c0_i32_1 = arith.constant 0 : i32
    %c0_i32_2 = arith.constant 0 : i32
    return %c0_i32, %c0_i32_0, %c0_i32_1 : i32, i32, i32
  }
  func.func @transform_4(%arg0: i32, %arg1: i32) -> (i32, i32) {
    %c0_i32 = arith.constant 0 : i32
    %c0_i32_0 = arith.constant 0 : i32
    %c0_i32_1 = arith.constant 0 : i32
    return %c0_i32, %c0_i32_0 : i32, i32
  }
  func.func @transform_5(%arg0: i32, %arg1: i32) -> (i32, i32, i32) {
    %c0_i32 = arith.constant 0 : i32
    %c0_i32_0 = arith.constant 0 : i32
    return %arg0, %arg1, %c0_i32 : i32, i32, i32
  }
}

module attributes {stable_mosaic.version = 11 : i64} {
  func.func @_temporal_block_kernel(%arg0: i32, %arg1: i32, %arg2: memref<2x16x8xf32, #tpu.memory_space<vmem>>, %arg3: memref<3x8x16xbf16, #tpu.memory_space<vmem>>, %arg4: memref<1x16xf32, #tpu.memory_space<vmem>>, %arg5: memref<3x16x16xbf16, #tpu.memory_space<vmem>>, %arg6: memref<1x16xf32, #tpu.memory_space<vmem>>, %arg7: memref<8x16xbf16, #tpu.memory_space<vmem>>, %arg8: memref<1x16xf32, #tpu.memory_space<vmem>>, %arg9: memref<2x16x16xf32, #tpu.memory_space<vmem>>, %arg10: memref<2x32x8xbf16, #tpu.memory_space<vmem>>, %arg11: memref<2x24x16xbf16, #tpu.memory_space<vmem>>, %arg12: memref<2x16x8xbf16, #tpu.memory_space<vmem>>) attributes {dimension_semantics = [#tpu.dimension_semantics<parallel>, #tpu.dimension_semantics<arbitrary>], iteration_bounds = array<i64: 1, 4>, scalar_prefetch = 0 : i64, scratch_operands = 3 : i64, tpu.core_type = #tpu.core_type<tc>, window_params = [{transform_indices = @transform_0, window_bounds = array<i64: 2, 16, 8>}, {pipeline_mode = #tpu.pipeline_mode<synchronous>, transform_indices = @transform_1, window_bounds = array<i64: 3, 8, 16>}, {pipeline_mode = #tpu.pipeline_mode<synchronous>, transform_indices = @transform_2, window_bounds = array<i64: 1, 16>}, {pipeline_mode = #tpu.pipeline_mode<synchronous>, transform_indices = @transform_3, window_bounds = array<i64: 3, 16, 16>}, {pipeline_mode = #tpu.pipeline_mode<synchronous>, transform_indices = @transform_4, window_bounds = array<i64: 1, 16>}, {pipeline_mode = #tpu.pipeline_mode<synchronous>, transform_indices = @transform_5, window_bounds = array<i64: 8, 16>}, {pipeline_mode = #tpu.pipeline_mode<synchronous>, transform_indices = @transform_6, window_bounds = array<i64: 1, 16>}, {transform_indices = @transform_7, window_bounds = array<i64: 2, 16, 16>}]} {
    %c0 = arith.constant 0 : index
    %c0_0 = arith.constant 0 : index
    %c0_1 = arith.constant 0 : index
    %0 = vector.load %arg2[%c0, %c0_0, %c0_1] : memref<2x16x8xf32, #tpu.memory_space<vmem>>, vector<2x16x8xf32>
    %c0_i32 = arith.constant 0 : i32
    %1 = arith.cmpi eq, %arg1, %c0_i32 : i32
    %2 = arith.extui %1 : i1 to i32
    %c0_i32_2 = arith.constant 0 : i32
    %3 = arith.cmpi ne, %2, %c0_i32_2 : i32
    scf.if %3 {
      %cst_74 = arith.constant 0.000000e+00 : bf16
      %72 = vector.broadcast %cst_74 : bf16 to vector<2x16x8xbf16>
      %c0_75 = arith.constant 0 : index
      %c0_76 = arith.constant 0 : index
      %c0_77 = arith.constant 0 : index
      %73 = vector.load %arg10[%c0_75, %c0_76, %c0_77] : memref<2x32x8xbf16, #tpu.memory_space<vmem>>, vector<2x16x8xbf16>
      tpu.vector_store %arg10[%c0_75, %c0_76, %c0_77], %72 {strides = array<i32>} : memref<2x32x8xbf16, #tpu.memory_space<vmem>>, vector<2x16x8xbf16>,
    } else {
    }
    %c0_i32_3 = arith.constant 0 : i32
    %4 = arith.cmpi sgt, %arg1, %c0_i32_3 : i32
    %5 = arith.extui %4 : i1 to i32
    %c0_i32_4 = arith.constant 0 : i32
    %6 = arith.cmpi ne, %5, %c0_i32_4 : i32
    scf.if %6 {
      %c0_74 = arith.constant 0 : index
      %c0_75 = arith.constant 0 : index
      %c0_76 = arith.constant 0 : index
      %72 = vector.load %arg12[%c0_74, %c0_75, %c0_76] : memref<2x16x8xbf16, #tpu.memory_space<vmem>>, vector<2x16x8xbf16>
      %c0_77 = arith.constant 0 : index
      %c0_78 = arith.constant 0 : index
      %c0_79 = arith.constant 0 : index
      %73 = vector.load %arg10[%c0_77, %c0_78, %c0_79] : memref<2x32x8xbf16, #tpu.memory_space<vmem>>, vector<2x16x8xbf16>
      tpu.vector_store %arg10[%c0_77, %c0_78, %c0_79], %72 {strides = array<i32>} : memref<2x32x8xbf16, #tpu.memory_space<vmem>>, vector<2x16x8xbf16>,
    } else {
    }
    %7 = arith.truncf %0 : vector<2x16x8xf32> to vector<2x16x8xbf16>
    %c0_5 = arith.constant 0 : index
    %c16 = arith.constant 16 : index
    %c0_6 = arith.constant 0 : index
    %8 = vector.load %arg10[%c0_5, %c16, %c0_6] : memref<2x32x8xbf16, #tpu.memory_space<vmem>>, vector<2x16x8xbf16>
    tpu.vector_store %arg10[%c0_5, %c16, %c0_6], %7 {strides = array<i32>} : memref<2x32x8xbf16, #tpu.memory_space<vmem>>, vector<2x16x8xbf16>,
    %c0_7 = arith.constant 0 : index
    %c16_8 = arith.constant 16 : index
    %c0_9 = arith.constant 0 : index
    %9 = vector.load %arg10[%c0_7, %c16_8, %c0_9] : memref<2x32x8xbf16, #tpu.memory_space<vmem>>, vector<2x16x8xbf16>
    %c0_10 = arith.constant 0 : index
    %c0_11 = arith.constant 0 : index
    %c0_12 = arith.constant 0 : index
    %10 = vector.load %arg12[%c0_10, %c0_11, %c0_12] : memref<2x16x8xbf16, #tpu.memory_space<vmem>>, vector<2x16x8xbf16>
    tpu.vector_store %arg12[%c0_10, %c0_11, %c0_12], %9 {strides = array<i32>} : memref<2x16x8xbf16, #tpu.memory_space<vmem>>, vector<2x16x8xbf16>,
    %cst = arith.constant 0.000000e+00 : f32
    %11 = vector.broadcast %cst : f32 to vector<2x24x16xf32>
    %c0_13 = arith.constant 0 : index
    %c0_14 = arith.constant 0 : index
    %c0_15 = arith.constant 0 : index
    %12 = vector.load %arg10[%c0_13, %c0_14, %c0_15] : memref<2x32x8xbf16, #tpu.memory_space<vmem>>, vector<2x24x8xbf16>
    %c0_16 = arith.constant 0 : index
    %c0_17 = arith.constant 0 : index
    %c0_18 = arith.constant 0 : index
    %13 = vector.load %arg3[%c0_16, %c0_17, %c0_18] : memref<3x8x16xbf16, #tpu.memory_space<vmem>>, vector<1x8x16xbf16>
    %14 = vector.shape_cast %13 : vector<1x8x16xbf16> to vector<8x16xbf16>
    "tpu.trace_start"() <{level = 10 : i32, message = "btc,co->bto"}> : () -> ()
    %cst_19 = arith.constant dense<0.000000e+00> : vector<2x24x16xf32>
    %15 = tpu.matmul %12, %14, %cst_19 {dimension_numbers = #tpu.dot_dimension_numbers<[2], [0], [0, 1], [1], [0, 0, 0, 1, 1, 1], [], []>} : vector<2x24x8xbf16>, vector<8x16xbf16>, vector<2x24x16xf32> -> vector<2x24x16xf32>
    "tpu.trace_stop"() : () -> ()
    %16 = arith.addf %11, %15 : vector<2x24x16xf32>
    %c0_20 = arith.constant 0 : index
    %c4 = arith.constant 4 : index
    %c0_21 = arith.constant 0 : index
    %17 = vector.load %arg10[%c0_20, %c4, %c0_21] : memref<2x32x8xbf16, #tpu.memory_space<vmem>>, vector<2x24x8xbf16>
    %c1 = arith.constant 1 : index
    %c0_22 = arith.constant 0 : index
    %c0_23 = arith.constant 0 : index
    %18 = vector.load %arg3[%c1, %c0_22, %c0_23] : memref<3x8x16xbf16, #tpu.memory_space<vmem>>, vector<1x8x16xbf16>
    %19 = vector.shape_cast %18 : vector<1x8x16xbf16> to vector<8x16xbf16>
    "tpu.trace_start"() <{level = 10 : i32, message = "btc,co->bto"}> : () -> ()
    %cst_24 = arith.constant dense<0.000000e+00> : vector<2x24x16xf32>
    %20 = tpu.matmul %17, %19, %cst_24 {dimension_numbers = #tpu.dot_dimension_numbers<[2], [0], [0, 1], [1], [0, 0, 0, 1, 1, 1], [], []>} : vector<2x24x8xbf16>, vector<8x16xbf16>, vector<2x24x16xf32> -> vector<2x24x16xf32>
    "tpu.trace_stop"() : () -> ()
    %21 = arith.addf %16, %20 : vector<2x24x16xf32>
    %c0_25 = arith.constant 0 : index
    %c8 = arith.constant 8 : index
    %c0_26 = arith.constant 0 : index
    %22 = vector.load %arg10[%c0_25, %c8, %c0_26] : memref<2x32x8xbf16, #tpu.memory_space<vmem>>, vector<2x24x8xbf16>
    %c2 = arith.constant 2 : index
    %c0_27 = arith.constant 0 : index
    %c0_28 = arith.constant 0 : index
    %23 = vector.load %arg3[%c2, %c0_27, %c0_28] : memref<3x8x16xbf16, #tpu.memory_space<vmem>>, vector<1x8x16xbf16>
    %24 = vector.shape_cast %23 : vector<1x8x16xbf16> to vector<8x16xbf16>
    "tpu.trace_start"() <{level = 10 : i32, message = "btc,co->bto"}> : () -> ()
    %cst_29 = arith.constant dense<0.000000e+00> : vector<2x24x16xf32>
    %25 = tpu.matmul %22, %24, %cst_29 {dimension_numbers = #tpu.dot_dimension_numbers<[2], [0], [0, 1], [1], [0, 0, 0, 1, 1, 1], [], []>} : vector<2x24x8xbf16>, vector<8x16xbf16>, vector<2x24x16xf32> -> vector<2x24x16xf32>
    "tpu.trace_stop"() : () -> ()
    %26 = arith.addf %21, %25 : vector<2x24x16xf32>
    %c0_30 = arith.constant 0 : index
    %c0_31 = arith.constant 0 : index
    %27 = vector.load %arg4[%c0_30, %c0_31] : memref<1x16xf32, #tpu.memory_space<vmem>>, vector<1x16xf32>
    %28 = vector.shape_cast %27 : vector<1x16xf32> to vector<1x1x16xf32>
    %29 = vector.broadcast %28 : vector<1x1x16xf32> to vector<2x24x16xf32>
    %30 = arith.addf %26, %29 : vector<2x24x16xf32>
    %cst_32 = arith.constant 0.000000e+00 : f32
    %31 = vector.broadcast %cst_32 : f32 to vector<2x24x16xf32>
    %32 = arith.maximumf %30, %31 : vector<2x24x16xf32>
    %33 = arith.truncf %32 : vector<2x24x16xf32> to vector<2x24x16xbf16>
    %c0_33 = arith.constant 0 : index
    %c0_34 = arith.constant 0 : index
    %c0_35 = arith.constant 0 : index
    %34 = vector.load %arg11[%c0_33, %c0_34, %c0_35] : memref<2x24x16xbf16, #tpu.memory_space<vmem>>, vector<2x24x16xbf16>
    tpu.vector_store %arg11[%c0_33, %c0_34, %c0_35], %33 {strides = array<i32>} : memref<2x24x16xbf16, #tpu.memory_space<vmem>>, vector<2x24x16xbf16>,
    %c16_i32 = arith.constant 16 : i32
    %35 = arith.muli %arg1, %c16_i32 : i32
    %c8_i32 = arith.constant 8 : i32
    %36 = arith.cmpi slt, %35, %c8_i32 : i32
    %37 = arith.extui %36 : i1 to i32
    %c0_i32_36 = arith.constant 0 : i32
    %38 = arith.cmpi ne, %37, %c0_i32_36 : i32
    scf.if %38 {
      %c16_i32_74 = arith.constant 16 : i32
      %72 = arith.muli %arg1, %c16_i32_74 : i32
      %c8_i32_75 = arith.constant 8 : i32
      %73 = arith.subi %72, %c8_i32_75 : i32
      %74 = tpu.iota {dimensions = array<i32: 1>} : vector<1x24x1xi32>
      %75 = vector.broadcast %73 : i32 to vector<1x24x1xi32>
      %76 = arith.addi %75, %74 : vector<1x24x1xi32>
      %c0_i32_76 = arith.constant 0 : i32
      %77 = vector.broadcast %c0_i32_76 : i32 to vector<1x24x1xi32>
      %78 = arith.cmpi sge, %76, %77 : vector<1x24x1xi32>
      %cst_77 = arith.constant 0.000000e+00 : f32
      %79 = vector.shape_cast %78 : vector<1x24x1xi1> to vector<1x24x1xi1>
      %80 = vector.broadcast %79 : vector<1x24x1xi1> to vector<2x24x16xi1>
      %81 = vector.broadcast %cst_77 : f32 to vector<2x24x16xf32>
      %82 = arith.select %80, %32, %81 : vector<2x24x16xi1>, vector<2x24x16xf32>
      %83 = arith.truncf %82 : vector<2x24x16xf32> to vector<2x24x16xbf16>
      %c0_78 = arith.constant 0 : index
      %c0_79 = arith.constant 0 : index
      %c0_80 = arith.constant 0 : index
      %84 = vector.load %arg11[%c0_78, %c0_79, %c0_80] : memref<2x24x16xbf16, #tpu.memory_space<vmem>>, vector<2x24x16xbf16>
      tpu.vector_store %arg11[%c0_78, %c0_79, %c0_80], %83 {strides = array<i32>} : memref<2x24x16xbf16, #tpu.memory_space<vmem>>, vector<2x24x16xbf16>,
    } else {
    }
    %cst_37 = arith.constant 0.000000e+00 : f32
    %39 = vector.broadcast %cst_37 : f32 to vector<2x16x16xf32>
    %c0_38 = arith.constant 0 : index
    %c0_39 = arith.constant 0 : index
    %c0_40 = arith.constant 0 : index
    %40 = vector.load %arg11[%c0_38, %c0_39, %c0_40] : memref<2x24x16xbf16, #tpu.memory_space<vmem>>, vector<2x16x16xbf16>
    %c0_41 = arith.constant 0 : index
    %c0_42 = arith.constant 0 : index
    %c0_43 = arith.constant 0 : index
    %41 = vector.load %arg5[%c0_41, %c0_42, %c0_43] : memref<3x16x16xbf16, #tpu.memory_space<vmem>>, vector<1x16x16xbf16>
    %42 = vector.shape_cast %41 : vector<1x16x16xbf16> to vector<16x16xbf16>
    "tpu.trace_start"() <{level = 10 : i32, message = "btc,co->bto"}> : () -> ()
    %cst_44 = arith.constant dense<0.000000e+00> : vector<2x16x16xf32>
    %43 = tpu.matmul %40, %42, %cst_44 {dimension_numbers = #tpu.dot_dimension_numbers<[2], [0], [0, 1], [1], [0, 0, 0, 1, 1, 1], [], []>} : vector<2x16x16xbf16>, vector<16x16xbf16>, vector<2x16x16xf32> -> vector<2x16x16xf32>
    "tpu.trace_stop"() : () -> ()
    %44 = arith.addf %39, %43 : vector<2x16x16xf32>
    %c0_45 = arith.constant 0 : index
    %c4_46 = arith.constant 4 : index
    %c0_47 = arith.constant 0 : index
    %45 = vector.load %arg11[%c0_45, %c4_46, %c0_47] : memref<2x24x16xbf16, #tpu.memory_space<vmem>>, vector<2x16x16xbf16>
    %c1_48 = arith.constant 1 : index
    %c0_49 = arith.constant 0 : index
    %c0_50 = arith.constant 0 : index
    %46 = vector.load %arg5[%c1_48, %c0_49, %c0_50] : memref<3x16x16xbf16, #tpu.memory_space<vmem>>, vector<1x16x16xbf16>
    %47 = vector.shape_cast %46 : vector<1x16x16xbf16> to vector<16x16xbf16>
    "tpu.trace_start"() <{level = 10 : i32, message = "btc,co->bto"}> : () -> ()
    %cst_51 = arith.constant dense<0.000000e+00> : vector<2x16x16xf32>
    %48 = tpu.matmul %45, %47, %cst_51 {dimension_numbers = #tpu.dot_dimension_numbers<[2], [0], [0, 1], [1], [0, 0, 0, 1, 1, 1], [], []>} : vector<2x16x16xbf16>, vector<16x16xbf16>, vector<2x16x16xf32> -> vector<2x16x16xf32>
    "tpu.trace_stop"() : () -> ()
    %49 = arith.addf %44, %48 : vector<2x16x16xf32>
    %c0_52 = arith.constant 0 : index
    %c8_53 = arith.constant 8 : index
    %c0_54 = arith.constant 0 : index
    %50 = vector.load %arg11[%c0_52, %c8_53, %c0_54] : memref<2x24x16xbf16, #tpu.memory_space<vmem>>, vector<2x16x16xbf16>
    %c2_55 = arith.constant 2 : index
    %c0_56 = arith.constant 0 : index
    %c0_57 = arith.constant 0 : index
    %51 = vector.load %arg5[%c2_55, %c0_56, %c0_57] : memref<3x16x16xbf16, #tpu.memory_space<vmem>>, vector<1x16x16xbf16>
    %52 = vector.shape_cast %51 : vector<1x16x16xbf16> to vector<16x16xbf16>
    "tpu.trace_start"() <{level = 10 : i32, message = "btc,co->bto"}> : () -> ()
    %cst_58 = arith.constant dense<0.000000e+00> : vector<2x16x16xf32>
    %53 = tpu.matmul %50, %52, %cst_58 {dimension_numbers = #tpu.dot_dimension_numbers<[2], [0], [0, 1], [1], [0, 0, 0, 1, 1, 1], [], []>} : vector<2x16x16xbf16>, vector<16x16xbf16>, vector<2x16x16xf32> -> vector<2x16x16xf32>
    "tpu.trace_stop"() : () -> ()
    %54 = arith.addf %49, %53 : vector<2x16x16xf32>
    %c0_59 = arith.constant 0 : index
    %c0_60 = arith.constant 0 : index
    %55 = vector.load %arg6[%c0_59, %c0_60] : memref<1x16xf32, #tpu.memory_space<vmem>>, vector<1x16xf32>
    %56 = vector.shape_cast %55 : vector<1x16xf32> to vector<1x1x16xf32>
    %57 = vector.broadcast %56 : vector<1x1x16xf32> to vector<2x16x16xf32>
    %58 = arith.addf %54, %57 : vector<2x16x16xf32>
    %cst_61 = arith.constant 0.000000e+00 : f32
    %59 = vector.broadcast %cst_61 : f32 to vector<2x16x16xf32>
    %60 = arith.maximumf %58, %59 : vector<2x16x16xf32>
    %c0_62 = arith.constant 0 : index
    %c16_63 = arith.constant 16 : index
    %c0_64 = arith.constant 0 : index
    %61 = vector.load %arg10[%c0_62, %c16_63, %c0_64] : memref<2x32x8xbf16, #tpu.memory_space<vmem>>, vector<2x16x8xbf16>
    %c0_65 = arith.constant 0 : index
    %c0_66 = arith.constant 0 : index
    %62 = vector.load %arg7[%c0_65, %c0_66] : memref<8x16xbf16, #tpu.memory_space<vmem>>, vector<8x16xbf16>
    "tpu.trace_start"() <{level = 10 : i32, message = "btc,co->bto"}> : () -> ()
    %cst_67 = arith.constant dense<0.000000e+00> : vector<2x16x16xf32>
    %63 = tpu.matmul %61, %62, %cst_67 {dimension_numbers = #tpu.dot_dimension_numbers<[2], [0], [0, 1], [1], [0, 0, 0, 1, 1, 1], [], []>} : vector<2x16x8xbf16>, vector<8x16xbf16>, vector<2x16x16xf32> -> vector<2x16x16xf32>
    "tpu.trace_stop"() : () -> ()
    %c0_68 = arith.constant 0 : index
    %c0_69 = arith.constant 0 : index
    %64 = vector.load %arg8[%c0_68, %c0_69] : memref<1x16xf32, #tpu.memory_space<vmem>>, vector<1x16xf32>
    %65 = vector.shape_cast %64 : vector<1x16xf32> to vector<1x1x16xf32>
    %66 = vector.broadcast %65 : vector<1x1x16xf32> to vector<2x16x16xf32>
    %67 = arith.addf %63, %66 : vector<2x16x16xf32>
    %68 = arith.addf %60, %67 : vector<2x16x16xf32>
    %cst_70 = arith.constant 0.000000e+00 : f32
    %69 = vector.broadcast %cst_70 : f32 to vector<2x16x16xf32>
    %70 = arith.maximumf %68, %69 : vector<2x16x16xf32>
    %c0_71 = arith.constant 0 : index
    %c0_72 = arith.constant 0 : index
    %c0_73 = arith.constant 0 : index
    %71 = vector.load %arg9[%c0_71, %c0_72, %c0_73] : memref<2x16x16xf32, #tpu.memory_space<vmem>>, vector<2x16x16xf32>
    tpu.vector_store %arg9[%c0_71, %c0_72, %c0_73], %70 {strides = array<i32>} : memref<2x16x16xf32, #tpu.memory_space<vmem>>, vector<2x16x16xf32>,
    return
  }
  func.func @transform_0(%arg0: i32, %arg1: i32) -> (i32, i32, i32) {
    %c0_i32 = arith.constant 0 : i32
    %c0_i32_0 = arith.constant 0 : i32
    return %arg0, %arg1, %c0_i32 : i32, i32, i32
  }
  func.func @transform_1(%arg0: i32, %arg1: i32) -> (i32, i32, i32) {
    %c0_i32 = arith.constant 0 : i32
    %c0_i32_0 = arith.constant 0 : i32
    %c0_i32_1 = arith.constant 0 : i32
    %c0_i32_2 = arith.constant 0 : i32
    return %c0_i32, %c0_i32_0, %c0_i32_1 : i32, i32, i32
  }
  func.func @transform_2(%arg0: i32, %arg1: i32) -> (i32, i32) {
    %c0_i32 = arith.constant 0 : i32
    %c0_i32_0 = arith.constant 0 : i32
    %c0_i32_1 = arith.constant 0 : i32
    return %c0_i32, %c0_i32_0 : i32, i32
  }
  func.func @transform_3(%arg0: i32, %arg1: i32) -> (i32, i32, i32) {
    %c0_i32 = arith.constant 0 : i32
    %c0_i32_0 = arith.constant 0 : i32
    %c0_i32_1 = arith.constant 0 : i32
    %c0_i32_2 = arith.constant 0 : i32
    return %c0_i32, %c0_i32_0, %c0_i32_1 : i32, i32, i32
  }
  func.func @transform_4(%arg0: i32, %arg1: i32) -> (i32, i32) {
    %c0_i32 = arith.constant 0 : i32
    %c0_i32_0 = arith.constant 0 : i32
    %c0_i32_1 = arith.constant 0 : i32
    return %c0_i32, %c0_i32_0 : i32, i32
  }
  func.func @transform_5(%arg0: i32, %arg1: i32) -> (i32, i32) {
    %c0_i32 = arith.constant 0 : i32
    %c0_i32_0 = arith.constant 0 : i32
    %c0_i32_1 = arith.constant 0 : i32
    return %c0_i32, %c0_i32_0 : i32, i32
  }
  func.func @transform_6(%arg0: i32, %arg1: i32) -> (i32, i32) {
    %c0_i32 = arith.constant 0 : i32
    %c0_i32_0 = arith.constant 0 : i32
    %c0_i32_1 = arith.constant 0 : i32
    return %c0_i32, %c0_i32_0 : i32, i32
  }
  func.func @transform_7(%arg0: i32, %arg1: i32) -> (i32, i32, i32) {
    %c0_i32 = arith.constant 0 : i32
    %c0_i32_0 = arith.constant 0 : i32
    return %arg0, %arg1, %c0_i32 : i32, i32, i32
  }
}

module attributes {stable_mosaic.version = 11 : i64} {
  func.func @_temporal_block_kernel(%arg0: i32, %arg1: i32, %arg2: memref<2x16x4xf32, #tpu.memory_space<vmem>>, %arg3: memref<3x4x8xbf16, #tpu.memory_space<vmem>>, %arg4: memref<1x8xf32, #tpu.memory_space<vmem>>, %arg5: memref<3x8x8xbf16, #tpu.memory_space<vmem>>, %arg6: memref<1x8xf32, #tpu.memory_space<vmem>>, %arg7: memref<4x8xbf16, #tpu.memory_space<vmem>>, %arg8: memref<1x8xf32, #tpu.memory_space<vmem>>, %arg9: memref<2x16x8xf32, #tpu.memory_space<vmem>>, %arg10: memref<2x20x4xbf16, #tpu.memory_space<vmem>>, %arg11: memref<2x18x8xbf16, #tpu.memory_space<vmem>>, %arg12: memref<2x4x4xbf16, #tpu.memory_space<vmem>>) attributes {dimension_semantics = [#tpu.dimension_semantics<parallel>, #tpu.dimension_semantics<arbitrary>], iteration_bounds = array<i64: 1, 4>, scalar_prefetch = 0 : i64, scratch_operands = 3 : i64, tpu.core_type = #tpu.core_type<tc>, window_params = [{transform_indices = @transform_0, window_bounds = array<i64: 2, 16, 4>}, {pipeline_mode = #tpu.pipeline_mode<synchronous>, transform_indices = @transform_1, window_bounds = array<i64: 3, 4, 8>}, {pipeline_mode = #tpu.pipeline_mode<synchronous>, transform_indices = @transform_2, window_bounds = array<i64: 1, 8>}, {pipeline_mode = #tpu.pipeline_mode<synchronous>, transform_indices = @transform_3, window_bounds = array<i64: 3, 8, 8>}, {pipeline_mode = #tpu.pipeline_mode<synchronous>, transform_indices = @transform_4, window_bounds = array<i64: 1, 8>}, {pipeline_mode = #tpu.pipeline_mode<synchronous>, transform_indices = @transform_5, window_bounds = array<i64: 4, 8>}, {pipeline_mode = #tpu.pipeline_mode<synchronous>, transform_indices = @transform_6, window_bounds = array<i64: 1, 8>}, {transform_indices = @transform_7, window_bounds = array<i64: 2, 16, 8>}]} {
    %c0 = arith.constant 0 : index
    %c0_0 = arith.constant 0 : index
    %c0_1 = arith.constant 0 : index
    %0 = vector.load %arg2[%c0, %c0_0, %c0_1] : memref<2x16x4xf32, #tpu.memory_space<vmem>>, vector<2x16x4xf32>
    %c0_i32 = arith.constant 0 : i32
    %1 = arith.cmpi eq, %arg1, %c0_i32 : i32
    %2 = arith.extui %1 : i1 to i32
    %c0_i32_2 = arith.constant 0 : i32
    %3 = arith.cmpi ne, %2, %c0_i32_2 : i32
    scf.if %3 {
      %cst_75 = arith.constant 0.000000e+00 : bf16
      %72 = vector.broadcast %cst_75 : bf16 to vector<2x4x4xbf16>
      %c0_76 = arith.constant 0 : index
      %c0_77 = arith.constant 0 : index
      %c0_78 = arith.constant 0 : index
      %73 = vector.load %arg10[%c0_76, %c0_77, %c0_78] : memref<2x20x4xbf16, #tpu.memory_space<vmem>>, vector<2x4x4xbf16>
      tpu.vector_store %arg10[%c0_76, %c0_77, %c0_78], %72 {strides = array<i32>} : memref<2x20x4xbf16, #tpu.memory_space<vmem>>, vector<2x4x4xbf16>,
    } else {
    }
    %c0_i32_3 = arith.constant 0 : i32
    %4 = arith.cmpi sgt, %arg1, %c0_i32_3 : i32
    %5 = arith.extui %4 : i1 to i32
    %c0_i32_4 = arith.constant 0 : i32
    %6 = arith.cmpi ne, %5, %c0_i32_4 : i32
    scf.if %6 {
      %c0_75 = arith.constant 0 : index
      %c0_76 = arith.constant 0 : index
      %c0_77 = arith.constant 0 : index
      %72 = vector.load %arg12[%c0_75, %c0_76, %c0_77] : memref<2x4x4xbf16, #tpu.memory_space<vmem>>, vector<2x4x4xbf16>
      %c0_78 = arith.constant 0 : index
      %c0_79 = arith.constant 0 : index
      %c0_80 = arith.constant 0 : index
      %73 = vector.load %arg10[%c0_78, %c0_79, %c0_80] : memref<2x20x4xbf16, #tpu.memory_space<vmem>>, vector<2x4x4xbf16>
      tpu.vector_store %arg10[%c0_78, %c0_79, %c0_80], %72 {strides = array<i32>} : memref<2x20x4xbf16, #tpu.memory_space<vmem>>, vector<2x4x4xbf16>,
    } else {
    }
    %7 = arith.truncf %0 : vector<2x16x4xf32> to vector<2x16x4xbf16>
    %c0_5 = arith.constant 0 : index
    %c4 = arith.constant 4 : index
    %c0_6 = arith.constant 0 : index
    %8 = vector.load %arg10[%c0_5, %c4, %c0_6] : memref<2x20x4xbf16, #tpu.memory_space<vmem>>, vector<2x16x4xbf16>
    tpu.vector_store %arg10[%c0_5, %c4, %c0_6], %7 {strides = array<i32>} : memref<2x20x4xbf16, #tpu.memory_space<vmem>>, vector<2x16x4xbf16>,
    %c0_7 = arith.constant 0 : index
    %c16 = arith.constant 16 : index
    %c0_8 = arith.constant 0 : index
    %9 = vector.load %arg10[%c0_7, %c16, %c0_8] : memref<2x20x4xbf16, #tpu.memory_space<vmem>>, vector<2x4x4xbf16>
    %c0_9 = arith.constant 0 : index
    %c0_10 = arith.constant 0 : index
    %c0_11 = arith.constant 0 : index
    %10 = vector.load %arg12[%c0_9, %c0_10, %c0_11] : memref<2x4x4xbf16, #tpu.memory_space<vmem>>, vector<2x4x4xbf16>
    tpu.vector_store %arg12[%c0_9, %c0_10, %c0_11], %9 {strides = array<i32>} : memref<2x4x4xbf16, #tpu.memory_space<vmem>>, vector<2x4x4xbf16>,
    %cst = arith.constant 0.000000e+00 : f32
    %11 = vector.broadcast %cst : f32 to vector<2x18x8xf32>
    %c0_12 = arith.constant 0 : index
    %c0_13 = arith.constant 0 : index
    %c0_14 = arith.constant 0 : index
    %12 = vector.load %arg10[%c0_12, %c0_13, %c0_14] : memref<2x20x4xbf16, #tpu.memory_space<vmem>>, vector<2x18x4xbf16>
    %c0_15 = arith.constant 0 : index
    %c0_16 = arith.constant 0 : index
    %c0_17 = arith.constant 0 : index
    %13 = vector.load %arg3[%c0_15, %c0_16, %c0_17] : memref<3x4x8xbf16, #tpu.memory_space<vmem>>, vector<1x4x8xbf16>
    %14 = vector.shape_cast %13 : vector<1x4x8xbf16> to vector<4x8xbf16>
    "tpu.trace_start"() <{level = 10 : i32, message = "btc,co->bto"}> : () -> ()
    %cst_18 = arith.constant dense<0.000000e+00> : vector<2x18x8xf32>
    %15 = tpu.matmul %12, %14, %cst_18 {dimension_numbers = #tpu.dot_dimension_numbers<[2], [0], [0, 1], [1], [0, 0, 0, 1, 1, 1], [], []>} : vector<2x18x4xbf16>, vector<4x8xbf16>, vector<2x18x8xf32> -> vector<2x18x8xf32>
    "tpu.trace_stop"() : () -> ()
    %16 = arith.addf %11, %15 : vector<2x18x8xf32>
    %c0_19 = arith.constant 0 : index
    %c1 = arith.constant 1 : index
    %c0_20 = arith.constant 0 : index
    %17 = vector.load %arg10[%c0_19, %c1, %c0_20] : memref<2x20x4xbf16, #tpu.memory_space<vmem>>, vector<2x18x4xbf16>
    %c1_21 = arith.constant 1 : index
    %c0_22 = arith.constant 0 : index
    %c0_23 = arith.constant 0 : index
    %18 = vector.load %arg3[%c1_21, %c0_22, %c0_23] : memref<3x4x8xbf16, #tpu.memory_space<vmem>>, vector<1x4x8xbf16>
    %19 = vector.shape_cast %18 : vector<1x4x8xbf16> to vector<4x8xbf16>
    "tpu.trace_start"() <{level = 10 : i32, message = "btc,co->bto"}> : () -> ()
    %cst_24 = arith.constant dense<0.000000e+00> : vector<2x18x8xf32>
    %20 = tpu.matmul %17, %19, %cst_24 {dimension_numbers = #tpu.dot_dimension_numbers<[2], [0], [0, 1], [1], [0, 0, 0, 1, 1, 1], [], []>} : vector<2x18x4xbf16>, vector<4x8xbf16>, vector<2x18x8xf32> -> vector<2x18x8xf32>
    "tpu.trace_stop"() : () -> ()
    %21 = arith.addf %16, %20 : vector<2x18x8xf32>
    %c0_25 = arith.constant 0 : index
    %c2 = arith.constant 2 : index
    %c0_26 = arith.constant 0 : index
    %22 = vector.load %arg10[%c0_25, %c2, %c0_26] : memref<2x20x4xbf16, #tpu.memory_space<vmem>>, vector<2x18x4xbf16>
    %c2_27 = arith.constant 2 : index
    %c0_28 = arith.constant 0 : index
    %c0_29 = arith.constant 0 : index
    %23 = vector.load %arg3[%c2_27, %c0_28, %c0_29] : memref<3x4x8xbf16, #tpu.memory_space<vmem>>, vector<1x4x8xbf16>
    %24 = vector.shape_cast %23 : vector<1x4x8xbf16> to vector<4x8xbf16>
    "tpu.trace_start"() <{level = 10 : i32, message = "btc,co->bto"}> : () -> ()
    %cst_30 = arith.constant dense<0.000000e+00> : vector<2x18x8xf32>
    %25 = tpu.matmul %22, %24, %cst_30 {dimension_numbers = #tpu.dot_dimension_numbers<[2], [0], [0, 1], [1], [0, 0, 0, 1, 1, 1], [], []>} : vector<2x18x4xbf16>, vector<4x8xbf16>, vector<2x18x8xf32> -> vector<2x18x8xf32>
    "tpu.trace_stop"() : () -> ()
    %26 = arith.addf %21, %25 : vector<2x18x8xf32>
    %c0_31 = arith.constant 0 : index
    %c0_32 = arith.constant 0 : index
    %27 = vector.load %arg4[%c0_31, %c0_32] : memref<1x8xf32, #tpu.memory_space<vmem>>, vector<1x8xf32>
    %28 = vector.shape_cast %27 : vector<1x8xf32> to vector<1x1x8xf32>
    %29 = vector.broadcast %28 : vector<1x1x8xf32> to vector<2x18x8xf32>
    %30 = arith.addf %26, %29 : vector<2x18x8xf32>
    %cst_33 = arith.constant 0.000000e+00 : f32
    %31 = vector.broadcast %cst_33 : f32 to vector<2x18x8xf32>
    %32 = arith.maximumf %30, %31 : vector<2x18x8xf32>
    %33 = arith.truncf %32 : vector<2x18x8xf32> to vector<2x18x8xbf16>
    %c0_34 = arith.constant 0 : index
    %c0_35 = arith.constant 0 : index
    %c0_36 = arith.constant 0 : index
    %34 = vector.load %arg11[%c0_34, %c0_35, %c0_36] : memref<2x18x8xbf16, #tpu.memory_space<vmem>>, vector<2x18x8xbf16>
    tpu.vector_store %arg11[%c0_34, %c0_35, %c0_36], %33 {strides = array<i32>} : memref<2x18x8xbf16, #tpu.memory_space<vmem>>, vector<2x18x8xbf16>,
    %c16_i32 = arith.constant 16 : i32
    %35 = arith.muli %arg1, %c16_i32 : i32
    %c2_i32 = arith.constant 2 : i32
    %36 = arith.cmpi slt, %35, %c2_i32 : i32
    %37 = arith.extui %36 : i1 to i32
    %c0_i32_37 = arith.constant 0 : i32
    %38 = arith.cmpi ne, %37, %c0_i32_37 : i32
    scf.if %38 {
      %c16_i32_75 = arith.constant 16 : i32
      %72 = arith.muli %arg1, %c16_i32_75 : i32
      %c2_i32_76 = arith.constant 2 : i32
      %73 = arith.subi %72, %c2_i32_76 : i32
      %74 = tpu.iota {dimensions = array<i32: 1>} : vector<1x18x1xi32>
      %75 = vector.broadcast %73 : i32 to vector<1x18x1xi32>
      %76 = arith.addi %75, %74 : vector<1x18x1xi32>
      %c0_i32_77 = arith.constant 0 : i32
      %77 = vector.broadcast %c0_i32_77 : i32 to vector<1x18x1xi32>
      %78 = arith.cmpi sge, %76, %77 : vector<1x18x1xi32>
      %cst_78 = arith.constant 0.000000e+00 : f32
      %79 = vector.shape_cast %78 : vector<1x18x1xi1> to vector<1x18x1xi1>
      %80 = vector.broadcast %79 : vector<1x18x1xi1> to vector<2x18x8xi1>
      %81 = vector.broadcast %cst_78 : f32 to vector<2x18x8xf32>
      %82 = arith.select %80, %32, %81 : vector<2x18x8xi1>, vector<2x18x8xf32>
      %83 = arith.truncf %82 : vector<2x18x8xf32> to vector<2x18x8xbf16>
      %c0_79 = arith.constant 0 : index
      %c0_80 = arith.constant 0 : index
      %c0_81 = arith.constant 0 : index
      %84 = vector.load %arg11[%c0_79, %c0_80, %c0_81] : memref<2x18x8xbf16, #tpu.memory_space<vmem>>, vector<2x18x8xbf16>
      tpu.vector_store %arg11[%c0_79, %c0_80, %c0_81], %83 {strides = array<i32>} : memref<2x18x8xbf16, #tpu.memory_space<vmem>>, vector<2x18x8xbf16>,
    } else {
    }
    %cst_38 = arith.constant 0.000000e+00 : f32
    %39 = vector.broadcast %cst_38 : f32 to vector<2x16x8xf32>
    %c0_39 = arith.constant 0 : index
    %c0_40 = arith.constant 0 : index
    %c0_41 = arith.constant 0 : index
    %40 = vector.load %arg11[%c0_39, %c0_40, %c0_41] : memref<2x18x8xbf16, #tpu.memory_space<vmem>>, vector<2x16x8xbf16>
    %c0_42 = arith.constant 0 : index
    %c0_43 = arith.constant 0 : index
    %c0_44 = arith.constant 0 : index
    %41 = vector.load %arg5[%c0_42, %c0_43, %c0_44] : memref<3x8x8xbf16, #tpu.memory_space<vmem>>, vector<1x8x8xbf16>
    %42 = vector.shape_cast %41 : vector<1x8x8xbf16> to vector<8x8xbf16>
    "tpu.trace_start"() <{level = 10 : i32, message = "btc,co->bto"}> : () -> ()
    %cst_45 = arith.constant dense<0.000000e+00> : vector<2x16x8xf32>
    %43 = tpu.matmul %40, %42, %cst_45 {dimension_numbers = #tpu.dot_dimension_numbers<[2], [0], [0, 1], [1], [0, 0, 0, 1, 1, 1], [], []>} : vector<2x16x8xbf16>, vector<8x8xbf16>, vector<2x16x8xf32> -> vector<2x16x8xf32>
    "tpu.trace_stop"() : () -> ()
    %44 = arith.addf %39, %43 : vector<2x16x8xf32>
    %c0_46 = arith.constant 0 : index
    %c1_47 = arith.constant 1 : index
    %c0_48 = arith.constant 0 : index
    %45 = vector.load %arg11[%c0_46, %c1_47, %c0_48] : memref<2x18x8xbf16, #tpu.memory_space<vmem>>, vector<2x16x8xbf16>
    %c1_49 = arith.constant 1 : index
    %c0_50 = arith.constant 0 : index
    %c0_51 = arith.constant 0 : index
    %46 = vector.load %arg5[%c1_49, %c0_50, %c0_51] : memref<3x8x8xbf16, #tpu.memory_space<vmem>>, vector<1x8x8xbf16>
    %47 = vector.shape_cast %46 : vector<1x8x8xbf16> to vector<8x8xbf16>
    "tpu.trace_start"() <{level = 10 : i32, message = "btc,co->bto"}> : () -> ()
    %cst_52 = arith.constant dense<0.000000e+00> : vector<2x16x8xf32>
    %48 = tpu.matmul %45, %47, %cst_52 {dimension_numbers = #tpu.dot_dimension_numbers<[2], [0], [0, 1], [1], [0, 0, 0, 1, 1, 1], [], []>} : vector<2x16x8xbf16>, vector<8x8xbf16>, vector<2x16x8xf32> -> vector<2x16x8xf32>
    "tpu.trace_stop"() : () -> ()
    %49 = arith.addf %44, %48 : vector<2x16x8xf32>
    %c0_53 = arith.constant 0 : index
    %c2_54 = arith.constant 2 : index
    %c0_55 = arith.constant 0 : index
    %50 = vector.load %arg11[%c0_53, %c2_54, %c0_55] : memref<2x18x8xbf16, #tpu.memory_space<vmem>>, vector<2x16x8xbf16>
    %c2_56 = arith.constant 2 : index
    %c0_57 = arith.constant 0 : index
    %c0_58 = arith.constant 0 : index
    %51 = vector.load %arg5[%c2_56, %c0_57, %c0_58] : memref<3x8x8xbf16, #tpu.memory_space<vmem>>, vector<1x8x8xbf16>
    %52 = vector.shape_cast %51 : vector<1x8x8xbf16> to vector<8x8xbf16>
    "tpu.trace_start"() <{level = 10 : i32, message = "btc,co->bto"}> : () -> ()
    %cst_59 = arith.constant dense<0.000000e+00> : vector<2x16x8xf32>
    %53 = tpu.matmul %50, %52, %cst_59 {dimension_numbers = #tpu.dot_dimension_numbers<[2], [0], [0, 1], [1], [0, 0, 0, 1, 1, 1], [], []>} : vector<2x16x8xbf16>, vector<8x8xbf16>, vector<2x16x8xf32> -> vector<2x16x8xf32>
    "tpu.trace_stop"() : () -> ()
    %54 = arith.addf %49, %53 : vector<2x16x8xf32>
    %c0_60 = arith.constant 0 : index
    %c0_61 = arith.constant 0 : index
    %55 = vector.load %arg6[%c0_60, %c0_61] : memref<1x8xf32, #tpu.memory_space<vmem>>, vector<1x8xf32>
    %56 = vector.shape_cast %55 : vector<1x8xf32> to vector<1x1x8xf32>
    %57 = vector.broadcast %56 : vector<1x1x8xf32> to vector<2x16x8xf32>
    %58 = arith.addf %54, %57 : vector<2x16x8xf32>
    %cst_62 = arith.constant 0.000000e+00 : f32
    %59 = vector.broadcast %cst_62 : f32 to vector<2x16x8xf32>
    %60 = arith.maximumf %58, %59 : vector<2x16x8xf32>
    %c0_63 = arith.constant 0 : index
    %c4_64 = arith.constant 4 : index
    %c0_65 = arith.constant 0 : index
    %61 = vector.load %arg10[%c0_63, %c4_64, %c0_65] : memref<2x20x4xbf16, #tpu.memory_space<vmem>>, vector<2x16x4xbf16>
    %c0_66 = arith.constant 0 : index
    %c0_67 = arith.constant 0 : index
    %62 = vector.load %arg7[%c0_66, %c0_67] : memref<4x8xbf16, #tpu.memory_space<vmem>>, vector<4x8xbf16>
    "tpu.trace_start"() <{level = 10 : i32, message = "btc,co->bto"}> : () -> ()
    %cst_68 = arith.constant dense<0.000000e+00> : vector<2x16x8xf32>
    %63 = tpu.matmul %61, %62, %cst_68 {dimension_numbers = #tpu.dot_dimension_numbers<[2], [0], [0, 1], [1], [0, 0, 0, 1, 1, 1], [], []>} : vector<2x16x4xbf16>, vector<4x8xbf16>, vector<2x16x8xf32> -> vector<2x16x8xf32>
    "tpu.trace_stop"() : () -> ()
    %c0_69 = arith.constant 0 : index
    %c0_70 = arith.constant 0 : index
    %64 = vector.load %arg8[%c0_69, %c0_70] : memref<1x8xf32, #tpu.memory_space<vmem>>, vector<1x8xf32>
    %65 = vector.shape_cast %64 : vector<1x8xf32> to vector<1x1x8xf32>
    %66 = vector.broadcast %65 : vector<1x1x8xf32> to vector<2x16x8xf32>
    %67 = arith.addf %63, %66 : vector<2x16x8xf32>
    %68 = arith.addf %60, %67 : vector<2x16x8xf32>
    %cst_71 = arith.constant 0.000000e+00 : f32
    %69 = vector.broadcast %cst_71 : f32 to vector<2x16x8xf32>
    %70 = arith.maximumf %68, %69 : vector<2x16x8xf32>
    %c0_72 = arith.constant 0 : index
    %c0_73 = arith.constant 0 : index
    %c0_74 = arith.constant 0 : index
    %71 = vector.load %arg9[%c0_72, %c0_73, %c0_74] : memref<2x16x8xf32, #tpu.memory_space<vmem>>, vector<2x16x8xf32>
    tpu.vector_store %arg9[%c0_72, %c0_73, %c0_74], %70 {strides = array<i32>} : memref<2x16x8xf32, #tpu.memory_space<vmem>>, vector<2x16x8xf32>,
    return
  }
  func.func @transform_0(%arg0: i32, %arg1: i32) -> (i32, i32, i32) {
    %c0_i32 = arith.constant 0 : i32
    %c0_i32_0 = arith.constant 0 : i32
    return %arg0, %arg1, %c0_i32 : i32, i32, i32
  }
  func.func @transform_1(%arg0: i32, %arg1: i32) -> (i32, i32, i32) {
    %c0_i32 = arith.constant 0 : i32
    %c0_i32_0 = arith.constant 0 : i32
    %c0_i32_1 = arith.constant 0 : i32
    %c0_i32_2 = arith.constant 0 : i32
    return %c0_i32, %c0_i32_0, %c0_i32_1 : i32, i32, i32
  }
  func.func @transform_2(%arg0: i32, %arg1: i32) -> (i32, i32) {
    %c0_i32 = arith.constant 0 : i32
    %c0_i32_0 = arith.constant 0 : i32
    %c0_i32_1 = arith.constant 0 : i32
    return %c0_i32, %c0_i32_0 : i32, i32
  }
  func.func @transform_3(%arg0: i32, %arg1: i32) -> (i32, i32, i32) {
    %c0_i32 = arith.constant 0 : i32
    %c0_i32_0 = arith.constant 0 : i32
    %c0_i32_1 = arith.constant 0 : i32
    %c0_i32_2 = arith.constant 0 : i32
    return %c0_i32, %c0_i32_0, %c0_i32_1 : i32, i32, i32
  }
  func.func @transform_4(%arg0: i32, %arg1: i32) -> (i32, i32) {
    %c0_i32 = arith.constant 0 : i32
    %c0_i32_0 = arith.constant 0 : i32
    %c0_i32_1 = arith.constant 0 : i32
    return %c0_i32, %c0_i32_0 : i32, i32
  }
  func.func @transform_5(%arg0: i32, %arg1: i32) -> (i32, i32) {
    %c0_i32 = arith.constant 0 : i32
    %c0_i32_0 = arith.constant 0 : i32
    %c0_i32_1 = arith.constant 0 : i32
    return %c0_i32, %c0_i32_0 : i32, i32
  }
  func.func @transform_6(%arg0: i32, %arg1: i32) -> (i32, i32) {
    %c0_i32 = arith.constant 0 : i32
    %c0_i32_0 = arith.constant 0 : i32
    %c0_i32_1 = arith.constant 0 : i32
    return %c0_i32, %c0_i32_0 : i32, i32
  }
  func.func @transform_7(%arg0: i32, %arg1: i32) -> (i32, i32, i32) {
    %c0_i32 = arith.constant 0 : i32
    %c0_i32_0 = arith.constant 0 : i32
    return %arg0, %arg1, %c0_i32 : i32, i32, i32
  }
}

module attributes {stable_mosaic.version = 11 : i64} {
  func.func @_temporal_block_kernel(%arg0: i32, %arg1: i32, %arg2: memref<2x16x16xf32, #tpu.memory_space<vmem>>, %arg3: memref<3x16x16xbf16, #tpu.memory_space<vmem>>, %arg4: memref<1x16xf32, #tpu.memory_space<vmem>>, %arg5: memref<3x16x16xbf16, #tpu.memory_space<vmem>>, %arg6: memref<1x16xf32, #tpu.memory_space<vmem>>, %arg7: memref<2x16x16xf32, #tpu.memory_space<vmem>>, %arg8: memref<2x48x16xbf16, #tpu.memory_space<vmem>>, %arg9: memref<2x32x16xbf16, #tpu.memory_space<vmem>>, %arg10: memref<2x32x16xbf16, #tpu.memory_space<vmem>>) attributes {dimension_semantics = [#tpu.dimension_semantics<parallel>, #tpu.dimension_semantics<arbitrary>], iteration_bounds = array<i64: 1, 4>, scalar_prefetch = 0 : i64, scratch_operands = 3 : i64, tpu.core_type = #tpu.core_type<tc>, window_params = [{transform_indices = @transform_0, window_bounds = array<i64: 2, 16, 16>}, {pipeline_mode = #tpu.pipeline_mode<synchronous>, transform_indices = @transform_1, window_bounds = array<i64: 3, 16, 16>}, {pipeline_mode = #tpu.pipeline_mode<synchronous>, transform_indices = @transform_2, window_bounds = array<i64: 1, 16>}, {pipeline_mode = #tpu.pipeline_mode<synchronous>, transform_indices = @transform_3, window_bounds = array<i64: 3, 16, 16>}, {pipeline_mode = #tpu.pipeline_mode<synchronous>, transform_indices = @transform_4, window_bounds = array<i64: 1, 16>}, {transform_indices = @transform_5, window_bounds = array<i64: 2, 16, 16>}]} {
    %c0 = arith.constant 0 : index
    %c0_0 = arith.constant 0 : index
    %c0_1 = arith.constant 0 : index
    %0 = vector.load %arg2[%c0, %c0_0, %c0_1] : memref<2x16x16xf32, #tpu.memory_space<vmem>>, vector<2x16x16xf32>
    %c0_i32 = arith.constant 0 : i32
    %1 = arith.cmpi eq, %arg1, %c0_i32 : i32
    %2 = arith.extui %1 : i1 to i32
    %c0_i32_2 = arith.constant 0 : i32
    %3 = arith.cmpi ne, %2, %c0_i32_2 : i32
    scf.if %3 {
      %cst_67 = arith.constant 0.000000e+00 : bf16
      %65 = vector.broadcast %cst_67 : bf16 to vector<2x32x16xbf16>
      %c0_68 = arith.constant 0 : index
      %c0_69 = arith.constant 0 : index
      %c0_70 = arith.constant 0 : index
      %66 = vector.load %arg8[%c0_68, %c0_69, %c0_70] : memref<2x48x16xbf16, #tpu.memory_space<vmem>>, vector<2x32x16xbf16>
      tpu.vector_store %arg8[%c0_68, %c0_69, %c0_70], %65 {strides = array<i32>} : memref<2x48x16xbf16, #tpu.memory_space<vmem>>, vector<2x32x16xbf16>,
    } else {
    }
    %c0_i32_3 = arith.constant 0 : i32
    %4 = arith.cmpi sgt, %arg1, %c0_i32_3 : i32
    %5 = arith.extui %4 : i1 to i32
    %c0_i32_4 = arith.constant 0 : i32
    %6 = arith.cmpi ne, %5, %c0_i32_4 : i32
    scf.if %6 {
      %c0_67 = arith.constant 0 : index
      %c0_68 = arith.constant 0 : index
      %c0_69 = arith.constant 0 : index
      %65 = vector.load %arg10[%c0_67, %c0_68, %c0_69] : memref<2x32x16xbf16, #tpu.memory_space<vmem>>, vector<2x32x16xbf16>
      %c0_70 = arith.constant 0 : index
      %c0_71 = arith.constant 0 : index
      %c0_72 = arith.constant 0 : index
      %66 = vector.load %arg8[%c0_70, %c0_71, %c0_72] : memref<2x48x16xbf16, #tpu.memory_space<vmem>>, vector<2x32x16xbf16>
      tpu.vector_store %arg8[%c0_70, %c0_71, %c0_72], %65 {strides = array<i32>} : memref<2x48x16xbf16, #tpu.memory_space<vmem>>, vector<2x32x16xbf16>,
    } else {
    }
    %7 = arith.truncf %0 : vector<2x16x16xf32> to vector<2x16x16xbf16>
    %c0_5 = arith.constant 0 : index
    %c32 = arith.constant 32 : index
    %c0_6 = arith.constant 0 : index
    %8 = vector.load %arg8[%c0_5, %c32, %c0_6] : memref<2x48x16xbf16, #tpu.memory_space<vmem>>, vector<2x16x16xbf16>
    tpu.vector_store %arg8[%c0_5, %c32, %c0_6], %7 {strides = array<i32>} : memref<2x48x16xbf16, #tpu.memory_space<vmem>>, vector<2x16x16xbf16>,
    %c0_7 = arith.constant 0 : index
    %c16 = arith.constant 16 : index
    %c0_8 = arith.constant 0 : index
    %9 = vector.load %arg8[%c0_7, %c16, %c0_8] : memref<2x48x16xbf16, #tpu.memory_space<vmem>>, vector<2x32x16xbf16>
    %c0_9 = arith.constant 0 : index
    %c0_10 = arith.constant 0 : index
    %c0_11 = arith.constant 0 : index
    %10 = vector.load %arg10[%c0_9, %c0_10, %c0_11] : memref<2x32x16xbf16, #tpu.memory_space<vmem>>, vector<2x32x16xbf16>
    tpu.vector_store %arg10[%c0_9, %c0_10, %c0_11], %9 {strides = array<i32>} : memref<2x32x16xbf16, #tpu.memory_space<vmem>>, vector<2x32x16xbf16>,
    %cst = arith.constant 0.000000e+00 : f32
    %11 = vector.broadcast %cst : f32 to vector<2x32x16xf32>
    %c0_12 = arith.constant 0 : index
    %c0_13 = arith.constant 0 : index
    %c0_14 = arith.constant 0 : index
    %12 = vector.load %arg8[%c0_12, %c0_13, %c0_14] : memref<2x48x16xbf16, #tpu.memory_space<vmem>>, vector<2x32x16xbf16>
    %c0_15 = arith.constant 0 : index
    %c0_16 = arith.constant 0 : index
    %c0_17 = arith.constant 0 : index
    %13 = vector.load %arg3[%c0_15, %c0_16, %c0_17] : memref<3x16x16xbf16, #tpu.memory_space<vmem>>, vector<1x16x16xbf16>
    %14 = vector.shape_cast %13 : vector<1x16x16xbf16> to vector<16x16xbf16>
    "tpu.trace_start"() <{level = 10 : i32, message = "btc,co->bto"}> : () -> ()
    %cst_18 = arith.constant dense<0.000000e+00> : vector<2x32x16xf32>
    %15 = tpu.matmul %12, %14, %cst_18 {dimension_numbers = #tpu.dot_dimension_numbers<[2], [0], [0, 1], [1], [0, 0, 0, 1, 1, 1], [], []>} : vector<2x32x16xbf16>, vector<16x16xbf16>, vector<2x32x16xf32> -> vector<2x32x16xf32>
    "tpu.trace_stop"() : () -> ()
    %16 = arith.addf %11, %15 : vector<2x32x16xf32>
    %c0_19 = arith.constant 0 : index
    %c8 = arith.constant 8 : index
    %c0_20 = arith.constant 0 : index
    %17 = vector.load %arg8[%c0_19, %c8, %c0_20] : memref<2x48x16xbf16, #tpu.memory_space<vmem>>, vector<2x32x16xbf16>
    %c1 = arith.constant 1 : index
    %c0_21 = arith.constant 0 : index
    %c0_22 = arith.constant 0 : index
    %18 = vector.load %arg3[%c1, %c0_21, %c0_22] : memref<3x16x16xbf16, #tpu.memory_space<vmem>>, vector<1x16x16xbf16>
    %19 = vector.shape_cast %18 : vector<1x16x16xbf16> to vector<16x16xbf16>
    "tpu.trace_start"() <{level = 10 : i32, message = "btc,co->bto"}> : () -> ()
    %cst_23 = arith.constant dense<0.000000e+00> : vector<2x32x16xf32>
    %20 = tpu.matmul %17, %19, %cst_23 {dimension_numbers = #tpu.dot_dimension_numbers<[2], [0], [0, 1], [1], [0, 0, 0, 1, 1, 1], [], []>} : vector<2x32x16xbf16>, vector<16x16xbf16>, vector<2x32x16xf32> -> vector<2x32x16xf32>
    "tpu.trace_stop"() : () -> ()
    %21 = arith.addf %16, %20 : vector<2x32x16xf32>
    %c0_24 = arith.constant 0 : index
    %c16_25 = arith.constant 16 : index
    %c0_26 = arith.constant 0 : index
    %22 = vector.load %arg8[%c0_24, %c16_25, %c0_26] : memref<2x48x16xbf16, #tpu.memory_space<vmem>>, vector<2x32x16xbf16>
    %c2 = arith.constant 2 : index
    %c0_27 = arith.constant 0 : index
    %c0_28 = arith.constant 0 : index
    %23 = vector.load %arg3[%c2, %c0_27, %c0_28] : memref<3x16x16xbf16, #tpu.memory_space<vmem>>, vector<1x16x16xbf16>
    %24 = vector.shape_cast %23 : vector<1x16x16xbf16> to vector<16x16xbf16>
    "tpu.trace_start"() <{level = 10 : i32, message = "btc,co->bto"}> : () -> ()
    %cst_29 = arith.constant dense<0.000000e+00> : vector<2x32x16xf32>
    %25 = tpu.matmul %22, %24, %cst_29 {dimension_numbers = #tpu.dot_dimension_numbers<[2], [0], [0, 1], [1], [0, 0, 0, 1, 1, 1], [], []>} : vector<2x32x16xbf16>, vector<16x16xbf16>, vector<2x32x16xf32> -> vector<2x32x16xf32>
    "tpu.trace_stop"() : () -> ()
    %26 = arith.addf %21, %25 : vector<2x32x16xf32>
    %c0_30 = arith.constant 0 : index
    %c0_31 = arith.constant 0 : index
    %27 = vector.load %arg4[%c0_30, %c0_31] : memref<1x16xf32, #tpu.memory_space<vmem>>, vector<1x16xf32>
    %28 = vector.shape_cast %27 : vector<1x16xf32> to vector<1x1x16xf32>
    %29 = vector.broadcast %28 : vector<1x1x16xf32> to vector<2x32x16xf32>
    %30 = arith.addf %26, %29 : vector<2x32x16xf32>
    %cst_32 = arith.constant 0.000000e+00 : f32
    %31 = vector.broadcast %cst_32 : f32 to vector<2x32x16xf32>
    %32 = arith.maximumf %30, %31 : vector<2x32x16xf32>
    %33 = arith.truncf %32 : vector<2x32x16xf32> to vector<2x32x16xbf16>
    %c0_33 = arith.constant 0 : index
    %c0_34 = arith.constant 0 : index
    %c0_35 = arith.constant 0 : index
    %34 = vector.load %arg9[%c0_33, %c0_34, %c0_35] : memref<2x32x16xbf16, #tpu.memory_space<vmem>>, vector<2x32x16xbf16>
    tpu.vector_store %arg9[%c0_33, %c0_34, %c0_35], %33 {strides = array<i32>} : memref<2x32x16xbf16, #tpu.memory_space<vmem>>, vector<2x32x16xbf16>,
    %c16_i32 = arith.constant 16 : i32
    %35 = arith.muli %arg1, %c16_i32 : i32
    %c16_i32_36 = arith.constant 16 : i32
    %36 = arith.cmpi slt, %35, %c16_i32_36 : i32
    %37 = arith.extui %36 : i1 to i32
    %c0_i32_37 = arith.constant 0 : i32
    %38 = arith.cmpi ne, %37, %c0_i32_37 : i32
    scf.if %38 {
      %c16_i32_67 = arith.constant 16 : i32
      %65 = arith.muli %arg1, %c16_i32_67 : i32
      %c16_i32_68 = arith.constant 16 : i32
      %66 = arith.subi %65, %c16_i32_68 : i32
      %67 = tpu.iota {dimensions = array<i32: 1>} : vector<1x32x1xi32>
      %68 = vector.broadcast %66 : i32 to vector<1x32x1xi32>
      %69 = arith.addi %68, %67 : vector<1x32x1xi32>
      %c0_i32_69 = arith.constant 0 : i32
      %70 = vector.broadcast %c0_i32_69 : i32 to vector<1x32x1xi32>
      %71 = arith.cmpi sge, %69, %70 : vector<1x32x1xi32>
      %cst_70 = arith.constant 0.000000e+00 : f32
      %72 = vector.shape_cast %71 : vector<1x32x1xi1> to vector<1x32x1xi1>
      %73 = vector.broadcast %72 : vector<1x32x1xi1> to vector<2x32x16xi1>
      %74 = vector.broadcast %cst_70 : f32 to vector<2x32x16xf32>
      %75 = arith.select %73, %32, %74 : vector<2x32x16xi1>, vector<2x32x16xf32>
      %76 = arith.truncf %75 : vector<2x32x16xf32> to vector<2x32x16xbf16>
      %c0_71 = arith.constant 0 : index
      %c0_72 = arith.constant 0 : index
      %c0_73 = arith.constant 0 : index
      %77 = vector.load %arg9[%c0_71, %c0_72, %c0_73] : memref<2x32x16xbf16, #tpu.memory_space<vmem>>, vector<2x32x16xbf16>
      tpu.vector_store %arg9[%c0_71, %c0_72, %c0_73], %76 {strides = array<i32>} : memref<2x32x16xbf16, #tpu.memory_space<vmem>>, vector<2x32x16xbf16>,
    } else {
    }
    %cst_38 = arith.constant 0.000000e+00 : f32
    %39 = vector.broadcast %cst_38 : f32 to vector<2x16x16xf32>
    %c0_39 = arith.constant 0 : index
    %c0_40 = arith.constant 0 : index
    %c0_41 = arith.constant 0 : index
    %40 = vector.load %arg9[%c0_39, %c0_40, %c0_41] : memref<2x32x16xbf16, #tpu.memory_space<vmem>>, vector<2x16x16xbf16>
    %c0_42 = arith.constant 0 : index
    %c0_43 = arith.constant 0 : index
    %c0_44 = arith.constant 0 : index
    %41 = vector.load %arg5[%c0_42, %c0_43, %c0_44] : memref<3x16x16xbf16, #tpu.memory_space<vmem>>, vector<1x16x16xbf16>
    %42 = vector.shape_cast %41 : vector<1x16x16xbf16> to vector<16x16xbf16>
    "tpu.trace_start"() <{level = 10 : i32, message = "btc,co->bto"}> : () -> ()
    %cst_45 = arith.constant dense<0.000000e+00> : vector<2x16x16xf32>
    %43 = tpu.matmul %40, %42, %cst_45 {dimension_numbers = #tpu.dot_dimension_numbers<[2], [0], [0, 1], [1], [0, 0, 0, 1, 1, 1], [], []>} : vector<2x16x16xbf16>, vector<16x16xbf16>, vector<2x16x16xf32> -> vector<2x16x16xf32>
    "tpu.trace_stop"() : () -> ()
    %44 = arith.addf %39, %43 : vector<2x16x16xf32>
    %c0_46 = arith.constant 0 : index
    %c8_47 = arith.constant 8 : index
    %c0_48 = arith.constant 0 : index
    %45 = vector.load %arg9[%c0_46, %c8_47, %c0_48] : memref<2x32x16xbf16, #tpu.memory_space<vmem>>, vector<2x16x16xbf16>
    %c1_49 = arith.constant 1 : index
    %c0_50 = arith.constant 0 : index
    %c0_51 = arith.constant 0 : index
    %46 = vector.load %arg5[%c1_49, %c0_50, %c0_51] : memref<3x16x16xbf16, #tpu.memory_space<vmem>>, vector<1x16x16xbf16>
    %47 = vector.shape_cast %46 : vector<1x16x16xbf16> to vector<16x16xbf16>
    "tpu.trace_start"() <{level = 10 : i32, message = "btc,co->bto"}> : () -> ()
    %cst_52 = arith.constant dense<0.000000e+00> : vector<2x16x16xf32>
    %48 = tpu.matmul %45, %47, %cst_52 {dimension_numbers = #tpu.dot_dimension_numbers<[2], [0], [0, 1], [1], [0, 0, 0, 1, 1, 1], [], []>} : vector<2x16x16xbf16>, vector<16x16xbf16>, vector<2x16x16xf32> -> vector<2x16x16xf32>
    "tpu.trace_stop"() : () -> ()
    %49 = arith.addf %44, %48 : vector<2x16x16xf32>
    %c0_53 = arith.constant 0 : index
    %c16_54 = arith.constant 16 : index
    %c0_55 = arith.constant 0 : index
    %50 = vector.load %arg9[%c0_53, %c16_54, %c0_55] : memref<2x32x16xbf16, #tpu.memory_space<vmem>>, vector<2x16x16xbf16>
    %c2_56 = arith.constant 2 : index
    %c0_57 = arith.constant 0 : index
    %c0_58 = arith.constant 0 : index
    %51 = vector.load %arg5[%c2_56, %c0_57, %c0_58] : memref<3x16x16xbf16, #tpu.memory_space<vmem>>, vector<1x16x16xbf16>
    %52 = vector.shape_cast %51 : vector<1x16x16xbf16> to vector<16x16xbf16>
    "tpu.trace_start"() <{level = 10 : i32, message = "btc,co->bto"}> : () -> ()
    %cst_59 = arith.constant dense<0.000000e+00> : vector<2x16x16xf32>
    %53 = tpu.matmul %50, %52, %cst_59 {dimension_numbers = #tpu.dot_dimension_numbers<[2], [0], [0, 1], [1], [0, 0, 0, 1, 1, 1], [], []>} : vector<2x16x16xbf16>, vector<16x16xbf16>, vector<2x16x16xf32> -> vector<2x16x16xf32>
    "tpu.trace_stop"() : () -> ()
    %54 = arith.addf %49, %53 : vector<2x16x16xf32>
    %c0_60 = arith.constant 0 : index
    %c0_61 = arith.constant 0 : index
    %55 = vector.load %arg6[%c0_60, %c0_61] : memref<1x16xf32, #tpu.memory_space<vmem>>, vector<1x16xf32>
    %56 = vector.shape_cast %55 : vector<1x16xf32> to vector<1x1x16xf32>
    %57 = vector.broadcast %56 : vector<1x1x16xf32> to vector<2x16x16xf32>
    %58 = arith.addf %54, %57 : vector<2x16x16xf32>
    %cst_62 = arith.constant 0.000000e+00 : f32
    %59 = vector.broadcast %cst_62 : f32 to vector<2x16x16xf32>
    %60 = arith.maximumf %58, %59 : vector<2x16x16xf32>
    %61 = arith.addf %60, %0 : vector<2x16x16xf32>
    %cst_63 = arith.constant 0.000000e+00 : f32
    %62 = vector.broadcast %cst_63 : f32 to vector<2x16x16xf32>
    %63 = arith.maximumf %61, %62 : vector<2x16x16xf32>
    %c0_64 = arith.constant 0 : index
    %c0_65 = arith.constant 0 : index
    %c0_66 = arith.constant 0 : index
    %64 = vector.load %arg7[%c0_64, %c0_65, %c0_66] : memref<2x16x16xf32, #tpu.memory_space<vmem>>, vector<2x16x16xf32>
    tpu.vector_store %arg7[%c0_64, %c0_65, %c0_66], %63 {strides = array<i32>} : memref<2x16x16xf32, #tpu.memory_space<vmem>>, vector<2x16x16xf32>,
    return
  }
  func.func @transform_0(%arg0: i32, %arg1: i32) -> (i32, i32, i32) {
    %c0_i32 = arith.constant 0 : i32
    %c0_i32_0 = arith.constant 0 : i32
    return %arg0, %arg1, %c0_i32 : i32, i32, i32
  }
  func.func @transform_1(%arg0: i32, %arg1: i32) -> (i32, i32, i32) {
    %c0_i32 = arith.constant 0 : i32
    %c0_i32_0 = arith.constant 0 : i32
    %c0_i32_1 = arith.constant 0 : i32
    %c0_i32_2 = arith.constant 0 : i32
    return %c0_i32, %c0_i32_0, %c0_i32_1 : i32, i32, i32
  }
  func.func @transform_2(%arg0: i32, %arg1: i32) -> (i32, i32) {
    %c0_i32 = arith.constant 0 : i32
    %c0_i32_0 = arith.constant 0 : i32
    %c0_i32_1 = arith.constant 0 : i32
    return %c0_i32, %c0_i32_0 : i32, i32
  }
  func.func @transform_3(%arg0: i32, %arg1: i32) -> (i32, i32, i32) {
    %c0_i32 = arith.constant 0 : i32
    %c0_i32_0 = arith.constant 0 : i32
    %c0_i32_1 = arith.constant 0 : i32
    %c0_i32_2 = arith.constant 0 : i32
    return %c0_i32, %c0_i32_0, %c0_i32_1 : i32, i32, i32
  }
  func.func @transform_4(%arg0: i32, %arg1: i32) -> (i32, i32) {
    %c0_i32 = arith.constant 0 : i32
    %c0_i32_0 = arith.constant 0 : i32
    %c0_i32_1 = arith.constant 0 : i32
    return %c0_i32, %c0_i32_0 : i32, i32
  }
  func.func @transform_5(%arg0: i32, %arg1: i32) -> (i32, i32, i32) {
    %c0_i32 = arith.constant 0 : i32
    %c0_i32_0 = arith.constant 0 : i32
    return %arg0, %arg1, %c0_i32 : i32, i32, i32
  }
}

</mosaic_0001>

<llo_original>
// kernel: temporal_conv_net.5
$region0: #{temporal_conv_net.5}
  #allocation0 [shape = 'u32[]', space=smem, size = 0x4, offset = 0x4, fixed_abs, tag = 'smem constant byte address 0x4 - core index']
  #allocation1 [shape = 'u32[144,128]{1,0:T(1,128)}', space=vmem, size = 0x12000, scoped, tag = 'internal scratch']
  #allocation2 [shape = 'bf16[2,24,8]{2,1,0:T(8,128)(2,1)}', space=vmem, size = 0x3000, scoped, tag = 'scratch operand']
  #allocation3 [shape = 'bf16[2,20,8]{2,1,0:T(8,128)(2,1)}', space=vmem, size = 0x3000, scoped, tag = 'scratch operand']
  #allocation4 [shape = 'bf16[2,8,8]{2,1,0:T(8,128)(2,1)}', space=vmem, size = 0x1000, scoped, tag = 'scratch operand']
  %s0 = inlined_call_operand.vmem [shape: f32[2,64,8], index: 0, kind: input, shape index: {}]
  %s1 = inlined_call_operand.vmem [shape: bf16[3,8,8], index: 1, kind: input, shape index: {}]
  %s2 = inlined_call_operand.vmem [shape: f32[1,8], index: 2, kind: input, shape index: {}]
  %s3 = inlined_call_operand.vmem [shape: bf16[3,8,8], index: 3, kind: input, shape index: {}]
  %s4 = inlined_call_operand.vmem [shape: f32[1,8], index: 4, kind: input, shape index: {}]
  %s5 = inlined_call_operand.vmem [shape: f32[2,64,8], index: 5, kind: output, shape index: {}]
  %s6 = sld [smem:[#allocation0]]
  $region137: #{temporal_conv_net.5} parent=0
    _
  %s8 = ssub.s32 1, %s6
  %s9 = scalar_select 0, %s8, %s6
  $region1: #{temporal_conv_net.5} parent=0
    #allocation5 [shape = 'u8[32768]{0}', space=vmem, size = 0x8000, scoped, tag = 'input window, operand 0']
    #allocation6 [shape = 'u8[32768]{0}', space=vmem, size = 0x8000, scoped, tag = 'output window, operand 0']
    loop: start=0, step=1, limit=6
    $region2: #{temporal_conv_net.5} parent=1 // loop_pre_header
      _
    $region3: #{temporal_conv_net.5} parent=1 // loop_header
      %s11 = sphi 0, %s15
      %p12 = scmp.ge.s32.totalorder %s11, 6
      %s18 = sphi 0, %s30
      %s19 = sphi 0, %s26
      %s20 = sphi 0, %s18
      %s21 = sphi 0, %s19
      %s22 = sphi 0, %s20
      %s23 = sphi 0, %s21
      %s35 = sphi 0, %s37
      %s38 = sphi 0, %s35
      %s39 = sphi 0, %s38
      %s55 = sphi 0, %s39
      %s59 = sphi 0, %s59
      %s61 = sphi 0, %s59
      %s62 = sphi 0, %s61
      %s76 = sphi 0, %s62
      %s80 = sphi 0, %s80
      %s82 = sphi 0, %s80
      %s83 = sphi 0, %s82
      %s97 = sphi 0, %s83
      %s101 = sphi 0, %s101
      %s103 = sphi 0, %s101
      %s104 = sphi 0, %s103
      %s118 = sphi 0, %s104
      %s122 = sphi 0, %s122
      %s124 = sphi 0, %s122
      %s125 = sphi 0, %s124
      %s139 = sphi 0, %s125
      %s147 = sphi 0, %s149
      %s150 = sphi 0, %s147
      %s151 = sphi 0, %s150
      %s167 = sphi 0, %s151
    $region4: #{temporal_conv_net.5} parent=1 // loop_header_branch
      %14 = sbr.rel (%p12) target = $region8
    $region5: #{temporal_conv_net.5} parent=1 // loop_body
      %s16 = ssub.s32 %s11, 1
      %s17 = ssub.s32 %s11, 2
      %s24 = sadd.s32 1, %s19
      %p25 = scmp.ge.s32.totalorder %s24, 4
      %s26 = scalar_select %p25, 0, %s24
      %s27 = sadd.s32 1, %s18
      %s28 = scalar_select %p25, %s27, %s18
      %p29 = scmp.ge.s32.totalorder %s28, 1
      %s30 = scalar_select %p29, 0, %s28
      %s31 = ssub.s32 %s18, %s30
      %s32 = ssub.s32 %s19, %s26
      %s33 = sor.u32 %s31, %s32
      %p34 = scmp.eq.s32.totalorder %s33, 0
      %s36 = sadd.s32 %s35, 1
      %s37 = scalar_select %p34, %s35, %s36
      %p40 = pneg %p34
      %p41 = scmp.eq.s32.totalorder %s11, 3
      %p42 = por %p40, %p41
      %p43 = scmp.ne.s32.totalorder %s35, %s38
      %p44 = scmp.eq.s32.totalorder %s11, 0
      %p45 = por %p43, %p44
      %p46 = scmp.ne.s32.totalorder %s35, %s38
      %p47 = scmp.eq.s32.totalorder %s16, 3
      %p48 = por %p46, %p47
      %p49 = scmp.ne.s32.totalorder %s38, %s39
      %p50 = scmp.eq.s32.totalorder %s16, 0
      %p51 = por %p49, %p50
      %p52 = scmp.ne.s32.totalorder %s38, %s39
      %p53 = scmp.eq.s32.totalorder %s17, 3
      %p54 = por %p52, %p53
      %p56 = scmp.ne.s32.totalorder %s39, %s55
      %p57 = scmp.eq.s32.totalorder %s17, 0
      %p58 = por %p56, %p57
      %s60 = sadd.s32 %s59, 1
      %p63 = scmp.eq.s32.totalorder %s11, 3
      %p64 = scmp.ne.s32.totalorder %s59, %s61
      %p65 = scmp.eq.s32.totalorder %s11, 0
      %p66 = por %p64, %p65
      %p67 = scmp.ne.s32.totalorder %s59, %s61
      %p68 = scmp.eq.s32.totalorder %s16, 3
      %p69 = por %p67, %p68
      %p70 = scmp.ne.s32.totalorder %s61, %s62
      %p71 = scmp.eq.s32.totalorder %s16, 0
      %p72 = por %p70, %p71
      %p73 = scmp.ne.s32.totalorder %s61, %s62
      %p74 = scmp.eq.s32.totalorder %s17, 3
      %p75 = por %p73, %p74
      %p77 = scmp.ne.s32.totalorder %s62, %s76
      %p78 = scmp.eq.s32.totalorder %s17, 0
      %p79 = por %p77, %p78
      %s81 = sadd.s32 %s80, 1
      %p84 = scmp.eq.s32.totalorder %s11, 3
      %p85 = scmp.ne.s32.totalorder %s80, %s82
      %p86 = scmp.eq.s32.totalorder %s11, 0
      %p87 = por %p85, %p86
      %p88 = scmp.ne.s32.totalorder %s80, %s82
      %p89 = scmp.eq.s32.totalorder %s16, 3
      %p90 = por %p88, %p89
      %p91 = scmp.ne.s32.totalorder %s82, %s83
      %p92 = scmp.eq.s32.totalorder %s16, 0
      %p93 = por %p91, %p92
      %p94 = scmp.ne.s32.totalorder %s82, %s83
      %p95 = scmp.eq.s32.totalorder %s17, 3
      %p96 = por %p94, %p95
      %p98 = scmp.ne.s32.totalorder %s83, %s97
      %p99 = scmp.eq.s32.totalorder %s17, 0
      %p100 = por %p98, %p99
      %s102 = sadd.s32 %s101, 1
      %p105 = scmp.eq.s32.totalorder %s11, 3
      %p106 = scmp.ne.s32.totalorder %s101, %s103
      %p107 = scmp.eq.s32.totalorder %s11, 0
      %p108 = por %p106, %p107
      %p109 = scmp.ne.s32.totalorder %s101, %s103
      %p110 = scmp.eq.s32.totalorder %s16, 3
      %p111 = por %p109, %p110
      %p112 = scmp.ne.s32.totalorder %s103, %s104
      %p113 = scmp.eq.s32.totalorder %s16, 0
      %p114 = por %p112, %p113
      %p115 = scmp.ne.s32.totalorder %s103, %s104
      %p116 = scmp.eq.s32.totalorder %s17, 3
      %p117 = por %p115, %p116
      %p119 = scmp.ne.s32.totalorder %s104, %s118
      %p120 = scmp.eq.s32.totalorder %s17, 0
      %p121 = por %p119, %p120
      %s123 = sadd.s32 %s122, 1
      %p126 = scmp.eq.s32.totalorder %s11, 3
      %p127 = scmp.ne.s32.totalorder %s122, %s124
      %p128 = scmp.eq.s32.totalorder %s11, 0
      %p129 = por %p127, %p128
      %p130 = scmp.ne.s32.totalorder %s122, %s124
      %p131 = scmp.eq.s32.totalorder %s16, 3
      %p132 = por %p130, %p131
      %p133 = scmp.ne.s32.totalorder %s124, %s125
      %p134 = scmp.eq.s32.totalorder %s16, 0
      %p135 = por %p133, %p134
      %p136 = scmp.ne.s32.totalorder %s124, %s125
      %p137 = scmp.eq.s32.totalorder %s17, 3
      %p138 = por %p136, %p137
      %p140 = scmp.ne.s32.totalorder %s125, %s139
      %p141 = scmp.eq.s32.totalorder %s17, 0
      %p142 = por %p140, %p141
      %s143 = ssub.s32 %s18, %s30
      %s144 = ssub.s32 %s19, %s26
      %s145 = sor.u32 %s143, %s144
      %p146 = scmp.eq.s32.totalorder %s145, 0
      %s148 = sadd.s32 %s147, 1
      %s149 = scalar_select %p146, %s147, %s148
      %p152 = pneg %p146
      %p153 = scmp.eq.s32.totalorder %s11, 3
      %p154 = por %p152, %p153
      %p155 = scmp.ne.s32.totalorder %s147, %s150
      %p156 = scmp.eq.s32.totalorder %s11, 0
      %p157 = por %p155, %p156
      %p158 = scmp.ne.s32.totalorder %s147, %s150
      %p159 = scmp.eq.s32.totalorder %s16, 3
      %p160 = por %p158, %p159
      %p161 = scmp.ne.s32.totalorder %s150, %s151
      %p162 = scmp.eq.s32.totalorder %s16, 0
      %p163 = por %p161, %p162
      %p164 = scmp.ne.s32.totalorder %s150, %s151
      %p165 = scmp.eq.s32.totalorder %s17, 3
      %p166 = por %p164, %p165
      %p168 = scmp.ne.s32.totalorder %s151, %s167
      %p169 = scmp.eq.s32.totalorder %s17, 0
      %p170 = por %p168, %p169
      %p171 = scmp.le.s32.totalorder 1, %s11
      %p172 = scmp.lt.s32.totalorder %s11, 5
      %p173 = pnand %p171, %p172
      %p174 = pneg %p173
      // Predicated region
      $region9: #{temporal_conv_net.5} parent=5 // pred_check
        _
      $region10: #{temporal_conv_net.5} parent=5 // pred_check_branch
        %176 = sbr.rel (%p173) target = $region12
      $region11: #{temporal_conv_net.5} parent=5 // pred_region
        %s177 = ssub.s32 %s11, 1
        // Predicated region
        $region13: #{temporal_conv_net.5} parent=11 // pred_check
          %p178 = pneg %p72
        $region14: #{temporal_conv_net.5} parent=11 // pred_check_branch
          %180 = sbr.rel (%p178) target = $region16
        $region15: #{temporal_conv_net.5} parent=11 // pred_region
          _
        $region16: #{temporal_conv_net.5} parent=11 // pred_fallthru
          _
        // Predicated region
        $region17: #{temporal_conv_net.5} parent=11 // pred_check
          %p181 = pneg %p93
        $region18: #{temporal_conv_net.5} parent=11 // pred_check_branch
          %183 = sbr.rel (%p181) target = $region20
        $region19: #{temporal_conv_net.5} parent=11 // pred_region
          _
        $region20: #{temporal_conv_net.5} parent=11 // pred_fallthru
          _
        // Predicated region
        $region21: #{temporal_conv_net.5} parent=11 // pred_check
          %p184 = pneg %p114
        $region22: #{temporal_conv_net.5} parent=11 // pred_check_branch
          %186 = sbr.rel (%p184) target = $region24
        $region23: #{temporal_conv_net.5} parent=11 // pred_region
          _
        $region24: #{temporal_conv_net.5} parent=11 // pred_fallthru
          _
        // Predicated region
        $region25: #{temporal_conv_net.5} parent=11 // pred_check
          %p187 = pneg %p135
        $region26: #{temporal_conv_net.5} parent=11 // pred_check_branch
          %189 = sbr.rel (%p187) target = $region28
        $region27: #{temporal_conv_net.5} parent=11 // pred_region
          _
        $region28: #{temporal_conv_net.5} parent=11 // pred_fallthru
          _
      $region12: #{temporal_conv_net.5} parent=5 // pred_fallthru
        _
      %p190 = scmp.lt.s32.totalorder %s11, 4
      // Predicated region
      $region29: #{temporal_conv_net.5} parent=5 // pred_check
        %p191 = pneg %p190
      $region30: #{temporal_conv_net.5} parent=5 // pred_check_branch
        %193 = sbr.rel (%p191) target = $region32
      $region31: #{temporal_conv_net.5} parent=5 // pred_region
        // Predicated region
        $region33: #{temporal_conv_net.5} parent=31 // pred_check
          %p194 = pneg %p45
        $region34: #{temporal_conv_net.5} parent=31 // pred_check_branch
          %196 = sbr.rel (%p194) target = $region36
        $region35: #{temporal_conv_net.5} parent=31 // pred_region
          %s197 = sand.u32 %s35, 1
          %s198 = sand.u32 %s35, 1
          %s199 = smul.addr %s198, 32
          %s200 = scalar_lea.vmem [#allocation5], %s199
          %s201 = smul.u32 2, %s18
          %s202 = smul.u32 2, %s19
          %s203 = smul.addr %s201, 8
          %s204 = sadd.s32 %s202, %s203
          %s205 = smul.addr %s204, 8
          %s206 = scalar_lea.vmem %s0, %s205
          // Predicated region
          $region37: #{temporal_conv_net.5} parent=35 // pred_check
            _
          $region38: #{temporal_conv_net.5} parent=35 // pred_check_branch
            %208 = sbr.rel (0) target = $region40
          $region39: #{temporal_conv_net.5} parent=35 // pred_region
            // Predicated region
            $region41: #{temporal_conv_net.5} parent=39 // pred_check
              _
            $region42: #{temporal_conv_net.5} parent=39 // pred_check_branch
              %210 = sbr.rel (0) target = $region44
            $region43: #{temporal_conv_net.5} parent=39 // pred_region
              // Predicated region
              $region56: #{temporal_conv_net.5} parent=43 // pred_check
                _
              $region57: #{temporal_conv_net.5} parent=43 // pred_check_branch
                %231 = sbr.rel (0) target = $region59
              $region58: #{temporal_conv_net.5} parent=43 // pred_region
                loop: start=0, step=1, limit=1
                $region60: #{temporal_conv_net.5} parent=58 // loop_pre_header
                  _
                $region61: #{temporal_conv_net.5} parent=58 // loop_header
                  %s233 = sphi 0, %s237
                  %p234 = scmp.ge.s32.totalorder %s233, 1
                  %s238 = sphi %s206, %s206
                  %s239 = sphi %s200, %s200
                $region62: #{temporal_conv_net.5} parent=58 // loop_header_branch
                  %236 = sbr.rel (%p234) target = $region66
                $region63: #{temporal_conv_net.5} parent=58 // loop_body
                  %v240 = vld [vmem:[%s238] sm:$0xff]
                  %241 = vst [vmem:[%s239] sm:$0xff] %v240
                  %v242 = vld [vmem:[%s238 + $0x8] sm:$0xff]
                  %243 = vst [vmem:[%s239 + $0x8] sm:$0xff] %v242
                  %v244 = vld [vmem:[%s238 + $0x40] sm:$0xff]
                  %245 = vst [vmem:[%s239 + $0x10] sm:$0xff] %v244
                  %v246 = vld [vmem:[%s238 + $0x48] sm:$0xff]
                  %247 = vst [vmem:[%s239 + $0x18] sm:$0xff] %v246
                $region64: #{temporal_conv_net.5} parent=58 // loop_footer
                  %s237 = sadd.s32 1, %s233
                $region65: #{temporal_conv_net.5} parent=58 // loop_footer_branch
                  %232 = sbr.rel target = $region61
                $region66: #{temporal_conv_net.5} parent=58 // loop_exit
                  _
              $region59: #{temporal_conv_net.5} parent=43 // pred_fallthru
                _
              // Predicated region
              $region67: #{temporal_conv_net.5} parent=43 // pred_check
                _
              $region68: #{temporal_conv_net.5} parent=43 // pred_check_branch
                %249 = sbr.rel target = $region70
              $region69: #{temporal_conv_net.5} parent=43 // pred_region
                _
              $region70: #{temporal_conv_net.5} parent=43 // pred_fallthru
                _
            $region44: #{temporal_conv_net.5} parent=39 // pred_fallthru
              _
            // Predicated region
            $region45: #{temporal_conv_net.5} parent=39 // pred_check
              _
            $region46: #{temporal_conv_net.5} parent=39 // pred_check_branch
              %212 = sbr.rel target = $region48
            $region47: #{temporal_conv_net.5} parent=39 // pred_region
              loop: start=0, step=1, limit=1
              $region49: #{temporal_conv_net.5} parent=47 // loop_pre_header
                _
              $region50: #{temporal_conv_net.5} parent=47 // loop_header
                %s215 = sphi 0, %s219
                %p216 = scmp.ge.s32.totalorder %s215, 1
                %s220 = sphi %s206, %s206
                %s221 = sphi %s200, %s200
              $region51: #{temporal_conv_net.5} parent=47 // loop_header_branch
                %218 = sbr.rel (%p216) target = $region55
              $region52: #{temporal_conv_net.5} parent=47 // loop_body
                %v222 = vld [vmem:[%s220] sm:$0xff]
                %223 = vst [vmem:[%s221] sm:$0xff] %v222
                %v224 = vld [vmem:[%s220 + $0x8] sm:$0xff]
                %225 = vst [vmem:[%s221 + $0x8] sm:$0xff] %v224
                %v226 = vld [vmem:[%s220 + $0x40] sm:$0xff]
                %227 = vst [vmem:[%s221 + $0x10] sm:$0xff] %v226
                %v228 = vld [vmem:[%s220 + $0x48] sm:$0xff]
                %229 = vst [vmem:[%s221 + $0x18] sm:$0xff] %v228
              $region53: #{temporal_conv_net.5} parent=47 // loop_footer
                %s219 = sadd.s32 1, %s215
              $region54: #{temporal_conv_net.5} parent=47 // loop_footer_branch
                %214 = sbr.rel target = $region50
              $region55: #{temporal_conv_net.5} parent=47 // loop_exit
                _
            $region48: #{temporal_conv_net.5} parent=39 // pred_fallthru
              _
          $region40: #{temporal_conv_net.5} parent=35 // pred_fallthru
            _
          %250 = vnop
        $region36: #{temporal_conv_net.5} parent=31 // pred_fallthru
          _
      $region32: #{temporal_conv_net.5} parent=5 // pred_fallthru
        _
      %p251 = scmp.le.s32.totalorder 1, %s11
      %p252 = scmp.lt.s32.totalorder %s11, 5
      %p253 = pnand %p251, %p252
      %p254 = pneg %p253
      // Predicated region
      $region71: #{temporal_conv_net.5} parent=5 // pred_check
        _
      $region72: #{temporal_conv_net.5} parent=5 // pred_check_branch
        %256 = sbr.rel (%p253) target = $region74
      $region73: #{temporal_conv_net.5} parent=5 // pred_region
        %s257 = ssub.s32 %s11, 1
        %s258 = sand.u32 %s38, 1
        %s259 = sand.u32 %s38, 1
        %s260 = smul.addr %s259, 32
        %s261 = scalar_lea.vmem [#allocation5], %s260
        // Predicated region
        $region75: #{temporal_conv_net.5} parent=73 // pred_check
          %p262 = pneg %p51
        $region76: #{temporal_conv_net.5} parent=73 // pred_check_branch
          %264 = sbr.rel (%p262) target = $region78
        $region77: #{temporal_conv_net.5} parent=73 // pred_region
          _
        $region78: #{temporal_conv_net.5} parent=73 // pred_fallthru
          _
        %s265 = sand.u32 %s38, 1
        %s266 = sand.u32 %s38, 1
        %s267 = smul.addr %s266, 32
        %s268 = scalar_lea.vmem [#allocation5], %s267
        %p269 = pneg %p51
        %p270 = pneg %p48
        %p271 = pneg %p72
        %p272 = pneg %p69
        %p273 = pneg %p93
        %p274 = pneg %p90
        %p275 = pneg %p114
        %p276 = pneg %p111
        %p277 = pneg %p135
        %p278 = pneg %p132
        %p279 = pneg %p163
        %p280 = pneg %p160
        %s281 = sand.u32 %s150, 1
        %s282 = sand.u32 %s150, 1
        %s283 = smul.addr %s282, 32
        %s284 = scalar_lea.vmem [#allocation6], %s283
        %s285 = smul.u32 2, %s20
        %s286 = smul.u32 2, %s21
        %s287 = smul.u32 2, %s20
        %s288 = smul.u32 2, %s21
        %v290 = vld [vmem:[%s261] sm:$0xff]
        %v291 = vld [vmem:[%s261 + $0x8] sm:$0xff]
        %v292 = vld [vmem:[%s261 + $0x10] sm:$0xff]
        %v293 = vld [vmem:[%s261 + $0x18] sm:$0xff]
        %p294 = scmp.eq.s32.totalorder %s21, 0
        // Predicated region
        $region79: #{temporal_conv_net.5} parent=73 // pred_check
          %p295 = pneg %p294
        $region80: #{temporal_conv_net.5} parent=73 // pred_check_branch
          %297 = sbr.rel (%p295) target = $region82
        $region81: #{temporal_conv_net.5} parent=73 // pred_region
          %vm298 = vcmask 60416
          %299 = vst.msk [vmem:[#allocation2] sm:$0xf] %vm298, 0
          %300 = vst.msk [vmem:[#allocation2 + $0xc] sm:$0xf] %vm298, 0
        $region82: #{temporal_conv_net.5} parent=73 // pred_fallthru
          _
        %p301 = scmp.gt.s32.totalorder %s21, 0
        // Predicated region
        $region83: #{temporal_conv_net.5} parent=73 // pred_check
          %p302 = pneg %p301
        $region84: #{temporal_conv_net.5} parent=73 // pred_check_branch
          %304 = sbr.rel (%p302) target = $region86
        $region85: #{temporal_conv_net.5} parent=73 // pred_region
          %v305 = vld [vmem:[#allocation4] sm:$0xf]
          %v306 = vld [vmem:[#allocation4 + $0x4] sm:$0xf]
          %vm307 = vcmask 60416
          %308 = vst.msk [vmem:[#allocation2] sm:$0xf] %vm307, %v305
          %309 = vst.msk [vmem:[#allocation2 + $0xc] sm:$0xf] %vm307, %v306
        $region86: #{temporal_conv_net.5} parent=73 // pred_fallthru
          _
        %v310 = vpack.c.bf16 %v291, %v290
        %v311 = vpack.c.bf16 %v293, %v292
        %v314 = vunpack.c.l.b16 %v310
        %v315 = vunpack.c.h.b16 %v310
        %v316 = vunpack.c.l.b16 %v311
        %v317 = vunpack.c.h.b16 %v311
        %v318 = vpack.c.b16 %v314, %v314
        %v319 = vpack.c.b16 %v315, %v315
        %v320 = vpack.c.b16 %v316, %v316
        %v321 = vpack.c.b16 %v317, %v317
        %vm326 = vcmask 60416
        %327 = vst.msk [vmem:[#allocation2 + $0x4] sm:$0xf] %vm326, %v318
        %328 = vst.msk [vmem:[#allocation2 + $0x8] sm:$0xf] %vm326, %v319
        %329 = vst.msk [vmem:[#allocation2 + $0x10] sm:$0xf] %vm326, %v320
        %330 = vst.msk [vmem:[#allocation2 + $0x14] sm:$0xf] %vm326, %v321
        %v331 = vld [vmem:[#allocation2 + $0x8] sm:$0xf]
        %v332 = vld [vmem:[#allocation2 + $0x14] sm:$0xf]
        %333 = vst.msk [vmem:[#allocation4] sm:$0xf] %vm326, %v331
        %334 = vst.msk [vmem:[#allocation4 + $0x4] sm:$0xf] %vm326, %v332
        %v335 = vld [vmem:[#allocation2] sm:$0xf]
        %v336 = vld [vmem:[#allocation2 + $0x4] sm:$0xf]
        %v337 = vld [vmem:[#allocation2 + $0x8] sm:$0x3]
        %v338 = vld [vmem:[#allocation2 + $0xc] sm:$0xf]
        %v339 = vld [vmem:[#allocation2 + $0x10] sm:$0xf]
        %v340 = vld [vmem:[#allocation2 + $0x14] sm:$0x3]
        %v341 = vld [vmem:[%s1] sm:$0xf]
        %v342 = vld [vmem:[#allocation2] sm:$0xe]
        %v343 = vld [vmem:[#allocation2 + $0x4] sm:$0xf]
        %v344 = vld [vmem:[#allocation2 + $0x8] sm:$0x7]
        %v345 = vld [vmem:[#allocation2 + $0xc] sm:$0xe]
        %v346 = vld [vmem:[#allocation2 + $0x10] sm:$0xf]
        %v347 = vld [vmem:[#allocation2 + $0x14] sm:$0x7]
        %s348 = scalar_lea.vmem %s1, 4
        %v349 = vld [vmem:[%s348] sm:$0xf]
        %v357 = vunpack.c.l.s4 1983009808
        %v358 = vunpack.c.0.s8 %v357
        %v359 = vlaneseq
        %v360 = vshrl.u32 %v359, 7
        %v361 = vsub.s32 %v358, %v360
        %v362 = vrot.slane %v342, %v361
        %v363 = vcombine.high %v362, %v362
        %v365 = vunpack.c.l.s4 1983009808
        %v366 = vunpack.c.0.s8 %v365
        %v367 = vlaneseq
        %v368 = vshrl.u32 %v367, 7
        %v369 = vsub.s32 %v366, %v368
        %v370 = vrot.slane %v343, %v369
        %v371 = vcombine.high %v370, %v370
        %v373 = vunpack.c.l.s4 1983009808
        %v374 = vunpack.c.0.s8 %v373
        %v375 = vlaneseq
        %v376 = vshrl.u32 %v375, 7
        %v377 = vsub.s32 %v374, %v376
        %v378 = vrot.slane %v344, %v377
        %v379 = vcombine.high %v378, %v378
        %v381 = vunpack.c.l.s4 1983009808
        %v382 = vunpack.c.0.s8 %v381
        %v383 = vlaneseq
        %v384 = vshrl.u32 %v383, 7
        %v385 = vsub.s32 %v382, %v384
        %v386 = vrot.slane %v345, %v385
        %v387 = vcombine.high %v386, %v386
        %v389 = vunpack.c.l.s4 1983009808
        %v390 = vunpack.c.0.s8 %v389
        %v391 = vlaneseq
        %v392 = vshrl.u32 %v391, 7
        %v393 = vsub.s32 %v390, %v392
        %v394 = vrot.slane %v346, %v393
        %v395 = vcombine.high %v394, %v394
        %v397 = vunpack.c.l.s4 1983009808
        %v398 = vunpack.c.0.s8 %v397
        %v399 = vlaneseq
        %v400 = vshrl.u32 %v399, 7
        %v401 = vsub.s32 %v398, %v400
        %v402 = vrot.slane %v347, %v401
        %v403 = vcombine.high %v402, %v402
        %vm404 = vcmask 1040384
        %vm405 = vcmask 1042434
        %vm406 = vmor %vm404, %vm405
        %vm407 = vcmask 1044484
        %vm408 = vmor %vm406, %vm407
        %vm409 = vcmask 1046534
        %vm410 = vmor %vm408, %vm409
        %v411 = vrot.slane %v362, 7
        %v412 = vrot.slane %v411, 2
        %v413 = vrot.slane %v363, 7
        %v414 = vsel %vm410, %v412, %v413
        %v415 = vrot.slane %v413, 2
        %v416 = vrot.slane %v370, 7
        %v417 = vsel %vm410, %v415, %v416
        %v418 = vrot.slane %v416, 2
        %v419 = vrot.slane %v371, 7
        %v420 = vsel %vm410, %v418, %v419
        %v421 = vrot.slane %v419, 2
        %v422 = vrot.slane %v378, 7
        %v423 = vsel %vm410, %v421, %v422
        %v424 = vrot.slane %v422, 2
        %v425 = vrot.slane %v379, 7
        %v426 = vsel %vm410, %v424, %v425
        %v427 = vrot.slane %v386, 7
        %v428 = vrot.slane %v427, 2
        %v429 = vrot.slane %v387, 7
        %v430 = vsel %vm410, %v428, %v429
        %v431 = vrot.slane %v429, 2
        %v432 = vrot.slane %v394, 7
        %v433 = vsel %vm410, %v431, %v432
        %v434 = vrot.slane %v432, 2
        %v435 = vrot.slane %v395, 7
        %v436 = vsel %vm410, %v434, %v435
        %v437 = vrot.slane %v435, 2
        %v438 = vrot.slane %v402, 7
        %v439 = vsel %vm410, %v437, %v438
        %v440 = vrot.slane %v438, 2
        %v441 = vrot.slane %v403, 7
        %v442 = vsel %vm410, %v440, %v441
        %v443 = vcombine.low %v414, %v417
        %v444 = vcombine.low %v420, %v423
        %v446 = vunpack.c.l.s4 1983009808
        %v447 = vunpack.c.0.s8 %v446
        %v448 = vlaneseq
        %v449 = vshrl.u32 %v448, 7
        %v450 = vsub.s32 %v447, %v449
        %v451 = vrot.slane %v443, %v450
        %v453 = vunpack.c.l.s4 1983009808
        %v454 = vunpack.c.0.s8 %v453
        %v455 = vlaneseq
        %v456 = vshrl.u32 %v455, 7
        %v457 = vsub.s32 %v454, %v456
        %v458 = vrot.slane %v444, %v457
        %v459 = vcombine.low %v451, %v458
        %v460 = vcombine.low %v426, %v430
        %v461 = vcombine.low %v433, %v436
        %v463 = vunpack.c.l.s4 1983009808
        %v464 = vunpack.c.0.s8 %v463
        %v465 = vlaneseq
        %v466 = vshrl.u32 %v465, 7
        %v467 = vsub.s32 %v464, %v466
        %v468 = vrot.slane %v460, %v467
        %v470 = vunpack.c.l.s4 1983009808
        %v471 = vunpack.c.0.s8 %v470
        %v472 = vlaneseq
        %v473 = vshrl.u32 %v472, 7
        %v474 = vsub.s32 %v471, %v473
        %v475 = vrot.slane %v461, %v474
        %v476 = vcombine.low %v468, %v475
        %v477 = vcombine.low %v439, %v442
        %v479 = vunpack.c.l.s4 1983009808
        %v480 = vunpack.c.0.s8 %v479
        %v481 = vlaneseq
        %v482 = vshrl.u32 %v481, 7
        %v483 = vsub.s32 %v480, %v482
        %v484 = vrot.slane %v477, %v483
        %vm485 = vcmask 64512
        %v487 = vsel %vm485, %v459, 0
        %v490 = vsel %vm485, %v476, 0
        %v493 = vsel %vm485, %v484, 0
        %vm495 = vcmask 1043456
        %v497 = vsel %vm495, %v349, 0
        %499 = vmatprep.subr.bf16.mxu0 0
        %500 = vmatpush1.bf16.msra.mxu0 %v497
        %501 = vmatprep.subr.bf16.mxu0 0
        %502 = vmatpush1.bf16.msra.mxu0 0
        %503 = vmatprep.subr.bf16.mxu0 0
        %504 = vmatpush1.bf16.msra.mxu0 0
        %505 = vmatprep.subr.bf16.mxu0 0
        %506 = vmatpush1.bf16.msra.mxu0 0
        %507 = vmatprep.subr.bf16.mxu0 0
        %508 = vmatpush1.bf16.msra.mxu0 0
        %509 = vmatprep.subr.bf16.mxu0 0
        %510 = vmatpush1.bf16.msra.mxu0 0
        %511 = vmatprep.subr.bf16.mxu0 0
        %512 = vmatpush1.bf16.msra.mxu0 0
        %513 = vmatprep.subr.bf16.mxu0 0
        %514 = vmatpush1.bf16.msra.mxu0 0
        %515 = vmatprep.subr.bf16.mxu0 0
        %516 = vmatpush1.bf16.msra.mxu0 0
        %517 = vmatprep.subr.bf16.mxu0 0
        %518 = vmatpush1.bf16.msra.mxu0 0
        %519 = vmatprep.subr.bf16.mxu0 0
        %520 = vmatpush1.bf16.msra.mxu0 0
        %521 = vmatprep.subr.bf16.mxu0 0
        %522 = vmatpush1.bf16.msra.mxu0 0
        %523 = vmatprep.subr.bf16.mxu0 0
        %524 = vmatpush1.bf16.msra.mxu0 0
        %525 = vmatprep.subr.bf16.mxu0 0
        %526 = vmatpush1.bf16.msra.mxu0 0
        %527 = vmatprep.subr.bf16.mxu0 0
        %528 = vmatpush1.bf16.msra.mxu0 0
        %529 = vmatprep.subr.bf16.mxu0 0
        %530 = vmatpush1.bf16.msra.mxu0 0
        %531 = vmatprep.mubr.bf16.mxu0 0
        %532 = vmatmul.mubr.bf16.gmra.mrb[0].mxu0 %v487
        %v533 = vpop.f32.mrb[0].mxu0
        %v534 = vadd.f32 0.0, %v533
        %v535 = vpop.f32.mrb[0].mxu0
        %v536 = vpop.f32.mrb[0].mxu0
        %v537 = vadd.f32 0.0, %v536
        %v538 = vpop.f32.mrb[0].mxu0
        %539 = vmatprep.mubr.bf16.mxu0 0
        %540 = vmatmul.mubr.bf16.gmra.mrb[0].mxu0 %v490
        %v541 = vpop.f32.mrb[0].mxu0
        %v542 = vadd.f32 0.0, %v541
        %v543 = vpop.f32.mrb[0].mxu0
        %v544 = vpop.f32.mrb[0].mxu0
        %v545 = vadd.f32 0.0, %v544
        %v546 = vpop.f32.mrb[0].mxu0
        %547 = vmatprep.mubr.bf16.mxu0 0
        %548 = vmatmul.mubr.bf16.gmra.mrb[0].mxu0 %v493
        %v549 = vpop.f32.mrb[0].mxu0
        %v550 = vadd.f32 0.0, %v549
        %v551 = vpop.f32.mrb[0].mxu0
        %v552 = vpop.f32.mrb[0].mxu0
        %v553 = vpop.f32.mrb[0].mxu0
        %554 = vdwg.mxu0
        %v562 = vunpack.c.l.s4 1983009808
        %v563 = vunpack.c.0.s8 %v562
        %v564 = vlaneseq
        %v565 = vshrl.u32 %v564, 7
        %v566 = vsub.s32 %v563, %v565
        %v567 = vrot.slane %v335, %v566
        %v568 = vcombine.high %v567, %v567
        %v570 = vunpack.c.l.s4 1983009808
        %v571 = vunpack.c.0.s8 %v570
        %v572 = vlaneseq
        %v573 = vshrl.u32 %v572, 7
        %v574 = vsub.s32 %v571, %v573
        %v575 = vrot.slane %v336, %v574
        %v576 = vcombine.high %v575, %v575
        %v578 = vunpack.c.l.s4 1983009808
        %v579 = vunpack.c.0.s8 %v578
        %v580 = vlaneseq
        %v581 = vshrl.u32 %v580, 7
        %v582 = vsub.s32 %v579, %v581
        %v583 = vrot.slane %v337, %v582
        %v585 = vunpack.c.l.s4 1983009808
        %v586 = vunpack.c.0.s8 %v585
        %v587 = vlaneseq
        %v588 = vshrl.u32 %v587, 7
        %v589 = vsub.s32 %v586, %v588
        %v590 = vrot.slane %v338, %v589
        %v591 = vcombine.high %v590, %v590
        %v593 = vunpack.c.l.s4 1983009808
        %v594 = vunpack.c.0.s8 %v593
        %v595 = vlaneseq
        %v596 = vshrl.u32 %v595, 7
        %v597 = vsub.s32 %v594, %v596
        %v598 = vrot.slane %v339, %v597
        %v599 = vcombine.high %v598, %v598
        %v601 = vunpack.c.l.s4 1983009808
        %v602 = vunpack.c.0.s8 %v601
        %v603 = vlaneseq
        %v604 = vshrl.u32 %v603, 7
        %v605 = vsub.s32 %v602, %v604
        %v606 = vrot.slane %v340, %v605
        %v607 = vcombine.low %v567, %v568
        %v608 = vcombine.low %v575, %v576
        %v610 = vunpack.c.l.s4 1983009808
        %v611 = vunpack.c.0.s8 %v610
        %v612 = vlaneseq
        %v613 = vshrl.u32 %v612, 7
        %v614 = vsub.s32 %v611, %v613
        %v615 = vrot.slane %v607, %v614
        %v617 = vunpack.c.l.s4 1983009808
        %v618 = vunpack.c.0.s8 %v617
        %v619 = vlaneseq
        %v620 = vshrl.u32 %v619, 7
        %v621 = vsub.s32 %v618, %v620
        %v622 = vrot.slane %v608, %v621
        %v623 = vcombine.low %v615, %v622
        %v624 = vcombine.low %v583, %v590
        %v625 = vcombine.low %v591, %v598
        %v627 = vunpack.c.l.s4 1983009808
        %v628 = vunpack.c.0.s8 %v627
        %v629 = vlaneseq
        %v630 = vshrl.u32 %v629, 7
        %v631 = vsub.s32 %v628, %v630
        %v632 = vrot.slane %v624, %v631
        %v634 = vunpack.c.l.s4 1983009808
        %v635 = vunpack.c.0.s8 %v634
        %v636 = vlaneseq
        %v637 = vshrl.u32 %v636, 7
        %v638 = vsub.s32 %v635, %v637
        %v639 = vrot.slane %v625, %v638
        %v640 = vcombine.low %v632, %v639
        %v641 = vcombine.low %v599, %v606
        %v643 = vunpack.c.l.s4 1983009808
        %v644 = vunpack.c.0.s8 %v643
        %v645 = vlaneseq
        %v646 = vshrl.u32 %v645, 7
        %v647 = vsub.s32 %v644, %v646
        %v648 = vrot.slane %v641, %v647
        %v650 = vsel %vm485, %v623, 0
        %v653 = vsel %vm485, %v640, 0
        %v656 = vsel %vm485, %v648, 0
        %v659 = vsel %vm495, %v341, 0
        %661 = vmatprep.subr.bf16.mxu0 0
        %662 = vmatpush1.bf16.msra.mxu0 %v659
        %663 = vmatprep.subr.bf16.mxu0 0
        %664 = vmatpush1.bf16.msra.mxu0 0
        %665 = vmatprep.subr.bf16.mxu0 0
        %666 = vmatpush1.bf16.msra.mxu0 0
        %667 = vmatprep.subr.bf16.mxu0 0
        %668 = vmatpush1.bf16.msra.mxu0 0
        %669 = vmatprep.subr.bf16.mxu0 0
        %670 = vmatpush1.bf16.msra.mxu0 0
        %671 = vmatprep.subr.bf16.mxu0 0
        %672 = vmatpush1.bf16.msra.mxu0 0
        %673 = vmatprep.subr.bf16.mxu0 0
        %674 = vmatpush1.bf16.msra.mxu0 0
        %675 = vmatprep.subr.bf16.mxu0 0
        %676 = vmatpush1.bf16.msra.mxu0 0
        %677 = vmatprep.subr.bf16.mxu0 0
        %678 = vmatpush1.bf16.msra.mxu0 0
        %679 = vmatprep.subr.bf16.mxu0 0
        %680 = vmatpush1.bf16.msra.mxu0 0
        %681 = vmatprep.subr.bf16.mxu0 0
        %682 = vmatpush1.bf16.msra.mxu0 0
        %683 = vmatprep.subr.bf16.mxu0 0
        %684 = vmatpush1.bf16.msra.mxu0 0
        %685 = vmatprep.subr.bf16.mxu0 0
        %686 = vmatpush1.bf16.msra.mxu0 0
        %687 = vmatprep.subr.bf16.mxu0 0
        %688 = vmatpush1.bf16.msra.mxu0 0
        %689 = vmatprep.subr.bf16.mxu0 0
        %690 = vmatpush1.bf16.msra.mxu0 0
        %691 = vmatprep.subr.bf16.mxu0 0
        %692 = vmatpush1.bf16.msra.mxu0 0
        %693 = vmatprep.mubr.bf16.mxu0 0
        %694 = vmatmul.mubr.bf16.gmra.mrb[0].mxu0 %v650
        %v695 = vpop.f32.mrb[0].mxu0
        %v696 = vadd.f32 %v534, %v695
        %v697 = vpop.f32.mrb[0].mxu0
        %v698 = vpop.f32.mrb[0].mxu0
        %v699 = vadd.f32 %v537, %v698
        %v700 = vpop.f32.mrb[0].mxu0
        %701 = vmatprep.mubr.bf16.mxu0 0
        %702 = vmatmul.mubr.bf16.gmra.mrb[0].mxu0 %v653
        %v703 = vpop.f32.mrb[0].mxu0
        %v704 = vadd.f32 %v542, %v703
        %v705 = vpop.f32.mrb[0].mxu0
        %v706 = vpop.f32.mrb[0].mxu0
        %v707 = vadd.f32 %v545, %v706
        %v708 = vpop.f32.mrb[0].mxu0
        %709 = vmatprep.mubr.bf16.mxu0 0
        %710 = vmatmul.mubr.bf16.gmra.mrb[0].mxu0 %v656
        %v711 = vpop.f32.mrb[0].mxu0
        %v712 = vadd.f32 %v550, %v711
        %v713 = vpop.f32.mrb[0].mxu0
        %v714 = vpop.f32.mrb[0].mxu0
        %v715 = vpop.f32.mrb[0].mxu0
        %716 = vdwg.mxu0
        %v722 = vcombine.high %v696, %v696
        %v723 = vcombine.high %v699, %v699
        %v724 = vcombine.high %v704, %v704
        %v725 = vcombine.high %v707, %v707
        %v726 = vcombine.high %v712, %v712
        %v732 = vld [vmem:[#allocation2] sm:$0xc]
        %v733 = vld [vmem:[#allocation2 + $0x4] sm:$0xf]
        %v734 = vld [vmem:[#allocation2 + $0x8] sm:$0xf]
        %v735 = vld [vmem:[#allocation2 + $0xc] sm:$0xc]
        %v736 = vld [vmem:[#allocation2 + $0x10] sm:$0xf]
        %v737 = vld [vmem:[#allocation2 + $0x14] sm:$0xf]
        %s738 = scalar_lea.vmem %s1, 8
        %v739 = vld [vmem:[%s738] sm:$0xf]
        %v747 = vunpack.c.l.s4 1983009808
        %v748 = vunpack.c.0.s8 %v747
        %v749 = vlaneseq
        %v750 = vshrl.u32 %v749, 7
        %v751 = vsub.s32 %v748, %v750
        %v752 = vrot.slane %v732, %v751
        %v753 = vcombine.high %v752, %v752
        %v755 = vunpack.c.l.s4 1983009808
        %v756 = vunpack.c.0.s8 %v755
        %v757 = vlaneseq
        %v758 = vshrl.u32 %v757, 7
        %v759 = vsub.s32 %v756, %v758
        %v760 = vrot.slane %v733, %v759
        %v761 = vcombine.high %v760, %v760
        %v763 = vunpack.c.l.s4 1983009808
        %v764 = vunpack.c.0.s8 %v763
        %v765 = vlaneseq
        %v766 = vshrl.u32 %v765, 7
        %v767 = vsub.s32 %v764, %v766
        %v768 = vrot.slane %v734, %v767
        %v769 = vcombine.high %v768, %v768
        %v771 = vunpack.c.l.s4 1983009808
        %v772 = vunpack.c.0.s8 %v771
        %v773 = vlaneseq
        %v774 = vshrl.u32 %v773, 7
        %v775 = vsub.s32 %v772, %v774
        %v776 = vrot.slane %v735, %v775
        %v777 = vcombine.high %v776, %v776
        %v779 = vunpack.c.l.s4 1983009808
        %v780 = vunpack.c.0.s8 %v779
        %v781 = vlaneseq
        %v782 = vshrl.u32 %v781, 7
        %v783 = vsub.s32 %v780, %v782
        %v784 = vrot.slane %v736, %v783
        %v785 = vcombine.high %v784, %v784
        %v787 = vunpack.c.l.s4 1983009808
        %v788 = vunpack.c.0.s8 %v787
        %v789 = vlaneseq
        %v790 = vshrl.u32 %v789, 7
        %v791 = vsub.s32 %v788, %v790
        %v792 = vrot.slane %v737, %v791
        %v793 = vcombine.high %v792, %v792
        %v794 = vcombine.low %v753, %v760
        %v795 = vcombine.low %v761, %v768
        %v797 = vunpack.c.l.s4 1983009808
        %v798 = vunpack.c.0.s8 %v797
        %v799 = vlaneseq
        %v800 = vshrl.u32 %v799, 7
        %v801 = vsub.s32 %v798, %v800
        %v802 = vrot.slane %v794, %v801
        %v804 = vunpack.c.l.s4 1983009808
        %v805 = vunpack.c.0.s8 %v804
        %v806 = vlaneseq
        %v807 = vshrl.u32 %v806, 7
        %v808 = vsub.s32 %v805, %v807
        %v809 = vrot.slane %v795, %v808
        %v810 = vcombine.low %v802, %v809
        %v811 = vcombine.low %v769, %v777
        %v812 = vcombine.low %v784, %v785
        %v814 = vunpack.c.l.s4 1983009808
        %v815 = vunpack.c.0.s8 %v814
        %v816 = vlaneseq
        %v817 = vshrl.u32 %v816, 7
        %v818 = vsub.s32 %v815, %v817
        %v819 = vrot.slane %v811, %v818
        %v821 = vunpack.c.l.s4 1983009808
        %v822 = vunpack.c.0.s8 %v821
        %v823 = vlaneseq
        %v824 = vshrl.u32 %v823, 7
        %v825 = vsub.s32 %v822, %v824
        %v826 = vrot.slane %v812, %v825
        %v827 = vcombine.low %v819, %v826
        %v828 = vcombine.low %v792, %v793
        %v830 = vunpack.c.l.s4 1983009808
        %v831 = vunpack.c.0.s8 %v830
        %v832 = vlaneseq
        %v833 = vshrl.u32 %v832, 7
        %v834 = vsub.s32 %v831, %v833
        %v835 = vrot.slane %v828, %v834
        %v837 = vsel %vm485, %v810, 0
        %v840 = vsel %vm485, %v827, 0
        %v843 = vsel %vm485, %v835, 0
        %v846 = vsel %vm495, %v739, 0
        %848 = vmatprep.subr.bf16.mxu0 0
        %849 = vmatpush1.bf16.msra.mxu0 %v846
        %850 = vmatprep.subr.bf16.mxu0 0
        %851 = vmatpush1.bf16.msra.mxu0 0
        %852 = vmatprep.subr.bf16.mxu0 0
        %853 = vmatpush1.bf16.msra.mxu0 0
        %854 = vmatprep.subr.bf16.mxu0 0
        %855 = vmatpush1.bf16.msra.mxu0 0
        %856 = vmatprep.subr.bf16.mxu0 0
        %857 = vmatpush1.bf16.msra.mxu0 0
        %858 = vmatprep.subr.bf16.mxu0 0
        %859 = vmatpush1.bf16.msra.mxu0 0
        %860 = vmatprep.subr.bf16.mxu0 0
        %861 = vmatpush1.bf16.msra.mxu0 0
        %862 = vmatprep.subr.bf16.mxu0 0
        %863 = vmatpush1.bf16.msra.mxu0 0
        %864 = vmatprep.subr.bf16.mxu0 0
        %865 = vmatpush1.bf16.msra.mxu0 0
        %866 = vmatprep.subr.bf16.mxu0 0
        %867 = vmatpush1.bf16.msra.mxu0 0
        %868 = vmatprep.subr.bf16.mxu0 0
        %869 = vmatpush1.bf16.msra.mxu0 0
        %870 = vmatprep.subr.bf16.mxu0 0
        %871 = vmatpush1.bf16.msra.mxu0 0
        %872 = vmatprep.subr.bf16.mxu0 0
        %873 = vmatpush1.bf16.msra.mxu0 0
        %874 = vmatprep.subr.bf16.mxu0 0
        %875 = vmatpush1.bf16.msra.mxu0 0
        %876 = vmatprep.subr.bf16.mxu0 0
        %877 = vmatpush1.bf16.msra.mxu0 0
        %878 = vmatprep.subr.bf16.mxu0 0
        %879 = vmatpush1.bf16.msra.mxu0 0
        %880 = vmatprep.mubr.bf16.mxu0 0
        %881 = vmatmul.mubr.bf16.gmra.mrb[0].mxu0 %v837
        %v882 = vpop.f32.mrb[0].mxu0
        %v883 = vadd.f32 0.0, %v882
        %v884 = vpop.f32.mrb[0].mxu0
        %v885 = vpop.f32.mrb[0].mxu0
        %v886 = vadd.f32 0.0, %v885
        %v887 = vpop.f32.mrb[0].mxu0
        %888 = vmatprep.mubr.bf16.mxu0 0
        %889 = vmatmul.mubr.bf16.gmra.mrb[0].mxu0 %v840
        %v890 = vpop.f32.mrb[0].mxu0
        %v891 = vadd.f32 0.0, %v890
        %v892 = vpop.f32.mrb[0].mxu0
        %v893 = vpop.f32.mrb[0].mxu0
        %v894 = vadd.f32 0.0, %v893
        %v895 = vpop.f32.mrb[0].mxu0
        %896 = vmatprep.mubr.bf16.mxu0 0
        %897 = vmatmul.mubr.bf16.gmra.mrb[0].mxu0 %v843
        %v898 = vpop.f32.mrb[0].mxu0
        %v899 = vadd.f32 0.0, %v898
        %v900 = vpop.f32.mrb[0].mxu0
        %v901 = vpop.f32.mrb[0].mxu0
        %v902 = vpop.f32.mrb[0].mxu0
        %903 = vdwg.mxu0
        %v909 = vcombine.high %v883, %v883
        %v910 = vcombine.high %v886, %v886
        %v911 = vcombine.high %v891, %v891
        %v912 = vcombine.high %v894, %v894
        %v913 = vcombine.high %v899, %v899
        %v919 = vadd.f32 %v696, %v883
        %v920 = vadd.f32 %v722, %v909
        %v921 = vadd.f32 %v699, %v886
        %v922 = vadd.f32 %v723, %v910
        %v923 = vadd.f32 %v704, %v891
        %v924 = vadd.f32 %v724, %v911
        %v925 = vadd.f32 %v707, %v894
        %v926 = vadd.f32 %v725, %v912
        %v927 = vadd.f32 %v712, %v899
        %v928 = vadd.f32 %v726, %v913
        %v929 = vld [vmem:[%s2] sm:$0x1]
        %v931 = vlaneseq
        %v932 = vshrl.u32 %v931, 7
        %v933 = vsub.s32 0, %v932
        %v934 = vrot.slane %v929, %v933
        %v936 = vcombine.high %v934, %v934
        %v938 = vadd.f32 %v919, %v934
        %v939 = vadd.f32 %v920, %v936
        %v940 = vadd.f32 %v921, %v934
        %v941 = vadd.f32 %v922, %v936
        %v942 = vadd.f32 %v923, %v934
        %v943 = vadd.f32 %v924, %v934
        %v944 = vadd.f32 %v925, %v936
        %v945 = vadd.f32 %v926, %v934
        %v946 = vadd.f32 %v927, %v936
        %v947 = vadd.f32 %v928, %v934
        %v948 = vmax.f32 %v938, 0.0
        %v949 = vmax.f32 %v939, 0.0
        %v950 = vmax.f32 %v940, 0.0
        %v951 = vmax.f32 %v941, 0.0
        %v952 = vmax.f32 %v942, 0.0
        %v953 = vmax.f32 %v943, 0.0
        %v954 = vmax.f32 %v944, 0.0
        %v955 = vmax.f32 %v945, 0.0
        %v956 = vmax.f32 %v946, 0.0
        %v957 = vmax.f32 %v947, 0.0
        %v966 = vcombine.low %v948, %v949
        %v967 = vcombine.low %v950, %v951
        %v968 = vcombine.low %v953, %v954
        %v969 = vcombine.low %v955, %v956
        %v974 = vpack.c.bf16 %v967, %v966
        %v975 = vpack.c.bf16 %v952, %v952
        %v976 = vpack.c.bf16 %v969, %v968
        %v977 = vpack.c.bf16 %v957, %v957
        %v982 = vunpack.c.l.b16 %v974
        %v983 = vunpack.c.h.b16 %v974
        %v984 = vunpack.c.l.b16 %v975
        %v985 = vunpack.c.l.b16 %v976
        %v986 = vunpack.c.h.b16 %v976
        %v987 = vunpack.c.l.b16 %v977
        %v988 = vpack.c.b16 %v982, %v982
        %v989 = vpack.c.b16 %v983, %v983
        %v990 = vpack.c.b16 %v984, %v984
        %v991 = vpack.c.b16 %v985, %v985
        %v992 = vpack.c.b16 %v986, %v986
        %v993 = vpack.c.b16 %v987, %v987
        %1000 = vst.msk [vmem:[#allocation3] sm:$0xf] %vm326, %v988
        %1001 = vst.msk [vmem:[#allocation3 + $0x4] sm:$0xf] %vm326, %v989
        %vm1002 = vcmask 58368
        %1003 = vst.msk [vmem:[#allocation3 + $0x8] sm:$0x3] %vm1002, %v990
        %1004 = vst.msk [vmem:[#allocation3 + $0xc] sm:$0xf] %vm326, %v991
        %1005 = vst.msk [vmem:[#allocation3 + $0x10] sm:$0xf] %vm326, %v992
        %1006 = vst.msk [vmem:[#allocation3 + $0x14] sm:$0x3] %vm1002, %v993
        %s1007 = smul.u32 %s21, 16
        %p1008 = scmp.lt.s32.totalorder %s1007, 4
        // Predicated region
        $region87: #{temporal_conv_net.5} parent=73 // pred_check
          %p1009 = pneg %p1008
        $region88: #{temporal_conv_net.5} parent=73 // pred_check_branch
          %1011 = sbr.rel (%p1009) target = $region90
        $region89: #{temporal_conv_net.5} parent=73 // pred_region
          %s1012 = ssub.s32 %s1007, 4
          %v1013 = vlaneseq
          %v1014 = vshrl.u32 %v1013, 7
          %v1015 = vadd.s32 %v1014, 8
          %v1016 = vadd.s32 %v1014, 16
          %v1017 = vstv %s1012
          %v1018 = vadd.s32 %v1017, %v1014
          %v1019 = vadd.s32 %v1017, %v1015
          %v1020 = vadd.s32 %v1017, %v1016
          %vm1021 = vcmp.ge.s32.totalorder %v1018, 0
          %vm1022 = vcmp.ge.s32.totalorder %v1019, 0
          %vm1023 = vcmp.ge.s32.totalorder %v1020, 0
          %v1024 = vsel %vm1021, 1, 0
          %v1025 = vsel %vm1022, 1, 0
          %v1026 = vsel %vm1023, 1, 0
          %vm1027 = vcmp.eq.s32.totalorder %v1024, 1
          %vm1028 = vcmp.eq.s32.totalorder %v1025, 1
          %vm1029 = vcmp.eq.s32.totalorder %v1026, 1
          %v1030 = vsel %vm1027, %v966, 0.0
          %v1031 = vsel %vm1028, %v967, 0.0
          %v1032 = vsel %vm1029, %v952, 0.0
          %v1033 = vsel %vm1027, %v968, 0.0
          %v1034 = vsel %vm1028, %v969, 0.0
          %v1035 = vsel %vm1029, %v957, 0.0
          %v1036 = vpack.c.bf16 %v1031, %v1030
          %v1037 = vpack.c.bf16 %v1032, %v1032
          %v1038 = vpack.c.bf16 %v1034, %v1033
          %v1039 = vpack.c.bf16 %v1035, %v1035
          %v1044 = vunpack.c.l.b16 %v1036
          %v1045 = vunpack.c.h.b16 %v1036
          %v1046 = vunpack.c.l.b16 %v1037
          %v1047 = vunpack.c.l.b16 %v1038
          %v1048 = vunpack.c.h.b16 %v1038
          %v1049 = vunpack.c.l.b16 %v1039
          %v1050 = vpack.c.b16 %v1044, %v1044
          %v1051 = vpack.c.b16 %v1045, %v1045
          %v1052 = vpack.c.b16 %v1046, %v1046
          %v1053 = vpack.c.b16 %v1047, %v1047
          %v1054 = vpack.c.b16 %v1048, %v1048
          %v1055 = vpack.c.b16 %v1049, %v1049
          %1062 = vst.msk [vmem:[#allocation3] sm:$0xf] %vm326, %v1050
          %1063 = vst.msk [vmem:[#allocation3 + $0x4] sm:$0xf] %vm326, %v1051
          %1064 = vst.msk [vmem:[#allocation3 + $0x8] sm:$0x3] %vm1002, %v1052
          %1065 = vst.msk [vmem:[#allocation3 + $0xc] sm:$0xf] %vm326, %v1053
          %1066 = vst.msk [vmem:[#allocation3 + $0x10] sm:$0xf] %vm326, %v1054
          %1067 = vst.msk [vmem:[#allocation3 + $0x14] sm:$0x3] %vm1002, %v1055
        $region90: #{temporal_conv_net.5} parent=73 // pred_fallthru
          _
        %v1068 = vld [vmem:[#allocation3] sm:$0xf]
        %v1069 = vld [vmem:[#allocation3 + $0x4] sm:$0xf]
        %v1070 = vld [vmem:[#allocation3 + $0xc] sm:$0xf]
        %v1071 = vld [vmem:[#allocation3 + $0x10] sm:$0xf]
        %v1072 = vld [vmem:[%s3] sm:$0xf]
        %v1073 = vld [vmem:[#allocation3] sm:$0xe]
        %v1074 = vld [vmem:[#allocation3 + $0x4] sm:$0xf]
        %v1075 = vld [vmem:[#allocation3 + $0x8] sm:$0x1]
        %v1076 = vld [vmem:[#allocation3 + $0xc] sm:$0xe]
        %v1077 = vld [vmem:[#allocation3 + $0x10] sm:$0xf]
        %v1078 = vld [vmem:[#allocation3 + $0x14] sm:$0x1]
        %s1079 = scalar_lea.vmem %s3, 4
        %v1080 = vld [vmem:[%s1079] sm:$0xf]
        %vm1087 = vcmask 1042432
        %vm1088 = vcmask 1046532
        %vm1089 = vmor %vm1087, %vm1088
        %v1090 = vrot.slane %v1073, 5
        %v1091 = vrot.slane %v1090, 4
        %v1092 = vrot.slane %v1074, 5
        %v1093 = vsel %vm1089, %v1091, %v1092
        %v1094 = vrot.slane %v1092, 4
        %v1095 = vrot.slane %v1075, 5
        %v1096 = vsel %vm1089, %v1094, %v1095
        %v1097 = vrot.slane %v1076, 5
        %v1098 = vrot.slane %v1097, 4
        %v1099 = vrot.slane %v1077, 5
        %v1100 = vsel %vm1089, %v1098, %v1099
        %v1101 = vrot.slane %v1099, 4
        %v1102 = vrot.slane %v1078, 5
        %v1103 = vsel %vm1089, %v1101, %v1102
        %v1104 = vunpack.c.l.b16 %v1093
        %v1105 = vunpack.c.l.b16 %v1096
        %v1106 = vunpack.c.l.b16 %v1100
        %v1107 = vunpack.c.l.b16 %v1103
        %v1108 = vpack.c.b16 %v1105, %v1104
        %v1109 = vpack.c.b16 %v1107, %v1106
        %v1111 = vsel %vm485, %v1108, 0
        %v1114 = vsel %vm485, %v1109, 0
        %v1117 = vsel %vm495, %v1080, 0
        %1119 = vmatprep.subr.bf16.mxu0 0
        %1120 = vmatpush1.bf16.msra.mxu0 %v1117
        %1121 = vmatprep.subr.bf16.mxu0 0
        %1122 = vmatpush1.bf16.msra.mxu0 0
        %1123 = vmatprep.subr.bf16.mxu0 0
        %1124 = vmatpush1.bf16.msra.mxu0 0
        %1125 = vmatprep.subr.bf16.mxu0 0
        %1126 = vmatpush1.bf16.msra.mxu0 0
        %1127 = vmatprep.subr.bf16.mxu0 0
        %1128 = vmatpush1.bf16.msra.mxu0 0
        %1129 = vmatprep.subr.bf16.mxu0 0
        %1130 = vmatpush1.bf16.msra.mxu0 0
        %1131 = vmatprep.subr.bf16.mxu0 0
        %1132 = vmatpush1.bf16.msra.mxu0 0
        %1133 = vmatprep.subr.bf16.mxu0 0
        %1134 = vmatpush1.bf16.msra.mxu0 0
        %1135 = vmatprep.subr.bf16.mxu0 0
        %1136 = vmatpush1.bf16.msra.mxu0 0
        %1137 = vmatprep.subr.bf16.mxu0 0
        %1138 = vmatpush1.bf16.msra.mxu0 0
        %1139 = vmatprep.subr.bf16.mxu0 0
        %1140 = vmatpush1.bf16.msra.mxu0 0
        %1141 = vmatprep.subr.bf16.mxu0 0
        %1142 = vmatpush1.bf16.msra.mxu0 0
        %1143 = vmatprep.subr.bf16.mxu0 0
        %1144 = vmatpush1.bf16.msra.mxu0 0
        %1145 = vmatprep.subr.bf16.mxu0 0
        %1146 = vmatpush1.bf16.msra.mxu0 0
        %1147 = vmatprep.subr.bf16.mxu0 0
        %1148 = vmatpush1.bf16.msra.mxu0 0
        %1149 = vmatprep.subr.bf16.mxu0 0
        %1150 = vmatpush1.bf16.msra.mxu0 0
        %1151 = vmatprep.mubr.bf16.mxu0 0
        %1152 = vmatmul.mubr.bf16.gmra.mrb[0].mxu0 %v1111
        %v1153 = vpop.f32.mrb[0].mxu0
        %v1154 = vadd.f32 0.0, %v1153
        %v1155 = vpop.f32.mrb[0].mxu0
        %v1156 = vpop.f32.mrb[0].mxu0
        %v1157 = vadd.f32 0.0, %v1156
        %v1158 = vpop.f32.mrb[0].mxu0
        %1159 = vmatprep.mubr.bf16.mxu0 0
        %1160 = vmatmul.mubr.bf16.gmra.mrb[0].mxu0 %v1114
        %v1161 = vpop.f32.mrb[0].mxu0
        %v1162 = vadd.f32 0.0, %v1161
        %v1163 = vpop.f32.mrb[0].mxu0
        %v1164 = vpop.f32.mrb[0].mxu0
        %v1165 = vadd.f32 0.0, %v1164
        %v1166 = vpop.f32.mrb[0].mxu0
        %1167 = vdwg.mxu0
        %v1172 = vunpack.c.l.b16 %v1068
        %v1173 = vunpack.c.l.b16 %v1069
        %v1174 = vunpack.c.l.b16 %v1070
        %v1175 = vunpack.c.l.b16 %v1071
        %v1176 = vpack.c.b16 %v1173, %v1172
        %v1177 = vpack.c.b16 %v1175, %v1174
        %v1179 = vsel %vm485, %v1176, 0
        %v1182 = vsel %vm485, %v1177, 0
        %v1185 = vsel %vm495, %v1072, 0
        %1187 = vmatprep.subr.bf16.mxu0 0
        %1188 = vmatpush1.bf16.msra.mxu0 %v1185
        %1189 = vmatprep.subr.bf16.mxu0 0
        %1190 = vmatpush1.bf16.msra.mxu0 0
        %1191 = vmatprep.subr.bf16.mxu0 0
        %1192 = vmatpush1.bf16.msra.mxu0 0
        %1193 = vmatprep.subr.bf16.mxu0 0
        %1194 = vmatpush1.bf16.msra.mxu0 0
        %1195 = vmatprep.subr.bf16.mxu0 0
        %1196 = vmatpush1.bf16.msra.mxu0 0
        %1197 = vmatprep.subr.bf16.mxu0 0
        %1198 = vmatpush1.bf16.msra.mxu0 0
        %1199 = vmatprep.subr.bf16.mxu0 0
        %1200 = vmatpush1.bf16.msra.mxu0 0
        %1201 = vmatprep.subr.bf16.mxu0 0
        %1202 = vmatpush1.bf16.msra.mxu0 0
        %1203 = vmatprep.subr.bf16.mxu0 0
        %1204 = vmatpush1.bf16.msra.mxu0 0
        %1205 = vmatprep.subr.bf16.mxu0 0
        %1206 = vmatpush1.bf16.msra.mxu0 0
        %1207 = vmatprep.subr.bf16.mxu0 0
        %1208 = vmatpush1.bf16.msra.mxu0 0
        %1209 = vmatprep.subr.bf16.mxu0 0
        %1210 = vmatpush1.bf16.msra.mxu0 0
        %1211 = vmatprep.subr.bf16.mxu0 0
        %1212 = vmatpush1.bf16.msra.mxu0 0
        %1213 = vmatprep.subr.bf16.mxu0 0
        %1214 = vmatpush1.bf16.msra.mxu0 0
        %1215 = vmatprep.subr.bf16.mxu0 0
        %1216 = vmatpush1.bf16.msra.mxu0 0
        %1217 = vmatprep.subr.bf16.mxu0 0
        %1218 = vmatpush1.bf16.msra.mxu0 0
        %1219 = vmatprep.mubr.bf16.mxu0 0
        %1220 = vmatmul.mubr.bf16.gmra.mrb[0].mxu0 %v1179
        %v1221 = vpop.f32.mrb[0].mxu0
        %v1222 = vadd.f32 %v1154, %v1221
        %v1223 = vpop.f32.mrb[0].mxu0
        %v1224 = vpop.f32.mrb[0].mxu0
        %v1225 = vadd.f32 %v1157, %v1224
        %v1226 = vpop.f32.mrb[0].mxu0
        %1227 = vmatprep.mubr.bf16.mxu0 0
        %1228 = vmatmul.mubr.bf16.gmra.mrb[0].mxu0 %v1182
        %v1229 = vpop.f32.mrb[0].mxu0
        %v1230 = vadd.f32 %v1162, %v1229
        %v1231 = vpop.f32.mrb[0].mxu0
        %v1232 = vpop.f32.mrb[0].mxu0
        %v1233 = vadd.f32 %v1165, %v1232
        %v1234 = vpop.f32.mrb[0].mxu0
        %1235 = vdwg.mxu0
        %v1236 = vld [vmem:[#allocation3] sm:$0xc]
        %v1237 = vld [vmem:[#allocation3 + $0x4] sm:$0xf]
        %v1238 = vld [vmem:[#allocation3 + $0x8] sm:$0x3]
        %v1239 = vld [vmem:[#allocation3 + $0xc] sm:$0xc]
        %v1240 = vld [vmem:[#allocation3 + $0x10] sm:$0xf]
        %v1241 = vld [vmem:[#allocation3 + $0x14] sm:$0x3]
        %s1242 = scalar_lea.vmem %s3, 8
        %v1243 = vld [vmem:[%s1242] sm:$0xf]
        %vm1250 = vcmask 1041408
        %vm1251 = vcmask 1045508
        %vm1252 = vmor %vm1250, %vm1251
        %v1253 = vrot.slane %v1236, 6
        %v1254 = vrot.slane %v1253, 4
        %v1255 = vrot.slane %v1237, 6
        %v1256 = vsel %vm1252, %v1254, %v1255
        %v1257 = vrot.slane %v1255, 4
        %v1258 = vrot.slane %v1238, 6
        %v1259 = vsel %vm1252, %v1257, %v1258
        %v1260 = vrot.slane %v1239, 6
        %v1261 = vrot.slane %v1260, 4
        %v1262 = vrot.slane %v1240, 6
        %v1263 = vsel %vm1252, %v1261, %v1262
        %v1264 = vrot.slane %v1262, 4
        %v1265 = vrot.slane %v1241, 6
        %v1266 = vsel %vm1252, %v1264, %v1265
        %v1267 = vunpack.c.l.b16 %v1256
        %v1268 = vunpack.c.l.b16 %v1259
        %v1269 = vunpack.c.l.b16 %v1263
        %v1270 = vunpack.c.l.b16 %v1266
        %v1271 = vpack.c.b16 %v1268, %v1267
        %v1272 = vpack.c.b16 %v1270, %v1269
        %v1274 = vsel %vm485, %v1271, 0
        %v1277 = vsel %vm485, %v1272, 0
        %v1280 = vsel %vm495, %v1243, 0
        %1282 = vmatprep.subr.bf16.mxu0 0
        %1283 = vmatpush1.bf16.msra.mxu0 %v1280
        %1284 = vmatprep.subr.bf16.mxu0 0
        %1285 = vmatpush1.bf16.msra.mxu0 0
        %1286 = vmatprep.subr.bf16.mxu0 0
        %1287 = vmatpush1.bf16.msra.mxu0 0
        %1288 = vmatprep.subr.bf16.mxu0 0
        %1289 = vmatpush1.bf16.msra.mxu0 0
        %1290 = vmatprep.subr.bf16.mxu0 0
        %1291 = vmatpush1.bf16.msra.mxu0 0
        %1292 = vmatprep.subr.bf16.mxu0 0
        %1293 = vmatpush1.bf16.msra.mxu0 0
        %1294 = vmatprep.subr.bf16.mxu0 0
        %1295 = vmatpush1.bf16.msra.mxu0 0
        %1296 = vmatprep.subr.bf16.mxu0 0
        %1297 = vmatpush1.bf16.msra.mxu0 0
        %1298 = vmatprep.subr.bf16.mxu0 0
        %1299 = vmatpush1.bf16.msra.mxu0 0
        %1300 = vmatprep.subr.bf16.mxu0 0
        %1301 = vmatpush1.bf16.msra.mxu0 0
        %1302 = vmatprep.subr.bf16.mxu0 0
        %1303 = vmatpush1.bf16.msra.mxu0 0
        %1304 = vmatprep.subr.bf16.mxu0 0
        %1305 = vmatpush1.bf16.msra.mxu0 0
        %1306 = vmatprep.subr.bf16.mxu0 0
        %1307 = vmatpush1.bf16.msra.mxu0 0
        %1308 = vmatprep.subr.bf16.mxu0 0
        %1309 = vmatpush1.bf16.msra.mxu0 0
        %1310 = vmatprep.subr.bf16.mxu0 0
        %1311 = vmatpush1.bf16.msra.mxu0 0
        %1312 = vmatprep.subr.bf16.mxu0 0
        %1313 = vmatpush1.bf16.msra.mxu0 0
        %1314 = vmatprep.mubr.bf16.mxu0 0
        %1315 = vmatmul.mubr.bf16.gmra.mrb[0].mxu0 %v1274
        %v1316 = vpop.f32.mrb[0].mxu0
        %v1317 = vadd.f32 0.0, %v1316
        %v1318 = vpop.f32.mrb[0].mxu0
        %v1319 = vpop.f32.mrb[0].mxu0
        %v1320 = vadd.f32 0.0, %v1319
        %v1321 = vpop.f32.mrb[0].mxu0
        %1322 = vmatprep.mubr.bf16.mxu0 0
        %1323 = vmatmul.mubr.bf16.gmra.mrb[0].mxu0 %v1277
        %v1324 = vpop.f32.mrb[0].mxu0
        %v1325 = vadd.f32 0.0, %v1324
        %v1326 = vpop.f32.mrb[0].mxu0
        %v1327 = vpop.f32.mrb[0].mxu0
        %v1328 = vadd.f32 0.0, %v1327
        %v1329 = vpop.f32.mrb[0].mxu0
        %1330 = vdwg.mxu0
        %v1331 = vadd.f32 %v1222, %v1317
        %v1332 = vadd.f32 %v1225, %v1320
        %v1333 = vadd.f32 %v1230, %v1325
        %v1334 = vadd.f32 %v1233, %v1328
        %v1335 = vld [vmem:[%s4] sm:$0x1]
        %v1337 = vlaneseq
        %v1338 = vshrl.u32 %v1337, 7
        %v1339 = vsub.s32 0, %v1338
        %v1340 = vrot.slane %v1335, %v1339
        %v1342 = vadd.f32 %v1331, %v1340
        %v1343 = vadd.f32 %v1332, %v1340
        %v1344 = vadd.f32 %v1333, %v1340
        %v1345 = vadd.f32 %v1334, %v1340
        %v1346 = vmax.f32 %v1342, 0.0
        %v1347 = vmax.f32 %v1343, 0.0
        %v1348 = vmax.f32 %v1344, 0.0
        %v1349 = vmax.f32 %v1345, 0.0
        %v1350 = vadd.f32 %v1346, %v290
        %v1351 = vadd.f32 %v1347, %v291
        %v1352 = vadd.f32 %v1348, %v292
        %v1353 = vadd.f32 %v1349, %v293
        %v1354 = vmax.f32 %v1350, 0.0
        %v1355 = vmax.f32 %v1351, 0.0
        %v1356 = vmax.f32 %v1352, 0.0
        %v1357 = vmax.f32 %v1353, 0.0
        %1358 = vst.msk [vmem:[%s284] sm:$0xff] %vm485, %v1354
        %1359 = vst.msk [vmem:[%s284 + $0x8] sm:$0xff] %vm485, %v1355
        %1360 = vst.msk [vmem:[%s284 + $0x10] sm:$0xff] %vm485, %v1356
        %1361 = vst.msk [vmem:[%s284 + $0x18] sm:$0xff] %vm485, %v1357
        %s1362 = sand.u32 %s150, 1
        %s1363 = sand.u32 %s150, 1
        %s1364 = smul.addr %s1363, 32
        %s1365 = scalar_lea.vmem [#allocation6], %s1364
        // Predicated region
        $region91: #{temporal_conv_net.5} parent=73 // pred_check
          %p1366 = pneg %p160
        $region92: #{temporal_conv_net.5} parent=73 // pred_check_branch
          %1368 = sbr.rel (%p1366) target = $region94
        $region93: #{temporal_conv_net.5} parent=73 // pred_region
          %s1369 = smul.u32 2, %s20
          %s1370 = smul.u32 2, %s21
          %s1371 = smul.addr %s1369, 8
          %s1372 = sadd.s32 %s1370, %s1371
          %s1373 = smul.addr %s1372, 8
          %s1374 = scalar_lea.vmem %s5, %s1373
          // Predicated region
          $region95: #{temporal_conv_net.5} parent=93 // pred_check
            _
          $region96: #{temporal_conv_net.5} parent=93 // pred_check_branch
            %1376 = sbr.rel (0) target = $region98
          $region97: #{temporal_conv_net.5} parent=93 // pred_region
            // Predicated region
            $region99: #{temporal_conv_net.5} parent=97 // pred_check
              _
            $region100: #{temporal_conv_net.5} parent=97 // pred_check_branch
              %1378 = sbr.rel (0) target = $region102
            $region101: #{temporal_conv_net.5} parent=97 // pred_region
              // Predicated region
              $region114: #{temporal_conv_net.5} parent=101 // pred_check
                _
              $region115: #{temporal_conv_net.5} parent=101 // pred_check_branch
                %1399 = sbr.rel (0) target = $region117
              $region116: #{temporal_conv_net.5} parent=101 // pred_region
                loop: start=0, step=1, limit=1
                $region118: #{temporal_conv_net.5} parent=116 // loop_pre_header
                  _
                $region119: #{temporal_conv_net.5} parent=116 // loop_header
                  %s1401 = sphi 0, %s1405
                  %p1402 = scmp.ge.s32.totalorder %s1401, 1
                  %s1406 = sphi %s1365, %s1365
                  %s1407 = sphi %s1374, %s1374
                $region120: #{temporal_conv_net.5} parent=116 // loop_header_branch
                  %1404 = sbr.rel (%p1402) target = $region124
                $region121: #{temporal_conv_net.5} parent=116 // loop_body
                  %v1408 = vld [vmem:[%s1406] sm:$0xff]
                  %1409 = vst [vmem:[%s1407] sm:$0xff] %v1408
                  %v1410 = vld [vmem:[%s1406 + $0x8] sm:$0xff]
                  %1411 = vst [vmem:[%s1407 + $0x8] sm:$0xff] %v1410
                  %v1412 = vld [vmem:[%s1406 + $0x10] sm:$0xff]
                  %1413 = vst [vmem:[%s1407 + $0x40] sm:$0xff] %v1412
                  %v1414 = vld [vmem:[%s1406 + $0x18] sm:$0xff]
                  %1415 = vst [vmem:[%s1407 + $0x48] sm:$0xff] %v1414
                $region122: #{temporal_conv_net.5} parent=116 // loop_footer
                  %s1405 = sadd.s32 1, %s1401
                $region123: #{temporal_conv_net.5} parent=116 // loop_footer_branch
                  %1400 = sbr.rel target = $region119
                $region124: #{temporal_conv_net.5} parent=116 // loop_exit
                  _
              $region117: #{temporal_conv_net.5} parent=101 // pred_fallthru
                _
              // Predicated region
              $region125: #{temporal_conv_net.5} parent=101 // pred_check
                _
              $region126: #{temporal_conv_net.5} parent=101 // pred_check_branch
                %1417 = sbr.rel target = $region128
              $region127: #{temporal_conv_net.5} parent=101 // pred_region
                _
              $region128: #{temporal_conv_net.5} parent=101 // pred_fallthru
                _
            $region102: #{temporal_conv_net.5} parent=97 // pred_fallthru
              _
            // Predicated region
            $region103: #{temporal_conv_net.5} parent=97 // pred_check
              _
            $region104: #{temporal_conv_net.5} parent=97 // pred_check_branch
              %1380 = sbr.rel target = $region106
            $region105: #{temporal_conv_net.5} parent=97 // pred_region
              loop: start=0, step=1, limit=1
              $region107: #{temporal_conv_net.5} parent=105 // loop_pre_header
                _
              $region108: #{temporal_conv_net.5} parent=105 // loop_header
                %s1383 = sphi 0, %s1387
                %p1384 = scmp.ge.s32.totalorder %s1383, 1
                %s1388 = sphi %s1365, %s1365
                %s1389 = sphi %s1374, %s1374
              $region109: #{temporal_conv_net.5} parent=105 // loop_header_branch
                %1386 = sbr.rel (%p1384) target = $region113
              $region110: #{temporal_conv_net.5} parent=105 // loop_body
                %v1390 = vld [vmem:[%s1388] sm:$0xff]
                %1391 = vst [vmem:[%s1389] sm:$0xff] %v1390
                %v1392 = vld [vmem:[%s1388 + $0x8] sm:$0xff]
                %1393 = vst [vmem:[%s1389 + $0x8] sm:$0xff] %v1392
                %v1394 = vld [vmem:[%s1388 + $0x10] sm:$0xff]
                %1395 = vst [vmem:[%s1389 + $0x40] sm:$0xff] %v1394
                %v1396 = vld [vmem:[%s1388 + $0x18] sm:$0xff]
                %1397 = vst [vmem:[%s1389 + $0x48] sm:$0xff] %v1396
              $region111: #{temporal_conv_net.5} parent=105 // loop_footer
                %s1387 = sadd.s32 1, %s1383
              $region112: #{temporal_conv_net.5} parent=105 // loop_footer_branch
                %1382 = sbr.rel target = $region108
              $region113: #{temporal_conv_net.5} parent=105 // loop_exit
                _
            $region106: #{temporal_conv_net.5} parent=97 // pred_fallthru
              _
          $region98: #{temporal_conv_net.5} parent=93 // pred_fallthru
            _
          %1418 = vnop
        $region94: #{temporal_conv_net.5} parent=73 // pred_fallthru
          _
      $region74: #{temporal_conv_net.5} parent=5 // pred_fallthru
        _
      %p1419 = scmp.le.s32.totalorder 2, %s11
      // Predicated region
      $region129: #{temporal_conv_net.5} parent=5 // pred_check
        %p1420 = pneg %p1419
      $region130: #{temporal_conv_net.5} parent=5 // pred_check_branch
        %1422 = sbr.rel (%p1420) target = $region132
      $region131: #{temporal_conv_net.5} parent=5 // pred_region
        %s1423 = ssub.s32 %s11, 2
        // Predicated region
        $region133: #{temporal_conv_net.5} parent=131 // pred_check
          %p1424 = pneg %p166
        $region134: #{temporal_conv_net.5} parent=131 // pred_check_branch
          %1426 = sbr.rel (%p1424) target = $region136
        $region135: #{temporal_conv_net.5} parent=131 // pred_region
          %s1427 = sand.u32 %s151, 1
          %s1428 = sand.u32 %s151, 1
          %s1429 = smul.addr %s1428, 32
          %s1430 = scalar_lea.vmem [#allocation6], %s1429
        $region136: #{temporal_conv_net.5} parent=131 // pred_fallthru
          _
      $region132: #{temporal_conv_net.5} parent=5 // pred_fallthru
        _
    $region6: #{temporal_conv_net.5} parent=1 // loop_footer
      %s15 = sadd.s32 1, %s11
    $region7: #{temporal_conv_net.5} parent=1 // loop_footer_branch
      %10 = sbr.rel target = $region3
    $region8: #{temporal_conv_net.5} parent=1 // loop_exit
      _

// kernel: temporal_conv_net.6
$region0: #{temporal_conv_net.6}
  #allocation0 [shape = 'u32[]', space=smem, size = 0x4, offset = 0x4, fixed_abs, tag = 'smem constant byte address 0x4 - core index']
  #allocation1 [shape = 'u32[144,128]{1,0:T(1,128)}', space=vmem, size = 0x12000, scoped, tag = 'internal scratch']
  #allocation2 [shape = 'bf16[2,32,8]{2,1,0:T(16,128)(2,1)}', space=vmem, size = 0x4000, scoped, tag = 'scratch operand']
  #allocation3 [shape = 'bf16[2,24,16]{2,1,0:T(8,128)(2,1)}', space=vmem, size = 0x3000, scoped, tag = 'scratch operand']
  #allocation4 [shape = 'bf16[2,16,8]{2,1,0:T(16,128)(2,1)}', space=vmem, size = 0x2000, scoped, tag = 'scratch operand']
  %s0 = inlined_call_operand.vmem [shape: f32[2,64,8], index: 0, kind: input, shape index: {}]
  %s1 = inlined_call_operand.vmem [shape: bf16[3,8,16], index: 1, kind: input, shape index: {}]
  %s2 = inlined_call_operand.vmem [shape: f32[1,16], index: 2, kind: input, shape index: {}]
  %s3 = inlined_call_operand.vmem [shape: bf16[3,16,16], index: 3, kind: input, shape index: {}]
  %s4 = inlined_call_operand.vmem [shape: f32[1,16], index: 4, kind: input, shape index: {}]
  %s5 = inlined_call_operand.vmem [shape: bf16[8,16], index: 5, kind: input, shape index: {}]
  %s6 = inlined_call_operand.vmem [shape: f32[1,16], index: 6, kind: input, shape index: {}]
  %s7 = inlined_call_operand.vmem [shape: f32[2,64,16], index: 7, kind: output, shape index: {}]
  %s8 = sld [smem:[#allocation0]]
  $region145: #{temporal_conv_net.6} parent=0
    _
  %s10 = ssub.s32 1, %s8
  %s11 = scalar_select 0, %s10, %s8
  $region1: #{temporal_conv_net.6} parent=0
    #allocation5 [shape = 'u8[32768]{0}', space=vmem, size = 0x8000, scoped, tag = 'input window, operand 0']
    #allocation6 [shape = 'u8[32768]{0}', space=vmem, size = 0x8000, scoped, tag = 'output window, operand 0']
    loop: start=0, step=1, limit=6
    $region2: #{temporal_conv_net.6} parent=1 // loop_pre_header
      _
    $region3: #{temporal_conv_net.6} parent=1 // loop_header
      %s13 = sphi 0, %s17
      %p14 = scmp.ge.s32.totalorder %s13, 6
      %s20 = sphi 0, %s32
      %s21 = sphi 0, %s28
      %s22 = sphi 0, %s20
      %s23 = sphi 0, %s21
      %s24 = sphi 0, %s22
      %s25 = sphi 0, %s23
      %s37 = sphi 0, %s39
      %s40 = sphi 0, %s37
      %s41 = sphi 0, %s40
      %s57 = sphi 0, %s41
      %s61 = sphi 0, %s61
      %s63 = sphi 0, %s61
      %s64 = sphi 0, %s63
      %s78 = sphi 0, %s64
      %s82 = sphi 0, %s82
      %s84 = sphi 0, %s82
      %s85 = sphi 0, %s84
      %s99 = sphi 0, %s85
      %s103 = sphi 0, %s103
      %s105 = sphi 0, %s103
      %s106 = sphi 0, %s105
      %s120 = sphi 0, %s106
      %s124 = sphi 0, %s124
      %s126 = sphi 0, %s124
      %s127 = sphi 0, %s126
      %s141 = sphi 0, %s127
      %s145 = sphi 0, %s145
      %s147 = sphi 0, %s145
      %s148 = sphi 0, %s147
      %s162 = sphi 0, %s148
      %s166 = sphi 0, %s166
      %s168 = sphi 0, %s166
      %s169 = sphi 0, %s168
      %s183 = sphi 0, %s169
      %s191 = sphi 0, %s193
      %s194 = sphi 0, %s191
      %s195 = sphi 0, %s194
      %s211 = sphi 0, %s195
    $region4: #{temporal_conv_net.6} parent=1 // loop_header_branch
      %16 = sbr.rel (%p14) target = $region8
    $region5: #{temporal_conv_net.6} parent=1 // loop_body
      %s18 = ssub.s32 %s13, 1
      %s19 = ssub.s32 %s13, 2
      %s26 = sadd.s32 1, %s21
      %p27 = scmp.ge.s32.totalorder %s26, 4
      %s28 = scalar_select %p27, 0, %s26
      %s29 = sadd.s32 1, %s20
      %s30 = scalar_select %p27, %s29, %s20
      %p31 = scmp.ge.s32.totalorder %s30, 1
      %s32 = scalar_select %p31, 0, %s30
      %s33 = ssub.s32 %s20, %s32
      %s34 = ssub.s32 %s21, %s28
      %s35 = sor.u32 %s33, %s34
      %p36 = scmp.eq.s32.totalorder %s35, 0
      %s38 = sadd.s32 %s37, 1
      %s39 = scalar_select %p36, %s37, %s38
      %p42 = pneg %p36
      %p43 = scmp.eq.s32.totalorder %s13, 3
      %p44 = por %p42, %p43
      %p45 = scmp.ne.s32.totalorder %s37, %s40
      %p46 = scmp.eq.s32.totalorder %s13, 0
      %p47 = por %p45, %p46
      %p48 = scmp.ne.s32.totalorder %s37, %s40
      %p49 = scmp.eq.s32.totalorder %s18, 3
      %p50 = por %p48, %p49
      %p51 = scmp.ne.s32.totalorder %s40, %s41
      %p52 = scmp.eq.s32.totalorder %s18, 0
      %p53 = por %p51, %p52
      %p54 = scmp.ne.s32.totalorder %s40, %s41
      %p55 = scmp.eq.s32.totalorder %s19, 3
      %p56 = por %p54, %p55
      %p58 = scmp.ne.s32.totalorder %s41, %s57
      %p59 = scmp.eq.s32.totalorder %s19, 0
      %p60 = por %p58, %p59
      %s62 = sadd.s32 %s61, 1
      %p65 = scmp.eq.s32.totalorder %s13, 3
      %p66 = scmp.ne.s32.totalorder %s61, %s63
      %p67 = scmp.eq.s32.totalorder %s13, 0
      %p68 = por %p66, %p67
      %p69 = scmp.ne.s32.totalorder %s61, %s63
      %p70 = scmp.eq.s32.totalorder %s18, 3
      %p71 = por %p69, %p70
      %p72 = scmp.ne.s32.totalorder %s63, %s64
      %p73 = scmp.eq.s32.totalorder %s18, 0
      %p74 = por %p72, %p73
      %p75 = scmp.ne.s32.totalorder %s63, %s64
      %p76 = scmp.eq.s32.totalorder %s19, 3
      %p77 = por %p75, %p76
      %p79 = scmp.ne.s32.totalorder %s64, %s78
      %p80 = scmp.eq.s32.totalorder %s19, 0
      %p81 = por %p79, %p80
      %s83 = sadd.s32 %s82, 1
      %p86 = scmp.eq.s32.totalorder %s13, 3
      %p87 = scmp.ne.s32.totalorder %s82, %s84
      %p88 = scmp.eq.s32.totalorder %s13, 0
      %p89 = por %p87, %p88
      %p90 = scmp.ne.s32.totalorder %s82, %s84
      %p91 = scmp.eq.s32.totalorder %s18, 3
      %p92 = por %p90, %p91
      %p93 = scmp.ne.s32.totalorder %s84, %s85
      %p94 = scmp.eq.s32.totalorder %s18, 0
      %p95 = por %p93, %p94
      %p96 = scmp.ne.s32.totalorder %s84, %s85
      %p97 = scmp.eq.s32.totalorder %s19, 3
      %p98 = por %p96, %p97
      %p100 = scmp.ne.s32.totalorder %s85, %s99
      %p101 = scmp.eq.s32.totalorder %s19, 0
      %p102 = por %p100, %p101
      %s104 = sadd.s32 %s103, 1
      %p107 = scmp.eq.s32.totalorder %s13, 3
      %p108 = scmp.ne.s32.totalorder %s103, %s105
      %p109 = scmp.eq.s32.totalorder %s13, 0
      %p110 = por %p108, %p109
      %p111 = scmp.ne.s32.totalorder %s103, %s105
      %p112 = scmp.eq.s32.totalorder %s18, 3
      %p113 = por %p111, %p112
      %p114 = scmp.ne.s32.totalorder %s105, %s106
      %p115 = scmp.eq.s32.totalorder %s18, 0
      %p116 = por %p114, %p115
      %p117 = scmp.ne.s32.totalorder %s105, %s106
      %p118 = scmp.eq.s32.totalorder %s19, 3
      %p119 = por %p117, %p118
      %p121 = scmp.ne.s32.totalorder %s106, %s120
      %p122 = scmp.eq.s32.totalorder %s19, 0
      %p123 = por %p121, %p122
      %s125 = sadd.s32 %s124, 1
      %p128 = scmp.eq.s32.totalorder %s13, 3
      %p129 = scmp.ne.s32.totalorder %s124, %s126
      %p130 = scmp.eq.s32.totalorder %s13, 0
      %p131 = por %p129, %p130
      %p132 = scmp.ne.s32.totalorder %s124, %s126
      %p133 = scmp.eq.s32.totalorder %s18, 3
      %p134 = por %p132, %p133
      %p135 = scmp.ne.s32.totalorder %s126, %s127
      %p136 = scmp.eq.s32.totalorder %s18, 0
      %p137 = por %p135, %p136
      %p138 = scmp.ne.s32.totalorder %s126, %s127
      %p139 = scmp.eq.s32.totalorder %s19, 3
      %p140 = por %p138, %p139
      %p142 = scmp.ne.s32.totalorder %s127, %s141
      %p143 = scmp.eq.s32.totalorder %s19, 0
      %p144 = por %p142, %p143
      %s146 = sadd.s32 %s145, 1
      %p149 = scmp.eq.s32.totalorder %s13, 3
      %p150 = scmp.ne.s32.totalorder %s145, %s147
      %p151 = scmp.eq.s32.totalorder %s13, 0
      %p152 = por %p150, %p151
      %p153 = scmp.ne.s32.totalorder %s145, %s147
      %p154 = scmp.eq.s32.totalorder %s18, 3
      %p155 = por %p153, %p154
      %p156 = scmp.ne.s32.totalorder %s147, %s148
      %p157 = scmp.eq.s32.totalorder %s18, 0
      %p158 = por %p156, %p157
      %p159 = scmp.ne.s32.totalorder %s147, %s148
      %p160 = scmp.eq.s32.totalorder %s19, 3
      %p161 = por %p159, %p160
      %p163 = scmp.ne.s32.totalorder %s148, %s162
      %p164 = scmp.eq.s32.totalorder %s19, 0
      %p165 = por %p163, %p164
      %s167 = sadd.s32 %s166, 1
      %p170 = scmp.eq.s32.totalorder %s13, 3
      %p171 = scmp.ne.s32.totalorder %s166, %s168
      %p172 = scmp.eq.s32.totalorder %s13, 0
      %p173 = por %p171, %p172
      %p174 = scmp.ne.s32.totalorder %s166, %s168
      %p175 = scmp.eq.s32.totalorder %s18, 3
      %p176 = por %p174, %p175
      %p177 = scmp.ne.s32.totalorder %s168, %s169
      %p178 = scmp.eq.s32.totalorder %s18, 0
      %p179 = por %p177, %p178
      %p180 = scmp.ne.s32.totalorder %s168, %s169
      %p181 = scmp.eq.s32.totalorder %s19, 3
      %p182 = por %p180, %p181
      %p184 = scmp.ne.s32.totalorder %s169, %s183
      %p185 = scmp.eq.s32.totalorder %s19, 0
      %p186 = por %p184, %p185
      %s187 = ssub.s32 %s20, %s32
      %s188 = ssub.s32 %s21, %s28
      %s189 = sor.u32 %s187, %s188
      %p190 = scmp.eq.s32.totalorder %s189, 0
      %s192 = sadd.s32 %s191, 1
      %s193 = scalar_select %p190, %s191, %s192
      %p196 = pneg %p190
      %p197 = scmp.eq.s32.totalorder %s13, 3
      %p198 = por %p196, %p197
      %p199 = scmp.ne.s32.totalorder %s191, %s194
      %p200 = scmp.eq.s32.totalorder %s13, 0
      %p201 = por %p199, %p200
      %p202 = scmp.ne.s32.totalorder %s191, %s194
      %p203 = scmp.eq.s32.totalorder %s18, 3
      %p204 = por %p202, %p203
      %p205 = scmp.ne.s32.totalorder %s194, %s195
      %p206 = scmp.eq.s32.totalorder %s18, 0
      %p207 = por %p205, %p206
      %p208 = scmp.ne.s32.totalorder %s194, %s195
      %p209 = scmp.eq.s32.totalorder %s19, 3
      %p210 = por %p208, %p209
      %p212 = scmp.ne.s32.totalorder %s195, %s211
      %p213 = scmp.eq.s32.totalorder %s19, 0
      %p214 = por %p212, %p213
      %p215 = scmp.le.s32.totalorder 1, %s13
      %p216 = scmp.lt.s32.totalorder %s13, 5
      %p217 = pnand %p215, %p216
      %p218 = pneg %p217
      // Predicated region
      $region9: #{temporal_conv_net.6} parent=5 // pred_check
        _
      $region10: #{temporal_conv_net.6} parent=5 // pred_check_branch
        %220 = sbr.rel (%p217) target = $region12
      $region11: #{temporal_conv_net.6} parent=5 // pred_region
        %s221 = ssub.s32 %s13, 1
        // Predicated region
        $region13: #{temporal_conv_net.6} parent=11 // pred_check
          %p222 = pneg %p74
        $region14: #{temporal_conv_net.6} parent=11 // pred_check_branch
          %224 = sbr.rel (%p222) target = $region16
        $region15: #{temporal_conv_net.6} parent=11 // pred_region
          _
        $region16: #{temporal_conv_net.6} parent=11 // pred_fallthru
          _
        // Predicated region
        $region17: #{temporal_conv_net.6} parent=11 // pred_check
          %p225 = pneg %p95
        $region18: #{temporal_conv_net.6} parent=11 // pred_check_branch
          %227 = sbr.rel (%p225) target = $region20
        $region19: #{temporal_conv_net.6} parent=11 // pred_region
          _
        $region20: #{temporal_conv_net.6} parent=11 // pred_fallthru
          _
        // Predicated region
        $region21: #{temporal_conv_net.6} parent=11 // pred_check
          %p228 = pneg %p116
        $region22: #{temporal_conv_net.6} parent=11 // pred_check_branch
          %230 = sbr.rel (%p228) target = $region24
        $region23: #{temporal_conv_net.6} parent=11 // pred_region
          _
        $region24: #{temporal_conv_net.6} parent=11 // pred_fallthru
          _
        // Predicated region
        $region25: #{temporal_conv_net.6} parent=11 // pred_check
          %p231 = pneg %p137
        $region26: #{temporal_conv_net.6} parent=11 // pred_check_branch
          %233 = sbr.rel (%p231) target = $region28
        $region27: #{temporal_conv_net.6} parent=11 // pred_region
          _
        $region28: #{temporal_conv_net.6} parent=11 // pred_fallthru
          _
        // Predicated region
        $region29: #{temporal_conv_net.6} parent=11 // pred_check
          %p234 = pneg %p158
        $region30: #{temporal_conv_net.6} parent=11 // pred_check_branch
          %236 = sbr.rel (%p234) target = $region32
        $region31: #{temporal_conv_net.6} parent=11 // pred_region
          _
        $region32: #{temporal_conv_net.6} parent=11 // pred_fallthru
          _
        // Predicated region
        $region33: #{temporal_conv_net.6} parent=11 // pred_check
          %p237 = pneg %p179
        $region34: #{temporal_conv_net.6} parent=11 // pred_check_branch
          %239 = sbr.rel (%p237) target = $region36
        $region35: #{temporal_conv_net.6} parent=11 // pred_region
          _
        $region36: #{temporal_conv_net.6} parent=11 // pred_fallthru
          _
      $region12: #{temporal_conv_net.6} parent=5 // pred_fallthru
        _
      %p240 = scmp.lt.s32.totalorder %s13, 4
      // Predicated region
      $region37: #{temporal_conv_net.6} parent=5 // pred_check
        %p241 = pneg %p240
      $region38: #{temporal_conv_net.6} parent=5 // pred_check_branch
        %243 = sbr.rel (%p241) target = $region40
      $region39: #{temporal_conv_net.6} parent=5 // pred_region
        // Predicated region
        $region41: #{temporal_conv_net.6} parent=39 // pred_check
          %p244 = pneg %p47
        $region42: #{temporal_conv_net.6} parent=39 // pred_check_branch
          %246 = sbr.rel (%p244) target = $region44
        $region43: #{temporal_conv_net.6} parent=39 // pred_region
          %s247 = sand.u32 %s37, 1
          %s248 = sand.u32 %s37, 1
          %s249 = smul.addr %s248, 32
          %s250 = scalar_lea.vmem [#allocation5], %s249
          %s251 = smul.u32 2, %s20
          %s252 = smul.u32 2, %s21
          %s253 = smul.addr %s251, 8
          %s254 = sadd.s32 %s252, %s253
          %s255 = smul.addr %s254, 8
          %s256 = scalar_lea.vmem %s0, %s255
          // Predicated region
          $region45: #{temporal_conv_net.6} parent=43 // pred_check
            _
          $region46: #{temporal_conv_net.6} parent=43 // pred_check_branch
            %258 = sbr.rel (0) target = $region48
          $region47: #{temporal_conv_net.6} parent=43 // pred_region
            // Predicated region
            $region49: #{temporal_conv_net.6} parent=47 // pred_check
              _
            $region50: #{temporal_conv_net.6} parent=47 // pred_check_branch
              %260 = sbr.rel (0) target = $region52
            $region51: #{temporal_conv_net.6} parent=47 // pred_region
              // Predicated region
              $region64: #{temporal_conv_net.6} parent=51 // pred_check
                _
              $region65: #{temporal_conv_net.6} parent=51 // pred_check_branch
                %281 = sbr.rel (0) target = $region67
              $region66: #{temporal_conv_net.6} parent=51 // pred_region
                loop: start=0, step=1, limit=1
                $region68: #{temporal_conv_net.6} parent=66 // loop_pre_header
                  _
                $region69: #{temporal_conv_net.6} parent=66 // loop_header
                  %s283 = sphi 0, %s287
                  %p284 = scmp.ge.s32.totalorder %s283, 1
                  %s288 = sphi %s256, %s256
                  %s289 = sphi %s250, %s250
                $region70: #{temporal_conv_net.6} parent=66 // loop_header_branch
                  %286 = sbr.rel (%p284) target = $region74
                $region71: #{temporal_conv_net.6} parent=66 // loop_body
                  %v290 = vld [vmem:[%s288] sm:$0xff]
                  %291 = vst [vmem:[%s289] sm:$0xff] %v290
                  %v292 = vld [vmem:[%s288 + $0x8] sm:$0xff]
                  %293 = vst [vmem:[%s289 + $0x8] sm:$0xff] %v292
                  %v294 = vld [vmem:[%s288 + $0x40] sm:$0xff]
                  %295 = vst [vmem:[%s289 + $0x10] sm:$0xff] %v294
                  %v296 = vld [vmem:[%s288 + $0x48] sm:$0xff]
                  %297 = vst [vmem:[%s289 + $0x18] sm:$0xff] %v296
                $region72: #{temporal_conv_net.6} parent=66 // loop_footer
                  %s287 = sadd.s32 1, %s283
                $region73: #{temporal_conv_net.6} parent=66 // loop_footer_branch
                  %282 = sbr.rel target = $region69
                $region74: #{temporal_conv_net.6} parent=66 // loop_exit
                  _
              $region67: #{temporal_conv_net.6} parent=51 // pred_fallthru
                _
              // Predicated region
              $region75: #{temporal_conv_net.6} parent=51 // pred_check
                _
              $region76: #{temporal_conv_net.6} parent=51 // pred_check_branch
                %299 = sbr.rel target = $region78
              $region77: #{temporal_conv_net.6} parent=51 // pred_region
                _
              $region78: #{temporal_conv_net.6} parent=51 // pred_fallthru
                _
            $region52: #{temporal_conv_net.6} parent=47 // pred_fallthru
              _
            // Predicated region
            $region53: #{temporal_conv_net.6} parent=47 // pred_check
              _
            $region54: #{temporal_conv_net.6} parent=47 // pred_check_branch
              %262 = sbr.rel target = $region56
            $region55: #{temporal_conv_net.6} parent=47 // pred_region
              loop: start=0, step=1, limit=1
              $region57: #{temporal_conv_net.6} parent=55 // loop_pre_header
                _
              $region58: #{temporal_conv_net.6} parent=55 // loop_header
                %s265 = sphi 0, %s269
                %p266 = scmp.ge.s32.totalorder %s265, 1
                %s270 = sphi %s256, %s256
                %s271 = sphi %s250, %s250
              $region59: #{temporal_conv_net.6} parent=55 // loop_header_branch
                %268 = sbr.rel (%p266) target = $region63
              $region60: #{temporal_conv_net.6} parent=55 // loop_body
                %v272 = vld [vmem:[%s270] sm:$0xff]
                %273 = vst [vmem:[%s271] sm:$0xff] %v272
                %v274 = vld [vmem:[%s270 + $0x8] sm:$0xff]
                %275 = vst [vmem:[%s271 + $0x8] sm:$0xff] %v274
                %v276 = vld [vmem:[%s270 + $0x40] sm:$0xff]
                %277 = vst [vmem:[%s271 + $0x10] sm:$0xff] %v276
                %v278 = vld [vmem:[%s270 + $0x48] sm:$0xff]
                %279 = vst [vmem:[%s271 + $0x18] sm:$0xff] %v278
              $region61: #{temporal_conv_net.6} parent=55 // loop_footer
                %s269 = sadd.s32 1, %s265
              $region62: #{temporal_conv_net.6} parent=55 // loop_footer_branch
                %264 = sbr.rel target = $region58
              $region63: #{temporal_conv_net.6} parent=55 // loop_exit
                _
            $region56: #{temporal_conv_net.6} parent=47 // pred_fallthru
              _
          $region48: #{temporal_conv_net.6} parent=43 // pred_fallthru
            _
          %300 = vnop
        $region44: #{temporal_conv_net.6} parent=39 // pred_fallthru
          _
      $region40: #{temporal_conv_net.6} parent=5 // pred_fallthru
        _
      %p301 = scmp.le.s32.totalorder 1, %s13
      %p302 = scmp.lt.s32.totalorder %s13, 5
      %p303 = pnand %p301, %p302
      %p304 = pneg %p303
      // Predicated region
      $region79: #{temporal_conv_net.6} parent=5 // pred_check
        _
      $region80: #{temporal_conv_net.6} parent=5 // pred_check_branch
        %306 = sbr.rel (%p303) target = $region82
      $region81: #{temporal_conv_net.6} parent=5 // pred_region
        %s307 = ssub.s32 %s13, 1
        %s308 = sand.u32 %s40, 1
        %s309 = sand.u32 %s40, 1
        %s310 = smul.addr %s309, 32
        %s311 = scalar_lea.vmem [#allocation5], %s310
        // Predicated region
        $region83: #{temporal_conv_net.6} parent=81 // pred_check
          %p312 = pneg %p53
        $region84: #{temporal_conv_net.6} parent=81 // pred_check_branch
          %314 = sbr.rel (%p312) target = $region86
        $region85: #{temporal_conv_net.6} parent=81 // pred_region
          _
        $region86: #{temporal_conv_net.6} parent=81 // pred_fallthru
          _
        %s315 = sand.u32 %s40, 1
        %s316 = sand.u32 %s40, 1
        %s317 = smul.addr %s316, 32
        %s318 = scalar_lea.vmem [#allocation5], %s317
        %p319 = pneg %p53
        %p320 = pneg %p50
        %p321 = pneg %p74
        %p322 = pneg %p71
        %p323 = pneg %p95
        %p324 = pneg %p92
        %p325 = pneg %p116
        %p326 = pneg %p113
        %p327 = pneg %p137
        %p328 = pneg %p134
        %p329 = pneg %p158
        %p330 = pneg %p155
        %p331 = pneg %p179
        %p332 = pneg %p176
        %p333 = pneg %p207
        %p334 = pneg %p204
        %s335 = sand.u32 %s194, 1
        %s336 = sand.u32 %s194, 1
        %s337 = smul.addr %s336, 32
        %s338 = scalar_lea.vmem [#allocation6], %s337
        %s339 = smul.u32 2, %s22
        %s340 = smul.u32 2, %s23
        %s341 = smul.u32 2, %s22
        %s342 = smul.u32 2, %s23
        %v344 = vld [vmem:[%s311] sm:$0xff]
        %v345 = vld [vmem:[%s311 + $0x8] sm:$0xff]
        %v346 = vld [vmem:[%s311 + $0x10] sm:$0xff]
        %v347 = vld [vmem:[%s311 + $0x18] sm:$0xff]
        %p348 = scmp.eq.s32.totalorder %s23, 0
        // Predicated region
        $region87: #{temporal_conv_net.6} parent=81 // pred_check
          %p349 = pneg %p348
        $region88: #{temporal_conv_net.6} parent=81 // pred_check_branch
          %351 = sbr.rel (%p349) target = $region90
        $region89: #{temporal_conv_net.6} parent=81 // pred_region
          %vm352 = vcmask 64512
          %353 = vst.msk [vmem:[#allocation2] sm:$0xff] %vm352, 0
          %354 = vst.msk [vmem:[#allocation2 + $0x10] sm:$0xff] %vm352, 0
        $region90: #{temporal_conv_net.6} parent=81 // pred_fallthru
          _
        %p355 = scmp.gt.s32.totalorder %s23, 0
        // Predicated region
        $region91: #{temporal_conv_net.6} parent=81 // pred_check
          %p356 = pneg %p355
        $region92: #{temporal_conv_net.6} parent=81 // pred_check_branch
          %358 = sbr.rel (%p356) target = $region94
        $region93: #{temporal_conv_net.6} parent=81 // pred_region
          %v359 = vld [vmem:[#allocation4] sm:$0xff]
          %v360 = vld [vmem:[#allocation4 + $0x8] sm:$0xff]
          %vm361 = vcmask 64512
          %362 = vst.msk [vmem:[#allocation2] sm:$0xff] %vm361, %v359
          %363 = vst.msk [vmem:[#allocation2 + $0x10] sm:$0xff] %vm361, %v360
        $region94: #{temporal_conv_net.6} parent=81 // pred_fallthru
          _
        %v364 = vpack.c.bf16 %v345, %v344
        %v365 = vpack.c.bf16 %v347, %v346
        %vm366 = vcmask 64512
        %367 = vst.msk [vmem:[#allocation2 + $0x8] sm:$0xff] %vm366, %v364
        %368 = vst.msk [vmem:[#allocation2 + $0x18] sm:$0xff] %vm366, %v365
        %v369 = vld [vmem:[#allocation2 + $0x8] sm:$0xff]
        %v370 = vld [vmem:[#allocation2 + $0x18] sm:$0xff]
        %371 = vst.msk [vmem:[#allocation4] sm:$0xff] %vm366, %v369
        %372 = vst.msk [vmem:[#allocation4 + $0x8] sm:$0xff] %vm366, %v370
        %v373 = vld [vmem:[#allocation2] sm:$0xff]
        %v374 = vld [vmem:[#allocation2 + $0x8] sm:$0xf]
        %v375 = vld [vmem:[#allocation2 + $0x10] sm:$0xff]
        %v376 = vld [vmem:[#allocation2 + $0x18] sm:$0xf]
        %v377 = vld [vmem:[%s1] sm:$0xf]
        %v378 = vld [vmem:[#allocation2] sm:$0xfc]
        %v379 = vld [vmem:[#allocation2 + $0x8] sm:$0x3f]
        %v380 = vld [vmem:[#allocation2 + $0x10] sm:$0xfc]
        %v381 = vld [vmem:[#allocation2 + $0x18] sm:$0x3f]
        %s382 = scalar_lea.vmem %s1, 4
        %v383 = vld [vmem:[%s382] sm:$0xf]
        %v388 = vunpack.c.l.b16 %v378
        %v389 = vunpack.c.h.b16 %v378
        %v390 = vunpack.c.l.b16 %v379
        %v391 = vunpack.c.h.b16 %v379
        %v392 = vunpack.c.l.b16 %v380
        %v393 = vunpack.c.h.b16 %v380
        %v394 = vunpack.c.l.b16 %v381
        %v395 = vunpack.c.h.b16 %v381
        %v396 = vpack.c.b16 %v388, %v388
        %v397 = vpack.c.b16 %v389, %v389
        %v398 = vpack.c.b16 %v390, %v390
        %v399 = vpack.c.b16 %v391, %v391
        %v400 = vpack.c.b16 %v392, %v392
        %v401 = vpack.c.b16 %v393, %v393
        %v402 = vpack.c.b16 %v394, %v394
        %v403 = vpack.c.b16 %v395, %v395
        %vm404 = vcmask 1041408
        %vm405 = vcmask 1045508
        %vm406 = vmor %vm404, %vm405
        %v407 = vrot.slane %v396, 6
        %v408 = vrot.slane %v407, 4
        %v409 = vrot.slane %v397, 6
        %v410 = vsel %vm406, %v408, %v409
        %v411 = vrot.slane %v409, 4
        %v412 = vrot.slane %v398, 6
        %v413 = vsel %vm406, %v411, %v412
        %v414 = vrot.slane %v412, 4
        %v415 = vrot.slane %v399, 6
        %v416 = vsel %vm406, %v414, %v415
        %v417 = vrot.slane %v400, 6
        %v418 = vrot.slane %v417, 4
        %v419 = vrot.slane %v401, 6
        %v420 = vsel %vm406, %v418, %v419
        %v421 = vrot.slane %v419, 4
        %v422 = vrot.slane %v402, 6
        %v423 = vsel %vm406, %v421, %v422
        %v424 = vrot.slane %v422, 4
        %v425 = vrot.slane %v403, 6
        %v426 = vsel %vm406, %v424, %v425
        %v427 = vunpack.c.l.b16 %v410
        %v428 = vunpack.c.l.b16 %v413
        %v429 = vunpack.c.l.b16 %v416
        %v430 = vunpack.c.l.b16 %v420
        %v431 = vunpack.c.l.b16 %v423
        %v432 = vunpack.c.l.b16 %v426
        %v433 = vpack.c.b16 %v428, %v427
        %v434 = vpack.c.b16 %v430, %v429
        %v435 = vpack.c.b16 %v432, %v431
        %v437 = vsel %vm366, %v433, 0
        %v440 = vsel %vm366, %v434, 0
        %v443 = vsel %vm366, %v435, 0
        %vm445 = vcmask 1043456
        %v447 = vsel %vm445, %v383, 0
        %449 = vmatprep.subr.bf16.mxu0 0
        %450 = vmatpush1.bf16.msra.mxu0 %v447
        %451 = vmatprep.subr.bf16.mxu0 0
        %452 = vmatpush1.bf16.msra.mxu0 0
        %453 = vmatprep.subr.bf16.mxu0 0
        %454 = vmatpush1.bf16.msra.mxu0 0
        %455 = vmatprep.subr.bf16.mxu0 0
        %456 = vmatpush1.bf16.msra.mxu0 0
        %457 = vmatprep.subr.bf16.mxu0 0
        %458 = vmatpush1.bf16.msra.mxu0 0
        %459 = vmatprep.subr.bf16.mxu0 0
        %460 = vmatpush1.bf16.msra.mxu0 0
        %461 = vmatprep.subr.bf16.mxu0 0
        %462 = vmatpush1.bf16.msra.mxu0 0
        %463 = vmatprep.subr.bf16.mxu0 0
        %464 = vmatpush1.bf16.msra.mxu0 0
        %465 = vmatprep.subr.bf16.mxu0 0
        %466 = vmatpush1.bf16.msra.mxu0 0
        %467 = vmatprep.subr.bf16.mxu0 0
        %468 = vmatpush1.bf16.msra.mxu0 0
        %469 = vmatprep.subr.bf16.mxu0 0
        %470 = vmatpush1.bf16.msra.mxu0 0
        %471 = vmatprep.subr.bf16.mxu0 0
        %472 = vmatpush1.bf16.msra.mxu0 0
        %473 = vmatprep.subr.bf16.mxu0 0
        %474 = vmatpush1.bf16.msra.mxu0 0
        %475 = vmatprep.subr.bf16.mxu0 0
        %476 = vmatpush1.bf16.msra.mxu0 0
        %477 = vmatprep.subr.bf16.mxu0 0
        %478 = vmatpush1.bf16.msra.mxu0 0
        %479 = vmatprep.subr.bf16.mxu0 0
        %480 = vmatpush1.bf16.msra.mxu0 0
        %481 = vmatprep.mubr.bf16.mxu0 0
        %482 = vmatmul.mubr.bf16.gmra.mrb[0].mxu0 %v437
        %v483 = vpop.f32.mrb[0].mxu0
        %v484 = vadd.f32 0.0, %v483
        %v485 = vpop.f32.mrb[0].mxu0
        %v486 = vpop.f32.mrb[0].mxu0
        %v487 = vadd.f32 0.0, %v486
        %v488 = vpop.f32.mrb[0].mxu0
        %489 = vmatprep.mubr.bf16.mxu0 0
        %490 = vmatmul.mubr.bf16.gmra.mrb[0].mxu0 %v440
        %v491 = vpop.f32.mrb[0].mxu0
        %v492 = vadd.f32 0.0, %v491
        %v493 = vpop.f32.mrb[0].mxu0
        %v494 = vpop.f32.mrb[0].mxu0
        %v495 = vadd.f32 0.0, %v494
        %v496 = vpop.f32.mrb[0].mxu0
        %497 = vmatprep.mubr.bf16.mxu0 0
        %498 = vmatmul.mubr.bf16.gmra.mrb[0].mxu0 %v443
        %v499 = vpop.f32.mrb[0].mxu0
        %v500 = vadd.f32 0.0, %v499
        %v501 = vpop.f32.mrb[0].mxu0
        %v502 = vpop.f32.mrb[0].mxu0
        %v503 = vadd.f32 0.0, %v502
        %v504 = vpop.f32.mrb[0].mxu0
        %505 = vdwg.mxu0
        %v510 = vunpack.c.l.b16 %v373
        %v511 = vunpack.c.h.b16 %v373
        %v512 = vunpack.c.l.b16 %v374
        %v513 = vunpack.c.l.b16 %v375
        %v514 = vunpack.c.h.b16 %v375
        %v515 = vunpack.c.l.b16 %v376
        %v516 = vpack.c.b16 %v511, %v510
        %v517 = vpack.c.b16 %v513, %v512
        %v518 = vpack.c.b16 %v515, %v514
        %v520 = vsel %vm366, %v516, 0
        %v523 = vsel %vm366, %v517, 0
        %v526 = vsel %vm366, %v518, 0
        %v529 = vsel %vm445, %v377, 0
        %531 = vmatprep.subr.bf16.mxu0 0
        %532 = vmatpush1.bf16.msra.mxu0 %v529
        %533 = vmatprep.subr.bf16.mxu0 0
        %534 = vmatpush1.bf16.msra.mxu0 0
        %535 = vmatprep.subr.bf16.mxu0 0
        %536 = vmatpush1.bf16.msra.mxu0 0
        %537 = vmatprep.subr.bf16.mxu0 0
        %538 = vmatpush1.bf16.msra.mxu0 0
        %539 = vmatprep.subr.bf16.mxu0 0
        %540 = vmatpush1.bf16.msra.mxu0 0
        %541 = vmatprep.subr.bf16.mxu0 0
        %542 = vmatpush1.bf16.msra.mxu0 0
        %543 = vmatprep.subr.bf16.mxu0 0
        %544 = vmatpush1.bf16.msra.mxu0 0
        %545 = vmatprep.subr.bf16.mxu0 0
        %546 = vmatpush1.bf16.msra.mxu0 0
        %547 = vmatprep.subr.bf16.mxu0 0
        %548 = vmatpush1.bf16.msra.mxu0 0
        %549 = vmatprep.subr.bf16.mxu0 0
        %550 = vmatpush1.bf16.msra.mxu0 0
        %551 = vmatprep.subr.bf16.mxu0 0
        %552 = vmatpush1.bf16.msra.mxu0 0
        %553 = vmatprep.subr.bf16.mxu0 0
        %554 = vmatpush1.bf16.msra.mxu0 0
        %555 = vmatprep.subr.bf16.mxu0 0
        %556 = vmatpush1.bf16.msra.mxu0 0
        %557 = vmatprep.subr.bf16.mxu0 0
        %558 = vmatpush1.bf16.msra.mxu0 0
        %559 = vmatprep.subr.bf16.mxu0 0
        %560 = vmatpush1.bf16.msra.mxu0 0
        %561 = vmatprep.subr.bf16.mxu0 0
        %562 = vmatpush1.bf16.msra.mxu0 0
        %563 = vmatprep.mubr.bf16.mxu0 0
        %564 = vmatmul.mubr.bf16.gmra.mrb[0].mxu0 %v520
        %v565 = vpop.f32.mrb[0].mxu0
        %v566 = vadd.f32 %v484, %v565
        %v567 = vpop.f32.mrb[0].mxu0
        %v568 = vpop.f32.mrb[0].mxu0
        %v569 = vadd.f32 %v487, %v568
        %v570 = vpop.f32.mrb[0].mxu0
        %571 = vmatprep.mubr.bf16.mxu0 0
        %572 = vmatmul.mubr.bf16.gmra.mrb[0].mxu0 %v523
        %v573 = vpop.f32.mrb[0].mxu0
        %v574 = vadd.f32 %v492, %v573
        %v575 = vpop.f32.mrb[0].mxu0
        %v576 = vpop.f32.mrb[0].mxu0
        %v577 = vadd.f32 %v495, %v576
        %v578 = vpop.f32.mrb[0].mxu0
        %579 = vmatprep.mubr.bf16.mxu0 0
        %580 = vmatmul.mubr.bf16.gmra.mrb[0].mxu0 %v526
        %v581 = vpop.f32.mrb[0].mxu0
        %v582 = vadd.f32 %v500, %v581
        %v583 = vpop.f32.mrb[0].mxu0
        %v584 = vpop.f32.mrb[0].mxu0
        %v585 = vadd.f32 %v503, %v584
        %v586 = vpop.f32.mrb[0].mxu0
        %587 = vdwg.mxu0
        %v588 = vld [vmem:[#allocation2] sm:$0xf0]
        %v589 = vld [vmem:[#allocation2 + $0x8] sm:$0xff]
        %v590 = vld [vmem:[#allocation2 + $0x10] sm:$0xf0]
        %v591 = vld [vmem:[#allocation2 + $0x18] sm:$0xff]
        %s592 = scalar_lea.vmem %s1, 8
        %v593 = vld [vmem:[%s592] sm:$0xf]
        %v598 = vunpack.c.h.b16 %v588
        %v599 = vunpack.c.l.b16 %v589
        %v600 = vunpack.c.h.b16 %v589
        %v601 = vunpack.c.h.b16 %v590
        %v602 = vunpack.c.l.b16 %v591
        %v603 = vunpack.c.h.b16 %v591
        %v604 = vpack.c.b16 %v599, %v598
        %v605 = vpack.c.b16 %v601, %v600
        %v606 = vpack.c.b16 %v603, %v602
        %v608 = vsel %vm366, %v604, 0
        %v611 = vsel %vm366, %v605, 0
        %v614 = vsel %vm366, %v606, 0
        %v617 = vsel %vm445, %v593, 0
        %619 = vmatprep.subr.bf16.mxu0 0
        %620 = vmatpush1.bf16.msra.mxu0 %v617
        %621 = vmatprep.subr.bf16.mxu0 0
        %622 = vmatpush1.bf16.msra.mxu0 0
        %623 = vmatprep.subr.bf16.mxu0 0
        %624 = vmatpush1.bf16.msra.mxu0 0
        %625 = vmatprep.subr.bf16.mxu0 0
        %626 = vmatpush1.bf16.msra.mxu0 0
        %627 = vmatprep.subr.bf16.mxu0 0
        %628 = vmatpush1.bf16.msra.mxu0 0
        %629 = vmatprep.subr.bf16.mxu0 0
        %630 = vmatpush1.bf16.msra.mxu0 0
        %631 = vmatprep.subr.bf16.mxu0 0
        %632 = vmatpush1.bf16.msra.mxu0 0
        %633 = vmatprep.subr.bf16.mxu0 0
        %634 = vmatpush1.bf16.msra.mxu0 0
        %635 = vmatprep.subr.bf16.mxu0 0
        %636 = vmatpush1.bf16.msra.mxu0 0
        %637 = vmatprep.subr.bf16.mxu0 0
        %638 = vmatpush1.bf16.msra.mxu0 0
        %639 = vmatprep.subr.bf16.mxu0 0
        %640 = vmatpush1.bf16.msra.mxu0 0
        %641 = vmatprep.subr.bf16.mxu0 0
        %642 = vmatpush1.bf16.msra.mxu0 0
        %643 = vmatprep.subr.bf16.mxu0 0
        %644 = vmatpush1.bf16.msra.mxu0 0
        %645 = vmatprep.subr.bf16.mxu0 0
        %646 = vmatpush1.bf16.msra.mxu0 0
        %647 = vmatprep.subr.bf16.mxu0 0
        %648 = vmatpush1.bf16.msra.mxu0 0
        %649 = vmatprep.subr.bf16.mxu0 0
        %650 = vmatpush1.bf16.msra.mxu0 0
        %651 = vmatprep.mubr.bf16.mxu0 0
        %652 = vmatmul.mubr.bf16.gmra.mrb[0].mxu0 %v608
        %v653 = vpop.f32.mrb[0].mxu0
        %v654 = vadd.f32 0.0, %v653
        %v655 = vpop.f32.mrb[0].mxu0
        %v656 = vpop.f32.mrb[0].mxu0
        %v657 = vadd.f32 0.0, %v656
        %v658 = vpop.f32.mrb[0].mxu0
        %659 = vmatprep.mubr.bf16.mxu0 0
        %660 = vmatmul.mubr.bf16.gmra.mrb[0].mxu0 %v611
        %v661 = vpop.f32.mrb[0].mxu0
        %v662 = vadd.f32 0.0, %v661
        %v663 = vpop.f32.mrb[0].mxu0
        %v664 = vpop.f32.mrb[0].mxu0
        %v665 = vadd.f32 0.0, %v664
        %v666 = vpop.f32.mrb[0].mxu0
        %667 = vmatprep.mubr.bf16.mxu0 0
        %668 = vmatmul.mubr.bf16.gmra.mrb[0].mxu0 %v614
        %v669 = vpop.f32.mrb[0].mxu0
        %v670 = vadd.f32 0.0, %v669
        %v671 = vpop.f32.mrb[0].mxu0
        %v672 = vpop.f32.mrb[0].mxu0
        %v673 = vadd.f32 0.0, %v672
        %v674 = vpop.f32.mrb[0].mxu0
        %675 = vdwg.mxu0
        %v676 = vadd.f32 %v566, %v654
        %v677 = vadd.f32 %v569, %v657
        %v678 = vadd.f32 %v574, %v662
        %v679 = vadd.f32 %v577, %v665
        %v680 = vadd.f32 %v582, %v670
        %v681 = vadd.f32 %v585, %v673
        %v682 = vld [vmem:[%s2] sm:$0x1]
        %v684 = vlaneseq
        %v685 = vshrl.u32 %v684, 7
        %v686 = vsub.s32 0, %v685
        %v687 = vrot.slane %v682, %v686
        %v689 = vadd.f32 %v676, %v687
        %v690 = vadd.f32 %v677, %v687
        %v691 = vadd.f32 %v678, %v687
        %v692 = vadd.f32 %v679, %v687
        %v693 = vadd.f32 %v680, %v687
        %v694 = vadd.f32 %v681, %v687
        %v695 = vmax.f32 %v689, 0.0
        %v696 = vmax.f32 %v690, 0.0
        %v697 = vmax.f32 %v691, 0.0
        %v698 = vmax.f32 %v692, 0.0
        %v699 = vmax.f32 %v693, 0.0
        %v700 = vmax.f32 %v694, 0.0
        %v701 = vpack.c.bf16 %v696, %v695
        %v702 = vpack.c.bf16 %v697, %v697
        %v703 = vpack.c.bf16 %v699, %v698
        %v704 = vpack.c.bf16 %v700, %v700
        %v709 = vunpack.c.l.b16 %v701
        %v710 = vunpack.c.h.b16 %v701
        %v711 = vunpack.c.l.b16 %v702
        %v712 = vunpack.c.l.b16 %v703
        %v713 = vunpack.c.h.b16 %v703
        %v714 = vunpack.c.l.b16 %v704
        %v715 = vpack.c.b16 %v709, %v709
        %v716 = vpack.c.b16 %v710, %v710
        %v717 = vpack.c.b16 %v711, %v711
        %v718 = vpack.c.b16 %v712, %v712
        %v719 = vpack.c.b16 %v713, %v713
        %v720 = vpack.c.b16 %v714, %v714
        %vm727 = vcmask 125952
        %728 = vst.msk [vmem:[#allocation3] sm:$0xf] %vm727, %v715
        %729 = vst.msk [vmem:[#allocation3 + $0x4] sm:$0xf] %vm727, %v716
        %730 = vst.msk [vmem:[#allocation3 + $0x8] sm:$0xf] %vm727, %v717
        %731 = vst.msk [vmem:[#allocation3 + $0xc] sm:$0xf] %vm727, %v718
        %732 = vst.msk [vmem:[#allocation3 + $0x10] sm:$0xf] %vm727, %v719
        %733 = vst.msk [vmem:[#allocation3 + $0x14] sm:$0xf] %vm727, %v720
        %s734 = smul.u32 %s23, 16
        %p735 = scmp.lt.s32.totalorder %s734, 8
        // Predicated region
        $region95: #{temporal_conv_net.6} parent=81 // pred_check
          %p736 = pneg %p735
        $region96: #{temporal_conv_net.6} parent=81 // pred_check_branch
          %738 = sbr.rel (%p736) target = $region98
        $region97: #{temporal_conv_net.6} parent=81 // pred_region
          %s739 = ssub.s32 %s734, 8
          %v740 = vlaneseq
          %v741 = vshrl.u32 %v740, 7
          %v742 = vadd.s32 %v741, 8
          %v743 = vadd.s32 %v741, 16
          %v744 = vstv %s739
          %v745 = vadd.s32 %v744, %v741
          %v746 = vadd.s32 %v744, %v742
          %v747 = vadd.s32 %v744, %v743
          %vm748 = vcmp.ge.s32.totalorder %v745, 0
          %vm749 = vcmp.ge.s32.totalorder %v746, 0
          %vm750 = vcmp.ge.s32.totalorder %v747, 0
          %v751 = vsel %vm748, 1, 0
          %v752 = vsel %vm749, 1, 0
          %v753 = vsel %vm750, 1, 0
          %vm754 = vcmp.eq.s32.totalorder %v751, 1
          %vm755 = vcmp.eq.s32.totalorder %v752, 1
          %vm756 = vcmp.eq.s32.totalorder %v753, 1
          %v757 = vsel %vm754, %v695, 0.0
          %v758 = vsel %vm755, %v696, 0.0
          %v759 = vsel %vm756, %v697, 0.0
          %v760 = vsel %vm754, %v698, 0.0
          %v761 = vsel %vm755, %v699, 0.0
          %v762 = vsel %vm756, %v700, 0.0
          %v763 = vpack.c.bf16 %v758, %v757
          %v764 = vpack.c.bf16 %v759, %v759
          %v765 = vpack.c.bf16 %v761, %v760
          %v766 = vpack.c.bf16 %v762, %v762
          %v771 = vunpack.c.l.b16 %v763
          %v772 = vunpack.c.h.b16 %v763
          %v773 = vunpack.c.l.b16 %v764
          %v774 = vunpack.c.l.b16 %v765
          %v775 = vunpack.c.h.b16 %v765
          %v776 = vunpack.c.l.b16 %v766
          %v777 = vpack.c.b16 %v771, %v771
          %v778 = vpack.c.b16 %v772, %v772
          %v779 = vpack.c.b16 %v773, %v773
          %v780 = vpack.c.b16 %v774, %v774
          %v781 = vpack.c.b16 %v775, %v775
          %v782 = vpack.c.b16 %v776, %v776
          %789 = vst.msk [vmem:[#allocation3] sm:$0xf] %vm727, %v777
          %790 = vst.msk [vmem:[#allocation3 + $0x4] sm:$0xf] %vm727, %v778
          %791 = vst.msk [vmem:[#allocation3 + $0x8] sm:$0xf] %vm727, %v779
          %792 = vst.msk [vmem:[#allocation3 + $0xc] sm:$0xf] %vm727, %v780
          %793 = vst.msk [vmem:[#allocation3 + $0x10] sm:$0xf] %vm727, %v781
          %794 = vst.msk [vmem:[#allocation3 + $0x14] sm:$0xf] %vm727, %v782
        $region98: #{temporal_conv_net.6} parent=81 // pred_fallthru
          _
        %v795 = vld [vmem:[#allocation3] sm:$0xf]
        %v796 = vld [vmem:[#allocation3 + $0x4] sm:$0xf]
        %v797 = vld [vmem:[#allocation3 + $0xc] sm:$0xf]
        %v798 = vld [vmem:[#allocation3 + $0x10] sm:$0xf]
        %v799 = vld [vmem:[%s3] sm:$0xf]
        %v800 = vld [vmem:[%s3 + $0x4] sm:$0xf]
        %v801 = vld [vmem:[#allocation3] sm:$0xc]
        %v802 = vld [vmem:[#allocation3 + $0x4] sm:$0xf]
        %v803 = vld [vmem:[#allocation3 + $0x8] sm:$0x3]
        %v804 = vld [vmem:[#allocation3 + $0xc] sm:$0xc]
        %v805 = vld [vmem:[#allocation3 + $0x10] sm:$0xf]
        %v806 = vld [vmem:[#allocation3 + $0x14] sm:$0x3]
        %s807 = scalar_lea.vmem %s3, 8
        %v808 = vld [vmem:[%s807] sm:$0xf]
        %v809 = vld [vmem:[%s807 + $0x4] sm:$0xf]
        %v816 = vrot.slane %v801, 6
        %v817 = vrot.slane %v816, 4
        %v818 = vrot.slane %v802, 6
        %v819 = vsel %vm406, %v817, %v818
        %v820 = vrot.slane %v818, 4
        %v821 = vrot.slane %v803, 6
        %v822 = vsel %vm406, %v820, %v821
        %v823 = vrot.slane %v804, 6
        %v824 = vrot.slane %v823, 4
        %v825 = vrot.slane %v805, 6
        %v826 = vsel %vm406, %v824, %v825
        %v827 = vrot.slane %v825, 4
        %v828 = vrot.slane %v806, 6
        %v829 = vsel %vm406, %v827, %v828
        %v830 = vunpack.c.l.b16 %v819
        %v831 = vunpack.c.l.b16 %v822
        %v832 = vunpack.c.l.b16 %v826
        %v833 = vunpack.c.l.b16 %v829
        %v834 = vpack.c.b16 %v831, %v830
        %v835 = vpack.c.b16 %v833, %v832
        %v838 = vunpack.c.l.b16 %v808
        %v839 = vunpack.c.l.b16 %v809
        %v840 = vpack.c.b16 %v839, %v838
        %vm842 = vcmask 130048
        %v844 = vsel %vm842, %v834, 0
        %v847 = vsel %vm842, %v835, 0
        %849 = vmatprep.subr.bf16.mxu0 0
        %850 = vmatpush1.bf16.msra.mxu0 %v840
        %851 = vmatprep.subr.bf16.mxu0 0
        %852 = vmatpush1.bf16.msra.mxu0 0
        %853 = vmatprep.subr.bf16.mxu0 0
        %854 = vmatpush1.bf16.msra.mxu0 0
        %855 = vmatprep.subr.bf16.mxu0 0
        %856 = vmatpush1.bf16.msra.mxu0 0
        %857 = vmatprep.subr.bf16.mxu0 0
        %858 = vmatpush1.bf16.msra.mxu0 0
        %859 = vmatprep.subr.bf16.mxu0 0
        %860 = vmatpush1.bf16.msra.mxu0 0
        %861 = vmatprep.subr.bf16.mxu0 0
        %862 = vmatpush1.bf16.msra.mxu0 0
        %863 = vmatprep.subr.bf16.mxu0 0
        %864 = vmatpush1.bf16.msra.mxu0 0
        %865 = vmatprep.subr.bf16.mxu0 0
        %866 = vmatpush1.bf16.msra.mxu0 0
        %867 = vmatprep.subr.bf16.mxu0 0
        %868 = vmatpush1.bf16.msra.mxu0 0
        %869 = vmatprep.subr.bf16.mxu0 0
        %870 = vmatpush1.bf16.msra.mxu0 0
        %871 = vmatprep.subr.bf16.mxu0 0
        %872 = vmatpush1.bf16.msra.mxu0 0
        %873 = vmatprep.subr.bf16.mxu0 0
        %874 = vmatpush1.bf16.msra.mxu0 0
        %875 = vmatprep.subr.bf16.mxu0 0
        %876 = vmatpush1.bf16.msra.mxu0 0
        %877 = vmatprep.subr.bf16.mxu0 0
        %878 = vmatpush1.bf16.msra.mxu0 0
        %879 = vmatprep.subr.bf16.mxu0 0
        %880 = vmatpush1.bf16.msra.mxu0 0
        %881 = vmatprep.mubr.bf16.mxu0 0
        %882 = vmatmul.mubr.bf16.gmra.mrb[0].mxu0 %v844
        %v883 = vpop.f32.mrb[0].mxu0
        %v884 = vadd.f32 0.0, %v883
        %v885 = vpop.f32.mrb[0].mxu0
        %v886 = vpop.f32.mrb[0].mxu0
        %v887 = vadd.f32 0.0, %v886
        %v888 = vpop.f32.mrb[0].mxu0
        %889 = vmatprep.mubr.bf16.mxu0 0
        %890 = vmatmul.mubr.bf16.gmra.mrb[0].mxu0 %v847
        %v891 = vpop.f32.mrb[0].mxu0
        %v892 = vadd.f32 0.0, %v891
        %v893 = vpop.f32.mrb[0].mxu0
        %v894 = vpop.f32.mrb[0].mxu0
        %v895 = vadd.f32 0.0, %v894
        %v896 = vpop.f32.mrb[0].mxu0
        %897 = vdwg.mxu0
        %v902 = vunpack.c.l.b16 %v795
        %v903 = vunpack.c.l.b16 %v796
        %v904 = vunpack.c.l.b16 %v797
        %v905 = vunpack.c.l.b16 %v798
        %v906 = vpack.c.b16 %v903, %v902
        %v907 = vpack.c.b16 %v905, %v904
        %v910 = vunpack.c.l.b16 %v799
        %v911 = vunpack.c.l.b16 %v800
        %v912 = vpack.c.b16 %v911, %v910
        %v915 = vsel %vm842, %v906, 0
        %v918 = vsel %vm842, %v907, 0
        %920 = vmatprep.subr.bf16.mxu0 0
        %921 = vmatpush1.bf16.msra.mxu0 %v912
        %922 = vmatprep.subr.bf16.mxu0 0
        %923 = vmatpush1.bf16.msra.mxu0 0
        %924 = vmatprep.subr.bf16.mxu0 0
        %925 = vmatpush1.bf16.msra.mxu0 0
        %926 = vmatprep.subr.bf16.mxu0 0
        %927 = vmatpush1.bf16.msra.mxu0 0
        %928 = vmatprep.subr.bf16.mxu0 0
        %929 = vmatpush1.bf16.msra.mxu0 0
        %930 = vmatprep.subr.bf16.mxu0 0
        %931 = vmatpush1.bf16.msra.mxu0 0
        %932 = vmatprep.subr.bf16.mxu0 0
        %933 = vmatpush1.bf16.msra.mxu0 0
        %934 = vmatprep.subr.bf16.mxu0 0
        %935 = vmatpush1.bf16.msra.mxu0 0
        %936 = vmatprep.subr.bf16.mxu0 0
        %937 = vmatpush1.bf16.msra.mxu0 0
        %938 = vmatprep.subr.bf16.mxu0 0
        %939 = vmatpush1.bf16.msra.mxu0 0
        %940 = vmatprep.subr.bf16.mxu0 0
        %941 = vmatpush1.bf16.msra.mxu0 0
        %942 = vmatprep.subr.bf16.mxu0 0
        %943 = vmatpush1.bf16.msra.mxu0 0
        %944 = vmatprep.subr.bf16.mxu0 0
        %945 = vmatpush1.bf16.msra.mxu0 0
        %946 = vmatprep.subr.bf16.mxu0 0
        %947 = vmatpush1.bf16.msra.mxu0 0
        %948 = vmatprep.subr.bf16.mxu0 0
        %949 = vmatpush1.bf16.msra.mxu0 0
        %950 = vmatprep.subr.bf16.mxu0 0
        %951 = vmatpush1.bf16.msra.mxu0 0
        %952 = vmatprep.mubr.bf16.mxu0 0
        %953 = vmatmul.mubr.bf16.gmra.mrb[0].mxu0 %v915
        %v954 = vpop.f32.mrb[0].mxu0
        %v955 = vadd.f32 %v884, %v954
        %v956 = vpop.f32.mrb[0].mxu0
        %v957 = vpop.f32.mrb[0].mxu0
        %v958 = vadd.f32 %v887, %v957
        %v959 = vpop.f32.mrb[0].mxu0
        %960 = vmatprep.mubr.bf16.mxu0 0
        %961 = vmatmul.mubr.bf16.gmra.mrb[0].mxu0 %v918
        %v962 = vpop.f32.mrb[0].mxu0
        %v963 = vadd.f32 %v892, %v962
        %v964 = vpop.f32.mrb[0].mxu0
        %v965 = vpop.f32.mrb[0].mxu0
        %v966 = vadd.f32 %v895, %v965
        %v967 = vpop.f32.mrb[0].mxu0
        %968 = vdwg.mxu0
        %v969 = vld [vmem:[#allocation3 + $0x4] sm:$0xf]
        %v970 = vld [vmem:[#allocation3 + $0x8] sm:$0xf]
        %v971 = vld [vmem:[#allocation3 + $0x10] sm:$0xf]
        %v972 = vld [vmem:[#allocation3 + $0x14] sm:$0xf]
        %s973 = scalar_lea.vmem %s3, 16
        %v974 = vld [vmem:[%s973] sm:$0xf]
        %v975 = vld [vmem:[%s973 + $0x4] sm:$0xf]
        %v980 = vunpack.c.l.b16 %v969
        %v981 = vunpack.c.l.b16 %v970
        %v982 = vunpack.c.l.b16 %v971
        %v983 = vunpack.c.l.b16 %v972
        %v984 = vpack.c.b16 %v981, %v980
        %v985 = vpack.c.b16 %v983, %v982
        %v988 = vunpack.c.l.b16 %v974
        %v989 = vunpack.c.l.b16 %v975
        %v990 = vpack.c.b16 %v989, %v988
        %v993 = vsel %vm842, %v984, 0
        %v996 = vsel %vm842, %v985, 0
        %998 = vmatprep.subr.bf16.mxu0 0
        %999 = vmatpush1.bf16.msra.mxu0 %v990
        %1000 = vmatprep.subr.bf16.mxu0 0
        %1001 = vmatpush1.bf16.msra.mxu0 0
        %1002 = vmatprep.subr.bf16.mxu0 0
        %1003 = vmatpush1.bf16.msra.mxu0 0
        %1004 = vmatprep.subr.bf16.mxu0 0
        %1005 = vmatpush1.bf16.msra.mxu0 0
        %1006 = vmatprep.subr.bf16.mxu0 0
        %1007 = vmatpush1.bf16.msra.mxu0 0
        %1008 = vmatprep.subr.bf16.mxu0 0
        %1009 = vmatpush1.bf16.msra.mxu0 0
        %1010 = vmatprep.subr.bf16.mxu0 0
        %1011 = vmatpush1.bf16.msra.mxu0 0
        %1012 = vmatprep.subr.bf16.mxu0 0
        %1013 = vmatpush1.bf16.msra.mxu0 0
        %1014 = vmatprep.subr.bf16.mxu0 0
        %1015 = vmatpush1.bf16.msra.mxu0 0
        %1016 = vmatprep.subr.bf16.mxu0 0
        %1017 = vmatpush1.bf16.msra.mxu0 0
        %1018 = vmatprep.subr.bf16.mxu0 0
        %1019 = vmatpush1.bf16.msra.mxu0 0
        %1020 = vmatprep.subr.bf16.mxu0 0
        %1021 = vmatpush1.bf16.msra.mxu0 0
        %1022 = vmatprep.subr.bf16.mxu0 0
        %1023 = vmatpush1.bf16.msra.mxu0 0
        %1024 = vmatprep.subr.bf16.mxu0 0
        %1025 = vmatpush1.bf16.msra.mxu0 0
        %1026 = vmatprep.subr.bf16.mxu0 0
        %1027 = vmatpush1.bf16.msra.mxu0 0
        %1028 = vmatprep.subr.bf16.mxu0 0
        %1029 = vmatpush1.bf16.msra.mxu0 0
        %1030 = vmatprep.mubr.bf16.mxu0 0
        %1031 = vmatmul.mubr.bf16.gmra.mrb[0].mxu0 %v993
        %v1032 = vpop.f32.mrb[0].mxu0
        %v1033 = vadd.f32 0.0, %v1032
        %v1034 = vpop.f32.mrb[0].mxu0
        %v1035 = vpop.f32.mrb[0].mxu0
        %v1036 = vadd.f32 0.0, %v1035
        %v1037 = vpop.f32.mrb[0].mxu0
        %1038 = vmatprep.mubr.bf16.mxu0 0
        %1039 = vmatmul.mubr.bf16.gmra.mrb[0].mxu0 %v996
        %v1040 = vpop.f32.mrb[0].mxu0
        %v1041 = vadd.f32 0.0, %v1040
        %v1042 = vpop.f32.mrb[0].mxu0
        %v1043 = vpop.f32.mrb[0].mxu0
        %v1044 = vadd.f32 0.0, %v1043
        %v1045 = vpop.f32.mrb[0].mxu0
        %1046 = vdwg.mxu0
        %v1047 = vadd.f32 %v955, %v1033
        %v1048 = vadd.f32 %v958, %v1036
        %v1049 = vadd.f32 %v963, %v1041
        %v1050 = vadd.f32 %v966, %v1044
        %v1051 = vld [vmem:[%s4] sm:$0x1]
        %v1053 = vlaneseq
        %v1054 = vshrl.u32 %v1053, 7
        %v1055 = vsub.s32 0, %v1054
        %v1056 = vrot.slane %v1051, %v1055
        %v1058 = vadd.f32 %v1047, %v1056
        %v1059 = vadd.f32 %v1048, %v1056
        %v1060 = vadd.f32 %v1049, %v1056
        %v1061 = vadd.f32 %v1050, %v1056
        %v1062 = vmax.f32 %v1058, 0.0
        %v1063 = vmax.f32 %v1059, 0.0
        %v1064 = vmax.f32 %v1060, 0.0
        %v1065 = vmax.f32 %v1061, 0.0
        %v1066 = vld [vmem:[#allocation2 + $0x8] sm:$0xff]
        %v1067 = vld [vmem:[#allocation2 + $0x18] sm:$0xff]
        %v1068 = vld [vmem:[%s5] sm:$0xf]
        %v1069 = vld [vmem:[%s6] sm:$0x1]
        %v1071 = vlaneseq
        %v1072 = vshrl.u32 %v1071, 7
        %v1073 = vsub.s32 0, %v1072
        %v1074 = vrot.slane %v1069, %v1073
        %v1077 = vsel %vm366, %v1066, 0
        %v1080 = vsel %vm366, %v1067, 0
        %v1083 = vsel %vm445, %v1068, 0
        %1085 = vmatprep.subr.bf16.mxu0 0
        %1086 = vmatpush1.bf16.msra.mxu0 %v1083
        %1087 = vmatprep.subr.bf16.mxu0 0
        %1088 = vmatpush1.bf16.msra.mxu0 0
        %1089 = vmatprep.subr.bf16.mxu0 0
        %1090 = vmatpush1.bf16.msra.mxu0 0
        %1091 = vmatprep.subr.bf16.mxu0 0
        %1092 = vmatpush1.bf16.msra.mxu0 0
        %1093 = vmatprep.subr.bf16.mxu0 0
        %1094 = vmatpush1.bf16.msra.mxu0 0
        %1095 = vmatprep.subr.bf16.mxu0 0
        %1096 = vmatpush1.bf16.msra.mxu0 0
        %1097 = vmatprep.subr.bf16.mxu0 0
        %1098 = vmatpush1.bf16.msra.mxu0 0
        %1099 = vmatprep.subr.bf16.mxu0 0
        %1100 = vmatpush1.bf16.msra.mxu0 0
        %1101 = vmatprep.subr.bf16.mxu0 0
        %1102 = vmatpush1.bf16.msra.mxu0 0
        %1103 = vmatprep.subr.bf16.mxu0 0
        %1104 = vmatpush1.bf16.msra.mxu0 0
        %1105 = vmatprep.subr.bf16.mxu0 0
        %1106 = vmatpush1.bf16.msra.mxu0 0
        %1107 = vmatprep.subr.bf16.mxu0 0
        %1108 = vmatpush1.bf16.msra.mxu0 0
        %1109 = vmatprep.subr.bf16.mxu0 0
        %1110 = vmatpush1.bf16.msra.mxu0 0
        %1111 = vmatprep.subr.bf16.mxu0 0
        %1112 = vmatpush1.bf16.msra.mxu0 0
        %1113 = vmatprep.subr.bf16.mxu0 0
        %1114 = vmatpush1.bf16.msra.mxu0 0
        %1115 = vmatprep.subr.bf16.mxu0 0
        %1116 = vmatpush1.bf16.msra.mxu0 0
        %1117 = vmatprep.mubr.bf16.mxu0 0
        %1118 = vmatmul.mubr.bf16.gmra.mrb[0].mxu0 %v1077
        %v1119 = vpop.f32.mrb[0].mxu0
        %v1120 = vadd.f32 %v1074, %v1119
        %v1121 = vpop.f32.mrb[0].mxu0
        %v1122 = vpop.f32.mrb[0].mxu0
        %v1123 = vadd.f32 %v1074, %v1122
        %v1124 = vpop.f32.mrb[0].mxu0
        %1125 = vmatprep.mubr.bf16.mxu0 0
        %1126 = vmatmul.mubr.bf16.gmra.mrb[0].mxu0 %v1080
        %v1127 = vpop.f32.mrb[0].mxu0
        %v1128 = vadd.f32 %v1074, %v1127
        %v1129 = vpop.f32.mrb[0].mxu0
        %v1130 = vpop.f32.mrb[0].mxu0
        %v1131 = vadd.f32 %v1074, %v1130
        %v1132 = vpop.f32.mrb[0].mxu0
        %1133 = vdwg.mxu0
        %v1134 = vadd.f32 %v1062, %v1120
        %v1135 = vadd.f32 %v1063, %v1123
        %v1136 = vadd.f32 %v1064, %v1128
        %v1137 = vadd.f32 %v1065, %v1131
        %v1138 = vmax.f32 %v1134, 0.0
        %v1139 = vmax.f32 %v1135, 0.0
        %v1140 = vmax.f32 %v1136, 0.0
        %v1141 = vmax.f32 %v1137, 0.0
        %1142 = vst.msk [vmem:[%s338] sm:$0xff] %vm842, %v1138
        %1143 = vst.msk [vmem:[%s338 + $0x8] sm:$0xff] %vm842, %v1139
        %1144 = vst.msk [vmem:[%s338 + $0x10] sm:$0xff] %vm842, %v1140
        %1145 = vst.msk [vmem:[%s338 + $0x18] sm:$0xff] %vm842, %v1141
        %s1146 = sand.u32 %s194, 1
        %s1147 = sand.u32 %s194, 1
        %s1148 = smul.addr %s1147, 32
        %s1149 = scalar_lea.vmem [#allocation6], %s1148
        // Predicated region
        $region99: #{temporal_conv_net.6} parent=81 // pred_check
          %p1150 = pneg %p204
        $region100: #{temporal_conv_net.6} parent=81 // pred_check_branch
          %1152 = sbr.rel (%p1150) target = $region102
        $region101: #{temporal_conv_net.6} parent=81 // pred_region
          %s1153 = smul.u32 2, %s22
          %s1154 = smul.u32 2, %s23
          %s1155 = smul.addr %s1153, 8
          %s1156 = sadd.s32 %s1154, %s1155
          %s1157 = smul.addr %s1156, 8
          %s1158 = scalar_lea.vmem %s7, %s1157
          // Predicated region
          $region103: #{temporal_conv_net.6} parent=101 // pred_check
            _
          $region104: #{temporal_conv_net.6} parent=101 // pred_check_branch
            %1160 = sbr.rel (0) target = $region106
          $region105: #{temporal_conv_net.6} parent=101 // pred_region
            // Predicated region
            $region107: #{temporal_conv_net.6} parent=105 // pred_check
              _
            $region108: #{temporal_conv_net.6} parent=105 // pred_check_branch
              %1162 = sbr.rel (0) target = $region110
            $region109: #{temporal_conv_net.6} parent=105 // pred_region
              // Predicated region
              $region122: #{temporal_conv_net.6} parent=109 // pred_check
                _
              $region123: #{temporal_conv_net.6} parent=109 // pred_check_branch
                %1183 = sbr.rel (0) target = $region125
              $region124: #{temporal_conv_net.6} parent=109 // pred_region
                loop: start=0, step=1, limit=1
                $region126: #{temporal_conv_net.6} parent=124 // loop_pre_header
                  _
                $region127: #{temporal_conv_net.6} parent=124 // loop_header
                  %s1185 = sphi 0, %s1189
                  %p1186 = scmp.ge.s32.totalorder %s1185, 1
                  %s1190 = sphi %s1149, %s1149
                  %s1191 = sphi %s1158, %s1158
                $region128: #{temporal_conv_net.6} parent=124 // loop_header_branch
                  %1188 = sbr.rel (%p1186) target = $region132
                $region129: #{temporal_conv_net.6} parent=124 // loop_body
                  %v1192 = vld [vmem:[%s1190] sm:$0xff]
                  %1193 = vst [vmem:[%s1191] sm:$0xff] %v1192
                  %v1194 = vld [vmem:[%s1190 + $0x8] sm:$0xff]
                  %1195 = vst [vmem:[%s1191 + $0x8] sm:$0xff] %v1194
                  %v1196 = vld [vmem:[%s1190 + $0x10] sm:$0xff]
                  %1197 = vst [vmem:[%s1191 + $0x40] sm:$0xff] %v1196
                  %v1198 = vld [vmem:[%s1190 + $0x18] sm:$0xff]
                  %1199 = vst [vmem:[%s1191 + $0x48] sm:$0xff] %v1198
                $region130: #{temporal_conv_net.6} parent=124 // loop_footer
                  %s1189 = sadd.s32 1, %s1185
                $region131: #{temporal_conv_net.6} parent=124 // loop_footer_branch
                  %1184 = sbr.rel target = $region127
                $region132: #{temporal_conv_net.6} parent=124 // loop_exit
                  _
              $region125: #{temporal_conv_net.6} parent=109 // pred_fallthru
                _
              // Predicated region
              $region133: #{temporal_conv_net.6} parent=109 // pred_check
                _
              $region134: #{temporal_conv_net.6} parent=109 // pred_check_branch
                %1201 = sbr.rel target = $region136
              $region135: #{temporal_conv_net.6} parent=109 // pred_region
                _
              $region136: #{temporal_conv_net.6} parent=109 // pred_fallthru
                _
            $region110: #{temporal_conv_net.6} parent=105 // pred_fallthru
              _
            // Predicated region
            $region111: #{temporal_conv_net.6} parent=105 // pred_check
              _
            $region112: #{temporal_conv_net.6} parent=105 // pred_check_branch
              %1164 = sbr.rel target = $region114
            $region113: #{temporal_conv_net.6} parent=105 // pred_region
              loop: start=0, step=1, limit=1
              $region115: #{temporal_conv_net.6} parent=113 // loop_pre_header
                _
              $region116: #{temporal_conv_net.6} parent=113 // loop_header
                %s1167 = sphi 0, %s1171
                %p1168 = scmp.ge.s32.totalorder %s1167, 1
                %s1172 = sphi %s1149, %s1149
                %s1173 = sphi %s1158, %s1158
              $region117: #{temporal_conv_net.6} parent=113 // loop_header_branch
                %1170 = sbr.rel (%p1168) target = $region121
              $region118: #{temporal_conv_net.6} parent=113 // loop_body
                %v1174 = vld [vmem:[%s1172] sm:$0xff]
                %1175 = vst [vmem:[%s1173] sm:$0xff] %v1174
                %v1176 = vld [vmem:[%s1172 + $0x8] sm:$0xff]
                %1177 = vst [vmem:[%s1173 + $0x8] sm:$0xff] %v1176
                %v1178 = vld [vmem:[%s1172 + $0x10] sm:$0xff]
                %1179 = vst [vmem:[%s1173 + $0x40] sm:$0xff] %v1178
                %v1180 = vld [vmem:[%s1172 + $0x18] sm:$0xff]
                %1181 = vst [vmem:[%s1173 + $0x48] sm:$0xff] %v1180
              $region119: #{temporal_conv_net.6} parent=113 // loop_footer
                %s1171 = sadd.s32 1, %s1167
              $region120: #{temporal_conv_net.6} parent=113 // loop_footer_branch
                %1166 = sbr.rel target = $region116
              $region121: #{temporal_conv_net.6} parent=113 // loop_exit
                _
            $region114: #{temporal_conv_net.6} parent=105 // pred_fallthru
              _
          $region106: #{temporal_conv_net.6} parent=101 // pred_fallthru
            _
          %1202 = vnop
        $region102: #{temporal_conv_net.6} parent=81 // pred_fallthru
          _
      $region82: #{temporal_conv_net.6} parent=5 // pred_fallthru
        _
      %p1203 = scmp.le.s32.totalorder 2, %s13
      // Predicated region
      $region137: #{temporal_conv_net.6} parent=5 // pred_check
        %p1204 = pneg %p1203
      $region138: #{temporal_conv_net.6} parent=5 // pred_check_branch
        %1206 = sbr.rel (%p1204) target = $region140
      $region139: #{temporal_conv_net.6} parent=5 // pred_region
        %s1207 = ssub.s32 %s13, 2
        // Predicated region
        $region141: #{temporal_conv_net.6} parent=139 // pred_check
          %p1208 = pneg %p210
        $region142: #{temporal_conv_net.6} parent=139 // pred_check_branch
          %1210 = sbr.rel (%p1208) target = $region144
        $region143: #{temporal_conv_net.6} parent=139 // pred_region
          %s1211 = sand.u32 %s195, 1
          %s1212 = sand.u32 %s195, 1
          %s1213 = smul.addr %s1212, 32
          %s1214 = scalar_lea.vmem [#allocation6], %s1213
        $region144: #{temporal_conv_net.6} parent=139 // pred_fallthru
          _
      $region140: #{temporal_conv_net.6} parent=5 // pred_fallthru
        _
    $region6: #{temporal_conv_net.6} parent=1 // loop_footer
      %s17 = sadd.s32 1, %s13
    $region7: #{temporal_conv_net.6} parent=1 // loop_footer_branch
      %12 = sbr.rel target = $region3
    $region8: #{temporal_conv_net.6} parent=1 // loop_exit
      _

// kernel: temporal_conv_net.7
$region0: #{temporal_conv_net.7}
  #allocation0 [shape = 'u32[]', space=smem, size = 0x4, offset = 0x4, fixed_abs, tag = 'smem constant byte address 0x4 - core index']
  #allocation1 [shape = 'u32[144,128]{1,0:T(1,128)}', space=vmem, size = 0x12000, scoped, tag = 'internal scratch']
  #allocation2 [shape = 'bf16[2,48,16]{2,1,0:T(16,128)(2,1)}', space=vmem, size = 0x6000, scoped, tag = 'scratch operand']
  #allocation3 [shape = 'bf16[2,32,16]{2,1,0:T(16,128)(2,1)}', space=vmem, size = 0x4000, scoped, tag = 'scratch operand']
  #allocation4 [shape = 'bf16[2,32,16]{2,1,0:T(16,128)(2,1)}', space=vmem, size = 0x4000, scoped, tag = 'scratch operand']
  %s0 = inlined_call_operand.vmem [shape: f32[2,64,16], index: 0, kind: input, shape index: {}]
  %s1 = inlined_call_operand.vmem [shape: bf16[3,16,16], index: 1, kind: input, shape index: {}]
  %s2 = inlined_call_operand.vmem [shape: f32[1,16], index: 2, kind: input, shape index: {}]
  %s3 = inlined_call_operand.vmem [shape: bf16[3,16,16], index: 3, kind: input, shape index: {}]
  %s4 = inlined_call_operand.vmem [shape: f32[1,16], index: 4, kind: input, shape index: {}]
  %s5 = inlined_call_operand.vmem [shape: f32[2,64,16], index: 5, kind: output, shape index: {}]
  %s6 = sld [smem:[#allocation0]]
  $region137: #{temporal_conv_net.7} parent=0
    _
  %s8 = ssub.s32 1, %s6
  %s9 = scalar_select 0, %s8, %s6
  $region1: #{temporal_conv_net.7} parent=0
    #allocation5 [shape = 'u8[32768]{0}', space=vmem, size = 0x8000, scoped, tag = 'input window, operand 0']
    #allocation6 [shape = 'u8[32768]{0}', space=vmem, size = 0x8000, scoped, tag = 'output window, operand 0']
    loop: start=0, step=1, limit=6
    $region2: #{temporal_conv_net.7} parent=1 // loop_pre_header
      _
    $region3: #{temporal_conv_net.7} parent=1 // loop_header
      %s11 = sphi 0, %s15
      %p12 = scmp.ge.s32.totalorder %s11, 6
      %s18 = sphi 0, %s30
      %s19 = sphi 0, %s26
      %s20 = sphi 0, %s18
      %s21 = sphi 0, %s19
      %s22 = sphi 0, %s20
      %s23 = sphi 0, %s21
      %s35 = sphi 0, %s37
      %s38 = sphi 0, %s35
      %s39 = sphi 0, %s38
      %s55 = sphi 0, %s39
      %s59 = sphi 0, %s59
      %s61 = sphi 0, %s59
      %s62 = sphi 0, %s61
      %s76 = sphi 0, %s62
      %s80 = sphi 0, %s80
      %s82 = sphi 0, %s80
      %s83 = sphi 0, %s82
      %s97 = sphi 0, %s83
      %s101 = sphi 0, %s101
      %s103 = sphi 0, %s101
      %s104 = sphi 0, %s103
      %s118 = sphi 0, %s104
      %s122 = sphi 0, %s122
      %s124 = sphi 0, %s122
      %s125 = sphi 0, %s124
      %s139 = sphi 0, %s125
      %s147 = sphi 0, %s149
      %s150 = sphi 0, %s147
      %s151 = sphi 0, %s150
      %s167 = sphi 0, %s151
    $region4: #{temporal_conv_net.7} parent=1 // loop_header_branch
      %14 = sbr.rel (%p12) target = $region8
    $region5: #{temporal_conv_net.7} parent=1 // loop_body
      %s16 = ssub.s32 %s11, 1
      %s17 = ssub.s32 %s11, 2
      %s24 = sadd.s32 1, %s19
      %p25 = scmp.ge.s32.totalorder %s24, 4
      %s26 = scalar_select %p25, 0, %s24
      %s27 = sadd.s32 1, %s18
      %s28 = scalar_select %p25, %s27, %s18
      %p29 = scmp.ge.s32.totalorder %s28, 1
      %s30 = scalar_select %p29, 0, %s28
      %s31 = ssub.s32 %s18, %s30
      %s32 = ssub.s32 %s19, %s26
      %s33 = sor.u32 %s31, %s32
      %p34 = scmp.eq.s32.totalorder %s33, 0
      %s36 = sadd.s32 %s35, 1
      %s37 = scalar_select %p34, %s35, %s36
      %p40 = pneg %p34
      %p41 = scmp.eq.s32.totalorder %s11, 3
      %p42 = por %p40, %p41
      %p43 = scmp.ne.s32.totalorder %s35, %s38
      %p44 = scmp.eq.s32.totalorder %s11, 0
      %p45 = por %p43, %p44
      %p46 = scmp.ne.s32.totalorder %s35, %s38
      %p47 = scmp.eq.s32.totalorder %s16, 3
      %p48 = por %p46, %p47
      %p49 = scmp.ne.s32.totalorder %s38, %s39
      %p50 = scmp.eq.s32.totalorder %s16, 0
      %p51 = por %p49, %p50
      %p52 = scmp.ne.s32.totalorder %s38, %s39
      %p53 = scmp.eq.s32.totalorder %s17, 3
      %p54 = por %p52, %p53
      %p56 = scmp.ne.s32.totalorder %s39, %s55
      %p57 = scmp.eq.s32.totalorder %s17, 0
      %p58 = por %p56, %p57
      %s60 = sadd.s32 %s59, 1
      %p63 = scmp.eq.s32.totalorder %s11, 3
      %p64 = scmp.ne.s32.totalorder %s59, %s61
      %p65 = scmp.eq.s32.totalorder %s11, 0
      %p66 = por %p64, %p65
      %p67 = scmp.ne.s32.totalorder %s59, %s61
      %p68 = scmp.eq.s32.totalorder %s16, 3
      %p69 = por %p67, %p68
      %p70 = scmp.ne.s32.totalorder %s61, %s62
      %p71 = scmp.eq.s32.totalorder %s16, 0
      %p72 = por %p70, %p71
      %p73 = scmp.ne.s32.totalorder %s61, %s62
      %p74 = scmp.eq.s32.totalorder %s17, 3
      %p75 = por %p73, %p74
      %p77 = scmp.ne.s32.totalorder %s62, %s76
      %p78 = scmp.eq.s32.totalorder %s17, 0
      %p79 = por %p77, %p78
      %s81 = sadd.s32 %s80, 1
      %p84 = scmp.eq.s32.totalorder %s11, 3
      %p85 = scmp.ne.s32.totalorder %s80, %s82
      %p86 = scmp.eq.s32.totalorder %s11, 0
      %p87 = por %p85, %p86
      %p88 = scmp.ne.s32.totalorder %s80, %s82
      %p89 = scmp.eq.s32.totalorder %s16, 3
      %p90 = por %p88, %p89
      %p91 = scmp.ne.s32.totalorder %s82, %s83
      %p92 = scmp.eq.s32.totalorder %s16, 0
      %p93 = por %p91, %p92
      %p94 = scmp.ne.s32.totalorder %s82, %s83
      %p95 = scmp.eq.s32.totalorder %s17, 3
      %p96 = por %p94, %p95
      %p98 = scmp.ne.s32.totalorder %s83, %s97
      %p99 = scmp.eq.s32.totalorder %s17, 0
      %p100 = por %p98, %p99
      %s102 = sadd.s32 %s101, 1
      %p105 = scmp.eq.s32.totalorder %s11, 3
      %p106 = scmp.ne.s32.totalorder %s101, %s103
      %p107 = scmp.eq.s32.totalorder %s11, 0
      %p108 = por %p106, %p107
      %p109 = scmp.ne.s32.totalorder %s101, %s103
      %p110 = scmp.eq.s32.totalorder %s16, 3
      %p111 = por %p109, %p110
      %p112 = scmp.ne.s32.totalorder %s103, %s104
      %p113 = scmp.eq.s32.totalorder %s16, 0
      %p114 = por %p112, %p113
      %p115 = scmp.ne.s32.totalorder %s103, %s104
      %p116 = scmp.eq.s32.totalorder %s17, 3
      %p117 = por %p115, %p116
      %p119 = scmp.ne.s32.totalorder %s104, %s118
      %p120 = scmp.eq.s32.totalorder %s17, 0
      %p121 = por %p119, %p120
      %s123 = sadd.s32 %s122, 1
      %p126 = scmp.eq.s32.totalorder %s11, 3
      %p127 = scmp.ne.s32.totalorder %s122, %s124
      %p128 = scmp.eq.s32.totalorder %s11, 0
      %p129 = por %p127, %p128
      %p130 = scmp.ne.s32.totalorder %s122, %s124
      %p131 = scmp.eq.s32.totalorder %s16, 3
      %p132 = por %p130, %p131
      %p133 = scmp.ne.s32.totalorder %s124, %s125
      %p134 = scmp.eq.s32.totalorder %s16, 0
      %p135 = por %p133, %p134
      %p136 = scmp.ne.s32.totalorder %s124, %s125
      %p137 = scmp.eq.s32.totalorder %s17, 3
      %p138 = por %p136, %p137
      %p140 = scmp.ne.s32.totalorder %s125, %s139
      %p141 = scmp.eq.s32.totalorder %s17, 0
      %p142 = por %p140, %p141
      %s143 = ssub.s32 %s18, %s30
      %s144 = ssub.s32 %s19, %s26
      %s145 = sor.u32 %s143, %s144
      %p146 = scmp.eq.s32.totalorder %s145, 0
      %s148 = sadd.s32 %s147, 1
      %s149 = scalar_select %p146, %s147, %s148
      %p152 = pneg %p146
      %p153 = scmp.eq.s32.totalorder %s11, 3
      %p154 = por %p152, %p153
      %p155 = scmp.ne.s32.totalorder %s147, %s150
      %p156 = scmp.eq.s32.totalorder %s11, 0
      %p157 = por %p155, %p156
      %p158 = scmp.ne.s32.totalorder %s147, %s150
      %p159 = scmp.eq.s32.totalorder %s16, 3
      %p160 = por %p158, %p159
      %p161 = scmp.ne.s32.totalorder %s150, %s151
      %p162 = scmp.eq.s32.totalorder %s16, 0
      %p163 = por %p161, %p162
      %p164 = scmp.ne.s32.totalorder %s150, %s151
      %p165 = scmp.eq.s32.totalorder %s17, 3
      %p166 = por %p164, %p165
      %p168 = scmp.ne.s32.totalorder %s151, %s167
      %p169 = scmp.eq.s32.totalorder %s17, 0
      %p170 = por %p168, %p169
      %p171 = scmp.le.s32.totalorder 1, %s11
      %p172 = scmp.lt.s32.totalorder %s11, 5
      %p173 = pnand %p171, %p172
      %p174 = pneg %p173
      // Predicated region
      $region9: #{temporal_conv_net.7} parent=5 // pred_check
        _
      $region10: #{temporal_conv_net.7} parent=5 // pred_check_branch
        %176 = sbr.rel (%p173) target = $region12
      $region11: #{temporal_conv_net.7} parent=5 // pred_region
        %s177 = ssub.s32 %s11, 1
        // Predicated region
        $region13: #{temporal_conv_net.7} parent=11 // pred_check
          %p178 = pneg %p72
        $region14: #{temporal_conv_net.7} parent=11 // pred_check_branch
          %180 = sbr.rel (%p178) target = $region16
        $region15: #{temporal_conv_net.7} parent=11 // pred_region
          _
        $region16: #{temporal_conv_net.7} parent=11 // pred_fallthru
          _
        // Predicated region
        $region17: #{temporal_conv_net.7} parent=11 // pred_check
          %p181 = pneg %p93
        $region18: #{temporal_conv_net.7} parent=11 // pred_check_branch
          %183 = sbr.rel (%p181) target = $region20
        $region19: #{temporal_conv_net.7} parent=11 // pred_region
          _
        $region20: #{temporal_conv_net.7} parent=11 // pred_fallthru
          _
        // Predicated region
        $region21: #{temporal_conv_net.7} parent=11 // pred_check
          %p184 = pneg %p114
        $region22: #{temporal_conv_net.7} parent=11 // pred_check_branch
          %186 = sbr.rel (%p184) target = $region24
        $region23: #{temporal_conv_net.7} parent=11 // pred_region
          _
        $region24: #{temporal_conv_net.7} parent=11 // pred_fallthru
          _
        // Predicated region
        $region25: #{temporal_conv_net.7} parent=11 // pred_check
          %p187 = pneg %p135
        $region26: #{temporal_conv_net.7} parent=11 // pred_check_branch
          %189 = sbr.rel (%p187) target = $region28
        $region27: #{temporal_conv_net.7} parent=11 // pred_region
          _
        $region28: #{temporal_conv_net.7} parent=11 // pred_fallthru
          _
      $region12: #{temporal_conv_net.7} parent=5 // pred_fallthru
        _
      %p190 = scmp.lt.s32.totalorder %s11, 4
      // Predicated region
      $region29: #{temporal_conv_net.7} parent=5 // pred_check
        %p191 = pneg %p190
      $region30: #{temporal_conv_net.7} parent=5 // pred_check_branch
        %193 = sbr.rel (%p191) target = $region32
      $region31: #{temporal_conv_net.7} parent=5 // pred_region
        // Predicated region
        $region33: #{temporal_conv_net.7} parent=31 // pred_check
          %p194 = pneg %p45
        $region34: #{temporal_conv_net.7} parent=31 // pred_check_branch
          %196 = sbr.rel (%p194) target = $region36
        $region35: #{temporal_conv_net.7} parent=31 // pred_region
          %s197 = sand.u32 %s35, 1
          %s198 = sand.u32 %s35, 1
          %s199 = smul.addr %s198, 32
          %s200 = scalar_lea.vmem [#allocation5], %s199
          %s201 = smul.u32 2, %s18
          %s202 = smul.u32 2, %s19
          %s203 = smul.addr %s201, 8
          %s204 = sadd.s32 %s202, %s203
          %s205 = smul.addr %s204, 8
          %s206 = scalar_lea.vmem %s0, %s205
          // Predicated region
          $region37: #{temporal_conv_net.7} parent=35 // pred_check
            _
          $region38: #{temporal_conv_net.7} parent=35 // pred_check_branch
            %208 = sbr.rel (0) target = $region40
          $region39: #{temporal_conv_net.7} parent=35 // pred_region
            // Predicated region
            $region41: #{temporal_conv_net.7} parent=39 // pred_check
              _
            $region42: #{temporal_conv_net.7} parent=39 // pred_check_branch
              %210 = sbr.rel (0) target = $region44
            $region43: #{temporal_conv_net.7} parent=39 // pred_region
              // Predicated region
              $region56: #{temporal_conv_net.7} parent=43 // pred_check
                _
              $region57: #{temporal_conv_net.7} parent=43 // pred_check_branch
                %231 = sbr.rel (0) target = $region59
              $region58: #{temporal_conv_net.7} parent=43 // pred_region
                loop: start=0, step=1, limit=1
                $region60: #{temporal_conv_net.7} parent=58 // loop_pre_header
                  _
                $region61: #{temporal_conv_net.7} parent=58 // loop_header
                  %s233 = sphi 0, %s237
                  %p234 = scmp.ge.s32.totalorder %s233, 1
                  %s238 = sphi %s206, %s206
                  %s239 = sphi %s200, %s200
                $region62: #{temporal_conv_net.7} parent=58 // loop_header_branch
                  %236 = sbr.rel (%p234) target = $region66
                $region63: #{temporal_conv_net.7} parent=58 // loop_body
                  %v240 = vld [vmem:[%s238] sm:$0xff]
                  %241 = vst [vmem:[%s239] sm:$0xff] %v240
                  %v242 = vld [vmem:[%s238 + $0x8] sm:$0xff]
                  %243 = vst [vmem:[%s239 + $0x8] sm:$0xff] %v242
                  %v244 = vld [vmem:[%s238 + $0x40] sm:$0xff]
                  %245 = vst [vmem:[%s239 + $0x10] sm:$0xff] %v244
                  %v246 = vld [vmem:[%s238 + $0x48] sm:$0xff]
                  %247 = vst [vmem:[%s239 + $0x18] sm:$0xff] %v246
                $region64: #{temporal_conv_net.7} parent=58 // loop_footer
                  %s237 = sadd.s32 1, %s233
                $region65: #{temporal_conv_net.7} parent=58 // loop_footer_branch
                  %232 = sbr.rel target = $region61
                $region66: #{temporal_conv_net.7} parent=58 // loop_exit
                  _
              $region59: #{temporal_conv_net.7} parent=43 // pred_fallthru
                _
              // Predicated region
              $region67: #{temporal_conv_net.7} parent=43 // pred_check
                _
              $region68: #{temporal_conv_net.7} parent=43 // pred_check_branch
                %249 = sbr.rel target = $region70
              $region69: #{temporal_conv_net.7} parent=43 // pred_region
                _
              $region70: #{temporal_conv_net.7} parent=43 // pred_fallthru
                _
            $region44: #{temporal_conv_net.7} parent=39 // pred_fallthru
              _
            // Predicated region
            $region45: #{temporal_conv_net.7} parent=39 // pred_check
              _
            $region46: #{temporal_conv_net.7} parent=39 // pred_check_branch
              %212 = sbr.rel target = $region48
            $region47: #{temporal_conv_net.7} parent=39 // pred_region
              loop: start=0, step=1, limit=1
              $region49: #{temporal_conv_net.7} parent=47 // loop_pre_header
                _
              $region50: #{temporal_conv_net.7} parent=47 // loop_header
                %s215 = sphi 0, %s219
                %p216 = scmp.ge.s32.totalorder %s215, 1
                %s220 = sphi %s206, %s206
                %s221 = sphi %s200, %s200
              $region51: #{temporal_conv_net.7} parent=47 // loop_header_branch
                %218 = sbr.rel (%p216) target = $region55
              $region52: #{temporal_conv_net.7} parent=47 // loop_body
                %v222 = vld [vmem:[%s220] sm:$0xff]
                %223 = vst [vmem:[%s221] sm:$0xff] %v222
                %v224 = vld [vmem:[%s220 + $0x8] sm:$0xff]
                %225 = vst [vmem:[%s221 + $0x8] sm:$0xff] %v224
                %v226 = vld [vmem:[%s220 + $0x40] sm:$0xff]
                %227 = vst [vmem:[%s221 + $0x10] sm:$0xff] %v226
                %v228 = vld [vmem:[%s220 + $0x48] sm:$0xff]
                %229 = vst [vmem:[%s221 + $0x18] sm:$0xff] %v228
              $region53: #{temporal_conv_net.7} parent=47 // loop_footer
                %s219 = sadd.s32 1, %s215
              $region54: #{temporal_conv_net.7} parent=47 // loop_footer_branch
                %214 = sbr.rel target = $region50
              $region55: #{temporal_conv_net.7} parent=47 // loop_exit
                _
            $region48: #{temporal_conv_net.7} parent=39 // pred_fallthru
              _
          $region40: #{temporal_conv_net.7} parent=35 // pred_fallthru
            _
          %250 = vnop
        $region36: #{temporal_conv_net.7} parent=31 // pred_fallthru
          _
      $region32: #{temporal_conv_net.7} parent=5 // pred_fallthru
        _
      %p251 = scmp.le.s32.totalorder 1, %s11
      %p252 = scmp.lt.s32.totalorder %s11, 5
      %p253 = pnand %p251, %p252
      %p254 = pneg %p253
      // Predicated region
      $region71: #{temporal_conv_net.7} parent=5 // pred_check
        _
      $region72: #{temporal_conv_net.7} parent=5 // pred_check_branch
        %256 = sbr.rel (%p253) target = $region74
      $region73: #{temporal_conv_net.7} parent=5 // pred_region
        %s257 = ssub.s32 %s11, 1
        %s258 = sand.u32 %s38, 1
        %s259 = sand.u32 %s38, 1
        %s260 = smul.addr %s259, 32
        %s261 = scalar_lea.vmem [#allocation5], %s260
        // Predicated region
        $region75: #{temporal_conv_net.7} parent=73 // pred_check
          %p262 = pneg %p51
        $region76: #{temporal_conv_net.7} parent=73 // pred_check_branch
          %264 = sbr.rel (%p262) target = $region78
        $region77: #{temporal_conv_net.7} parent=73 // pred_region
          _
        $region78: #{temporal_conv_net.7} parent=73 // pred_fallthru
          _
        %s265 = sand.u32 %s38, 1
        %s266 = sand.u32 %s38, 1
        %s267 = smul.addr %s266, 32
        %s268 = scalar_lea.vmem [#allocation5], %s267
        %p269 = pneg %p51
        %p270 = pneg %p48
        %p271 = pneg %p72
        %p272 = pneg %p69
        %p273 = pneg %p93
        %p274 = pneg %p90
        %p275 = pneg %p114
        %p276 = pneg %p111
        %p277 = pneg %p135
        %p278 = pneg %p132
        %p279 = pneg %p163
        %p280 = pneg %p160
        %s281 = sand.u32 %s150, 1
        %s282 = sand.u32 %s150, 1
        %s283 = smul.addr %s282, 32
        %s284 = scalar_lea.vmem [#allocation6], %s283
        %s285 = smul.u32 2, %s20
        %s286 = smul.u32 2, %s21
        %s287 = smul.u32 2, %s20
        %s288 = smul.u32 2, %s21
        %v290 = vld [vmem:[%s261] sm:$0xff]
        %v291 = vld [vmem:[%s261 + $0x8] sm:$0xff]
        %v292 = vld [vmem:[%s261 + $0x10] sm:$0xff]
        %v293 = vld [vmem:[%s261 + $0x18] sm:$0xff]
        %p294 = scmp.eq.s32.totalorder %s21, 0
        // Predicated region
        $region79: #{temporal_conv_net.7} parent=73 // pred_check
          %p295 = pneg %p294
        $region80: #{temporal_conv_net.7} parent=73 // pred_check_branch
          %297 = sbr.rel (%p295) target = $region82
        $region81: #{temporal_conv_net.7} parent=73 // pred_region
          %vm298 = vcmask 130048
          %299 = vst.msk [vmem:[#allocation2] sm:$0xff] %vm298, 0
          %300 = vst.msk [vmem:[#allocation2 + $0x8] sm:$0xff] %vm298, 0
          %301 = vst.msk [vmem:[#allocation2 + $0x18] sm:$0xff] %vm298, 0
          %302 = vst.msk [vmem:[#allocation2 + $0x20] sm:$0xff] %vm298, 0
        $region82: #{temporal_conv_net.7} parent=73 // pred_fallthru
          _
        %p303 = scmp.gt.s32.totalorder %s21, 0
        // Predicated region
        $region83: #{temporal_conv_net.7} parent=73 // pred_check
          %p304 = pneg %p303
        $region84: #{temporal_conv_net.7} parent=73 // pred_check_branch
          %306 = sbr.rel (%p304) target = $region86
        $region85: #{temporal_conv_net.7} parent=73 // pred_region
          %v307 = vld [vmem:[#allocation4] sm:$0xff]
          %v308 = vld [vmem:[#allocation4 + $0x8] sm:$0xff]
          %v309 = vld [vmem:[#allocation4 + $0x10] sm:$0xff]
          %v310 = vld [vmem:[#allocation4 + $0x18] sm:$0xff]
          %vm311 = vcmask 130048
          %312 = vst.msk [vmem:[#allocation2] sm:$0xff] %vm311, %v307
          %313 = vst.msk [vmem:[#allocation2 + $0x8] sm:$0xff] %vm311, %v308
          %314 = vst.msk [vmem:[#allocation2 + $0x18] sm:$0xff] %vm311, %v309
          %315 = vst.msk [vmem:[#allocation2 + $0x20] sm:$0xff] %vm311, %v310
        $region86: #{temporal_conv_net.7} parent=73 // pred_fallthru
          _
        %v316 = vpack.c.bf16 %v291, %v290
        %v317 = vpack.c.bf16 %v293, %v292
        %vm318 = vcmask 130048
        %319 = vst.msk [vmem:[#allocation2 + $0x10] sm:$0xff] %vm318, %v316
        %320 = vst.msk [vmem:[#allocation2 + $0x28] sm:$0xff] %vm318, %v317
        %v321 = vld [vmem:[#allocation2 + $0x8] sm:$0xff]
        %v322 = vld [vmem:[#allocation2 + $0x10] sm:$0xff]
        %v323 = vld [vmem:[#allocation2 + $0x20] sm:$0xff]
        %v324 = vld [vmem:[#allocation2 + $0x28] sm:$0xff]
        %325 = vst.msk [vmem:[#allocation4] sm:$0xff] %vm318, %v321
        %326 = vst.msk [vmem:[#allocation4 + $0x8] sm:$0xff] %vm318, %v322
        %327 = vst.msk [vmem:[#allocation4 + $0x10] sm:$0xff] %vm318, %v323
        %328 = vst.msk [vmem:[#allocation4 + $0x18] sm:$0xff] %vm318, %v324
        %v329 = vld [vmem:[#allocation2] sm:$0xff]
        %v330 = vld [vmem:[#allocation2 + $0x8] sm:$0xff]
        %v331 = vld [vmem:[#allocation2 + $0x18] sm:$0xff]
        %v332 = vld [vmem:[#allocation2 + $0x20] sm:$0xff]
        %v333 = vld [vmem:[%s1] sm:$0xf]
        %v334 = vld [vmem:[%s1 + $0x4] sm:$0xf]
        %v335 = vld [vmem:[#allocation2] sm:$0xf0]
        %v336 = vld [vmem:[#allocation2 + $0x8] sm:$0xff]
        %v337 = vld [vmem:[#allocation2 + $0x10] sm:$0xf]
        %v338 = vld [vmem:[#allocation2 + $0x18] sm:$0xf0]
        %v339 = vld [vmem:[#allocation2 + $0x20] sm:$0xff]
        %v340 = vld [vmem:[#allocation2 + $0x28] sm:$0xf]
        %s341 = scalar_lea.vmem %s1, 8
        %v342 = vld [vmem:[%s341] sm:$0xf]
        %v343 = vld [vmem:[%s341 + $0x4] sm:$0xf]
        %vm350 = vcmask 1043456
        %v351 = vrot.slane %v335, 4
        %v352 = vrot.slane %v336, 4
        %v353 = vsel %vm350, %v351, %v352
        %v354 = vrot.slane %v337, 4
        %v355 = vsel %vm350, %v352, %v354
        %v356 = vrot.slane %v338, 4
        %v357 = vrot.slane %v339, 4
        %v358 = vsel %vm350, %v356, %v357
        %v359 = vrot.slane %v340, 4
        %v360 = vsel %vm350, %v357, %v359
        %v363 = vunpack.c.l.b16 %v342
        %v364 = vunpack.c.l.b16 %v343
        %v365 = vpack.c.b16 %v364, %v363
        %v368 = vsel %vm318, %v353, 0
        %v371 = vsel %vm318, %v355, 0
        %v374 = vsel %vm318, %v358, 0
        %v377 = vsel %vm318, %v360, 0
        %379 = vmatprep.subr.bf16.mxu0 0
        %380 = vmatpush1.bf16.msra.mxu0 %v365
        %381 = vmatprep.subr.bf16.mxu0 0
        %382 = vmatpush1.bf16.msra.mxu0 0
        %383 = vmatprep.subr.bf16.mxu0 0
        %384 = vmatpush1.bf16.msra.mxu0 0
        %385 = vmatprep.subr.bf16.mxu0 0
        %386 = vmatpush1.bf16.msra.mxu0 0
        %387 = vmatprep.subr.bf16.mxu0 0
        %388 = vmatpush1.bf16.msra.mxu0 0
        %389 = vmatprep.subr.bf16.mxu0 0
        %390 = vmatpush1.bf16.msra.mxu0 0
        %391 = vmatprep.subr.bf16.mxu0 0
        %392 = vmatpush1.bf16.msra.mxu0 0
        %393 = vmatprep.subr.bf16.mxu0 0
        %394 = vmatpush1.bf16.msra.mxu0 0
        %395 = vmatprep.subr.bf16.mxu0 0
        %396 = vmatpush1.bf16.msra.mxu0 0
        %397 = vmatprep.subr.bf16.mxu0 0
        %398 = vmatpush1.bf16.msra.mxu0 0
        %399 = vmatprep.subr.bf16.mxu0 0
        %400 = vmatpush1.bf16.msra.mxu0 0
        %401 = vmatprep.subr.bf16.mxu0 0
        %402 = vmatpush1.bf16.msra.mxu0 0
        %403 = vmatprep.subr.bf16.mxu0 0
        %404 = vmatpush1.bf16.msra.mxu0 0
        %405 = vmatprep.subr.bf16.mxu0 0
        %406 = vmatpush1.bf16.msra.mxu0 0
        %407 = vmatprep.subr.bf16.mxu0 0
        %408 = vmatpush1.bf16.msra.mxu0 0
        %409 = vmatprep.subr.bf16.mxu0 0
        %410 = vmatpush1.bf16.msra.mxu0 0
        %411 = vmatprep.mubr.bf16.mxu0 0
        %412 = vmatmul.mubr.bf16.gmra.mrb[0].mxu0 %v368
        %v413 = vpop.f32.mrb[0].mxu0
        %v414 = vadd.f32 0.0, %v413
        %v415 = vpop.f32.mrb[0].mxu0
        %v416 = vpop.f32.mrb[0].mxu0
        %v417 = vadd.f32 0.0, %v416
        %v418 = vpop.f32.mrb[0].mxu0
        %419 = vmatprep.mubr.bf16.mxu0 0
        %420 = vmatmul.mubr.bf16.gmra.mrb[0].mxu0 %v371
        %v421 = vpop.f32.mrb[0].mxu0
        %v422 = vadd.f32 0.0, %v421
        %v423 = vpop.f32.mrb[0].mxu0
        %v424 = vpop.f32.mrb[0].mxu0
        %v425 = vadd.f32 0.0, %v424
        %v426 = vpop.f32.mrb[0].mxu0
        %427 = vmatprep.mubr.bf16.mxu0 0
        %428 = vmatmul.mubr.bf16.gmra.mrb[0].mxu0 %v374
        %v429 = vpop.f32.mrb[0].mxu0
        %v430 = vadd.f32 0.0, %v429
        %v431 = vpop.f32.mrb[0].mxu0
        %v432 = vpop.f32.mrb[0].mxu0
        %v433 = vadd.f32 0.0, %v432
        %v434 = vpop.f32.mrb[0].mxu0
        %435 = vmatprep.mubr.bf16.mxu0 0
        %436 = vmatmul.mubr.bf16.gmra.mrb[0].mxu0 %v377
        %v437 = vpop.f32.mrb[0].mxu0
        %v438 = vadd.f32 0.0, %v437
        %v439 = vpop.f32.mrb[0].mxu0
        %v440 = vpop.f32.mrb[0].mxu0
        %v441 = vadd.f32 0.0, %v440
        %v442 = vpop.f32.mrb[0].mxu0
        %443 = vdwg.mxu0
        %v446 = vunpack.c.l.b16 %v333
        %v447 = vunpack.c.l.b16 %v334
        %v448 = vpack.c.b16 %v447, %v446
        %v451 = vsel %vm318, %v329, 0
        %v454 = vsel %vm318, %v330, 0
        %v457 = vsel %vm318, %v331, 0
        %v460 = vsel %vm318, %v332, 0
        %462 = vmatprep.subr.bf16.mxu0 0
        %463 = vmatpush1.bf16.msra.mxu0 %v448
        %464 = vmatprep.subr.bf16.mxu0 0
        %465 = vmatpush1.bf16.msra.mxu0 0
        %466 = vmatprep.subr.bf16.mxu0 0
        %467 = vmatpush1.bf16.msra.mxu0 0
        %468 = vmatprep.subr.bf16.mxu0 0
        %469 = vmatpush1.bf16.msra.mxu0 0
        %470 = vmatprep.subr.bf16.mxu0 0
        %471 = vmatpush1.bf16.msra.mxu0 0
        %472 = vmatprep.subr.bf16.mxu0 0
        %473 = vmatpush1.bf16.msra.mxu0 0
        %474 = vmatprep.subr.bf16.mxu0 0
        %475 = vmatpush1.bf16.msra.mxu0 0
        %476 = vmatprep.subr.bf16.mxu0 0
        %477 = vmatpush1.bf16.msra.mxu0 0
        %478 = vmatprep.subr.bf16.mxu0 0
        %479 = vmatpush1.bf16.msra.mxu0 0
        %480 = vmatprep.subr.bf16.mxu0 0
        %481 = vmatpush1.bf16.msra.mxu0 0
        %482 = vmatprep.subr.bf16.mxu0 0
        %483 = vmatpush1.bf16.msra.mxu0 0
        %484 = vmatprep.subr.bf16.mxu0 0
        %485 = vmatpush1.bf16.msra.mxu0 0
        %486 = vmatprep.subr.bf16.mxu0 0
        %487 = vmatpush1.bf16.msra.mxu0 0
        %488 = vmatprep.subr.bf16.mxu0 0
        %489 = vmatpush1.bf16.msra.mxu0 0
        %490 = vmatprep.subr.bf16.mxu0 0
        %491 = vmatpush1.bf16.msra.mxu0 0
        %492 = vmatprep.subr.bf16.mxu0 0
        %493 = vmatpush1.bf16.msra.mxu0 0
        %494 = vmatprep.mubr.bf16.mxu0 0
        %495 = vmatmul.mubr.bf16.gmra.mrb[0].mxu0 %v451
        %v496 = vpop.f32.mrb[0].mxu0
        %v497 = vadd.f32 %v414, %v496
        %v498 = vpop.f32.mrb[0].mxu0
        %v499 = vpop.f32.mrb[0].mxu0
        %v500 = vadd.f32 %v417, %v499
        %v501 = vpop.f32.mrb[0].mxu0
        %502 = vmatprep.mubr.bf16.mxu0 0
        %503 = vmatmul.mubr.bf16.gmra.mrb[0].mxu0 %v454
        %v504 = vpop.f32.mrb[0].mxu0
        %v505 = vadd.f32 %v422, %v504
        %v506 = vpop.f32.mrb[0].mxu0
        %v507 = vpop.f32.mrb[0].mxu0
        %v508 = vadd.f32 %v425, %v507
        %v509 = vpop.f32.mrb[0].mxu0
        %510 = vmatprep.mubr.bf16.mxu0 0
        %511 = vmatmul.mubr.bf16.gmra.mrb[0].mxu0 %v457
        %v512 = vpop.f32.mrb[0].mxu0
        %v513 = vadd.f32 %v430, %v512
        %v514 = vpop.f32.mrb[0].mxu0
        %v515 = vpop.f32.mrb[0].mxu0
        %v516 = vadd.f32 %v433, %v515
        %v517 = vpop.f32.mrb[0].mxu0
        %518 = vmatprep.mubr.bf16.mxu0 0
        %519 = vmatmul.mubr.bf16.gmra.mrb[0].mxu0 %v460
        %v520 = vpop.f32.mrb[0].mxu0
        %v521 = vadd.f32 %v438, %v520
        %v522 = vpop.f32.mrb[0].mxu0
        %v523 = vpop.f32.mrb[0].mxu0
        %v524 = vadd.f32 %v441, %v523
        %v525 = vpop.f32.mrb[0].mxu0
        %526 = vdwg.mxu0
        %v527 = vld [vmem:[#allocation2 + $0x8] sm:$0xff]
        %v528 = vld [vmem:[#allocation2 + $0x10] sm:$0xff]
        %v529 = vld [vmem:[#allocation2 + $0x20] sm:$0xff]
        %v530 = vld [vmem:[#allocation2 + $0x28] sm:$0xff]
        %s531 = scalar_lea.vmem %s1, 16
        %v532 = vld [vmem:[%s531] sm:$0xf]
        %v533 = vld [vmem:[%s531 + $0x4] sm:$0xf]
        %v536 = vunpack.c.l.b16 %v532
        %v537 = vunpack.c.l.b16 %v533
        %v538 = vpack.c.b16 %v537, %v536
        %v541 = vsel %vm318, %v527, 0
        %v544 = vsel %vm318, %v528, 0
        %v547 = vsel %vm318, %v529, 0
        %v550 = vsel %vm318, %v530, 0
        %552 = vmatprep.subr.bf16.mxu0 0
        %553 = vmatpush1.bf16.msra.mxu0 %v538
        %554 = vmatprep.subr.bf16.mxu0 0
        %555 = vmatpush1.bf16.msra.mxu0 0
        %556 = vmatprep.subr.bf16.mxu0 0
        %557 = vmatpush1.bf16.msra.mxu0 0
        %558 = vmatprep.subr.bf16.mxu0 0
        %559 = vmatpush1.bf16.msra.mxu0 0
        %560 = vmatprep.subr.bf16.mxu0 0
        %561 = vmatpush1.bf16.msra.mxu0 0
        %562 = vmatprep.subr.bf16.mxu0 0
        %563 = vmatpush1.bf16.msra.mxu0 0
        %564 = vmatprep.subr.bf16.mxu0 0
        %565 = vmatpush1.bf16.msra.mxu0 0
        %566 = vmatprep.subr.bf16.mxu0 0
        %567 = vmatpush1.bf16.msra.mxu0 0
        %568 = vmatprep.subr.bf16.mxu0 0
        %569 = vmatpush1.bf16.msra.mxu0 0
        %570 = vmatprep.subr.bf16.mxu0 0
        %571 = vmatpush1.bf16.msra.mxu0 0
        %572 = vmatprep.subr.bf16.mxu0 0
        %573 = vmatpush1.bf16.msra.mxu0 0
        %574 = vmatprep.subr.bf16.mxu0 0
        %575 = vmatpush1.bf16.msra.mxu0 0
        %576 = vmatprep.subr.bf16.mxu0 0
        %577 = vmatpush1.bf16.msra.mxu0 0
        %578 = vmatprep.subr.bf16.mxu0 0
        %579 = vmatpush1.bf16.msra.mxu0 0
        %580 = vmatprep.subr.bf16.mxu0 0
        %581 = vmatpush1.bf16.msra.mxu0 0
        %582 = vmatprep.subr.bf16.mxu0 0
        %583 = vmatpush1.bf16.msra.mxu0 0
        %584 = vmatprep.mubr.bf16.mxu0 0
        %585 = vmatmul.mubr.bf16.gmra.mrb[0].mxu0 %v541
        %v586 = vpop.f32.mrb[0].mxu0
        %v587 = vadd.f32 0.0, %v586
        %v588 = vpop.f32.mrb[0].mxu0
        %v589 = vpop.f32.mrb[0].mxu0
        %v590 = vadd.f32 0.0, %v589
        %v591 = vpop.f32.mrb[0].mxu0
        %592 = vmatprep.mubr.bf16.mxu0 0
        %593 = vmatmul.mubr.bf16.gmra.mrb[0].mxu0 %v544
        %v594 = vpop.f32.mrb[0].mxu0
        %v595 = vadd.f32 0.0, %v594
        %v596 = vpop.f32.mrb[0].mxu0
        %v597 = vpop.f32.mrb[0].mxu0
        %v598 = vadd.f32 0.0, %v597
        %v599 = vpop.f32.mrb[0].mxu0
        %600 = vmatprep.mubr.bf16.mxu0 0
        %601 = vmatmul.mubr.bf16.gmra.mrb[0].mxu0 %v547
        %v602 = vpop.f32.mrb[0].mxu0
        %v603 = vadd.f32 0.0, %v602
        %v604 = vpop.f32.mrb[0].mxu0
        %v605 = vpop.f32.mrb[0].mxu0
        %v606 = vadd.f32 0.0, %v605
        %v607 = vpop.f32.mrb[0].mxu0
        %608 = vmatprep.mubr.bf16.mxu0 0
        %609 = vmatmul.mubr.bf16.gmra.mrb[0].mxu0 %v550
        %v610 = vpop.f32.mrb[0].mxu0
        %v611 = vadd.f32 0.0, %v610
        %v612 = vpop.f32.mrb[0].mxu0
        %v613 = vpop.f32.mrb[0].mxu0
        %v614 = vadd.f32 0.0, %v613
        %v615 = vpop.f32.mrb[0].mxu0
        %616 = vdwg.mxu0
        %v617 = vadd.f32 %v497, %v587
        %v618 = vadd.f32 %v500, %v590
        %v619 = vadd.f32 %v505, %v595
        %v620 = vadd.f32 %v508, %v598
        %v621 = vadd.f32 %v513, %v603
        %v622 = vadd.f32 %v516, %v606
        %v623 = vadd.f32 %v521, %v611
        %v624 = vadd.f32 %v524, %v614
        %v625 = vld [vmem:[%s2] sm:$0x1]
        %v627 = vlaneseq
        %v628 = vshrl.u32 %v627, 7
        %v629 = vsub.s32 0, %v628
        %v630 = vrot.slane %v625, %v629
        %v632 = vadd.f32 %v617, %v630
        %v633 = vadd.f32 %v618, %v630
        %v634 = vadd.f32 %v619, %v630
        %v635 = vadd.f32 %v620, %v630
        %v636 = vadd.f32 %v621, %v630
        %v637 = vadd.f32 %v622, %v630
        %v638 = vadd.f32 %v623, %v630
        %v639 = vadd.f32 %v624, %v630
        %v640 = vmax.f32 %v632, 0.0
        %v641 = vmax.f32 %v633, 0.0
        %v642 = vmax.f32 %v634, 0.0
        %v643 = vmax.f32 %v635, 0.0
        %v644 = vmax.f32 %v636, 0.0
        %v645 = vmax.f32 %v637, 0.0
        %v646 = vmax.f32 %v638, 0.0
        %v647 = vmax.f32 %v639, 0.0
        %v648 = vpack.c.bf16 %v641, %v640
        %v649 = vpack.c.bf16 %v643, %v642
        %v650 = vpack.c.bf16 %v645, %v644
        %v651 = vpack.c.bf16 %v647, %v646
        %652 = vst.msk [vmem:[#allocation3] sm:$0xff] %vm318, %v648
        %653 = vst.msk [vmem:[#allocation3 + $0x8] sm:$0xff] %vm318, %v649
        %654 = vst.msk [vmem:[#allocation3 + $0x10] sm:$0xff] %vm318, %v650
        %655 = vst.msk [vmem:[#allocation3 + $0x18] sm:$0xff] %vm318, %v651
        %s656 = smul.u32 %s21, 16
        %p657 = scmp.lt.s32.totalorder %s656, 16
        // Predicated region
        $region87: #{temporal_conv_net.7} parent=73 // pred_check
          %p658 = pneg %p657
        $region88: #{temporal_conv_net.7} parent=73 // pred_check_branch
          %660 = sbr.rel (%p658) target = $region90
        $region89: #{temporal_conv_net.7} parent=73 // pred_region
          %s661 = ssub.s32 %s656, 16
          %v662 = vlaneseq
          %v663 = vshrl.u32 %v662, 7
          %v664 = vadd.s32 %v663, 8
          %v665 = vadd.s32 %v663, 16
          %v666 = vadd.s32 %v663, 24
          %v667 = vstv %s661
          %v668 = vadd.s32 %v667, %v663
          %v669 = vadd.s32 %v667, %v664
          %v670 = vadd.s32 %v667, %v665
          %v671 = vadd.s32 %v667, %v666
          %vm672 = vcmp.ge.s32.totalorder %v668, 0
          %vm673 = vcmp.ge.s32.totalorder %v669, 0
          %vm674 = vcmp.ge.s32.totalorder %v670, 0
          %vm675 = vcmp.ge.s32.totalorder %v671, 0
          %v676 = vsel %vm672, 1, 0
          %v677 = vsel %vm673, 1, 0
          %v678 = vsel %vm674, 1, 0
          %v679 = vsel %vm675, 1, 0
          %vm680 = vcmp.eq.s32.totalorder %v676, 1
          %vm681 = vcmp.eq.s32.totalorder %v677, 1
          %vm682 = vcmp.eq.s32.totalorder %v678, 1
          %vm683 = vcmp.eq.s32.totalorder %v679, 1
          %v684 = vsel %vm680, %v640, 0.0
          %v685 = vsel %vm681, %v641, 0.0
          %v686 = vsel %vm682, %v642, 0.0
          %v687 = vsel %vm683, %v643, 0.0
          %v688 = vsel %vm680, %v644, 0.0
          %v689 = vsel %vm681, %v645, 0.0
          %v690 = vsel %vm682, %v646, 0.0
          %v691 = vsel %vm683, %v647, 0.0
          %v692 = vpack.c.bf16 %v685, %v684
          %v693 = vpack.c.bf16 %v687, %v686
          %v694 = vpack.c.bf16 %v689, %v688
          %v695 = vpack.c.bf16 %v691, %v690
          %696 = vst.msk [vmem:[#allocation3] sm:$0xff] %vm318, %v692
          %697 = vst.msk [vmem:[#allocation3 + $0x8] sm:$0xff] %vm318, %v693
          %698 = vst.msk [vmem:[#allocation3 + $0x10] sm:$0xff] %vm318, %v694
          %699 = vst.msk [vmem:[#allocation3 + $0x18] sm:$0xff] %vm318, %v695
        $region90: #{temporal_conv_net.7} parent=73 // pred_fallthru
          _
        %v700 = vld [vmem:[#allocation3] sm:$0xff]
        %v701 = vld [vmem:[#allocation3 + $0x10] sm:$0xff]
        %v702 = vld [vmem:[%s3] sm:$0xf]
        %v703 = vld [vmem:[%s3 + $0x4] sm:$0xf]
        %v704 = vld [vmem:[#allocation3] sm:$0xf0]
        %v705 = vld [vmem:[#allocation3 + $0x8] sm:$0xf]
        %v706 = vld [vmem:[#allocation3 + $0x10] sm:$0xf0]
        %v707 = vld [vmem:[#allocation3 + $0x18] sm:$0xf]
        %s708 = scalar_lea.vmem %s3, 8
        %v709 = vld [vmem:[%s708] sm:$0xf]
        %v710 = vld [vmem:[%s708 + $0x4] sm:$0xf]
        %v715 = vrot.slane %v704, 4
        %v716 = vrot.slane %v705, 4
        %v717 = vsel %vm350, %v715, %v716
        %v718 = vrot.slane %v706, 4
        %v719 = vrot.slane %v707, 4
        %v720 = vsel %vm350, %v718, %v719
        %v723 = vunpack.c.l.b16 %v709
        %v724 = vunpack.c.l.b16 %v710
        %v725 = vpack.c.b16 %v724, %v723
        %v728 = vsel %vm318, %v717, 0
        %v731 = vsel %vm318, %v720, 0
        %733 = vmatprep.subr.bf16.mxu0 0
        %734 = vmatpush1.bf16.msra.mxu0 %v725
        %735 = vmatprep.subr.bf16.mxu0 0
        %736 = vmatpush1.bf16.msra.mxu0 0
        %737 = vmatprep.subr.bf16.mxu0 0
        %738 = vmatpush1.bf16.msra.mxu0 0
        %739 = vmatprep.subr.bf16.mxu0 0
        %740 = vmatpush1.bf16.msra.mxu0 0
        %741 = vmatprep.subr.bf16.mxu0 0
        %742 = vmatpush1.bf16.msra.mxu0 0
        %743 = vmatprep.subr.bf16.mxu0 0
        %744 = vmatpush1.bf16.msra.mxu0 0
        %745 = vmatprep.subr.bf16.mxu0 0
        %746 = vmatpush1.bf16.msra.mxu0 0
        %747 = vmatprep.subr.bf16.mxu0 0
        %748 = vmatpush1.bf16.msra.mxu0 0
        %749 = vmatprep.subr.bf16.mxu0 0
        %750 = vmatpush1.bf16.msra.mxu0 0
        %751 = vmatprep.subr.bf16.mxu0 0
        %752 = vmatpush1.bf16.msra.mxu0 0
        %753 = vmatprep.subr.bf16.mxu0 0
        %754 = vmatpush1.bf16.msra.mxu0 0
        %755 = vmatprep.subr.bf16.mxu0 0
        %756 = vmatpush1.bf16.msra.mxu0 0
        %757 = vmatprep.subr.bf16.mxu0 0
        %758 = vmatpush1.bf16.msra.mxu0 0
        %759 = vmatprep.subr.bf16.mxu0 0
        %760 = vmatpush1.bf16.msra.mxu0 0
        %761 = vmatprep.subr.bf16.mxu0 0
        %762 = vmatpush1.bf16.msra.mxu0 0
        %763 = vmatprep.subr.bf16.mxu0 0
        %764 = vmatpush1.bf16.msra.mxu0 0
        %765 = vmatprep.mubr.bf16.mxu0 0
        %766 = vmatmul.mubr.bf16.gmra.mrb[0].mxu0 %v728
        %v767 = vpop.f32.mrb[0].mxu0
        %v768 = vadd.f32 0.0, %v767
        %v769 = vpop.f32.mrb[0].mxu0
        %v770 = vpop.f32.mrb[0].mxu0
        %v771 = vadd.f32 0.0, %v770
        %v772 = vpop.f32.mrb[0].mxu0
        %773 = vmatprep.mubr.bf16.mxu0 0
        %774 = vmatmul.mubr.bf16.gmra.mrb[0].mxu0 %v731
        %v775 = vpop.f32.mrb[0].mxu0
        %v776 = vadd.f32 0.0, %v775
        %v777 = vpop.f32.mrb[0].mxu0
        %v778 = vpop.f32.mrb[0].mxu0
        %v779 = vadd.f32 0.0, %v778
        %v780 = vpop.f32.mrb[0].mxu0
        %781 = vdwg.mxu0
        %v784 = vunpack.c.l.b16 %v702
        %v785 = vunpack.c.l.b16 %v703
        %v786 = vpack.c.b16 %v785, %v784
        %v789 = vsel %vm318, %v700, 0
        %v792 = vsel %vm318, %v701, 0
        %794 = vmatprep.subr.bf16.mxu0 0
        %795 = vmatpush1.bf16.msra.mxu0 %v786
        %796 = vmatprep.subr.bf16.mxu0 0
        %797 = vmatpush1.bf16.msra.mxu0 0
        %798 = vmatprep.subr.bf16.mxu0 0
        %799 = vmatpush1.bf16.msra.mxu0 0
        %800 = vmatprep.subr.bf16.mxu0 0
        %801 = vmatpush1.bf16.msra.mxu0 0
        %802 = vmatprep.subr.bf16.mxu0 0
        %803 = vmatpush1.bf16.msra.mxu0 0
        %804 = vmatprep.subr.bf16.mxu0 0
        %805 = vmatpush1.bf16.msra.mxu0 0
        %806 = vmatprep.subr.bf16.mxu0 0
        %807 = vmatpush1.bf16.msra.mxu0 0
        %808 = vmatprep.subr.bf16.mxu0 0
        %809 = vmatpush1.bf16.msra.mxu0 0
        %810 = vmatprep.subr.bf16.mxu0 0
        %811 = vmatpush1.bf16.msra.mxu0 0
        %812 = vmatprep.subr.bf16.mxu0 0
        %813 = vmatpush1.bf16.msra.mxu0 0
        %814 = vmatprep.subr.bf16.mxu0 0
        %815 = vmatpush1.bf16.msra.mxu0 0
        %816 = vmatprep.subr.bf16.mxu0 0
        %817 = vmatpush1.bf16.msra.mxu0 0
        %818 = vmatprep.subr.bf16.mxu0 0
        %819 = vmatpush1.bf16.msra.mxu0 0
        %820 = vmatprep.subr.bf16.mxu0 0
        %821 = vmatpush1.bf16.msra.mxu0 0
        %822 = vmatprep.subr.bf16.mxu0 0
        %823 = vmatpush1.bf16.msra.mxu0 0
        %824 = vmatprep.subr.bf16.mxu0 0
        %825 = vmatpush1.bf16.msra.mxu0 0
        %826 = vmatprep.mubr.bf16.mxu0 0
        %827 = vmatmul.mubr.bf16.gmra.mrb[0].mxu0 %v789
        %v828 = vpop.f32.mrb[0].mxu0
        %v829 = vadd.f32 %v768, %v828
        %v830 = vpop.f32.mrb[0].mxu0
        %v831 = vpop.f32.mrb[0].mxu0
        %v832 = vadd.f32 %v771, %v831
        %v833 = vpop.f32.mrb[0].mxu0
        %834 = vmatprep.mubr.bf16.mxu0 0
        %835 = vmatmul.mubr.bf16.gmra.mrb[0].mxu0 %v792
        %v836 = vpop.f32.mrb[0].mxu0
        %v837 = vadd.f32 %v776, %v836
        %v838 = vpop.f32.mrb[0].mxu0
        %v839 = vpop.f32.mrb[0].mxu0
        %v840 = vadd.f32 %v779, %v839
        %v841 = vpop.f32.mrb[0].mxu0
        %842 = vdwg.mxu0
        %v843 = vld [vmem:[#allocation3 + $0x8] sm:$0xff]
        %v844 = vld [vmem:[#allocation3 + $0x18] sm:$0xff]
        %s845 = scalar_lea.vmem %s3, 16
        %v846 = vld [vmem:[%s845] sm:$0xf]
        %v847 = vld [vmem:[%s845 + $0x4] sm:$0xf]
        %v850 = vunpack.c.l.b16 %v846
        %v851 = vunpack.c.l.b16 %v847
        %v852 = vpack.c.b16 %v851, %v850
        %v855 = vsel %vm318, %v843, 0
        %v858 = vsel %vm318, %v844, 0
        %860 = vmatprep.subr.bf16.mxu0 0
        %861 = vmatpush1.bf16.msra.mxu0 %v852
        %862 = vmatprep.subr.bf16.mxu0 0
        %863 = vmatpush1.bf16.msra.mxu0 0
        %864 = vmatprep.subr.bf16.mxu0 0
        %865 = vmatpush1.bf16.msra.mxu0 0
        %866 = vmatprep.subr.bf16.mxu0 0
        %867 = vmatpush1.bf16.msra.mxu0 0
        %868 = vmatprep.subr.bf16.mxu0 0
        %869 = vmatpush1.bf16.msra.mxu0 0
        %870 = vmatprep.subr.bf16.mxu0 0
        %871 = vmatpush1.bf16.msra.mxu0 0
        %872 = vmatprep.subr.bf16.mxu0 0
        %873 = vmatpush1.bf16.msra.mxu0 0
        %874 = vmatprep.subr.bf16.mxu0 0
        %875 = vmatpush1.bf16.msra.mxu0 0
        %876 = vmatprep.subr.bf16.mxu0 0
        %877 = vmatpush1.bf16.msra.mxu0 0
        %878 = vmatprep.subr.bf16.mxu0 0
        %879 = vmatpush1.bf16.msra.mxu0 0
        %880 = vmatprep.subr.bf16.mxu0 0
        %881 = vmatpush1.bf16.msra.mxu0 0
        %882 = vmatprep.subr.bf16.mxu0 0
        %883 = vmatpush1.bf16.msra.mxu0 0
        %884 = vmatprep.subr.bf16.mxu0 0
        %885 = vmatpush1.bf16.msra.mxu0 0
        %886 = vmatprep.subr.bf16.mxu0 0
        %887 = vmatpush1.bf16.msra.mxu0 0
        %888 = vmatprep.subr.bf16.mxu0 0
        %889 = vmatpush1.bf16.msra.mxu0 0
        %890 = vmatprep.subr.bf16.mxu0 0
        %891 = vmatpush1.bf16.msra.mxu0 0
        %892 = vmatprep.mubr.bf16.mxu0 0
        %893 = vmatmul.mubr.bf16.gmra.mrb[0].mxu0 %v855
        %v894 = vpop.f32.mrb[0].mxu0
        %v895 = vadd.f32 0.0, %v894
        %v896 = vpop.f32.mrb[0].mxu0
        %v897 = vpop.f32.mrb[0].mxu0
        %v898 = vadd.f32 0.0, %v897
        %v899 = vpop.f32.mrb[0].mxu0
        %900 = vmatprep.mubr.bf16.mxu0 0
        %901 = vmatmul.mubr.bf16.gmra.mrb[0].mxu0 %v858
        %v902 = vpop.f32.mrb[0].mxu0
        %v903 = vadd.f32 0.0, %v902
        %v904 = vpop.f32.mrb[0].mxu0
        %v905 = vpop.f32.mrb[0].mxu0
        %v906 = vadd.f32 0.0, %v905
        %v907 = vpop.f32.mrb[0].mxu0
        %908 = vdwg.mxu0
        %v909 = vadd.f32 %v829, %v895
        %v910 = vadd.f32 %v832, %v898
        %v911 = vadd.f32 %v837, %v903
        %v912 = vadd.f32 %v840, %v906
        %v913 = vld [vmem:[%s4] sm:$0x1]
        %v915 = vlaneseq
        %v916 = vshrl.u32 %v915, 7
        %v917 = vsub.s32 0, %v916
        %v918 = vrot.slane %v913, %v917
        %v920 = vadd.f32 %v909, %v918
        %v921 = vadd.f32 %v910, %v918
        %v922 = vadd.f32 %v911, %v918
        %v923 = vadd.f32 %v912, %v918
        %v924 = vmax.f32 %v920, 0.0
        %v925 = vmax.f32 %v921, 0.0
        %v926 = vmax.f32 %v922, 0.0
        %v927 = vmax.f32 %v923, 0.0
        %v928 = vadd.f32 %v924, %v290
        %v929 = vadd.f32 %v925, %v291
        %v930 = vadd.f32 %v926, %v292
        %v931 = vadd.f32 %v927, %v293
        %v932 = vmax.f32 %v928, 0.0
        %v933 = vmax.f32 %v929, 0.0
        %v934 = vmax.f32 %v930, 0.0
        %v935 = vmax.f32 %v931, 0.0
        %936 = vst.msk [vmem:[%s284] sm:$0xff] %vm318, %v932
        %937 = vst.msk [vmem:[%s284 + $0x8] sm:$0xff] %vm318, %v933
        %938 = vst.msk [vmem:[%s284 + $0x10] sm:$0xff] %vm318, %v934
        %939 = vst.msk [vmem:[%s284 + $0x18] sm:$0xff] %vm318, %v935
        %s940 = sand.u32 %s150, 1
        %s941 = sand.u32 %s150, 1
        %s942 = smul.addr %s941, 32
        %s943 = scalar_lea.vmem [#allocation6], %s942
        // Predicated region
        $region91: #{temporal_conv_net.7} parent=73 // pred_check
          %p944 = pneg %p160
        $region92: #{temporal_conv_net.7} parent=73 // pred_check_branch
          %946 = sbr.rel (%p944) target = $region94
        $region93: #{temporal_conv_net.7} parent=73 // pred_region
          %s947 = smul.u32 2, %s20
          %s948 = smul.u32 2, %s21
          %s949 = smul.addr %s947, 8
          %s950 = sadd.s32 %s948, %s949
          %s951 = smul.addr %s950, 8
          %s952 = scalar_lea.vmem %s5, %s951
          // Predicated region
          $region95: #{temporal_conv_net.7} parent=93 // pred_check
            _
          $region96: #{temporal_conv_net.7} parent=93 // pred_check_branch
            %954 = sbr.rel (0) target = $region98
          $region97: #{temporal_conv_net.7} parent=93 // pred_region
            // Predicated region
            $region99: #{temporal_conv_net.7} parent=97 // pred_check
              _
            $region100: #{temporal_conv_net.7} parent=97 // pred_check_branch
              %956 = sbr.rel (0) target = $region102
            $region101: #{temporal_conv_net.7} parent=97 // pred_region
              // Predicated region
              $region114: #{temporal_conv_net.7} parent=101 // pred_check
                _
              $region115: #{temporal_conv_net.7} parent=101 // pred_check_branch
                %977 = sbr.rel (0) target = $region117
              $region116: #{temporal_conv_net.7} parent=101 // pred_region
                loop: start=0, step=1, limit=1
                $region118: #{temporal_conv_net.7} parent=116 // loop_pre_header
                  _
                $region119: #{temporal_conv_net.7} parent=116 // loop_header
                  %s979 = sphi 0, %s983
                  %p980 = scmp.ge.s32.totalorder %s979, 1
                  %s984 = sphi %s943, %s943
                  %s985 = sphi %s952, %s952
                $region120: #{temporal_conv_net.7} parent=116 // loop_header_branch
                  %982 = sbr.rel (%p980) target = $region124
                $region121: #{temporal_conv_net.7} parent=116 // loop_body
                  %v986 = vld [vmem:[%s984] sm:$0xff]
                  %987 = vst [vmem:[%s985] sm:$0xff] %v986
                  %v988 = vld [vmem:[%s984 + $0x8] sm:$0xff]
                  %989 = vst [vmem:[%s985 + $0x8] sm:$0xff] %v988
                  %v990 = vld [vmem:[%s984 + $0x10] sm:$0xff]
                  %991 = vst [vmem:[%s985 + $0x40] sm:$0xff] %v990
                  %v992 = vld [vmem:[%s984 + $0x18] sm:$0xff]
                  %993 = vst [vmem:[%s985 + $0x48] sm:$0xff] %v992
                $region122: #{temporal_conv_net.7} parent=116 // loop_footer
                  %s983 = sadd.s32 1, %s979
                $region123: #{temporal_conv_net.7} parent=116 // loop_footer_branch
                  %978 = sbr.rel target = $region119
                $region124: #{temporal_conv_net.7} parent=116 // loop_exit
                  _
              $region117: #{temporal_conv_net.7} parent=101 // pred_fallthru
                _
              // Predicated region
              $region125: #{temporal_conv_net.7} parent=101 // pred_check
                _
              $region126: #{temporal_conv_net.7} parent=101 // pred_check_branch
                %995 = sbr.rel target = $region128
              $region127: #{temporal_conv_net.7} parent=101 // pred_region
                _
              $region128: #{temporal_conv_net.7} parent=101 // pred_fallthru
                _
            $region102: #{temporal_conv_net.7} parent=97 // pred_fallthru
              _
            // Predicated region
            $region103: #{temporal_conv_net.7} parent=97 // pred_check
              _
            $region104: #{temporal_conv_net.7} parent=97 // pred_check_branch
              %958 = sbr.rel target = $region106
            $region105: #{temporal_conv_net.7} parent=97 // pred_region
              loop: start=0, step=1, limit=1
              $region107: #{temporal_conv_net.7} parent=105 // loop_pre_header
                _
              $region108: #{temporal_conv_net.7} parent=105 // loop_header
                %s961 = sphi 0, %s965
                %p962 = scmp.ge.s32.totalorder %s961, 1
                %s966 = sphi %s943, %s943
                %s967 = sphi %s952, %s952
              $region109: #{temporal_conv_net.7} parent=105 // loop_header_branch
                %964 = sbr.rel (%p962) target = $region113
              $region110: #{temporal_conv_net.7} parent=105 // loop_body
                %v968 = vld [vmem:[%s966] sm:$0xff]
                %969 = vst [vmem:[%s967] sm:$0xff] %v968
                %v970 = vld [vmem:[%s966 + $0x8] sm:$0xff]
                %971 = vst [vmem:[%s967 + $0x8] sm:$0xff] %v970
                %v972 = vld [vmem:[%s966 + $0x10] sm:$0xff]
                %973 = vst [vmem:[%s967 + $0x40] sm:$0xff] %v972
                %v974 = vld [vmem:[%s966 + $0x18] sm:$0xff]
                %975 = vst [vmem:[%s967 + $0x48] sm:$0xff] %v974
              $region111: #{temporal_conv_net.7} parent=105 // loop_footer
                %s965 = sadd.s32 1, %s961
              $region112: #{temporal_conv_net.7} parent=105 // loop_footer_branch
                %960 = sbr.rel target = $region108
              $region113: #{temporal_conv_net.7} parent=105 // loop_exit
                _
            $region106: #{temporal_conv_net.7} parent=97 // pred_fallthru
              _
          $region98: #{temporal_conv_net.7} parent=93 // pred_fallthru
            _
          %996 = vnop
        $region94: #{temporal_conv_net.7} parent=73 // pred_fallthru
          _
      $region74: #{temporal_conv_net.7} parent=5 // pred_fallthru
        _
      %p997 = scmp.le.s32.totalorder 2, %s11
      // Predicated region
      $region129: #{temporal_conv_net.7} parent=5 // pred_check
        %p998 = pneg %p997
      $region130: #{temporal_conv_net.7} parent=5 // pred_check_branch
        %1000 = sbr.rel (%p998) target = $region132
      $region131: #{temporal_conv_net.7} parent=5 // pred_region
        %s1001 = ssub.s32 %s11, 2
        // Predicated region
        $region133: #{temporal_conv_net.7} parent=131 // pred_check
          %p1002 = pneg %p166
        $region134: #{temporal_conv_net.7} parent=131 // pred_check_branch
          %1004 = sbr.rel (%p1002) target = $region136
        $region135: #{temporal_conv_net.7} parent=131 // pred_region
          %s1005 = sand.u32 %s151, 1
          %s1006 = sand.u32 %s151, 1
          %s1007 = smul.addr %s1006, 32
          %s1008 = scalar_lea.vmem [#allocation6], %s1007
        $region136: #{temporal_conv_net.7} parent=131 // pred_fallthru
          _
      $region132: #{temporal_conv_net.7} parent=5 // pred_fallthru
        _
    $region6: #{temporal_conv_net.7} parent=1 // loop_footer
      %s15 = sadd.s32 1, %s11
    $region7: #{temporal_conv_net.7} parent=1 // loop_footer_branch
      %10 = sbr.rel target = $region3
    $region8: #{temporal_conv_net.7} parent=1 // loop_exit
      _

// kernel: temporal_conv_net.4
$region0: #{temporal_conv_net.4}
  #allocation0 [shape = 'u32[]', space=smem, size = 0x4, offset = 0x4, fixed_abs, tag = 'smem constant byte address 0x4 - core index']
  #allocation1 [shape = 'u32[144,128]{1,0:T(1,128)}', space=vmem, size = 0x12000, scoped, tag = 'internal scratch']
  #allocation2 [shape = 'bf16[2,20,4]{2,1,0:T(8,128)(2,1)}', space=vmem, size = 0x3000, scoped, tag = 'scratch operand']
  #allocation3 [shape = 'bf16[2,18,8]{2,1,0:T(8,128)(2,1)}', space=vmem, size = 0x3000, scoped, tag = 'scratch operand']
  #allocation4 [shape = 'bf16[2,4,4]{2,1,0:T(4,128)(2,1)}', space=vmem, size = 0x800, scoped, tag = 'scratch operand']
  %s0 = inlined_call_operand.vmem [shape: f32[2,64,4], index: 0, kind: input, shape index: {}]
  %s1 = inlined_call_operand.vmem [shape: bf16[3,4,8], index: 1, kind: input, shape index: {}]
  %s2 = inlined_call_operand.vmem [shape: f32[1,8], index: 2, kind: input, shape index: {}]
  %s3 = inlined_call_operand.vmem [shape: bf16[3,8,8], index: 3, kind: input, shape index: {}]
  %s4 = inlined_call_operand.vmem [shape: f32[1,8], index: 4, kind: input, shape index: {}]
  %s5 = inlined_call_operand.vmem [shape: bf16[4,8], index: 5, kind: input, shape index: {}]
  %s6 = inlined_call_operand.vmem [shape: f32[1,8], index: 6, kind: input, shape index: {}]
  %s7 = inlined_call_operand.vmem [shape: f32[2,64,8], index: 7, kind: output, shape index: {}]
  %s8 = sld [smem:[#allocation0]]
  $region145: #{temporal_conv_net.4} parent=0
    _
  %s10 = ssub.s32 1, %s8
  %s11 = scalar_select 0, %s10, %s8
  $region1: #{temporal_conv_net.4} parent=0
    #allocation5 [shape = 'u8[32768]{0}', space=vmem, size = 0x8000, scoped, tag = 'input window, operand 0']
    #allocation6 [shape = 'u8[32768]{0}', space=vmem, size = 0x8000, scoped, tag = 'output window, operand 0']
    loop: start=0, step=1, limit=6
    $region2: #{temporal_conv_net.4} parent=1 // loop_pre_header
      _
    $region3: #{temporal_conv_net.4} parent=1 // loop_header
      %s13 = sphi 0, %s17
      %p14 = scmp.ge.s32.totalorder %s13, 6
      %s20 = sphi 0, %s32
      %s21 = sphi 0, %s28
      %s22 = sphi 0, %s20
      %s23 = sphi 0, %s21
      %s24 = sphi 0, %s22
      %s25 = sphi 0, %s23
      %s37 = sphi 0, %s39
      %s40 = sphi 0, %s37
      %s41 = sphi 0, %s40
      %s57 = sphi 0, %s41
      %s61 = sphi 0, %s61
      %s63 = sphi 0, %s61
      %s64 = sphi 0, %s63
      %s78 = sphi 0, %s64
      %s82 = sphi 0, %s82
      %s84 = sphi 0, %s82
      %s85 = sphi 0, %s84
      %s99 = sphi 0, %s85
      %s103 = sphi 0, %s103
      %s105 = sphi 0, %s103
      %s106 = sphi 0, %s105
      %s120 = sphi 0, %s106
      %s124 = sphi 0, %s124
      %s126 = sphi 0, %s124
      %s127 = sphi 0, %s126
      %s141 = sphi 0, %s127
      %s145 = sphi 0, %s145
      %s147 = sphi 0, %s145
      %s148 = sphi 0, %s147
      %s162 = sphi 0, %s148
      %s166 = sphi 0, %s166
      %s168 = sphi 0, %s166
      %s169 = sphi 0, %s168
      %s183 = sphi 0, %s169
      %s191 = sphi 0, %s193
      %s194 = sphi 0, %s191
      %s195 = sphi 0, %s194
      %s211 = sphi 0, %s195
    $region4: #{temporal_conv_net.4} parent=1 // loop_header_branch
      %16 = sbr.rel (%p14) target = $region8
    $region5: #{temporal_conv_net.4} parent=1 // loop_body
      %s18 = ssub.s32 %s13, 1
      %s19 = ssub.s32 %s13, 2
      %s26 = sadd.s32 1, %s21
      %p27 = scmp.ge.s32.totalorder %s26, 4
      %s28 = scalar_select %p27, 0, %s26
      %s29 = sadd.s32 1, %s20
      %s30 = scalar_select %p27, %s29, %s20
      %p31 = scmp.ge.s32.totalorder %s30, 1
      %s32 = scalar_select %p31, 0, %s30
      %s33 = ssub.s32 %s20, %s32
      %s34 = ssub.s32 %s21, %s28
      %s35 = sor.u32 %s33, %s34
      %p36 = scmp.eq.s32.totalorder %s35, 0
      %s38 = sadd.s32 %s37, 1
      %s39 = scalar_select %p36, %s37, %s38
      %p42 = pneg %p36
      %p43 = scmp.eq.s32.totalorder %s13, 3
      %p44 = por %p42, %p43
      %p45 = scmp.ne.s32.totalorder %s37, %s40
      %p46 = scmp.eq.s32.totalorder %s13, 0
      %p47 = por %p45, %p46
      %p48 = scmp.ne.s32.totalorder %s37, %s40
      %p49 = scmp.eq.s32.totalorder %s18, 3
      %p50 = por %p48, %p49
      %p51 = scmp.ne.s32.totalorder %s40, %s41
      %p52 = scmp.eq.s32.totalorder %s18, 0
      %p53 = por %p51, %p52
      %p54 = scmp.ne.s32.totalorder %s40, %s41
      %p55 = scmp.eq.s32.totalorder %s19, 3
      %p56 = por %p54, %p55
      %p58 = scmp.ne.s32.totalorder %s41, %s57
      %p59 = scmp.eq.s32.totalorder %s19, 0
      %p60 = por %p58, %p59
      %s62 = sadd.s32 %s61, 1
      %p65 = scmp.eq.s32.totalorder %s13, 3
      %p66 = scmp.ne.s32.totalorder %s61, %s63
      %p67 = scmp.eq.s32.totalorder %s13, 0
      %p68 = por %p66, %p67
      %p69 = scmp.ne.s32.totalorder %s61, %s63
      %p70 = scmp.eq.s32.totalorder %s18, 3
      %p71 = por %p69, %p70
      %p72 = scmp.ne.s32.totalorder %s63, %s64
      %p73 = scmp.eq.s32.totalorder %s18, 0
      %p74 = por %p72, %p73
      %p75 = scmp.ne.s32.totalorder %s63, %s64
      %p76 = scmp.eq.s32.totalorder %s19, 3
      %p77 = por %p75, %p76
      %p79 = scmp.ne.s32.totalorder %s64, %s78
      %p80 = scmp.eq.s32.totalorder %s19, 0
      %p81 = por %p79, %p80
      %s83 = sadd.s32 %s82, 1
      %p86 = scmp.eq.s32.totalorder %s13, 3
      %p87 = scmp.ne.s32.totalorder %s82, %s84
      %p88 = scmp.eq.s32.totalorder %s13, 0
      %p89 = por %p87, %p88
      %p90 = scmp.ne.s32.totalorder %s82, %s84
      %p91 = scmp.eq.s32.totalorder %s18, 3
      %p92 = por %p90, %p91
      %p93 = scmp.ne.s32.totalorder %s84, %s85
      %p94 = scmp.eq.s32.totalorder %s18, 0
      %p95 = por %p93, %p94
      %p96 = scmp.ne.s32.totalorder %s84, %s85
      %p97 = scmp.eq.s32.totalorder %s19, 3
      %p98 = por %p96, %p97
      %p100 = scmp.ne.s32.totalorder %s85, %s99
      %p101 = scmp.eq.s32.totalorder %s19, 0
      %p102 = por %p100, %p101
      %s104 = sadd.s32 %s103, 1
      %p107 = scmp.eq.s32.totalorder %s13, 3
      %p108 = scmp.ne.s32.totalorder %s103, %s105
      %p109 = scmp.eq.s32.totalorder %s13, 0
      %p110 = por %p108, %p109
      %p111 = scmp.ne.s32.totalorder %s103, %s105
      %p112 = scmp.eq.s32.totalorder %s18, 3
      %p113 = por %p111, %p112
      %p114 = scmp.ne.s32.totalorder %s105, %s106
      %p115 = scmp.eq.s32.totalorder %s18, 0
      %p116 = por %p114, %p115
      %p117 = scmp.ne.s32.totalorder %s105, %s106
      %p118 = scmp.eq.s32.totalorder %s19, 3
      %p119 = por %p117, %p118
      %p121 = scmp.ne.s32.totalorder %s106, %s120
      %p122 = scmp.eq.s32.totalorder %s19, 0
      %p123 = por %p121, %p122
      %s125 = sadd.s32 %s124, 1
      %p128 = scmp.eq.s32.totalorder %s13, 3
      %p129 = scmp.ne.s32.totalorder %s124, %s126
      %p130 = scmp.eq.s32.totalorder %s13, 0
      %p131 = por %p129, %p130
      %p132 = scmp.ne.s32.totalorder %s124, %s126
      %p133 = scmp.eq.s32.totalorder %s18, 3
      %p134 = por %p132, %p133
      %p135 = scmp.ne.s32.totalorder %s126, %s127
      %p136 = scmp.eq.s32.totalorder %s18, 0
      %p137 = por %p135, %p136
      %p138 = scmp.ne.s32.totalorder %s126, %s127
      %p139 = scmp.eq.s32.totalorder %s19, 3
      %p140 = por %p138, %p139
      %p142 = scmp.ne.s32.totalorder %s127, %s141
      %p143 = scmp.eq.s32.totalorder %s19, 0
      %p144 = por %p142, %p143
      %s146 = sadd.s32 %s145, 1
      %p149 = scmp.eq.s32.totalorder %s13, 3
      %p150 = scmp.ne.s32.totalorder %s145, %s147
      %p151 = scmp.eq.s32.totalorder %s13, 0
      %p152 = por %p150, %p151
      %p153 = scmp.ne.s32.totalorder %s145, %s147
      %p154 = scmp.eq.s32.totalorder %s18, 3
      %p155 = por %p153, %p154
      %p156 = scmp.ne.s32.totalorder %s147, %s148
      %p157 = scmp.eq.s32.totalorder %s18, 0
      %p158 = por %p156, %p157
      %p159 = scmp.ne.s32.totalorder %s147, %s148
      %p160 = scmp.eq.s32.totalorder %s19, 3
      %p161 = por %p159, %p160
      %p163 = scmp.ne.s32.totalorder %s148, %s162
      %p164 = scmp.eq.s32.totalorder %s19, 0
      %p165 = por %p163, %p164
      %s167 = sadd.s32 %s166, 1
      %p170 = scmp.eq.s32.totalorder %s13, 3
      %p171 = scmp.ne.s32.totalorder %s166, %s168
      %p172 = scmp.eq.s32.totalorder %s13, 0
      %p173 = por %p171, %p172
      %p174 = scmp.ne.s32.totalorder %s166, %s168
      %p175 = scmp.eq.s32.totalorder %s18, 3
      %p176 = por %p174, %p175
      %p177 = scmp.ne.s32.totalorder %s168, %s169
      %p178 = scmp.eq.s32.totalorder %s18, 0
      %p179 = por %p177, %p178
      %p180 = scmp.ne.s32.totalorder %s168, %s169
      %p181 = scmp.eq.s32.totalorder %s19, 3
      %p182 = por %p180, %p181
      %p184 = scmp.ne.s32.totalorder %s169, %s183
      %p185 = scmp.eq.s32.totalorder %s19, 0
      %p186 = por %p184, %p185
      %s187 = ssub.s32 %s20, %s32
      %s188 = ssub.s32 %s21, %s28
      %s189 = sor.u32 %s187, %s188
      %p190 = scmp.eq.s32.totalorder %s189, 0
      %s192 = sadd.s32 %s191, 1
      %s193 = scalar_select %p190, %s191, %s192
      %p196 = pneg %p190
      %p197 = scmp.eq.s32.totalorder %s13, 3
      %p198 = por %p196, %p197
      %p199 = scmp.ne.s32.totalorder %s191, %s194
      %p200 = scmp.eq.s32.totalorder %s13, 0
      %p201 = por %p199, %p200
      %p202 = scmp.ne.s32.totalorder %s191, %s194
      %p203 = scmp.eq.s32.totalorder %s18, 3
      %p204 = por %p202, %p203
      %p205 = scmp.ne.s32.totalorder %s194, %s195
      %p206 = scmp.eq.s32.totalorder %s18, 0
      %p207 = por %p205, %p206
      %p208 = scmp.ne.s32.totalorder %s194, %s195
      %p209 = scmp.eq.s32.totalorder %s19, 3
      %p210 = por %p208, %p209
      %p212 = scmp.ne.s32.totalorder %s195, %s211
      %p213 = scmp.eq.s32.totalorder %s19, 0
      %p214 = por %p212, %p213
      %p215 = scmp.le.s32.totalorder 1, %s13
      %p216 = scmp.lt.s32.totalorder %s13, 5
      %p217 = pnand %p215, %p216
      %p218 = pneg %p217
      // Predicated region
      $region9: #{temporal_conv_net.4} parent=5 // pred_check
        _
      $region10: #{temporal_conv_net.4} parent=5 // pred_check_branch
        %220 = sbr.rel (%p217) target = $region12
      $region11: #{temporal_conv_net.4} parent=5 // pred_region
        %s221 = ssub.s32 %s13, 1
        // Predicated region
        $region13: #{temporal_conv_net.4} parent=11 // pred_check
          %p222 = pneg %p74
        $region14: #{temporal_conv_net.4} parent=11 // pred_check_branch
          %224 = sbr.rel (%p222) target = $region16
        $region15: #{temporal_conv_net.4} parent=11 // pred_region
          _
        $region16: #{temporal_conv_net.4} parent=11 // pred_fallthru
          _
        // Predicated region
        $region17: #{temporal_conv_net.4} parent=11 // pred_check
          %p225 = pneg %p95
        $region18: #{temporal_conv_net.4} parent=11 // pred_check_branch
          %227 = sbr.rel (%p225) target = $region20
        $region19: #{temporal_conv_net.4} parent=11 // pred_region
          _
        $region20: #{temporal_conv_net.4} parent=11 // pred_fallthru
          _
        // Predicated region
        $region21: #{temporal_conv_net.4} parent=11 // pred_check
          %p228 = pneg %p116
        $region22: #{temporal_conv_net.4} parent=11 // pred_check_branch
          %230 = sbr.rel (%p228) target = $region24
        $region23: #{temporal_conv_net.4} parent=11 // pred_region
          _
        $region24: #{temporal_conv_net.4} parent=11 // pred_fallthru
          _
        // Predicated region
        $region25: #{temporal_conv_net.4} parent=11 // pred_check
          %p231 = pneg %p137
        $region26: #{temporal_conv_net.4} parent=11 // pred_check_branch
          %233 = sbr.rel (%p231) target = $region28
        $region27: #{temporal_conv_net.4} parent=11 // pred_region
          _
        $region28: #{temporal_conv_net.4} parent=11 // pred_fallthru
          _
        // Predicated region
        $region29: #{temporal_conv_net.4} parent=11 // pred_check
          %p234 = pneg %p158
        $region30: #{temporal_conv_net.4} parent=11 // pred_check_branch
          %236 = sbr.rel (%p234) target = $region32
        $region31: #{temporal_conv_net.4} parent=11 // pred_region
          _
        $region32: #{temporal_conv_net.4} parent=11 // pred_fallthru
          _
        // Predicated region
        $region33: #{temporal_conv_net.4} parent=11 // pred_check
          %p237 = pneg %p179
        $region34: #{temporal_conv_net.4} parent=11 // pred_check_branch
          %239 = sbr.rel (%p237) target = $region36
        $region35: #{temporal_conv_net.4} parent=11 // pred_region
          _
        $region36: #{temporal_conv_net.4} parent=11 // pred_fallthru
          _
      $region12: #{temporal_conv_net.4} parent=5 // pred_fallthru
        _
      %p240 = scmp.lt.s32.totalorder %s13, 4
      // Predicated region
      $region37: #{temporal_conv_net.4} parent=5 // pred_check
        %p241 = pneg %p240
      $region38: #{temporal_conv_net.4} parent=5 // pred_check_branch
        %243 = sbr.rel (%p241) target = $region40
      $region39: #{temporal_conv_net.4} parent=5 // pred_region
        // Predicated region
        $region41: #{temporal_conv_net.4} parent=39 // pred_check
          %p244 = pneg %p47
        $region42: #{temporal_conv_net.4} parent=39 // pred_check_branch
          %246 = sbr.rel (%p244) target = $region44
        $region43: #{temporal_conv_net.4} parent=39 // pred_region
          %s247 = sand.u32 %s37, 1
          %s248 = sand.u32 %s37, 1
          %s249 = smul.addr %s248, 32
          %s250 = scalar_lea.vmem [#allocation5], %s249
          %s251 = smul.u32 2, %s20
          %s252 = smul.u32 2, %s21
          %s253 = smul.addr %s251, 8
          %s254 = sadd.s32 %s252, %s253
          %s255 = smul.addr %s254, 8
          %s256 = scalar_lea.vmem %s0, %s255
          // Predicated region
          $region45: #{temporal_conv_net.4} parent=43 // pred_check
            _
          $region46: #{temporal_conv_net.4} parent=43 // pred_check_branch
            %258 = sbr.rel (0) target = $region48
          $region47: #{temporal_conv_net.4} parent=43 // pred_region
            // Predicated region
            $region49: #{temporal_conv_net.4} parent=47 // pred_check
              _
            $region50: #{temporal_conv_net.4} parent=47 // pred_check_branch
              %260 = sbr.rel (0) target = $region52
            $region51: #{temporal_conv_net.4} parent=47 // pred_region
              // Predicated region
              $region64: #{temporal_conv_net.4} parent=51 // pred_check
                _
              $region65: #{temporal_conv_net.4} parent=51 // pred_check_branch
                %281 = sbr.rel (0) target = $region67
              $region66: #{temporal_conv_net.4} parent=51 // pred_region
                loop: start=0, step=1, limit=1
                $region68: #{temporal_conv_net.4} parent=66 // loop_pre_header
                  _
                $region69: #{temporal_conv_net.4} parent=66 // loop_header
                  %s283 = sphi 0, %s287
                  %p284 = scmp.ge.s32.totalorder %s283, 1
                  %s288 = sphi %s256, %s256
                  %s289 = sphi %s250, %s250
                $region70: #{temporal_conv_net.4} parent=66 // loop_header_branch
                  %286 = sbr.rel (%p284) target = $region74
                $region71: #{temporal_conv_net.4} parent=66 // loop_body
                  %v290 = vld [vmem:[%s288] sm:$0xff]
                  %291 = vst [vmem:[%s289] sm:$0xff] %v290
                  %v292 = vld [vmem:[%s288 + $0x8] sm:$0xff]
                  %293 = vst [vmem:[%s289 + $0x8] sm:$0xff] %v292
                  %v294 = vld [vmem:[%s288 + $0x40] sm:$0xff]
                  %295 = vst [vmem:[%s289 + $0x10] sm:$0xff] %v294
                  %v296 = vld [vmem:[%s288 + $0x48] sm:$0xff]
                  %297 = vst [vmem:[%s289 + $0x18] sm:$0xff] %v296
                $region72: #{temporal_conv_net.4} parent=66 // loop_footer
                  %s287 = sadd.s32 1, %s283
                $region73: #{temporal_conv_net.4} parent=66 // loop_footer_branch
                  %282 = sbr.rel target = $region69
                $region74: #{temporal_conv_net.4} parent=66 // loop_exit
                  _
              $region67: #{temporal_conv_net.4} parent=51 // pred_fallthru
                _
              // Predicated region
              $region75: #{temporal_conv_net.4} parent=51 // pred_check
                _
              $region76: #{temporal_conv_net.4} parent=51 // pred_check_branch
                %299 = sbr.rel target = $region78
              $region77: #{temporal_conv_net.4} parent=51 // pred_region
                _
              $region78: #{temporal_conv_net.4} parent=51 // pred_fallthru
                _
            $region52: #{temporal_conv_net.4} parent=47 // pred_fallthru
              _
            // Predicated region
            $region53: #{temporal_conv_net.4} parent=47 // pred_check
              _
            $region54: #{temporal_conv_net.4} parent=47 // pred_check_branch
              %262 = sbr.rel target = $region56
            $region55: #{temporal_conv_net.4} parent=47 // pred_region
              loop: start=0, step=1, limit=1
              $region57: #{temporal_conv_net.4} parent=55 // loop_pre_header
                _
              $region58: #{temporal_conv_net.4} parent=55 // loop_header
                %s265 = sphi 0, %s269
                %p266 = scmp.ge.s32.totalorder %s265, 1
                %s270 = sphi %s256, %s256
                %s271 = sphi %s250, %s250
              $region59: #{temporal_conv_net.4} parent=55 // loop_header_branch
                %268 = sbr.rel (%p266) target = $region63
              $region60: #{temporal_conv_net.4} parent=55 // loop_body
                %v272 = vld [vmem:[%s270] sm:$0xff]
                %273 = vst [vmem:[%s271] sm:$0xff] %v272
                %v274 = vld [vmem:[%s270 + $0x8] sm:$0xff]
                %275 = vst [vmem:[%s271 + $0x8] sm:$0xff] %v274
                %v276 = vld [vmem:[%s270 + $0x40] sm:$0xff]
                %277 = vst [vmem:[%s271 + $0x10] sm:$0xff] %v276
                %v278 = vld [vmem:[%s270 + $0x48] sm:$0xff]
                %279 = vst [vmem:[%s271 + $0x18] sm:$0xff] %v278
              $region61: #{temporal_conv_net.4} parent=55 // loop_footer
                %s269 = sadd.s32 1, %s265
              $region62: #{temporal_conv_net.4} parent=55 // loop_footer_branch
                %264 = sbr.rel target = $region58
              $region63: #{temporal_conv_net.4} parent=55 // loop_exit
                _
            $region56: #{temporal_conv_net.4} parent=47 // pred_fallthru
              _
          $region48: #{temporal_conv_net.4} parent=43 // pred_fallthru
            _
          %300 = vnop
        $region44: #{temporal_conv_net.4} parent=39 // pred_fallthru
          _
      $region40: #{temporal_conv_net.4} parent=5 // pred_fallthru
        _
      %p301 = scmp.le.s32.totalorder 1, %s13
      %p302 = scmp.lt.s32.totalorder %s13, 5
      %p303 = pnand %p301, %p302
      %p304 = pneg %p303
      // Predicated region
      $region79: #{temporal_conv_net.4} parent=5 // pred_check
        _
      $region80: #{temporal_conv_net.4} parent=5 // pred_check_branch
        %306 = sbr.rel (%p303) target = $region82
      $region81: #{temporal_conv_net.4} parent=5 // pred_region
        %s307 = ssub.s32 %s13, 1
        %s308 = sand.u32 %s40, 1
        %s309 = sand.u32 %s40, 1
        %s310 = smul.addr %s309, 32
        %s311 = scalar_lea.vmem [#allocation5], %s310
        // Predicated region
        $region83: #{temporal_conv_net.4} parent=81 // pred_check
          %p312 = pneg %p53
        $region84: #{temporal_conv_net.4} parent=81 // pred_check_branch
          %314 = sbr.rel (%p312) target = $region86
        $region85: #{temporal_conv_net.4} parent=81 // pred_region
          _
        $region86: #{temporal_conv_net.4} parent=81 // pred_fallthru
          _
        %s315 = sand.u32 %s40, 1
        %s316 = sand.u32 %s40, 1
        %s317 = smul.addr %s316, 32
        %s318 = scalar_lea.vmem [#allocation5], %s317
        %p319 = pneg %p53
        %p320 = pneg %p50
        %p321 = pneg %p74
        %p322 = pneg %p71
        %p323 = pneg %p95
        %p324 = pneg %p92
        %p325 = pneg %p116
        %p326 = pneg %p113
        %p327 = pneg %p137
        %p328 = pneg %p134
        %p329 = pneg %p158
        %p330 = pneg %p155
        %p331 = pneg %p179
        %p332 = pneg %p176
        %p333 = pneg %p207
        %p334 = pneg %p204
        %s335 = sand.u32 %s194, 1
        %s336 = sand.u32 %s194, 1
        %s337 = smul.addr %s336, 32
        %s338 = scalar_lea.vmem [#allocation6], %s337
        %s339 = smul.u32 2, %s22
        %s340 = smul.u32 2, %s23
        %s341 = smul.u32 2, %s22
        %s342 = smul.u32 2, %s23
        %v344 = vld [vmem:[%s311] sm:$0xff]
        %v345 = vld [vmem:[%s311 + $0x8] sm:$0xff]
        %v346 = vld [vmem:[%s311 + $0x10] sm:$0xff]
        %v347 = vld [vmem:[%s311 + $0x18] sm:$0xff]
        %p348 = scmp.eq.s32.totalorder %s23, 0
        // Predicated region
        $region87: #{temporal_conv_net.4} parent=81 // pred_check
          %p349 = pneg %p348
        $region88: #{temporal_conv_net.4} parent=81 // pred_check_branch
          %351 = sbr.rel (%p349) target = $region90
        $region89: #{temporal_conv_net.4} parent=81 // pred_region
          %vm352 = vcmask 25600
          %353 = vst.msk [vmem:[#allocation2] sm:$0x3] %vm352, 0
          %354 = vst.msk [vmem:[#allocation2 + $0xc] sm:$0x3] %vm352, 0
        $region90: #{temporal_conv_net.4} parent=81 // pred_fallthru
          _
        %p355 = scmp.gt.s32.totalorder %s23, 0
        // Predicated region
        $region91: #{temporal_conv_net.4} parent=81 // pred_check
          %p356 = pneg %p355
        $region92: #{temporal_conv_net.4} parent=81 // pred_check_branch
          %358 = sbr.rel (%p356) target = $region94
        $region93: #{temporal_conv_net.4} parent=81 // pred_region
          %v359 = vld [vmem:[#allocation4] sm:$0x3]
          %v360 = vld [vmem:[#allocation4 + $0x2] sm:$0x3]
          %vm361 = vcmask 25600
          %362 = vst.msk [vmem:[#allocation2] sm:$0x3] %vm361, %v359
          %363 = vst.msk [vmem:[#allocation2 + $0xc] sm:$0x3] %vm361, %v360
        $region94: #{temporal_conv_net.4} parent=81 // pred_fallthru
          _
        %v364 = vpack.c.bf16 %v345, %v344
        %v365 = vpack.c.bf16 %v347, %v346
        %v368 = vunpack.c.l.b16 %v364
        %v369 = vunpack.c.h.b16 %v364
        %v370 = vunpack.c.l.b16 %v365
        %v371 = vunpack.c.h.b16 %v365
        %v372 = vpack.c.b16 %v368, %v368
        %v373 = vpack.c.b16 %v369, %v369
        %v374 = vpack.c.b16 %v370, %v370
        %v375 = vpack.c.b16 %v371, %v371
        %vm376 = vcmask 1041408
        %vm377 = vcmask 1045508
        %vm378 = vmor %vm376, %vm377
        %v379 = vrot.slane %v372, 6
        %v380 = vrot.slane %v379, 4
        %v381 = vrot.slane %v373, 6
        %v382 = vsel %vm378, %v380, %v381
        %v383 = vrot.slane %v381, 4
        %v384 = vrot.slane %v374, 6
        %v385 = vrot.slane %v384, 4
        %v386 = vrot.slane %v375, 6
        %v387 = vsel %vm378, %v385, %v386
        %v388 = vrot.slane %v386, 4
        %vm395 = vcmask 27650
        %396 = vst.msk [vmem:[#allocation2] sm:$0xc] %vm395, %v379
        %vm397 = vcmask 27648
        %398 = vst.msk [vmem:[#allocation2 + $0x4] sm:$0xf] %vm397, %v382
        %vm399 = vcmask 25600
        %400 = vst.msk [vmem:[#allocation2 + $0x8] sm:$0x3] %vm399, %v383
        %401 = vst.msk [vmem:[#allocation2 + $0xc] sm:$0xc] %vm395, %v384
        %402 = vst.msk [vmem:[#allocation2 + $0x10] sm:$0xf] %vm397, %v387
        %403 = vst.msk [vmem:[#allocation2 + $0x14] sm:$0x3] %vm399, %v388
        %v404 = vld [vmem:[#allocation2 + $0x8] sm:$0x3]
        %v405 = vld [vmem:[#allocation2 + $0x14] sm:$0x3]
        %406 = vst.msk [vmem:[#allocation4] sm:$0x3] %vm399, %v404
        %407 = vst.msk [vmem:[#allocation4 + $0x2] sm:$0x3] %vm399, %v405
        %v408 = vld [vmem:[#allocation2] sm:$0xf]
        %v409 = vld [vmem:[#allocation2 + $0x4] sm:$0xf]
        %v410 = vld [vmem:[#allocation2 + $0x8] sm:$0x1]
        %v411 = vld [vmem:[#allocation2 + $0xc] sm:$0xf]
        %v412 = vld [vmem:[#allocation2 + $0x10] sm:$0xf]
        %v413 = vld [vmem:[#allocation2 + $0x14] sm:$0x1]
        %v414 = vld [vmem:[%s1] sm:$0x3]
        %v415 = vld [vmem:[#allocation2] sm:$0xf]
        %v416 = vld [vmem:[#allocation2 + $0x4] sm:$0xf]
        %v417 = vld [vmem:[#allocation2 + $0x8] sm:$0x3]
        %v418 = vld [vmem:[#allocation2 + $0xc] sm:$0xf]
        %v419 = vld [vmem:[#allocation2 + $0x10] sm:$0xf]
        %v420 = vld [vmem:[#allocation2 + $0x14] sm:$0x3]
        %s421 = scalar_lea.vmem %s1, 2
        %v422 = vld [vmem:[%s421] sm:$0x3]
        %v430 = vunpack.c.l.s4 1966171168
        %v431 = vunpack.c.0.s8 %v430
        %v432 = vlaneseq
        %v433 = vshrl.u32 %v432, 7
        %v434 = vsub.s32 %v431, %v433
        %v435 = vrot.slane %v415, %v434
        %v436 = vcombine.high %v435, %v435
        %v438 = vunpack.c.l.s4 1966171168
        %v439 = vunpack.c.0.s8 %v438
        %v440 = vlaneseq
        %v441 = vshrl.u32 %v440, 7
        %v442 = vsub.s32 %v439, %v441
        %v443 = vrot.slane %v435, %v442
        %v445 = vunpack.c.l.s4 1966171168
        %v446 = vunpack.c.0.s8 %v445
        %v447 = vlaneseq
        %v448 = vshrl.u32 %v447, 7
        %v449 = vsub.s32 %v446, %v448
        %v450 = vrot.slane %v436, %v449
        %v451 = vcombine.high %v443, %v443
        %v452 = vcombine.high %v450, %v450
        %v454 = vunpack.c.l.s4 1966171168
        %v455 = vunpack.c.0.s8 %v454
        %v456 = vlaneseq
        %v457 = vshrl.u32 %v456, 7
        %v458 = vsub.s32 %v455, %v457
        %v459 = vrot.slane %v416, %v458
        %v460 = vcombine.high %v459, %v459
        %v462 = vunpack.c.l.s4 1966171168
        %v463 = vunpack.c.0.s8 %v462
        %v464 = vlaneseq
        %v465 = vshrl.u32 %v464, 7
        %v466 = vsub.s32 %v463, %v465
        %v467 = vrot.slane %v459, %v466
        %v469 = vunpack.c.l.s4 1966171168
        %v470 = vunpack.c.0.s8 %v469
        %v471 = vlaneseq
        %v472 = vshrl.u32 %v471, 7
        %v473 = vsub.s32 %v470, %v472
        %v474 = vrot.slane %v460, %v473
        %v475 = vcombine.high %v467, %v467
        %v476 = vcombine.high %v474, %v474
        %v478 = vunpack.c.l.s4 1966171168
        %v479 = vunpack.c.0.s8 %v478
        %v480 = vlaneseq
        %v481 = vshrl.u32 %v480, 7
        %v482 = vsub.s32 %v479, %v481
        %v483 = vrot.slane %v417, %v482
        %v484 = vcombine.high %v483, %v483
        %v486 = vunpack.c.l.s4 1966171168
        %v487 = vunpack.c.0.s8 %v486
        %v488 = vlaneseq
        %v489 = vshrl.u32 %v488, 7
        %v490 = vsub.s32 %v487, %v489
        %v491 = vrot.slane %v483, %v490
        %v493 = vunpack.c.l.s4 1966171168
        %v494 = vunpack.c.0.s8 %v493
        %v495 = vlaneseq
        %v496 = vshrl.u32 %v495, 7
        %v497 = vsub.s32 %v494, %v496
        %v498 = vrot.slane %v484, %v497
        %v500 = vunpack.c.l.s4 1966171168
        %v501 = vunpack.c.0.s8 %v500
        %v502 = vlaneseq
        %v503 = vshrl.u32 %v502, 7
        %v504 = vsub.s32 %v501, %v503
        %v505 = vrot.slane %v418, %v504
        %v506 = vcombine.high %v505, %v505
        %v508 = vunpack.c.l.s4 1966171168
        %v509 = vunpack.c.0.s8 %v508
        %v510 = vlaneseq
        %v511 = vshrl.u32 %v510, 7
        %v512 = vsub.s32 %v509, %v511
        %v513 = vrot.slane %v505, %v512
        %v515 = vunpack.c.l.s4 1966171168
        %v516 = vunpack.c.0.s8 %v515
        %v517 = vlaneseq
        %v518 = vshrl.u32 %v517, 7
        %v519 = vsub.s32 %v516, %v518
        %v520 = vrot.slane %v506, %v519
        %v521 = vcombine.high %v513, %v513
        %v522 = vcombine.high %v520, %v520
        %v524 = vunpack.c.l.s4 1966171168
        %v525 = vunpack.c.0.s8 %v524
        %v526 = vlaneseq
        %v527 = vshrl.u32 %v526, 7
        %v528 = vsub.s32 %v525, %v527
        %v529 = vrot.slane %v419, %v528
        %v530 = vcombine.high %v529, %v529
        %v532 = vunpack.c.l.s4 1966171168
        %v533 = vunpack.c.0.s8 %v532
        %v534 = vlaneseq
        %v535 = vshrl.u32 %v534, 7
        %v536 = vsub.s32 %v533, %v535
        %v537 = vrot.slane %v529, %v536
        %v539 = vunpack.c.l.s4 1966171168
        %v540 = vunpack.c.0.s8 %v539
        %v541 = vlaneseq
        %v542 = vshrl.u32 %v541, 7
        %v543 = vsub.s32 %v540, %v542
        %v544 = vrot.slane %v530, %v543
        %v545 = vcombine.high %v537, %v537
        %v546 = vcombine.high %v544, %v544
        %v548 = vunpack.c.l.s4 1966171168
        %v549 = vunpack.c.0.s8 %v548
        %v550 = vlaneseq
        %v551 = vshrl.u32 %v550, 7
        %v552 = vsub.s32 %v549, %v551
        %v553 = vrot.slane %v420, %v552
        %v554 = vcombine.high %v553, %v553
        %v556 = vunpack.c.l.s4 1966171168
        %v557 = vunpack.c.0.s8 %v556
        %v558 = vlaneseq
        %v559 = vshrl.u32 %v558, 7
        %v560 = vsub.s32 %v557, %v559
        %v561 = vrot.slane %v553, %v560
        %v563 = vunpack.c.l.s4 1966171168
        %v564 = vunpack.c.0.s8 %v563
        %v565 = vlaneseq
        %v566 = vshrl.u32 %v565, 7
        %v567 = vsub.s32 %v564, %v566
        %v568 = vrot.slane %v554, %v567
        %vm569 = vsmask.f32 256
        %vm570 = vsmask.f32 1284
        %vm571 = vmor %vm569, %vm570
        %vm572 = vsmask.f32 2312
        %vm573 = vmor %vm571, %vm572
        %vm574 = vsmask.f32 3340
        %vm575 = vmor %vm573, %vm574
        %vm576 = vsmask.f32 4368
        %vm577 = vmor %vm575, %vm576
        %vm578 = vsmask.f32 5396
        %vm579 = vmor %vm577, %vm578
        %vm580 = vsmask.f32 6424
        %vm581 = vmor %vm579, %vm580
        %vm582 = vsmask.f32 7452
        %vm583 = vmor %vm581, %vm582
        %v585 = vshrl.u32 %v443, 16
        %v587 = vrot.slane %v585, 7
        %v588 = vrot.slane %v587, 1
        %v590 = vshll.u32 %v450, 16
        %v592 = vsel %vm583, %v588, %v590
        %v593 = vshrl.u32 %v450, 16
        %v595 = vrot.slane %v593, 7
        %v596 = vrot.slane %v595, 1
        %v598 = vshll.u32 %v451, 16
        %v600 = vsel %vm583, %v596, %v598
        %v601 = vshrl.u32 %v451, 16
        %v603 = vrot.slane %v601, 7
        %v604 = vrot.slane %v603, 1
        %v606 = vshll.u32 %v452, 16
        %v608 = vsel %vm583, %v604, %v606
        %v609 = vshrl.u32 %v452, 16
        %v611 = vrot.slane %v609, 7
        %v612 = vrot.slane %v611, 1
        %v614 = vshll.u32 %v467, 16
        %v616 = vsel %vm583, %v612, %v614
        %v617 = vshrl.u32 %v467, 16
        %v619 = vrot.slane %v617, 7
        %v620 = vrot.slane %v619, 1
        %v622 = vshll.u32 %v474, 16
        %v624 = vsel %vm583, %v620, %v622
        %v625 = vshrl.u32 %v474, 16
        %v627 = vrot.slane %v625, 7
        %v628 = vrot.slane %v627, 1
        %v630 = vshll.u32 %v475, 16
        %v632 = vsel %vm583, %v628, %v630
        %v633 = vshrl.u32 %v475, 16
        %v635 = vrot.slane %v633, 7
        %v636 = vrot.slane %v635, 1
        %v638 = vshll.u32 %v476, 16
        %v640 = vsel %vm583, %v636, %v638
        %v641 = vshrl.u32 %v476, 16
        %v643 = vrot.slane %v641, 7
        %v644 = vrot.slane %v643, 1
        %v646 = vshll.u32 %v491, 16
        %v648 = vsel %vm583, %v644, %v646
        %v649 = vshrl.u32 %v491, 16
        %v651 = vrot.slane %v649, 7
        %v652 = vrot.slane %v651, 1
        %v654 = vshll.u32 %v498, 16
        %v656 = vsel %vm583, %v652, %v654
        %v658 = vshrl.u32 %v513, 16
        %v660 = vrot.slane %v658, 7
        %v661 = vrot.slane %v660, 1
        %v663 = vshll.u32 %v520, 16
        %v665 = vsel %vm583, %v661, %v663
        %v666 = vshrl.u32 %v520, 16
        %v668 = vrot.slane %v666, 7
        %v669 = vrot.slane %v668, 1
        %v671 = vshll.u32 %v521, 16
        %v673 = vsel %vm583, %v669, %v671
        %v674 = vshrl.u32 %v521, 16
        %v676 = vrot.slane %v674, 7
        %v677 = vrot.slane %v676, 1
        %v679 = vshll.u32 %v522, 16
        %v681 = vsel %vm583, %v677, %v679
        %v682 = vshrl.u32 %v522, 16
        %v684 = vrot.slane %v682, 7
        %v685 = vrot.slane %v684, 1
        %v687 = vshll.u32 %v537, 16
        %v689 = vsel %vm583, %v685, %v687
        %v690 = vshrl.u32 %v537, 16
        %v692 = vrot.slane %v690, 7
        %v693 = vrot.slane %v692, 1
        %v695 = vshll.u32 %v544, 16
        %v697 = vsel %vm583, %v693, %v695
        %v698 = vshrl.u32 %v544, 16
        %v700 = vrot.slane %v698, 7
        %v701 = vrot.slane %v700, 1
        %v703 = vshll.u32 %v545, 16
        %v705 = vsel %vm583, %v701, %v703
        %v706 = vshrl.u32 %v545, 16
        %v708 = vrot.slane %v706, 7
        %v709 = vrot.slane %v708, 1
        %v711 = vshll.u32 %v546, 16
        %v713 = vsel %vm583, %v709, %v711
        %v714 = vshrl.u32 %v546, 16
        %v716 = vrot.slane %v714, 7
        %v717 = vrot.slane %v716, 1
        %v719 = vshll.u32 %v561, 16
        %v721 = vsel %vm583, %v717, %v719
        %v722 = vshrl.u32 %v561, 16
        %v724 = vrot.slane %v722, 7
        %v725 = vrot.slane %v724, 1
        %v727 = vshll.u32 %v568, 16
        %v729 = vsel %vm583, %v725, %v727
        %v730 = vcombine.low %v592, %v600
        %v731 = vcombine.low %v608, %v616
        %v732 = vcombine.low %v624, %v632
        %v733 = vcombine.low %v640, %v648
        %v735 = vunpack.c.l.s4 1966171168
        %v736 = vunpack.c.0.s8 %v735
        %v737 = vlaneseq
        %v738 = vshrl.u32 %v737, 7
        %v739 = vsub.s32 %v736, %v738
        %v740 = vrot.slane %v730, %v739
        %v742 = vunpack.c.l.s4 1966171168
        %v743 = vunpack.c.0.s8 %v742
        %v744 = vlaneseq
        %v745 = vshrl.u32 %v744, 7
        %v746 = vsub.s32 %v743, %v745
        %v747 = vrot.slane %v731, %v746
        %v749 = vunpack.c.l.s4 1966171168
        %v750 = vunpack.c.0.s8 %v749
        %v751 = vlaneseq
        %v752 = vshrl.u32 %v751, 7
        %v753 = vsub.s32 %v750, %v752
        %v754 = vrot.slane %v732, %v753
        %v756 = vunpack.c.l.s4 1966171168
        %v757 = vunpack.c.0.s8 %v756
        %v758 = vlaneseq
        %v759 = vshrl.u32 %v758, 7
        %v760 = vsub.s32 %v757, %v759
        %v761 = vrot.slane %v733, %v760
        %v762 = vcombine.low %v740, %v747
        %v763 = vcombine.low %v754, %v761
        %v765 = vunpack.c.l.s4 1966171168
        %v766 = vunpack.c.0.s8 %v765
        %v767 = vlaneseq
        %v768 = vshrl.u32 %v767, 7
        %v769 = vsub.s32 %v766, %v768
        %v770 = vrot.slane %v762, %v769
        %v772 = vunpack.c.l.s4 1966171168
        %v773 = vunpack.c.0.s8 %v772
        %v774 = vlaneseq
        %v775 = vshrl.u32 %v774, 7
        %v776 = vsub.s32 %v773, %v775
        %v777 = vrot.slane %v763, %v776
        %v778 = vcombine.low %v770, %v777
        %v779 = vcombine.low %v656, %v665
        %v780 = vcombine.low %v673, %v681
        %v781 = vcombine.low %v689, %v697
        %v782 = vcombine.low %v705, %v713
        %v784 = vunpack.c.l.s4 1966171168
        %v785 = vunpack.c.0.s8 %v784
        %v786 = vlaneseq
        %v787 = vshrl.u32 %v786, 7
        %v788 = vsub.s32 %v785, %v787
        %v789 = vrot.slane %v779, %v788
        %v791 = vunpack.c.l.s4 1966171168
        %v792 = vunpack.c.0.s8 %v791
        %v793 = vlaneseq
        %v794 = vshrl.u32 %v793, 7
        %v795 = vsub.s32 %v792, %v794
        %v796 = vrot.slane %v780, %v795
        %v798 = vunpack.c.l.s4 1966171168
        %v799 = vunpack.c.0.s8 %v798
        %v800 = vlaneseq
        %v801 = vshrl.u32 %v800, 7
        %v802 = vsub.s32 %v799, %v801
        %v803 = vrot.slane %v781, %v802
        %v805 = vunpack.c.l.s4 1966171168
        %v806 = vunpack.c.0.s8 %v805
        %v807 = vlaneseq
        %v808 = vshrl.u32 %v807, 7
        %v809 = vsub.s32 %v806, %v808
        %v810 = vrot.slane %v782, %v809
        %v811 = vcombine.low %v789, %v796
        %v812 = vcombine.low %v803, %v810
        %v814 = vunpack.c.l.s4 1966171168
        %v815 = vunpack.c.0.s8 %v814
        %v816 = vlaneseq
        %v817 = vshrl.u32 %v816, 7
        %v818 = vsub.s32 %v815, %v817
        %v819 = vrot.slane %v811, %v818
        %v821 = vunpack.c.l.s4 1966171168
        %v822 = vunpack.c.0.s8 %v821
        %v823 = vlaneseq
        %v824 = vshrl.u32 %v823, 7
        %v825 = vsub.s32 %v822, %v824
        %v826 = vrot.slane %v812, %v825
        %v827 = vcombine.low %v819, %v826
        %v828 = vcombine.low %v721, %v729
        %v830 = vunpack.c.l.s4 1966171168
        %v831 = vunpack.c.0.s8 %v830
        %v832 = vlaneseq
        %v833 = vshrl.u32 %v832, 7
        %v834 = vsub.s32 %v831, %v833
        %v835 = vrot.slane %v828, %v834
        %v837 = vunpack.c.l.s4 1966171168
        %v838 = vunpack.c.0.s8 %v837
        %v839 = vlaneseq
        %v840 = vshrl.u32 %v839, 7
        %v841 = vsub.s32 %v838, %v840
        %v842 = vrot.slane %v835, %v841
        %vm843 = vcmask 31744
        %v845 = vsel %vm843, %v778, 0
        %v848 = vsel %vm843, %v827, 0
        %v851 = vsel %vm843, %v842, 0
        %vm853 = vcmask 1041408
        %v855 = vsel %vm853, %v422, 0
        %857 = vmatprep.subr.bf16.mxu0 0
        %858 = vmatpush1.bf16.msra.mxu0 %v855
        %859 = vmatprep.subr.bf16.mxu0 0
        %860 = vmatpush1.bf16.msra.mxu0 0
        %861 = vmatprep.subr.bf16.mxu0 0
        %862 = vmatpush1.bf16.msra.mxu0 0
        %863 = vmatprep.subr.bf16.mxu0 0
        %864 = vmatpush1.bf16.msra.mxu0 0
        %865 = vmatprep.subr.bf16.mxu0 0
        %866 = vmatpush1.bf16.msra.mxu0 0
        %867 = vmatprep.subr.bf16.mxu0 0
        %868 = vmatpush1.bf16.msra.mxu0 0
        %869 = vmatprep.subr.bf16.mxu0 0
        %870 = vmatpush1.bf16.msra.mxu0 0
        %871 = vmatprep.subr.bf16.mxu0 0
        %872 = vmatpush1.bf16.msra.mxu0 0
        %873 = vmatprep.subr.bf16.mxu0 0
        %874 = vmatpush1.bf16.msra.mxu0 0
        %875 = vmatprep.subr.bf16.mxu0 0
        %876 = vmatpush1.bf16.msra.mxu0 0
        %877 = vmatprep.subr.bf16.mxu0 0
        %878 = vmatpush1.bf16.msra.mxu0 0
        %879 = vmatprep.subr.bf16.mxu0 0
        %880 = vmatpush1.bf16.msra.mxu0 0
        %881 = vmatprep.subr.bf16.mxu0 0
        %882 = vmatpush1.bf16.msra.mxu0 0
        %883 = vmatprep.subr.bf16.mxu0 0
        %884 = vmatpush1.bf16.msra.mxu0 0
        %885 = vmatprep.subr.bf16.mxu0 0
        %886 = vmatpush1.bf16.msra.mxu0 0
        %887 = vmatprep.subr.bf16.mxu0 0
        %888 = vmatpush1.bf16.msra.mxu0 0
        %889 = vmatprep.mubr.bf16.mxu0 0
        %890 = vmatmul.mubr.bf16.gmra.mrb[0].mxu0 %v845
        %v891 = vpop.f32.mrb[0].mxu0
        %v892 = vadd.f32 0.0, %v891
        %v893 = vpop.f32.mrb[0].mxu0
        %v894 = vpop.f32.mrb[0].mxu0
        %v895 = vadd.f32 0.0, %v894
        %v896 = vpop.f32.mrb[0].mxu0
        %897 = vmatprep.mubr.bf16.mxu0 0
        %898 = vmatmul.mubr.bf16.gmra.mrb[0].mxu0 %v848
        %v899 = vpop.f32.mrb[0].mxu0
        %v900 = vadd.f32 0.0, %v899
        %v901 = vpop.f32.mrb[0].mxu0
        %v902 = vpop.f32.mrb[0].mxu0
        %v903 = vadd.f32 0.0, %v902
        %v904 = vpop.f32.mrb[0].mxu0
        %905 = vmatprep.mubr.bf16.mxu0 0
        %906 = vmatmul.mubr.bf16.gmra.mrb[0].mxu0 %v851
        %v907 = vpop.f32.mrb[0].mxu0
        %v908 = vadd.f32 0.0, %v907
        %v909 = vpop.f32.mrb[0].mxu0
        %v910 = vpop.f32.mrb[0].mxu0
        %v911 = vpop.f32.mrb[0].mxu0
        %912 = vdwg.mxu0
        %v920 = vunpack.c.l.s4 1966171168
        %v921 = vunpack.c.0.s8 %v920
        %v922 = vlaneseq
        %v923 = vshrl.u32 %v922, 7
        %v924 = vsub.s32 %v921, %v923
        %v925 = vrot.slane %v408, %v924
        %v926 = vcombine.high %v925, %v925
        %v928 = vunpack.c.l.s4 1966171168
        %v929 = vunpack.c.0.s8 %v928
        %v930 = vlaneseq
        %v931 = vshrl.u32 %v930, 7
        %v932 = vsub.s32 %v929, %v931
        %v933 = vrot.slane %v925, %v932
        %v935 = vunpack.c.l.s4 1966171168
        %v936 = vunpack.c.0.s8 %v935
        %v937 = vlaneseq
        %v938 = vshrl.u32 %v937, 7
        %v939 = vsub.s32 %v936, %v938
        %v940 = vrot.slane %v926, %v939
        %v941 = vcombine.high %v933, %v933
        %v942 = vcombine.high %v940, %v940
        %v944 = vunpack.c.l.s4 1966171168
        %v945 = vunpack.c.0.s8 %v944
        %v946 = vlaneseq
        %v947 = vshrl.u32 %v946, 7
        %v948 = vsub.s32 %v945, %v947
        %v949 = vrot.slane %v409, %v948
        %v950 = vcombine.high %v949, %v949
        %v952 = vunpack.c.l.s4 1966171168
        %v953 = vunpack.c.0.s8 %v952
        %v954 = vlaneseq
        %v955 = vshrl.u32 %v954, 7
        %v956 = vsub.s32 %v953, %v955
        %v957 = vrot.slane %v949, %v956
        %v959 = vunpack.c.l.s4 1966171168
        %v960 = vunpack.c.0.s8 %v959
        %v961 = vlaneseq
        %v962 = vshrl.u32 %v961, 7
        %v963 = vsub.s32 %v960, %v962
        %v964 = vrot.slane %v950, %v963
        %v965 = vcombine.high %v957, %v957
        %v966 = vcombine.high %v964, %v964
        %v968 = vunpack.c.l.s4 1966171168
        %v969 = vunpack.c.0.s8 %v968
        %v970 = vlaneseq
        %v971 = vshrl.u32 %v970, 7
        %v972 = vsub.s32 %v969, %v971
        %v973 = vrot.slane %v410, %v972
        %v975 = vunpack.c.l.s4 1966171168
        %v976 = vunpack.c.0.s8 %v975
        %v977 = vlaneseq
        %v978 = vshrl.u32 %v977, 7
        %v979 = vsub.s32 %v976, %v978
        %v980 = vrot.slane %v973, %v979
        %v982 = vunpack.c.l.s4 1966171168
        %v983 = vunpack.c.0.s8 %v982
        %v984 = vlaneseq
        %v985 = vshrl.u32 %v984, 7
        %v986 = vsub.s32 %v983, %v985
        %v987 = vrot.slane %v411, %v986
        %v988 = vcombine.high %v987, %v987
        %v990 = vunpack.c.l.s4 1966171168
        %v991 = vunpack.c.0.s8 %v990
        %v992 = vlaneseq
        %v993 = vshrl.u32 %v992, 7
        %v994 = vsub.s32 %v991, %v993
        %v995 = vrot.slane %v987, %v994
        %v997 = vunpack.c.l.s4 1966171168
        %v998 = vunpack.c.0.s8 %v997
        %v999 = vlaneseq
        %v1000 = vshrl.u32 %v999, 7
        %v1001 = vsub.s32 %v998, %v1000
        %v1002 = vrot.slane %v988, %v1001
        %v1003 = vcombine.high %v995, %v995
        %v1004 = vcombine.high %v1002, %v1002
        %v1006 = vunpack.c.l.s4 1966171168
        %v1007 = vunpack.c.0.s8 %v1006
        %v1008 = vlaneseq
        %v1009 = vshrl.u32 %v1008, 7
        %v1010 = vsub.s32 %v1007, %v1009
        %v1011 = vrot.slane %v412, %v1010
        %v1012 = vcombine.high %v1011, %v1011
        %v1014 = vunpack.c.l.s4 1966171168
        %v1015 = vunpack.c.0.s8 %v1014
        %v1016 = vlaneseq
        %v1017 = vshrl.u32 %v1016, 7
        %v1018 = vsub.s32 %v1015, %v1017
        %v1019 = vrot.slane %v1011, %v1018
        %v1021 = vunpack.c.l.s4 1966171168
        %v1022 = vunpack.c.0.s8 %v1021
        %v1023 = vlaneseq
        %v1024 = vshrl.u32 %v1023, 7
        %v1025 = vsub.s32 %v1022, %v1024
        %v1026 = vrot.slane %v1012, %v1025
        %v1027 = vcombine.high %v1019, %v1019
        %v1028 = vcombine.high %v1026, %v1026
        %v1030 = vunpack.c.l.s4 1966171168
        %v1031 = vunpack.c.0.s8 %v1030
        %v1032 = vlaneseq
        %v1033 = vshrl.u32 %v1032, 7
        %v1034 = vsub.s32 %v1031, %v1033
        %v1035 = vrot.slane %v413, %v1034
        %v1037 = vunpack.c.l.s4 1966171168
        %v1038 = vunpack.c.0.s8 %v1037
        %v1039 = vlaneseq
        %v1040 = vshrl.u32 %v1039, 7
        %v1041 = vsub.s32 %v1038, %v1040
        %v1042 = vrot.slane %v1035, %v1041
        %v1043 = vcombine.low %v933, %v940
        %v1044 = vcombine.low %v941, %v942
        %v1045 = vcombine.low %v957, %v964
        %v1046 = vcombine.low %v965, %v966
        %v1048 = vunpack.c.l.s4 1966171168
        %v1049 = vunpack.c.0.s8 %v1048
        %v1050 = vlaneseq
        %v1051 = vshrl.u32 %v1050, 7
        %v1052 = vsub.s32 %v1049, %v1051
        %v1053 = vrot.slane %v1043, %v1052
        %v1055 = vunpack.c.l.s4 1966171168
        %v1056 = vunpack.c.0.s8 %v1055
        %v1057 = vlaneseq
        %v1058 = vshrl.u32 %v1057, 7
        %v1059 = vsub.s32 %v1056, %v1058
        %v1060 = vrot.slane %v1044, %v1059
        %v1062 = vunpack.c.l.s4 1966171168
        %v1063 = vunpack.c.0.s8 %v1062
        %v1064 = vlaneseq
        %v1065 = vshrl.u32 %v1064, 7
        %v1066 = vsub.s32 %v1063, %v1065
        %v1067 = vrot.slane %v1045, %v1066
        %v1069 = vunpack.c.l.s4 1966171168
        %v1070 = vunpack.c.0.s8 %v1069
        %v1071 = vlaneseq
        %v1072 = vshrl.u32 %v1071, 7
        %v1073 = vsub.s32 %v1070, %v1072
        %v1074 = vrot.slane %v1046, %v1073
        %v1075 = vcombine.low %v1053, %v1060
        %v1076 = vcombine.low %v1067, %v1074
        %v1078 = vunpack.c.l.s4 1966171168
        %v1079 = vunpack.c.0.s8 %v1078
        %v1080 = vlaneseq
        %v1081 = vshrl.u32 %v1080, 7
        %v1082 = vsub.s32 %v1079, %v1081
        %v1083 = vrot.slane %v1075, %v1082
        %v1085 = vunpack.c.l.s4 1966171168
        %v1086 = vunpack.c.0.s8 %v1085
        %v1087 = vlaneseq
        %v1088 = vshrl.u32 %v1087, 7
        %v1089 = vsub.s32 %v1086, %v1088
        %v1090 = vrot.slane %v1076, %v1089
        %v1091 = vcombine.low %v1083, %v1090
        %v1092 = vcombine.low %v980, %v995
        %v1093 = vcombine.low %v1002, %v1003
        %v1094 = vcombine.low %v1004, %v1019
        %v1095 = vcombine.low %v1026, %v1027
        %v1097 = vunpack.c.l.s4 1966171168
        %v1098 = vunpack.c.0.s8 %v1097
        %v1099 = vlaneseq
        %v1100 = vshrl.u32 %v1099, 7
        %v1101 = vsub.s32 %v1098, %v1100
        %v1102 = vrot.slane %v1092, %v1101
        %v1104 = vunpack.c.l.s4 1966171168
        %v1105 = vunpack.c.0.s8 %v1104
        %v1106 = vlaneseq
        %v1107 = vshrl.u32 %v1106, 7
        %v1108 = vsub.s32 %v1105, %v1107
        %v1109 = vrot.slane %v1093, %v1108
        %v1111 = vunpack.c.l.s4 1966171168
        %v1112 = vunpack.c.0.s8 %v1111
        %v1113 = vlaneseq
        %v1114 = vshrl.u32 %v1113, 7
        %v1115 = vsub.s32 %v1112, %v1114
        %v1116 = vrot.slane %v1094, %v1115
        %v1118 = vunpack.c.l.s4 1966171168
        %v1119 = vunpack.c.0.s8 %v1118
        %v1120 = vlaneseq
        %v1121 = vshrl.u32 %v1120, 7
        %v1122 = vsub.s32 %v1119, %v1121
        %v1123 = vrot.slane %v1095, %v1122
        %v1124 = vcombine.low %v1102, %v1109
        %v1125 = vcombine.low %v1116, %v1123
        %v1127 = vunpack.c.l.s4 1966171168
        %v1128 = vunpack.c.0.s8 %v1127
        %v1129 = vlaneseq
        %v1130 = vshrl.u32 %v1129, 7
        %v1131 = vsub.s32 %v1128, %v1130
        %v1132 = vrot.slane %v1124, %v1131
        %v1134 = vunpack.c.l.s4 1966171168
        %v1135 = vunpack.c.0.s8 %v1134
        %v1136 = vlaneseq
        %v1137 = vshrl.u32 %v1136, 7
        %v1138 = vsub.s32 %v1135, %v1137
        %v1139 = vrot.slane %v1125, %v1138
        %v1140 = vcombine.low %v1132, %v1139
        %v1141 = vcombine.low %v1028, %v1042
        %v1143 = vunpack.c.l.s4 1966171168
        %v1144 = vunpack.c.0.s8 %v1143
        %v1145 = vlaneseq
        %v1146 = vshrl.u32 %v1145, 7
        %v1147 = vsub.s32 %v1144, %v1146
        %v1148 = vrot.slane %v1141, %v1147
        %v1150 = vunpack.c.l.s4 1966171168
        %v1151 = vunpack.c.0.s8 %v1150
        %v1152 = vlaneseq
        %v1153 = vshrl.u32 %v1152, 7
        %v1154 = vsub.s32 %v1151, %v1153
        %v1155 = vrot.slane %v1148, %v1154
        %v1157 = vsel %vm843, %v1091, 0
        %v1160 = vsel %vm843, %v1140, 0
        %v1163 = vsel %vm843, %v1155, 0
        %v1166 = vsel %vm853, %v414, 0
        %1168 = vmatprep.subr.bf16.mxu0 0
        %1169 = vmatpush1.bf16.msra.mxu0 %v1166
        %1170 = vmatprep.subr.bf16.mxu0 0
        %1171 = vmatpush1.bf16.msra.mxu0 0
        %1172 = vmatprep.subr.bf16.mxu0 0
        %1173 = vmatpush1.bf16.msra.mxu0 0
        %1174 = vmatprep.subr.bf16.mxu0 0
        %1175 = vmatpush1.bf16.msra.mxu0 0
        %1176 = vmatprep.subr.bf16.mxu0 0
        %1177 = vmatpush1.bf16.msra.mxu0 0
        %1178 = vmatprep.subr.bf16.mxu0 0
        %1179 = vmatpush1.bf16.msra.mxu0 0
        %1180 = vmatprep.subr.bf16.mxu0 0
        %1181 = vmatpush1.bf16.msra.mxu0 0
        %1182 = vmatprep.subr.bf16.mxu0 0
        %1183 = vmatpush1.bf16.msra.mxu0 0
        %1184 = vmatprep.subr.bf16.mxu0 0
        %1185 = vmatpush1.bf16.msra.mxu0 0
        %1186 = vmatprep.subr.bf16.mxu0 0
        %1187 = vmatpush1.bf16.msra.mxu0 0
        %1188 = vmatprep.subr.bf16.mxu0 0
        %1189 = vmatpush1.bf16.msra.mxu0 0
        %1190 = vmatprep.subr.bf16.mxu0 0
        %1191 = vmatpush1.bf16.msra.mxu0 0
        %1192 = vmatprep.subr.bf16.mxu0 0
        %1193 = vmatpush1.bf16.msra.mxu0 0
        %1194 = vmatprep.subr.bf16.mxu0 0
        %1195 = vmatpush1.bf16.msra.mxu0 0
        %1196 = vmatprep.subr.bf16.mxu0 0
        %1197 = vmatpush1.bf16.msra.mxu0 0
        %1198 = vmatprep.subr.bf16.mxu0 0
        %1199 = vmatpush1.bf16.msra.mxu0 0
        %1200 = vmatprep.mubr.bf16.mxu0 0
        %1201 = vmatmul.mubr.bf16.gmra.mrb[0].mxu0 %v1157
        %v1202 = vpop.f32.mrb[0].mxu0
        %v1203 = vadd.f32 %v892, %v1202
        %v1204 = vpop.f32.mrb[0].mxu0
        %v1205 = vpop.f32.mrb[0].mxu0
        %v1206 = vadd.f32 %v895, %v1205
        %v1207 = vpop.f32.mrb[0].mxu0
        %1208 = vmatprep.mubr.bf16.mxu0 0
        %1209 = vmatmul.mubr.bf16.gmra.mrb[0].mxu0 %v1160
        %v1210 = vpop.f32.mrb[0].mxu0
        %v1211 = vadd.f32 %v900, %v1210
        %v1212 = vpop.f32.mrb[0].mxu0
        %v1213 = vpop.f32.mrb[0].mxu0
        %v1214 = vadd.f32 %v903, %v1213
        %v1215 = vpop.f32.mrb[0].mxu0
        %1216 = vmatprep.mubr.bf16.mxu0 0
        %1217 = vmatmul.mubr.bf16.gmra.mrb[0].mxu0 %v1163
        %v1218 = vpop.f32.mrb[0].mxu0
        %v1219 = vadd.f32 %v908, %v1218
        %v1220 = vpop.f32.mrb[0].mxu0
        %v1221 = vpop.f32.mrb[0].mxu0
        %v1222 = vpop.f32.mrb[0].mxu0
        %1223 = vdwg.mxu0
        %v1229 = vcombine.high %v1203, %v1203
        %v1231 = vunpack.c.l.s4 1983009808
        %v1232 = vunpack.c.0.s8 %v1231
        %v1233 = vlaneseq
        %v1234 = vshrl.u32 %v1233, 7
        %v1235 = vsub.s32 %v1232, %v1234
        %v1236 = vrot.slane %v1203, %v1235
        %v1238 = vunpack.c.l.s4 1983009808
        %v1239 = vunpack.c.0.s8 %v1238
        %v1240 = vlaneseq
        %v1241 = vshrl.u32 %v1240, 7
        %v1242 = vsub.s32 %v1239, %v1241
        %v1243 = vrot.slane %v1229, %v1242
        %v1244 = vcombine.high %v1236, %v1236
        %v1245 = vcombine.high %v1243, %v1243
        %v1246 = vcombine.high %v1206, %v1206
        %v1248 = vunpack.c.l.s4 1983009808
        %v1249 = vunpack.c.0.s8 %v1248
        %v1250 = vlaneseq
        %v1251 = vshrl.u32 %v1250, 7
        %v1252 = vsub.s32 %v1249, %v1251
        %v1253 = vrot.slane %v1206, %v1252
        %v1255 = vunpack.c.l.s4 1983009808
        %v1256 = vunpack.c.0.s8 %v1255
        %v1257 = vlaneseq
        %v1258 = vshrl.u32 %v1257, 7
        %v1259 = vsub.s32 %v1256, %v1258
        %v1260 = vrot.slane %v1246, %v1259
        %v1261 = vcombine.high %v1253, %v1253
        %v1262 = vcombine.high %v1260, %v1260
        %v1263 = vcombine.high %v1211, %v1211
        %v1265 = vunpack.c.l.s4 1983009808
        %v1266 = vunpack.c.0.s8 %v1265
        %v1267 = vlaneseq
        %v1268 = vshrl.u32 %v1267, 7
        %v1269 = vsub.s32 %v1266, %v1268
        %v1270 = vrot.slane %v1211, %v1269
        %v1272 = vunpack.c.l.s4 1983009808
        %v1273 = vunpack.c.0.s8 %v1272
        %v1274 = vlaneseq
        %v1275 = vshrl.u32 %v1274, 7
        %v1276 = vsub.s32 %v1273, %v1275
        %v1277 = vrot.slane %v1263, %v1276
        %v1278 = vcombine.high %v1270, %v1270
        %v1279 = vcombine.high %v1277, %v1277
        %v1280 = vcombine.high %v1214, %v1214
        %v1282 = vunpack.c.l.s4 1983009808
        %v1283 = vunpack.c.0.s8 %v1282
        %v1284 = vlaneseq
        %v1285 = vshrl.u32 %v1284, 7
        %v1286 = vsub.s32 %v1283, %v1285
        %v1287 = vrot.slane %v1214, %v1286
        %v1289 = vunpack.c.l.s4 1983009808
        %v1290 = vunpack.c.0.s8 %v1289
        %v1291 = vlaneseq
        %v1292 = vshrl.u32 %v1291, 7
        %v1293 = vsub.s32 %v1290, %v1292
        %v1294 = vrot.slane %v1280, %v1293
        %v1295 = vcombine.high %v1287, %v1287
        %v1296 = vcombine.high %v1294, %v1294
        %v1298 = vunpack.c.l.s4 1983009808
        %v1299 = vunpack.c.0.s8 %v1298
        %v1300 = vlaneseq
        %v1301 = vshrl.u32 %v1300, 7
        %v1302 = vsub.s32 %v1299, %v1301
        %v1303 = vrot.slane %v1219, %v1302
        %v1304 = vcombine.high %v1303, %v1303
        %v1323 = vld [vmem:[#allocation2] sm:$0xe]
        %v1324 = vld [vmem:[#allocation2 + $0x4] sm:$0xf]
        %v1325 = vld [vmem:[#allocation2 + $0x8] sm:$0x3]
        %v1326 = vld [vmem:[#allocation2 + $0xc] sm:$0xe]
        %v1327 = vld [vmem:[#allocation2 + $0x10] sm:$0xf]
        %v1328 = vld [vmem:[#allocation2 + $0x14] sm:$0x3]
        %s1329 = scalar_lea.vmem %s1, 4
        %v1330 = vld [vmem:[%s1329] sm:$0x3]
        %v1338 = vunpack.c.l.s4 1966171168
        %v1339 = vunpack.c.0.s8 %v1338
        %v1340 = vlaneseq
        %v1341 = vshrl.u32 %v1340, 7
        %v1342 = vsub.s32 %v1339, %v1341
        %v1343 = vrot.slane %v1323, %v1342
        %v1344 = vcombine.high %v1343, %v1343
        %v1346 = vunpack.c.l.s4 1966171168
        %v1347 = vunpack.c.0.s8 %v1346
        %v1348 = vlaneseq
        %v1349 = vshrl.u32 %v1348, 7
        %v1350 = vsub.s32 %v1347, %v1349
        %v1351 = vrot.slane %v1343, %v1350
        %v1353 = vunpack.c.l.s4 1966171168
        %v1354 = vunpack.c.0.s8 %v1353
        %v1355 = vlaneseq
        %v1356 = vshrl.u32 %v1355, 7
        %v1357 = vsub.s32 %v1354, %v1356
        %v1358 = vrot.slane %v1344, %v1357
        %v1359 = vcombine.high %v1351, %v1351
        %v1360 = vcombine.high %v1358, %v1358
        %v1362 = vunpack.c.l.s4 1966171168
        %v1363 = vunpack.c.0.s8 %v1362
        %v1364 = vlaneseq
        %v1365 = vshrl.u32 %v1364, 7
        %v1366 = vsub.s32 %v1363, %v1365
        %v1367 = vrot.slane %v1324, %v1366
        %v1368 = vcombine.high %v1367, %v1367
        %v1370 = vunpack.c.l.s4 1966171168
        %v1371 = vunpack.c.0.s8 %v1370
        %v1372 = vlaneseq
        %v1373 = vshrl.u32 %v1372, 7
        %v1374 = vsub.s32 %v1371, %v1373
        %v1375 = vrot.slane %v1367, %v1374
        %v1377 = vunpack.c.l.s4 1966171168
        %v1378 = vunpack.c.0.s8 %v1377
        %v1379 = vlaneseq
        %v1380 = vshrl.u32 %v1379, 7
        %v1381 = vsub.s32 %v1378, %v1380
        %v1382 = vrot.slane %v1368, %v1381
        %v1383 = vcombine.high %v1375, %v1375
        %v1384 = vcombine.high %v1382, %v1382
        %v1386 = vunpack.c.l.s4 1966171168
        %v1387 = vunpack.c.0.s8 %v1386
        %v1388 = vlaneseq
        %v1389 = vshrl.u32 %v1388, 7
        %v1390 = vsub.s32 %v1387, %v1389
        %v1391 = vrot.slane %v1325, %v1390
        %v1392 = vcombine.high %v1391, %v1391
        %v1394 = vunpack.c.l.s4 1966171168
        %v1395 = vunpack.c.0.s8 %v1394
        %v1396 = vlaneseq
        %v1397 = vshrl.u32 %v1396, 7
        %v1398 = vsub.s32 %v1395, %v1397
        %v1399 = vrot.slane %v1391, %v1398
        %v1401 = vunpack.c.l.s4 1966171168
        %v1402 = vunpack.c.0.s8 %v1401
        %v1403 = vlaneseq
        %v1404 = vshrl.u32 %v1403, 7
        %v1405 = vsub.s32 %v1402, %v1404
        %v1406 = vrot.slane %v1392, %v1405
        %v1408 = vunpack.c.l.s4 1966171168
        %v1409 = vunpack.c.0.s8 %v1408
        %v1410 = vlaneseq
        %v1411 = vshrl.u32 %v1410, 7
        %v1412 = vsub.s32 %v1409, %v1411
        %v1413 = vrot.slane %v1326, %v1412
        %v1414 = vcombine.high %v1413, %v1413
        %v1416 = vunpack.c.l.s4 1966171168
        %v1417 = vunpack.c.0.s8 %v1416
        %v1418 = vlaneseq
        %v1419 = vshrl.u32 %v1418, 7
        %v1420 = vsub.s32 %v1417, %v1419
        %v1421 = vrot.slane %v1413, %v1420
        %v1423 = vunpack.c.l.s4 1966171168
        %v1424 = vunpack.c.0.s8 %v1423
        %v1425 = vlaneseq
        %v1426 = vshrl.u32 %v1425, 7
        %v1427 = vsub.s32 %v1424, %v1426
        %v1428 = vrot.slane %v1414, %v1427
        %v1429 = vcombine.high %v1421, %v1421
        %v1430 = vcombine.high %v1428, %v1428
        %v1432 = vunpack.c.l.s4 1966171168
        %v1433 = vunpack.c.0.s8 %v1432
        %v1434 = vlaneseq
        %v1435 = vshrl.u32 %v1434, 7
        %v1436 = vsub.s32 %v1433, %v1435
        %v1437 = vrot.slane %v1327, %v1436
        %v1438 = vcombine.high %v1437, %v1437
        %v1440 = vunpack.c.l.s4 1966171168
        %v1441 = vunpack.c.0.s8 %v1440
        %v1442 = vlaneseq
        %v1443 = vshrl.u32 %v1442, 7
        %v1444 = vsub.s32 %v1441, %v1443
        %v1445 = vrot.slane %v1437, %v1444
        %v1447 = vunpack.c.l.s4 1966171168
        %v1448 = vunpack.c.0.s8 %v1447
        %v1449 = vlaneseq
        %v1450 = vshrl.u32 %v1449, 7
        %v1451 = vsub.s32 %v1448, %v1450
        %v1452 = vrot.slane %v1438, %v1451
        %v1453 = vcombine.high %v1445, %v1445
        %v1454 = vcombine.high %v1452, %v1452
        %v1456 = vunpack.c.l.s4 1966171168
        %v1457 = vunpack.c.0.s8 %v1456
        %v1458 = vlaneseq
        %v1459 = vshrl.u32 %v1458, 7
        %v1460 = vsub.s32 %v1457, %v1459
        %v1461 = vrot.slane %v1328, %v1460
        %v1462 = vcombine.high %v1461, %v1461
        %v1464 = vunpack.c.l.s4 1966171168
        %v1465 = vunpack.c.0.s8 %v1464
        %v1466 = vlaneseq
        %v1467 = vshrl.u32 %v1466, 7
        %v1468 = vsub.s32 %v1465, %v1467
        %v1469 = vrot.slane %v1461, %v1468
        %v1471 = vunpack.c.l.s4 1966171168
        %v1472 = vunpack.c.0.s8 %v1471
        %v1473 = vlaneseq
        %v1474 = vshrl.u32 %v1473, 7
        %v1475 = vsub.s32 %v1472, %v1474
        %v1476 = vrot.slane %v1462, %v1475
        %v1477 = vcombine.low %v1358, %v1359
        %v1478 = vcombine.low %v1360, %v1375
        %v1479 = vcombine.low %v1382, %v1383
        %v1480 = vcombine.low %v1384, %v1399
        %v1482 = vunpack.c.l.s4 1966171168
        %v1483 = vunpack.c.0.s8 %v1482
        %v1484 = vlaneseq
        %v1485 = vshrl.u32 %v1484, 7
        %v1486 = vsub.s32 %v1483, %v1485
        %v1487 = vrot.slane %v1477, %v1486
        %v1489 = vunpack.c.l.s4 1966171168
        %v1490 = vunpack.c.0.s8 %v1489
        %v1491 = vlaneseq
        %v1492 = vshrl.u32 %v1491, 7
        %v1493 = vsub.s32 %v1490, %v1492
        %v1494 = vrot.slane %v1478, %v1493
        %v1496 = vunpack.c.l.s4 1966171168
        %v1497 = vunpack.c.0.s8 %v1496
        %v1498 = vlaneseq
        %v1499 = vshrl.u32 %v1498, 7
        %v1500 = vsub.s32 %v1497, %v1499
        %v1501 = vrot.slane %v1479, %v1500
        %v1503 = vunpack.c.l.s4 1966171168
        %v1504 = vunpack.c.0.s8 %v1503
        %v1505 = vlaneseq
        %v1506 = vshrl.u32 %v1505, 7
        %v1507 = vsub.s32 %v1504, %v1506
        %v1508 = vrot.slane %v1480, %v1507
        %v1509 = vcombine.low %v1487, %v1494
        %v1510 = vcombine.low %v1501, %v1508
        %v1512 = vunpack.c.l.s4 1966171168
        %v1513 = vunpack.c.0.s8 %v1512
        %v1514 = vlaneseq
        %v1515 = vshrl.u32 %v1514, 7
        %v1516 = vsub.s32 %v1513, %v1515
        %v1517 = vrot.slane %v1509, %v1516
        %v1519 = vunpack.c.l.s4 1966171168
        %v1520 = vunpack.c.0.s8 %v1519
        %v1521 = vlaneseq
        %v1522 = vshrl.u32 %v1521, 7
        %v1523 = vsub.s32 %v1520, %v1522
        %v1524 = vrot.slane %v1510, %v1523
        %v1525 = vcombine.low %v1517, %v1524
        %v1526 = vcombine.low %v1406, %v1428
        %v1527 = vcombine.low %v1429, %v1430
        %v1528 = vcombine.low %v1445, %v1452
        %v1529 = vcombine.low %v1453, %v1454
        %v1531 = vunpack.c.l.s4 1966171168
        %v1532 = vunpack.c.0.s8 %v1531
        %v1533 = vlaneseq
        %v1534 = vshrl.u32 %v1533, 7
        %v1535 = vsub.s32 %v1532, %v1534
        %v1536 = vrot.slane %v1526, %v1535
        %v1538 = vunpack.c.l.s4 1966171168
        %v1539 = vunpack.c.0.s8 %v1538
        %v1540 = vlaneseq
        %v1541 = vshrl.u32 %v1540, 7
        %v1542 = vsub.s32 %v1539, %v1541
        %v1543 = vrot.slane %v1527, %v1542
        %v1545 = vunpack.c.l.s4 1966171168
        %v1546 = vunpack.c.0.s8 %v1545
        %v1547 = vlaneseq
        %v1548 = vshrl.u32 %v1547, 7
        %v1549 = vsub.s32 %v1546, %v1548
        %v1550 = vrot.slane %v1528, %v1549
        %v1552 = vunpack.c.l.s4 1966171168
        %v1553 = vunpack.c.0.s8 %v1552
        %v1554 = vlaneseq
        %v1555 = vshrl.u32 %v1554, 7
        %v1556 = vsub.s32 %v1553, %v1555
        %v1557 = vrot.slane %v1529, %v1556
        %v1558 = vcombine.low %v1536, %v1543
        %v1559 = vcombine.low %v1550, %v1557
        %v1561 = vunpack.c.l.s4 1966171168
        %v1562 = vunpack.c.0.s8 %v1561
        %v1563 = vlaneseq
        %v1564 = vshrl.u32 %v1563, 7
        %v1565 = vsub.s32 %v1562, %v1564
        %v1566 = vrot.slane %v1558, %v1565
        %v1568 = vunpack.c.l.s4 1966171168
        %v1569 = vunpack.c.0.s8 %v1568
        %v1570 = vlaneseq
        %v1571 = vshrl.u32 %v1570, 7
        %v1572 = vsub.s32 %v1569, %v1571
        %v1573 = vrot.slane %v1559, %v1572
        %v1574 = vcombine.low %v1566, %v1573
        %v1575 = vcombine.low %v1469, %v1476
        %v1577 = vunpack.c.l.s4 1966171168
        %v1578 = vunpack.c.0.s8 %v1577
        %v1579 = vlaneseq
        %v1580 = vshrl.u32 %v1579, 7
        %v1581 = vsub.s32 %v1578, %v1580
        %v1582 = vrot.slane %v1575, %v1581
        %v1584 = vunpack.c.l.s4 1966171168
        %v1585 = vunpack.c.0.s8 %v1584
        %v1586 = vlaneseq
        %v1587 = vshrl.u32 %v1586, 7
        %v1588 = vsub.s32 %v1585, %v1587
        %v1589 = vrot.slane %v1582, %v1588
        %v1591 = vsel %vm843, %v1525, 0
        %v1594 = vsel %vm843, %v1574, 0
        %v1597 = vsel %vm843, %v1589, 0
        %v1600 = vsel %vm853, %v1330, 0
        %1602 = vmatprep.subr.bf16.mxu0 0
        %1603 = vmatpush1.bf16.msra.mxu0 %v1600
        %1604 = vmatprep.subr.bf16.mxu0 0
        %1605 = vmatpush1.bf16.msra.mxu0 0
        %1606 = vmatprep.subr.bf16.mxu0 0
        %1607 = vmatpush1.bf16.msra.mxu0 0
        %1608 = vmatprep.subr.bf16.mxu0 0
        %1609 = vmatpush1.bf16.msra.mxu0 0
        %1610 = vmatprep.subr.bf16.mxu0 0
        %1611 = vmatpush1.bf16.msra.mxu0 0
        %1612 = vmatprep.subr.bf16.mxu0 0
        %1613 = vmatpush1.bf16.msra.mxu0 0
        %1614 = vmatprep.subr.bf16.mxu0 0
        %1615 = vmatpush1.bf16.msra.mxu0 0
        %1616 = vmatprep.subr.bf16.mxu0 0
        %1617 = vmatpush1.bf16.msra.mxu0 0
        %1618 = vmatprep.subr.bf16.mxu0 0
        %1619 = vmatpush1.bf16.msra.mxu0 0
        %1620 = vmatprep.subr.bf16.mxu0 0
        %1621 = vmatpush1.bf16.msra.mxu0 0
        %1622 = vmatprep.subr.bf16.mxu0 0
        %1623 = vmatpush1.bf16.msra.mxu0 0
        %1624 = vmatprep.subr.bf16.mxu0 0
        %1625 = vmatpush1.bf16.msra.mxu0 0
        %1626 = vmatprep.subr.bf16.mxu0 0
        %1627 = vmatpush1.bf16.msra.mxu0 0
        %1628 = vmatprep.subr.bf16.mxu0 0
        %1629 = vmatpush1.bf16.msra.mxu0 0
        %1630 = vmatprep.subr.bf16.mxu0 0
        %1631 = vmatpush1.bf16.msra.mxu0 0
        %1632 = vmatprep.subr.bf16.mxu0 0
        %1633 = vmatpush1.bf16.msra.mxu0 0
        %1634 = vmatprep.mubr.bf16.mxu0 0
        %1635 = vmatmul.mubr.bf16.gmra.mrb[0].mxu0 %v1591
        %v1636 = vpop.f32.mrb[0].mxu0
        %v1637 = vadd.f32 0.0, %v1636
        %v1638 = vpop.f32.mrb[0].mxu0
        %v1639 = vpop.f32.mrb[0].mxu0
        %v1640 = vadd.f32 0.0, %v1639
        %v1641 = vpop.f32.mrb[0].mxu0
        %1642 = vmatprep.mubr.bf16.mxu0 0
        %1643 = vmatmul.mubr.bf16.gmra.mrb[0].mxu0 %v1594
        %v1644 = vpop.f32.mrb[0].mxu0
        %v1645 = vadd.f32 0.0, %v1644
        %v1646 = vpop.f32.mrb[0].mxu0
        %v1647 = vpop.f32.mrb[0].mxu0
        %v1648 = vadd.f32 0.0, %v1647
        %v1649 = vpop.f32.mrb[0].mxu0
        %1650 = vmatprep.mubr.bf16.mxu0 0
        %1651 = vmatmul.mubr.bf16.gmra.mrb[0].mxu0 %v1597
        %v1652 = vpop.f32.mrb[0].mxu0
        %v1653 = vadd.f32 0.0, %v1652
        %v1654 = vpop.f32.mrb[0].mxu0
        %v1655 = vpop.f32.mrb[0].mxu0
        %v1656 = vpop.f32.mrb[0].mxu0
        %1657 = vdwg.mxu0
        %v1663 = vcombine.high %v1637, %v1637
        %v1665 = vunpack.c.l.s4 1983009808
        %v1666 = vunpack.c.0.s8 %v1665
        %v1667 = vlaneseq
        %v1668 = vshrl.u32 %v1667, 7
        %v1669 = vsub.s32 %v1666, %v1668
        %v1670 = vrot.slane %v1637, %v1669
        %v1672 = vunpack.c.l.s4 1983009808
        %v1673 = vunpack.c.0.s8 %v1672
        %v1674 = vlaneseq
        %v1675 = vshrl.u32 %v1674, 7
        %v1676 = vsub.s32 %v1673, %v1675
        %v1677 = vrot.slane %v1663, %v1676
        %v1678 = vcombine.high %v1670, %v1670
        %v1679 = vcombine.high %v1677, %v1677
        %v1680 = vcombine.high %v1640, %v1640
        %v1682 = vunpack.c.l.s4 1983009808
        %v1683 = vunpack.c.0.s8 %v1682
        %v1684 = vlaneseq
        %v1685 = vshrl.u32 %v1684, 7
        %v1686 = vsub.s32 %v1683, %v1685
        %v1687 = vrot.slane %v1640, %v1686
        %v1689 = vunpack.c.l.s4 1983009808
        %v1690 = vunpack.c.0.s8 %v1689
        %v1691 = vlaneseq
        %v1692 = vshrl.u32 %v1691, 7
        %v1693 = vsub.s32 %v1690, %v1692
        %v1694 = vrot.slane %v1680, %v1693
        %v1695 = vcombine.high %v1687, %v1687
        %v1696 = vcombine.high %v1694, %v1694
        %v1697 = vcombine.high %v1645, %v1645
        %v1699 = vunpack.c.l.s4 1983009808
        %v1700 = vunpack.c.0.s8 %v1699
        %v1701 = vlaneseq
        %v1702 = vshrl.u32 %v1701, 7
        %v1703 = vsub.s32 %v1700, %v1702
        %v1704 = vrot.slane %v1645, %v1703
        %v1706 = vunpack.c.l.s4 1983009808
        %v1707 = vunpack.c.0.s8 %v1706
        %v1708 = vlaneseq
        %v1709 = vshrl.u32 %v1708, 7
        %v1710 = vsub.s32 %v1707, %v1709
        %v1711 = vrot.slane %v1697, %v1710
        %v1712 = vcombine.high %v1704, %v1704
        %v1713 = vcombine.high %v1711, %v1711
        %v1714 = vcombine.high %v1648, %v1648
        %v1716 = vunpack.c.l.s4 1983009808
        %v1717 = vunpack.c.0.s8 %v1716
        %v1718 = vlaneseq
        %v1719 = vshrl.u32 %v1718, 7
        %v1720 = vsub.s32 %v1717, %v1719
        %v1721 = vrot.slane %v1648, %v1720
        %v1723 = vunpack.c.l.s4 1983009808
        %v1724 = vunpack.c.0.s8 %v1723
        %v1725 = vlaneseq
        %v1726 = vshrl.u32 %v1725, 7
        %v1727 = vsub.s32 %v1724, %v1726
        %v1728 = vrot.slane %v1714, %v1727
        %v1729 = vcombine.high %v1721, %v1721
        %v1730 = vcombine.high %v1728, %v1728
        %v1732 = vunpack.c.l.s4 1983009808
        %v1733 = vunpack.c.0.s8 %v1732
        %v1734 = vlaneseq
        %v1735 = vshrl.u32 %v1734, 7
        %v1736 = vsub.s32 %v1733, %v1735
        %v1737 = vrot.slane %v1653, %v1736
        %v1738 = vcombine.high %v1737, %v1737
        %v1757 = vadd.f32 %v1236, %v1670
        %v1758 = vadd.f32 %v1244, %v1678
        %v1759 = vadd.f32 %v1243, %v1677
        %v1760 = vadd.f32 %v1245, %v1679
        %v1761 = vadd.f32 %v1253, %v1687
        %v1762 = vadd.f32 %v1261, %v1695
        %v1763 = vadd.f32 %v1260, %v1694
        %v1764 = vadd.f32 %v1262, %v1696
        %v1765 = vadd.f32 %v1270, %v1704
        %v1766 = vadd.f32 %v1278, %v1712
        %v1767 = vadd.f32 %v1277, %v1711
        %v1768 = vadd.f32 %v1279, %v1713
        %v1769 = vadd.f32 %v1287, %v1721
        %v1770 = vadd.f32 %v1295, %v1729
        %v1771 = vadd.f32 %v1294, %v1728
        %v1772 = vadd.f32 %v1296, %v1730
        %v1773 = vadd.f32 %v1303, %v1737
        %v1774 = vadd.f32 %v1304, %v1738
        %v1775 = vld [vmem:[%s2] sm:$0x1]
        %v1777 = vlaneseq
        %v1778 = vshrl.u32 %v1777, 7
        %v1779 = vsub.s32 0, %v1778
        %v1780 = vrot.slane %v1775, %v1779
        %v1781 = vcombine.high %v1780, %v1780
        %v1783 = vunpack.c.l.s4 1983009808
        %v1784 = vunpack.c.0.s8 %v1783
        %v1785 = vlaneseq
        %v1786 = vshrl.u32 %v1785, 7
        %v1787 = vsub.s32 %v1784, %v1786
        %v1788 = vrot.slane %v1780, %v1787
        %v1790 = vunpack.c.l.s4 1983009808
        %v1791 = vunpack.c.0.s8 %v1790
        %v1792 = vlaneseq
        %v1793 = vshrl.u32 %v1792, 7
        %v1794 = vsub.s32 %v1791, %v1793
        %v1795 = vrot.slane %v1781, %v1794
        %v1796 = vcombine.high %v1788, %v1788
        %v1797 = vcombine.high %v1795, %v1795
        %v1802 = vadd.f32 %v1757, %v1788
        %v1803 = vadd.f32 %v1758, %v1796
        %v1804 = vadd.f32 %v1759, %v1795
        %v1805 = vadd.f32 %v1760, %v1797
        %v1806 = vadd.f32 %v1761, %v1788
        %v1807 = vadd.f32 %v1762, %v1796
        %v1808 = vadd.f32 %v1763, %v1795
        %v1809 = vadd.f32 %v1764, %v1797
        %v1810 = vadd.f32 %v1765, %v1788
        %v1811 = vadd.f32 %v1766, %v1788
        %v1812 = vadd.f32 %v1767, %v1796
        %v1813 = vadd.f32 %v1768, %v1795
        %v1814 = vadd.f32 %v1769, %v1797
        %v1815 = vadd.f32 %v1770, %v1788
        %v1816 = vadd.f32 %v1771, %v1796
        %v1817 = vadd.f32 %v1772, %v1795
        %v1818 = vadd.f32 %v1773, %v1797
        %v1819 = vadd.f32 %v1774, %v1788
        %v1820 = vmax.f32 %v1802, 0.0
        %v1821 = vmax.f32 %v1803, 0.0
        %v1822 = vmax.f32 %v1804, 0.0
        %v1823 = vmax.f32 %v1805, 0.0
        %v1824 = vmax.f32 %v1806, 0.0
        %v1825 = vmax.f32 %v1807, 0.0
        %v1826 = vmax.f32 %v1808, 0.0
        %v1827 = vmax.f32 %v1809, 0.0
        %v1828 = vmax.f32 %v1810, 0.0
        %v1829 = vmax.f32 %v1811, 0.0
        %v1830 = vmax.f32 %v1812, 0.0
        %v1831 = vmax.f32 %v1813, 0.0
        %v1832 = vmax.f32 %v1814, 0.0
        %v1833 = vmax.f32 %v1815, 0.0
        %v1834 = vmax.f32 %v1816, 0.0
        %v1835 = vmax.f32 %v1817, 0.0
        %v1836 = vmax.f32 %v1818, 0.0
        %v1837 = vmax.f32 %v1819, 0.0
        %v1856 = vcombine.low %v1820, %v1821
        %v1857 = vcombine.low %v1822, %v1823
        %v1859 = vunpack.c.l.s4 1983009808
        %v1860 = vunpack.c.0.s8 %v1859
        %v1861 = vlaneseq
        %v1862 = vshrl.u32 %v1861, 7
        %v1863 = vsub.s32 %v1860, %v1862
        %v1864 = vrot.slane %v1856, %v1863
        %v1866 = vunpack.c.l.s4 1983009808
        %v1867 = vunpack.c.0.s8 %v1866
        %v1868 = vlaneseq
        %v1869 = vshrl.u32 %v1868, 7
        %v1870 = vsub.s32 %v1867, %v1869
        %v1871 = vrot.slane %v1857, %v1870
        %v1872 = vcombine.low %v1864, %v1871
        %v1873 = vcombine.low %v1824, %v1825
        %v1874 = vcombine.low %v1826, %v1827
        %v1876 = vunpack.c.l.s4 1983009808
        %v1877 = vunpack.c.0.s8 %v1876
        %v1878 = vlaneseq
        %v1879 = vshrl.u32 %v1878, 7
        %v1880 = vsub.s32 %v1877, %v1879
        %v1881 = vrot.slane %v1873, %v1880
        %v1883 = vunpack.c.l.s4 1983009808
        %v1884 = vunpack.c.0.s8 %v1883
        %v1885 = vlaneseq
        %v1886 = vshrl.u32 %v1885, 7
        %v1887 = vsub.s32 %v1884, %v1886
        %v1888 = vrot.slane %v1874, %v1887
        %v1889 = vcombine.low %v1881, %v1888
        %v1891 = vunpack.c.l.s4 1983009808
        %v1892 = vunpack.c.0.s8 %v1891
        %v1893 = vlaneseq
        %v1894 = vshrl.u32 %v1893, 7
        %v1895 = vsub.s32 %v1892, %v1894
        %v1896 = vrot.slane %v1828, %v1895
        %v1897 = vcombine.low %v1829, %v1830
        %v1898 = vcombine.low %v1831, %v1832
        %v1900 = vunpack.c.l.s4 1983009808
        %v1901 = vunpack.c.0.s8 %v1900
        %v1902 = vlaneseq
        %v1903 = vshrl.u32 %v1902, 7
        %v1904 = vsub.s32 %v1901, %v1903
        %v1905 = vrot.slane %v1897, %v1904
        %v1907 = vunpack.c.l.s4 1983009808
        %v1908 = vunpack.c.0.s8 %v1907
        %v1909 = vlaneseq
        %v1910 = vshrl.u32 %v1909, 7
        %v1911 = vsub.s32 %v1908, %v1910
        %v1912 = vrot.slane %v1898, %v1911
        %v1913 = vcombine.low %v1905, %v1912
        %v1914 = vcombine.low %v1833, %v1834
        %v1915 = vcombine.low %v1835, %v1836
        %v1917 = vunpack.c.l.s4 1983009808
        %v1918 = vunpack.c.0.s8 %v1917
        %v1919 = vlaneseq
        %v1920 = vshrl.u32 %v1919, 7
        %v1921 = vsub.s32 %v1918, %v1920
        %v1922 = vrot.slane %v1914, %v1921
        %v1924 = vunpack.c.l.s4 1983009808
        %v1925 = vunpack.c.0.s8 %v1924
        %v1926 = vlaneseq
        %v1927 = vshrl.u32 %v1926, 7
        %v1928 = vsub.s32 %v1925, %v1927
        %v1929 = vrot.slane %v1915, %v1928
        %v1930 = vcombine.low %v1922, %v1929
        %v1932 = vunpack.c.l.s4 1983009808
        %v1933 = vunpack.c.0.s8 %v1932
        %v1934 = vlaneseq
        %v1935 = vshrl.u32 %v1934, 7
        %v1936 = vsub.s32 %v1933, %v1935
        %v1937 = vrot.slane %v1837, %v1936
        %v1944 = vpack.c.bf16 %v1889, %v1872
        %v1945 = vpack.c.bf16 %v1896, %v1896
        %v1946 = vpack.c.bf16 %v1930, %v1913
        %v1947 = vpack.c.bf16 %v1937, %v1937
        %v1952 = vunpack.c.l.b16 %v1944
        %v1953 = vunpack.c.h.b16 %v1944
        %v1954 = vunpack.c.l.b16 %v1945
        %v1955 = vunpack.c.l.b16 %v1946
        %v1956 = vunpack.c.h.b16 %v1946
        %v1957 = vunpack.c.l.b16 %v1947
        %v1958 = vpack.c.b16 %v1952, %v1952
        %v1959 = vpack.c.b16 %v1953, %v1953
        %v1960 = vpack.c.b16 %v1954, %v1954
        %v1961 = vpack.c.b16 %v1955, %v1955
        %v1962 = vpack.c.b16 %v1956, %v1956
        %v1963 = vpack.c.b16 %v1957, %v1957
        %vm1970 = vcmask 60416
        %1971 = vst.msk [vmem:[#allocation3] sm:$0xf] %vm1970, %v1958
        %1972 = vst.msk [vmem:[#allocation3 + $0x4] sm:$0xf] %vm1970, %v1959
        %vm1973 = vcmask 57344
        %1974 = vst.msk [vmem:[#allocation3 + $0x8] sm:$0x1] %vm1973, %v1960
        %1975 = vst.msk [vmem:[#allocation3 + $0xc] sm:$0xf] %vm1970, %v1961
        %1976 = vst.msk [vmem:[#allocation3 + $0x10] sm:$0xf] %vm1970, %v1962
        %1977 = vst.msk [vmem:[#allocation3 + $0x14] sm:$0x1] %vm1973, %v1963
        %s1978 = smul.u32 %s23, 16
        %p1979 = scmp.lt.s32.totalorder %s1978, 2
        // Predicated region
        $region95: #{temporal_conv_net.4} parent=81 // pred_check
          %p1980 = pneg %p1979
        $region96: #{temporal_conv_net.4} parent=81 // pred_check_branch
          %1982 = sbr.rel (%p1980) target = $region98
        $region97: #{temporal_conv_net.4} parent=81 // pred_region
          %s1983 = ssub.s32 %s1978, 2
          %v1984 = vlaneseq
          %v1985 = vshrl.u32 %v1984, 7
          %v1986 = vadd.s32 %v1985, 8
          %v1987 = vadd.s32 %v1985, 16
          %v1988 = vstv %s1983
          %v1989 = vadd.s32 %v1988, %v1985
          %v1990 = vadd.s32 %v1988, %v1986
          %v1991 = vadd.s32 %v1988, %v1987
          %vm1992 = vcmp.ge.s32.totalorder %v1989, 0
          %vm1993 = vcmp.ge.s32.totalorder %v1990, 0
          %vm1994 = vcmp.ge.s32.totalorder %v1991, 0
          %v1995 = vsel %vm1992, 1, 0
          %v1996 = vsel %vm1993, 1, 0
          %v1997 = vsel %vm1994, 1, 0
          %vm1998 = vcmp.eq.s32.totalorder %v1995, 1
          %vm1999 = vcmp.eq.s32.totalorder %v1996, 1
          %vm2000 = vcmp.eq.s32.totalorder %v1997, 1
          %v2001 = vsel %vm1998, %v1872, 0.0
          %v2002 = vsel %vm1999, %v1889, 0.0
          %v2003 = vsel %vm2000, %v1896, 0.0
          %v2004 = vsel %vm1998, %v1913, 0.0
          %v2005 = vsel %vm1999, %v1930, 0.0
          %v2006 = vsel %vm2000, %v1937, 0.0
          %v2007 = vpack.c.bf16 %v2002, %v2001
          %v2008 = vpack.c.bf16 %v2003, %v2003
          %v2009 = vpack.c.bf16 %v2005, %v2004
          %v2010 = vpack.c.bf16 %v2006, %v2006
          %v2015 = vunpack.c.l.b16 %v2007
          %v2016 = vunpack.c.h.b16 %v2007
          %v2017 = vunpack.c.l.b16 %v2008
          %v2018 = vunpack.c.l.b16 %v2009
          %v2019 = vunpack.c.h.b16 %v2009
          %v2020 = vunpack.c.l.b16 %v2010
          %v2021 = vpack.c.b16 %v2015, %v2015
          %v2022 = vpack.c.b16 %v2016, %v2016
          %v2023 = vpack.c.b16 %v2017, %v2017
          %v2024 = vpack.c.b16 %v2018, %v2018
          %v2025 = vpack.c.b16 %v2019, %v2019
          %v2026 = vpack.c.b16 %v2020, %v2020
          %2033 = vst.msk [vmem:[#allocation3] sm:$0xf] %vm1970, %v2021
          %2034 = vst.msk [vmem:[#allocation3 + $0x4] sm:$0xf] %vm1970, %v2022
          %2035 = vst.msk [vmem:[#allocation3 + $0x8] sm:$0x1] %vm1973, %v2023
          %2036 = vst.msk [vmem:[#allocation3 + $0xc] sm:$0xf] %vm1970, %v2024
          %2037 = vst.msk [vmem:[#allocation3 + $0x10] sm:$0xf] %vm1970, %v2025
          %2038 = vst.msk [vmem:[#allocation3 + $0x14] sm:$0x1] %vm1973, %v2026
        $region98: #{temporal_conv_net.4} parent=81 // pred_fallthru
          _
        %v2039 = vld [vmem:[#allocation3] sm:$0xf]
        %v2040 = vld [vmem:[#allocation3 + $0x4] sm:$0xf]
        %v2041 = vld [vmem:[#allocation3 + $0xc] sm:$0xf]
        %v2042 = vld [vmem:[#allocation3 + $0x10] sm:$0xf]
        %v2043 = vld [vmem:[%s3] sm:$0xf]
        %v2044 = vld [vmem:[#allocation3] sm:$0xf]
        %v2045 = vld [vmem:[#allocation3 + $0x4] sm:$0xf]
        %v2046 = vld [vmem:[#allocation3 + $0x8] sm:$0x1]
        %v2047 = vld [vmem:[#allocation3 + $0xc] sm:$0xf]
        %v2048 = vld [vmem:[#allocation3 + $0x10] sm:$0xf]
        %v2049 = vld [vmem:[#allocation3 + $0x14] sm:$0x1]
        %s2050 = scalar_lea.vmem %s3, 4
        %v2051 = vld [vmem:[%s2050] sm:$0xf]
        %vm2052 = vsmask.f32 3328
        %vm2053 = vsmask.f32 7440
        %vm2054 = vmor %vm2052, %vm2053
        %v2056 = vshrl.u32 %v2044, 16
        %v2058 = vrot.slane %v2056, 4
        %v2059 = vshll.u32 %v2044, 16
        %v2061 = vrot.slane %v2059, 5
        %v2062 = vor.u32 %v2058, %v2061
        %v2063 = vrot.slane %v2062, 4
        %v2065 = vshll.u32 %v2045, 16
        %v2067 = vrot.slane %v2065, 5
        %v2068 = vsel %vm2054, %v2063, %v2067
        %v2069 = vshrl.u32 %v2045, 16
        %v2071 = vrot.slane %v2069, 4
        %v2072 = vor.u32 %v2071, %v2067
        %v2073 = vrot.slane %v2072, 4
        %v2075 = vshll.u32 %v2046, 16
        %v2077 = vrot.slane %v2075, 5
        %v2078 = vsel %vm2054, %v2073, %v2077
        %v2080 = vshrl.u32 %v2047, 16
        %v2082 = vrot.slane %v2080, 4
        %v2083 = vshll.u32 %v2047, 16
        %v2085 = vrot.slane %v2083, 5
        %v2086 = vor.u32 %v2082, %v2085
        %v2087 = vrot.slane %v2086, 4
        %v2089 = vshll.u32 %v2048, 16
        %v2091 = vrot.slane %v2089, 5
        %v2092 = vsel %vm2054, %v2087, %v2091
        %v2093 = vshrl.u32 %v2048, 16
        %v2095 = vrot.slane %v2093, 4
        %v2096 = vor.u32 %v2095, %v2091
        %v2097 = vrot.slane %v2096, 4
        %v2099 = vshll.u32 %v2049, 16
        %v2101 = vrot.slane %v2099, 5
        %v2102 = vsel %vm2054, %v2097, %v2101
        %v2103 = vunpack.c.l.b16 %v2068
        %v2104 = vunpack.c.l.b16 %v2078
        %v2105 = vunpack.c.l.b16 %v2092
        %v2106 = vunpack.c.l.b16 %v2102
        %v2107 = vpack.c.b16 %v2104, %v2103
        %v2108 = vpack.c.b16 %v2106, %v2105
        %vm2109 = vcmask 64512
        %v2111 = vsel %vm2109, %v2107, 0
        %v2114 = vsel %vm2109, %v2108, 0
        %vm2116 = vcmask 1043456
        %v2118 = vsel %vm2116, %v2051, 0
        %2120 = vmatprep.subr.bf16.mxu0 0
        %2121 = vmatpush1.bf16.msra.mxu0 %v2118
        %2122 = vmatprep.subr.bf16.mxu0 0
        %2123 = vmatpush1.bf16.msra.mxu0 0
        %2124 = vmatprep.subr.bf16.mxu0 0
        %2125 = vmatpush1.bf16.msra.mxu0 0
        %2126 = vmatprep.subr.bf16.mxu0 0
        %2127 = vmatpush1.bf16.msra.mxu0 0
        %2128 = vmatprep.subr.bf16.mxu0 0
        %2129 = vmatpush1.bf16.msra.mxu0 0
        %2130 = vmatprep.subr.bf16.mxu0 0
        %2131 = vmatpush1.bf16.msra.mxu0 0
        %2132 = vmatprep.subr.bf16.mxu0 0
        %2133 = vmatpush1.bf16.msra.mxu0 0
        %2134 = vmatprep.subr.bf16.mxu0 0
        %2135 = vmatpush1.bf16.msra.mxu0 0
        %2136 = vmatprep.subr.bf16.mxu0 0
        %2137 = vmatpush1.bf16.msra.mxu0 0
        %2138 = vmatprep.subr.bf16.mxu0 0
        %2139 = vmatpush1.bf16.msra.mxu0 0
        %2140 = vmatprep.subr.bf16.mxu0 0
        %2141 = vmatpush1.bf16.msra.mxu0 0
        %2142 = vmatprep.subr.bf16.mxu0 0
        %2143 = vmatpush1.bf16.msra.mxu0 0
        %2144 = vmatprep.subr.bf16.mxu0 0
        %2145 = vmatpush1.bf16.msra.mxu0 0
        %2146 = vmatprep.subr.bf16.mxu0 0
        %2147 = vmatpush1.bf16.msra.mxu0 0
        %2148 = vmatprep.subr.bf16.mxu0 0
        %2149 = vmatpush1.bf16.msra.mxu0 0
        %2150 = vmatprep.subr.bf16.mxu0 0
        %2151 = vmatpush1.bf16.msra.mxu0 0
        %2152 = vmatprep.mubr.bf16.mxu0 0
        %2153 = vmatmul.mubr.bf16.gmra.mrb[0].mxu0 %v2111
        %v2154 = vpop.f32.mrb[0].mxu0
        %v2155 = vadd.f32 0.0, %v2154
        %v2156 = vpop.f32.mrb[0].mxu0
        %v2157 = vpop.f32.mrb[0].mxu0
        %v2158 = vadd.f32 0.0, %v2157
        %v2159 = vpop.f32.mrb[0].mxu0
        %2160 = vmatprep.mubr.bf16.mxu0 0
        %2161 = vmatmul.mubr.bf16.gmra.mrb[0].mxu0 %v2114
        %v2162 = vpop.f32.mrb[0].mxu0
        %v2163 = vadd.f32 0.0, %v2162
        %v2164 = vpop.f32.mrb[0].mxu0
        %v2165 = vpop.f32.mrb[0].mxu0
        %v2166 = vadd.f32 0.0, %v2165
        %v2167 = vpop.f32.mrb[0].mxu0
        %2168 = vdwg.mxu0
        %v2173 = vunpack.c.l.b16 %v2039
        %v2174 = vunpack.c.l.b16 %v2040
        %v2175 = vunpack.c.l.b16 %v2041
        %v2176 = vunpack.c.l.b16 %v2042
        %v2177 = vpack.c.b16 %v2174, %v2173
        %v2178 = vpack.c.b16 %v2176, %v2175
        %v2180 = vsel %vm2109, %v2177, 0
        %v2183 = vsel %vm2109, %v2178, 0
        %v2186 = vsel %vm2116, %v2043, 0
        %2188 = vmatprep.subr.bf16.mxu0 0
        %2189 = vmatpush1.bf16.msra.mxu0 %v2186
        %2190 = vmatprep.subr.bf16.mxu0 0
        %2191 = vmatpush1.bf16.msra.mxu0 0
        %2192 = vmatprep.subr.bf16.mxu0 0
        %2193 = vmatpush1.bf16.msra.mxu0 0
        %2194 = vmatprep.subr.bf16.mxu0 0
        %2195 = vmatpush1.bf16.msra.mxu0 0
        %2196 = vmatprep.subr.bf16.mxu0 0
        %2197 = vmatpush1.bf16.msra.mxu0 0
        %2198 = vmatprep.subr.bf16.mxu0 0
        %2199 = vmatpush1.bf16.msra.mxu0 0
        %2200 = vmatprep.subr.bf16.mxu0 0
        %2201 = vmatpush1.bf16.msra.mxu0 0
        %2202 = vmatprep.subr.bf16.mxu0 0
        %2203 = vmatpush1.bf16.msra.mxu0 0
        %2204 = vmatprep.subr.bf16.mxu0 0
        %2205 = vmatpush1.bf16.msra.mxu0 0
        %2206 = vmatprep.subr.bf16.mxu0 0
        %2207 = vmatpush1.bf16.msra.mxu0 0
        %2208 = vmatprep.subr.bf16.mxu0 0
        %2209 = vmatpush1.bf16.msra.mxu0 0
        %2210 = vmatprep.subr.bf16.mxu0 0
        %2211 = vmatpush1.bf16.msra.mxu0 0
        %2212 = vmatprep.subr.bf16.mxu0 0
        %2213 = vmatpush1.bf16.msra.mxu0 0
        %2214 = vmatprep.subr.bf16.mxu0 0
        %2215 = vmatpush1.bf16.msra.mxu0 0
        %2216 = vmatprep.subr.bf16.mxu0 0
        %2217 = vmatpush1.bf16.msra.mxu0 0
        %2218 = vmatprep.subr.bf16.mxu0 0
        %2219 = vmatpush1.bf16.msra.mxu0 0
        %2220 = vmatprep.mubr.bf16.mxu0 0
        %2221 = vmatmul.mubr.bf16.gmra.mrb[0].mxu0 %v2180
        %v2222 = vpop.f32.mrb[0].mxu0
        %v2223 = vadd.f32 %v2155, %v2222
        %v2224 = vpop.f32.mrb[0].mxu0
        %v2225 = vpop.f32.mrb[0].mxu0
        %v2226 = vadd.f32 %v2158, %v2225
        %v2227 = vpop.f32.mrb[0].mxu0
        %2228 = vmatprep.mubr.bf16.mxu0 0
        %2229 = vmatmul.mubr.bf16.gmra.mrb[0].mxu0 %v2183
        %v2230 = vpop.f32.mrb[0].mxu0
        %v2231 = vadd.f32 %v2163, %v2230
        %v2232 = vpop.f32.mrb[0].mxu0
        %v2233 = vpop.f32.mrb[0].mxu0
        %v2234 = vadd.f32 %v2166, %v2233
        %v2235 = vpop.f32.mrb[0].mxu0
        %2236 = vdwg.mxu0
        %v2237 = vld [vmem:[#allocation3] sm:$0xe]
        %v2238 = vld [vmem:[#allocation3 + $0x4] sm:$0xf]
        %v2239 = vld [vmem:[#allocation3 + $0x8] sm:$0x1]
        %v2240 = vld [vmem:[#allocation3 + $0xc] sm:$0xe]
        %v2241 = vld [vmem:[#allocation3 + $0x10] sm:$0xf]
        %v2242 = vld [vmem:[#allocation3 + $0x14] sm:$0x1]
        %s2243 = scalar_lea.vmem %s3, 8
        %v2244 = vld [vmem:[%s2243] sm:$0xf]
        %vm2251 = vcmask 1042432
        %vm2252 = vcmask 1046532
        %vm2253 = vmor %vm2251, %vm2252
        %v2254 = vrot.slane %v2237, 5
        %v2255 = vrot.slane %v2254, 4
        %v2256 = vrot.slane %v2238, 5
        %v2257 = vsel %vm2253, %v2255, %v2256
        %v2258 = vrot.slane %v2256, 4
        %v2259 = vrot.slane %v2239, 5
        %v2260 = vsel %vm2253, %v2258, %v2259
        %v2261 = vrot.slane %v2240, 5
        %v2262 = vrot.slane %v2261, 4
        %v2263 = vrot.slane %v2241, 5
        %v2264 = vsel %vm2253, %v2262, %v2263
        %v2265 = vrot.slane %v2263, 4
        %v2266 = vrot.slane %v2242, 5
        %v2267 = vsel %vm2253, %v2265, %v2266
        %v2268 = vunpack.c.l.b16 %v2257
        %v2269 = vunpack.c.l.b16 %v2260
        %v2270 = vunpack.c.l.b16 %v2264
        %v2271 = vunpack.c.l.b16 %v2267
        %v2272 = vpack.c.b16 %v2269, %v2268
        %v2273 = vpack.c.b16 %v2271, %v2270
        %v2275 = vsel %vm2109, %v2272, 0
        %v2278 = vsel %vm2109, %v2273, 0
        %v2281 = vsel %vm2116, %v2244, 0
        %2283 = vmatprep.subr.bf16.mxu0 0
        %2284 = vmatpush1.bf16.msra.mxu0 %v2281
        %2285 = vmatprep.subr.bf16.mxu0 0
        %2286 = vmatpush1.bf16.msra.mxu0 0
        %2287 = vmatprep.subr.bf16.mxu0 0
        %2288 = vmatpush1.bf16.msra.mxu0 0
        %2289 = vmatprep.subr.bf16.mxu0 0
        %2290 = vmatpush1.bf16.msra.mxu0 0
        %2291 = vmatprep.subr.bf16.mxu0 0
        %2292 = vmatpush1.bf16.msra.mxu0 0
        %2293 = vmatprep.subr.bf16.mxu0 0
        %2294 = vmatpush1.bf16.msra.mxu0 0
        %2295 = vmatprep.subr.bf16.mxu0 0
        %2296 = vmatpush1.bf16.msra.mxu0 0
        %2297 = vmatprep.subr.bf16.mxu0 0
        %2298 = vmatpush1.bf16.msra.mxu0 0
        %2299 = vmatprep.subr.bf16.mxu0 0
        %2300 = vmatpush1.bf16.msra.mxu0 0
        %2301 = vmatprep.subr.bf16.mxu0 0
        %2302 = vmatpush1.bf16.msra.mxu0 0
        %2303 = vmatprep.subr.bf16.mxu0 0
        %2304 = vmatpush1.bf16.msra.mxu0 0
        %2305 = vmatprep.subr.bf16.mxu0 0
        %2306 = vmatpush1.bf16.msra.mxu0 0
        %2307 = vmatprep.subr.bf16.mxu0 0
        %2308 = vmatpush1.bf16.msra.mxu0 0
        %2309 = vmatprep.subr.bf16.mxu0 0
        %2310 = vmatpush1.bf16.msra.mxu0 0
        %2311 = vmatprep.subr.bf16.mxu0 0
        %2312 = vmatpush1.bf16.msra.mxu0 0
        %2313 = vmatprep.subr.bf16.mxu0 0
        %2314 = vmatpush1.bf16.msra.mxu0 0
        %2315 = vmatprep.mubr.bf16.mxu0 0
        %2316 = vmatmul.mubr.bf16.gmra.mrb[0].mxu0 %v2275
        %v2317 = vpop.f32.mrb[0].mxu0
        %v2318 = vadd.f32 0.0, %v2317
        %v2319 = vpop.f32.mrb[0].mxu0
        %v2320 = vpop.f32.mrb[0].mxu0
        %v2321 = vadd.f32 0.0, %v2320
        %v2322 = vpop.f32.mrb[0].mxu0
        %2323 = vmatprep.mubr.bf16.mxu0 0
        %2324 = vmatmul.mubr.bf16.gmra.mrb[0].mxu0 %v2278
        %v2325 = vpop.f32.mrb[0].mxu0
        %v2326 = vadd.f32 0.0, %v2325
        %v2327 = vpop.f32.mrb[0].mxu0
        %v2328 = vpop.f32.mrb[0].mxu0
        %v2329 = vadd.f32 0.0, %v2328
        %v2330 = vpop.f32.mrb[0].mxu0
        %2331 = vdwg.mxu0
        %v2332 = vadd.f32 %v2223, %v2318
        %v2333 = vadd.f32 %v2226, %v2321
        %v2334 = vadd.f32 %v2231, %v2326
        %v2335 = vadd.f32 %v2234, %v2329
        %v2336 = vld [vmem:[%s4] sm:$0x1]
        %v2338 = vlaneseq
        %v2339 = vshrl.u32 %v2338, 7
        %v2340 = vsub.s32 0, %v2339
        %v2341 = vrot.slane %v2336, %v2340
        %v2343 = vadd.f32 %v2332, %v2341
        %v2344 = vadd.f32 %v2333, %v2341
        %v2345 = vadd.f32 %v2334, %v2341
        %v2346 = vadd.f32 %v2335, %v2341
        %v2347 = vmax.f32 %v2343, 0.0
        %v2348 = vmax.f32 %v2344, 0.0
        %v2349 = vmax.f32 %v2345, 0.0
        %v2350 = vmax.f32 %v2346, 0.0
        %v2351 = vld [vmem:[#allocation2] sm:$0xc]
        %v2352 = vld [vmem:[#allocation2 + $0x4] sm:$0xf]
        %v2353 = vld [vmem:[#allocation2 + $0x8] sm:$0x3]
        %v2354 = vld [vmem:[#allocation2 + $0xc] sm:$0xc]
        %v2355 = vld [vmem:[#allocation2 + $0x10] sm:$0xf]
        %v2356 = vld [vmem:[#allocation2 + $0x14] sm:$0x3]
        %v2357 = vld [vmem:[%s5] sm:$0x3]
        %v2358 = vld [vmem:[%s6] sm:$0x1]
        %v2360 = vlaneseq
        %v2361 = vshrl.u32 %v2360, 7
        %v2362 = vsub.s32 0, %v2361
        %v2363 = vrot.slane %v2358, %v2362
        %v2371 = vrot.slane %v2351, 6
        %v2372 = vrot.slane %v2371, 4
        %v2373 = vrot.slane %v2352, 6
        %v2374 = vsel %vm378, %v2372, %v2373
        %v2375 = vrot.slane %v2373, 4
        %v2376 = vrot.slane %v2353, 6
        %v2377 = vsel %vm378, %v2375, %v2376
        %v2378 = vrot.slane %v2354, 6
        %v2379 = vrot.slane %v2378, 4
        %v2380 = vrot.slane %v2355, 6
        %v2381 = vsel %vm378, %v2379, %v2380
        %v2382 = vrot.slane %v2380, 4
        %v2383 = vrot.slane %v2356, 6
        %v2384 = vsel %vm378, %v2382, %v2383
        %v2385 = vunpack.c.l.b16 %v2374
        %v2386 = vunpack.c.l.b16 %v2377
        %v2387 = vunpack.c.l.b16 %v2381
        %v2388 = vunpack.c.l.b16 %v2384
        %v2389 = vpack.c.b16 %v2386, %v2385
        %v2390 = vpack.c.b16 %v2388, %v2387
        %v2392 = vsel %vm843, %v2389, 0
        %v2395 = vsel %vm843, %v2390, 0
        %v2398 = vsel %vm853, %v2357, 0
        %2400 = vmatprep.subr.bf16.mxu0 0
        %2401 = vmatpush1.bf16.msra.mxu0 %v2398
        %2402 = vmatprep.subr.bf16.mxu0 0
        %2403 = vmatpush1.bf16.msra.mxu0 0
        %2404 = vmatprep.subr.bf16.mxu0 0
        %2405 = vmatpush1.bf16.msra.mxu0 0
        %2406 = vmatprep.subr.bf16.mxu0 0
        %2407 = vmatpush1.bf16.msra.mxu0 0
        %2408 = vmatprep.subr.bf16.mxu0 0
        %2409 = vmatpush1.bf16.msra.mxu0 0
        %2410 = vmatprep.subr.bf16.mxu0 0
        %2411 = vmatpush1.bf16.msra.mxu0 0
        %2412 = vmatprep.subr.bf16.mxu0 0
        %2413 = vmatpush1.bf16.msra.mxu0 0
        %2414 = vmatprep.subr.bf16.mxu0 0
        %2415 = vmatpush1.bf16.msra.mxu0 0
        %2416 = vmatprep.subr.bf16.mxu0 0
        %2417 = vmatpush1.bf16.msra.mxu0 0
        %2418 = vmatprep.subr.bf16.mxu0 0
        %2419 = vmatpush1.bf16.msra.mxu0 0
        %2420 = vmatprep.subr.bf16.mxu0 0
        %2421 = vmatpush1.bf16.msra.mxu0 0
        %2422 = vmatprep.subr.bf16.mxu0 0
        %2423 = vmatpush1.bf16.msra.mxu0 0
        %2424 = vmatprep.subr.bf16.mxu0 0
        %2425 = vmatpush1.bf16.msra.mxu0 0
        %2426 = vmatprep.subr.bf16.mxu0 0
        %2427 = vmatpush1.bf16.msra.mxu0 0
        %2428 = vmatprep.subr.bf16.mxu0 0
        %2429 = vmatpush1.bf16.msra.mxu0 0
        %2430 = vmatprep.subr.bf16.mxu0 0
        %2431 = vmatpush1.bf16.msra.mxu0 0
        %2432 = vmatprep.mubr.bf16.mxu0 0
        %2433 = vmatmul.mubr.bf16.gmra.mrb[0].mxu0 %v2392
        %v2434 = vpop.f32.mrb[0].mxu0
        %v2435 = vadd.f32 %v2363, %v2434
        %v2436 = vpop.f32.mrb[0].mxu0
        %v2437 = vpop.f32.mrb[0].mxu0
        %v2438 = vadd.f32 %v2363, %v2437
        %v2439 = vpop.f32.mrb[0].mxu0
        %2440 = vmatprep.mubr.bf16.mxu0 0
        %2441 = vmatmul.mubr.bf16.gmra.mrb[0].mxu0 %v2395
        %v2442 = vpop.f32.mrb[0].mxu0
        %v2443 = vadd.f32 %v2363, %v2442
        %v2444 = vpop.f32.mrb[0].mxu0
        %v2445 = vpop.f32.mrb[0].mxu0
        %v2446 = vadd.f32 %v2363, %v2445
        %v2447 = vpop.f32.mrb[0].mxu0
        %2448 = vdwg.mxu0
        %v2449 = vadd.f32 %v2347, %v2435
        %v2450 = vadd.f32 %v2348, %v2438
        %v2451 = vadd.f32 %v2349, %v2443
        %v2452 = vadd.f32 %v2350, %v2446
        %v2453 = vmax.f32 %v2449, 0.0
        %v2454 = vmax.f32 %v2450, 0.0
        %v2455 = vmax.f32 %v2451, 0.0
        %v2456 = vmax.f32 %v2452, 0.0
        %2457 = vst.msk [vmem:[%s338] sm:$0xff] %vm2109, %v2453
        %2458 = vst.msk [vmem:[%s338 + $0x8] sm:$0xff] %vm2109, %v2454
        %2459 = vst.msk [vmem:[%s338 + $0x10] sm:$0xff] %vm2109, %v2455
        %2460 = vst.msk [vmem:[%s338 + $0x18] sm:$0xff] %vm2109, %v2456
        %s2461 = sand.u32 %s194, 1
        %s2462 = sand.u32 %s194, 1
        %s2463 = smul.addr %s2462, 32
        %s2464 = scalar_lea.vmem [#allocation6], %s2463
        // Predicated region
        $region99: #{temporal_conv_net.4} parent=81 // pred_check
          %p2465 = pneg %p204
        $region100: #{temporal_conv_net.4} parent=81 // pred_check_branch
          %2467 = sbr.rel (%p2465) target = $region102
        $region101: #{temporal_conv_net.4} parent=81 // pred_region
          %s2468 = smul.u32 2, %s22
          %s2469 = smul.u32 2, %s23
          %s2470 = smul.addr %s2468, 8
          %s2471 = sadd.s32 %s2469, %s2470
          %s2472 = smul.addr %s2471, 8
          %s2473 = scalar_lea.vmem %s7, %s2472
          // Predicated region
          $region103: #{temporal_conv_net.4} parent=101 // pred_check
            _
          $region104: #{temporal_conv_net.4} parent=101 // pred_check_branch
            %2475 = sbr.rel (0) target = $region106
          $region105: #{temporal_conv_net.4} parent=101 // pred_region
            // Predicated region
            $region107: #{temporal_conv_net.4} parent=105 // pred_check
              _
            $region108: #{temporal_conv_net.4} parent=105 // pred_check_branch
              %2477 = sbr.rel (0) target = $region110
            $region109: #{temporal_conv_net.4} parent=105 // pred_region
              // Predicated region
              $region122: #{temporal_conv_net.4} parent=109 // pred_check
                _
              $region123: #{temporal_conv_net.4} parent=109 // pred_check_branch
                %2498 = sbr.rel (0) target = $region125
              $region124: #{temporal_conv_net.4} parent=109 // pred_region
                loop: start=0, step=1, limit=1
                $region126: #{temporal_conv_net.4} parent=124 // loop_pre_header
                  _
                $region127: #{temporal_conv_net.4} parent=124 // loop_header
                  %s2500 = sphi 0, %s2504
                  %p2501 = scmp.ge.s32.totalorder %s2500, 1
                  %s2505 = sphi %s2464, %s2464
                  %s2506 = sphi %s2473, %s2473
                $region128: #{temporal_conv_net.4} parent=124 // loop_header_branch
                  %2503 = sbr.rel (%p2501) target = $region132
                $region129: #{temporal_conv_net.4} parent=124 // loop_body
                  %v2507 = vld [vmem:[%s2505] sm:$0xff]
                  %2508 = vst [vmem:[%s2506] sm:$0xff] %v2507
                  %v2509 = vld [vmem:[%s2505 + $0x8] sm:$0xff]
                  %2510 = vst [vmem:[%s2506 + $0x8] sm:$0xff] %v2509
                  %v2511 = vld [vmem:[%s2505 + $0x10] sm:$0xff]
                  %2512 = vst [vmem:[%s2506 + $0x40] sm:$0xff] %v2511
                  %v2513 = vld [vmem:[%s2505 + $0x18] sm:$0xff]
                  %2514 = vst [vmem:[%s2506 + $0x48] sm:$0xff] %v2513
                $region130: #{temporal_conv_net.4} parent=124 // loop_footer
                  %s2504 = sadd.s32 1, %s2500
                $region131: #{temporal_conv_net.4} parent=124 // loop_footer_branch
                  %2499 = sbr.rel target = $region127
                $region132: #{temporal_conv_net.4} parent=124 // loop_exit
                  _
              $region125: #{temporal_conv_net.4} parent=109 // pred_fallthru
                _
              // Predicated region
              $region133: #{temporal_conv_net.4} parent=109 // pred_check
                _
              $region134: #{temporal_conv_net.4} parent=109 // pred_check_branch
                %2516 = sbr.rel target = $region136
              $region135: #{temporal_conv_net.4} parent=109 // pred_region
                _
              $region136: #{temporal_conv_net.4} parent=109 // pred_fallthru
                _
            $region110: #{temporal_conv_net.4} parent=105 // pred_fallthru
              _
            // Predicated region
            $region111: #{temporal_conv_net.4} parent=105 // pred_check
              _
            $region112: #{temporal_conv_net.4} parent=105 // pred_check_branch
              %2479 = sbr.rel target = $region114
            $region113: #{temporal_conv_net.4} parent=105 // pred_region
              loop: start=0, step=1, limit=1
              $region115: #{temporal_conv_net.4} parent=113 // loop_pre_header
                _
              $region116: #{temporal_conv_net.4} parent=113 // loop_header
                %s2482 = sphi 0, %s2486
                %p2483 = scmp.ge.s32.totalorder %s2482, 1
                %s2487 = sphi %s2464, %s2464
                %s2488 = sphi %s2473, %s2473
              $region117: #{temporal_conv_net.4} parent=113 // loop_header_branch
                %2485 = sbr.rel (%p2483) target = $region121
              $region118: #{temporal_conv_net.4} parent=113 // loop_body
                %v2489 = vld [vmem:[%s2487] sm:$0xff]
                %2490 = vst [vmem:[%s2488] sm:$0xff] %v2489
                %v2491 = vld [vmem:[%s2487 + $0x8] sm:$0xff]
                %2492 = vst [vmem:[%s2488 + $0x8] sm:$0xff] %v2491
                %v2493 = vld [vmem:[%s2487 + $0x10] sm:$0xff]
                %2494 = vst [vmem:[%s2488 + $0x40] sm:$0xff] %v2493
                %v2495 = vld [vmem:[%s2487 + $0x18] sm:$0xff]
                %2496 = vst [vmem:[%s2488 + $0x48] sm:$0xff] %v2495
              $region119: #{temporal_conv_net.4} parent=113 // loop_footer
                %s2486 = sadd.s32 1, %s2482
              $region120: #{temporal_conv_net.4} parent=113 // loop_footer_branch
                %2481 = sbr.rel target = $region116
              $region121: #{temporal_conv_net.4} parent=113 // loop_exit
                _
            $region114: #{temporal_conv_net.4} parent=105 // pred_fallthru
              _
          $region106: #{temporal_conv_net.4} parent=101 // pred_fallthru
            _
          %2517 = vnop
        $region102: #{temporal_conv_net.4} parent=81 // pred_fallthru
          _
      $region82: #{temporal_conv_net.4} parent=5 // pred_fallthru
        _
      %p2518 = scmp.le.s32.totalorder 2, %s13
      // Predicated region
      $region137: #{temporal_conv_net.4} parent=5 // pred_check
        %p2519 = pneg %p2518
      $region138: #{temporal_conv_net.4} parent=5 // pred_check_branch
        %2521 = sbr.rel (%p2519) target = $region140
      $region139: #{temporal_conv_net.4} parent=5 // pred_region
        %s2522 = ssub.s32 %s13, 2
        // Predicated region
        $region141: #{temporal_conv_net.4} parent=139 // pred_check
          %p2523 = pneg %p210
        $region142: #{temporal_conv_net.4} parent=139 // pred_check_branch
          %2525 = sbr.rel (%p2523) target = $region144
        $region143: #{temporal_conv_net.4} parent=139 // pred_region
          %s2526 = sand.u32 %s195, 1
          %s2527 = sand.u32 %s195, 1
          %s2528 = smul.addr %s2527, 32
          %s2529 = scalar_lea.vmem [#allocation6], %s2528
        $region144: #{temporal_conv_net.4} parent=139 // pred_fallthru
          _
      $region140: #{temporal_conv_net.4} parent=5 // pred_fallthru
        _
    $region6: #{temporal_conv_net.4} parent=1 // loop_footer
      %s17 = sadd.s32 1, %s13
    $region7: #{temporal_conv_net.4} parent=1 // loop_footer_branch
      %12 = sbr.rel target = $region3
    $region8: #{temporal_conv_net.4} parent=1 // loop_exit
      _

</llo_original>
